<compile_context>
chip_gen: v5e
topology: v5e:2x2
jax: 0.10.0
libtpu: 0.0.40
codegen_flags: <defaults>
</compile_context>

<pallas_src>
import functools

import jax
import jax.numpy as jnp
from jax import lax
from jax.experimental import pallas as pl
from jax.experimental.pallas import tpu as pltpu

ACT_DTYPE = jnp.bfloat16   # inter-kernel activations
WGT_DTYPE = jnp.bfloat16   # matmul weights


def _derive_vmem_limit():
    """Per-generation VMEM limit with headroom for Mosaic internal scratch."""
    cap = None
    try:
        cap = getattr(pltpu.get_tpu_info(), "vmem_capacity_bytes", None)
    except Exception:
        cap = None
    if not cap:
        cap = 64 * 1024 * 1024  # conservative fallback (v7x-sized)
    # ~75% of physical, never above 100 MiB.
    return min((cap * 3) // 4, 100 * 1024 * 1024)


_VMEM_LIMIT = _derive_vmem_limit()


def _tile(dim, target, aligns):
    """Largest tile <= target dividing dim, preferring coarser alignment."""
    if dim <= target:
        return dim
    for align in aligns:
        t = (target // align) * align
        while t >= align:
            if dim % t == 0:
                return t
            t -= align
    return dim


def _act(y, activation):
    if activation == "relu":
        return jnp.maximum(y, 0.0)
    if activation == "gelu":
        # TODO(synk): DistilBERT uses exact erf-GELU; tanh approximation here.
        c = 0.7978845608028654
        return 0.5 * y * (1.0 + jnp.tanh(c * (y + 0.044715 * y * y * y)))
    return y


# ----------------------------------------------------------------------------
# Tiled linear (x @ w + b, optional fused activation) — bf16 MXU, f32 acc
# ----------------------------------------------------------------------------
def _matmul_kernel(x_ref, w_ref, b_ref, o_ref, acc_ref, *, activation):
    @pl.when(pl.program_id(2) == 0)
    def _():
        acc_ref[...] = jnp.zeros_like(acc_ref)

    acc_ref[...] += jnp.dot(x_ref[...].astype(jnp.bfloat16),
                            w_ref[...].astype(jnp.bfloat16),
                            preferred_element_type=jnp.float32)

    @pl.when(pl.program_id(2) == pl.num_programs(2) - 1)
    def _():
        y = acc_ref[...] + b_ref[...]
        o_ref[...] = _act(y, activation).astype(o_ref.dtype)


def linear(x, w, b, activation=None):
    """out = x @ w + b  (w stored as (in, out)); fused optional activation."""
    M, K = x.shape
    N = w.shape[1]
    tm = _tile(M, 1024, (8,))
    tn = _tile(N, 768, (256, 128))
    tk = _tile(K, 768, (256, 128))
    return pl.pallas_call(
        functools.partial(_matmul_kernel, activation=activation),
        grid=(M // tm, N // tn, K // tk),
        out_shape=jax.ShapeDtypeStruct((M, N), ACT_DTYPE),
        in_specs=[
            pl.BlockSpec((tm, tk), lambda i, j, k: (i, k)),
            pl.BlockSpec((tk, tn), lambda i, j, k: (k, j)),
            pl.BlockSpec((1, tn), lambda i, j, k: (0, j)),
        ],
        out_specs=pl.BlockSpec((tm, tn), lambda i, j, k: (i, j)),
        scratch_shapes=[pltpu.VMEM((tm, tn), jnp.float32)],
        compiler_params=pltpu.CompilerParams(
            dimension_semantics=("parallel", "parallel", "arbitrary"),
            vmem_limit_bytes=_VMEM_LIMIT),
    )(x, w, b.reshape(1, N))


# ----------------------------------------------------------------------------
# Fused FFN: out = act(x @ w1 + b1) @ w2 + b2
# F-tiled (arbitrary axis) so only (H, tf)/(tf, H) weight slices and a
# (tm, tf) intermediate are live at any step (v7x VMEM safe).
# ----------------------------------------------------------------------------
def _ffn_kernel(x_ref, w1_ref, b1_ref, w2_ref, b2_ref, o_ref, acc_ref, *,
                activation):
    @pl.when(pl.program_id(1) == 0)
    def _():
        acc_ref[...] = jnp.zeros_like(acc_ref)

    h = jnp.dot(x_ref[...].astype(jnp.bfloat16),
                w1_ref[...].astype(jnp.bfloat16),
                preferred_element_type=jnp.float32) + b1_ref[...]
    h = _act(h, activation)
    acc_ref[...] += jnp.dot(h.astype(jnp.bfloat16),
                            w2_ref[...].astype(jnp.bfloat16),
                            preferred_element_type=jnp.float32)

    @pl.when(pl.program_id(1) == pl.num_programs(1) - 1)
    def _():
        o_ref[...] = (acc_ref[...] + b2_ref[...]).astype(o_ref.dtype)


def ffn(x, w1, b1, w2, b2, activation):
    M, H = x.shape
    F = w1.shape[1]
    tm = _tile(M, 512, (8,))
    tf = _tile(F, 512, (256, 128))
    return pl.pallas_call(
        functools.partial(_ffn_kernel, activation=activation),
        grid=(M // tm, F // tf),
        out_shape=jax.ShapeDtypeStruct((M, H), ACT_DTYPE),
        in_specs=[
            pl.BlockSpec((tm, H), lambda i, f: (i, 0)),
            pl.BlockSpec((H, tf), lambda i, f: (0, f)),
            pl.BlockSpec((1, tf), lambda i, f: (0, f)),
            pl.BlockSpec((tf, H), lambda i, f: (f, 0)),
            pl.BlockSpec((1, H), lambda i, f: (0, 0)),
        ],
        out_specs=pl.BlockSpec((tm, H), lambda i, f: (i, 0)),
        scratch_shapes=[pltpu.VMEM((tm, H), jnp.float32)],
        compiler_params=pltpu.CompilerParams(
            dimension_semantics=("parallel", "arbitrary"),
            vmem_limit_bytes=_VMEM_LIMIT),
    )(x, w1, b1.reshape(1, F), w2, b2.reshape(1, H))


# ----------------------------------------------------------------------------
# Row-tiled LayerNorm (f32 statistics) with optional fused residual add
# ----------------------------------------------------------------------------
def _layernorm_kernel(x_ref, g_ref, b_ref, o_ref, *, eps):
    x = x_ref[...].astype(jnp.float32)
    mean = jnp.mean(x, axis=-1, keepdims=True)
    xc = x - mean
    var = jnp.mean(xc * xc, axis=-1, keepdims=True)
    o_ref[...] = (xc * lax.rsqrt(var + eps) * g_ref[...] + b_ref[...]).astype(
        o_ref.dtype)


def _layernorm_res_kernel(x_ref, r_ref, g_ref, b_ref, o_ref, *, eps):
    x = x_ref[...].astype(jnp.float32) + r_ref[...].astype(jnp.float32)
    mean = jnp.mean(x, axis=-1, keepdims=True)
    xc = x - mean
    var = jnp.mean(xc * xc, axis=-1, keepdims=True)
    o_ref[...] = (xc * lax.rsqrt(var + eps) * g_ref[...] + b_ref[...]).astype(
        o_ref.dtype)


def layer_norm(x, gamma, beta, eps, residual=None):
    M, D = x.shape
    tm = _tile(M, 1024, (8,))
    row_spec = pl.BlockSpec((tm, D), lambda i: (i, 0))
    vec_spec = pl.BlockSpec((1, D), lambda i: (0, 0))
    cp = pltpu.CompilerParams(dimension_semantics=("parallel",),
                              vmem_limit_bytes=_VMEM_LIMIT)
    if residual is None:
        return pl.pallas_call(
            functools.partial(_layernorm_kernel, eps=eps),
            grid=(M // tm,),
            out_shape=jax.ShapeDtypeStruct((M, D), ACT_DTYPE),
            in_specs=[row_spec, vec_spec, vec_spec],
            out_specs=row_spec,
            compiler_params=cp,
        )(x, gamma.reshape(1, D), beta.reshape(1, D))
    return pl.pallas_call(
        functools.partial(_layernorm_res_kernel, eps=eps),
        grid=(M // tm,),
        out_shape=jax.ShapeDtypeStruct((M, D), ACT_DTYPE),
        in_specs=[row_spec, row_spec, vec_spec, vec_spec],
        out_specs=row_spec,
        compiler_params=cp,
    )(x, residual, gamma.reshape(1, D), beta.reshape(1, D))


# ----------------------------------------------------------------------------
# Multi-head attention: grid over batch, all heads per step, (B, S, H) layout.
# 1/sqrt(d) already folded into the Q projection.  Head outputs are stored
# directly into o_ref (no concatenate).
# ----------------------------------------------------------------------------
def _attention_kernel(qkv_ref, bias_ref, o_ref, *, n_heads, q_rows):
    qkv = qkv_ref[0]          # (S, 3H) bf16
    bias = bias_ref[0]        # (1, S) f32 additive bias over keys
    H3 = qkv.shape[1]
    H = H3 // 3
    d = H // n_heads
    # TODO(synk): with production d=64, pack wqkv head-pair-major so every
    # q/k/v slice is 128-lane aligned (removes per-head lane relayouts).
    for h in range(n_heads):                       # static unroll over heads
        q = qkv[:q_rows, h * d:(h + 1) * d]        # (q_rows, d)
        k = qkv[:, H + h * d:H + (h + 1) * d]      # (S, d)
        v = qkv[:, 2 * H + h * d:2 * H + (h + 1) * d]
        # QK^T without a physical transpose: contract the last dims directly.
        s = lax.dot_general(q, k, (((1,), (1,)), ((), ())),
                            preferred_element_type=jnp.float32) + bias
        m = jnp.max(s, axis=-1, keepdims=True)
        p = jnp.exp(s - m)                          # f32 exp (EUP)
        inv = pl.reciprocal(jnp.sum(p, axis=-1, keepdims=True), approx=True)
        p = (p * inv).astype(v.dtype)               # bf16 P@V on the MXU
        o_ref[0, :, h * d:(h + 1) * d] = jnp.dot(
            p, v, preferred_element_type=jnp.float32).astype(o_ref.dtype)


def attention(qkv, bias, n_heads, q_rows=None):
    """qkv: (B, S, 3H) fused projections; bias: (B, 1, S) additive key bias.
    q_rows=1 computes only the CLS-query row."""
    B, S, H3 = qkv.shape
    H = H3 // 3
    if q_rows is None:
        q_rows = S
    return pl.pallas_call(
        functools.partial(_attention_kernel, n_heads=n_heads, q_rows=q_rows),
        grid=(B,),
        out_shape=jax.ShapeDtypeStruct((B, q_rows, H), ACT_DTYPE),
        in_specs=[
            pl.BlockSpec((1, S, H3), lambda i: (i, 0, 0)),
            pl.BlockSpec((1, 1, S), lambda i: (i, 0, 0)),
        ],
        out_specs=pl.BlockSpec((1, q_rows, H), lambda i: (i, 0, 0)),
        compiler_params=pltpu.CompilerParams(
            dimension_semantics=("parallel",),
            vmem_limit_bytes=_VMEM_LIMIT),
    )(qkv, bias)


def multi_head_attention(x, bias, p, n_heads, cls_only=False):
    """x: (B, S, H); bias: (B, 1, S).  Returns (B, S, H) or (B, 1, H)."""
    B, S, H = x.shape
    qkv = linear(x.reshape(B * S, H), p["wqkv"], p["bqkv"]).reshape(B, S, 3 * H)
    q_rows = 1 if cls_only else S
    o = attention(qkv, bias, n_heads, q_rows=q_rows)       # (B, q_rows, H)
    o = linear(o.reshape(B * q_rows, H), p["wo"], p["bo"])
    return o.reshape(B, q_rows, H)


# ----------------------------------------------------------------------------
# Model glue (reshapes / parameter plumbing stay in plain JAX)
# ----------------------------------------------------------------------------
def turn_encoder_forward(input_ids, attention_mask, p, cfg):
    """DistilBERT-style encoder (post-LN, GELU FFN).  Returns CLS rows (Bt, H)."""
    Bt, S = input_ids.shape
    H = cfg["hidden"]
    pos = jnp.arange(S)
    # Embedding gather stays in XLA (data-dependent gather).
    emb = p["word_emb"][input_ids] + p["pos_emb"][pos][None, :, :]
    x = layer_norm(emb.reshape(Bt * S, H), p["emb_ln_g"], p["emb_ln_b"],
                   1e-12).reshape(Bt, S, H)
    # mask==0 -> -1e9 additive bias on the key axis
    bias = (attention_mask.astype(jnp.float32) - 1.0)[:, None, :] * 1e9

    for layer in p["layers"][:-1]:
        attn = multi_head_attention(x, bias, layer["attn"], cfg["n_heads"])
        x2 = layer_norm(attn.reshape(Bt * S, H),
                        layer["sa_ln_g"], layer["sa_ln_b"], 1e-12,
                        residual=x.reshape(Bt * S, H))
        h = ffn(x2, layer["w1"], layer["b1"], layer["w2"], layer["b2"],
                activation="gelu")
        x = layer_norm(h, layer["out_ln_g"], layer["out_ln_b"], 1e-12,
                       residual=x2).reshape(Bt, S, H)

    # Final layer: only the CLS row is consumed downstream -> compute
    # attention for the CLS query only and run out-proj/FFN/LN on (Bt, H).
    layer = p["layers"][-1]
    attn = multi_head_attention(x, bias, layer["attn"], cfg["n_heads"],
                                cls_only=True)              # (Bt, 1, H)
    cls_res = x[:, 0, :]                                     # (Bt, H)
    x2 = layer_norm(attn.reshape(Bt, H), layer["sa_ln_g"], layer["sa_ln_b"],
                    1e-12, residual=cls_res)
    h = ffn(x2, layer["w1"], layer["b1"], layer["w2"], layer["b2"],
            activation="gelu")
    cls = layer_norm(h, layer["out_ln_g"], layer["out_ln_b"], 1e-12,
                     residual=x2)
    return cls                                               # (Bt, H)


def dialogue_layer_forward(x, layer, n_heads, eps=1e-5):
    """PyTorch nn.TransformerEncoderLayer defaults: post-LN, ReLU FFN.
    Kept in (B, T, H) layout (attention over T == permute(1,0,2) semantics)."""
    B, T, H = x.shape
    zero_bias = jnp.zeros((B, 1, T), jnp.float32)
    attn = multi_head_attention(x, zero_bias, layer["attn"], n_heads)
    x1 = layer_norm(attn.reshape(B * T, H), layer["ln1_g"], layer["ln1_b"], eps,
                    residual=x.reshape(B * T, H))
    h = ffn(x1, layer["w1"], layer["b1"], layer["w2"], layer["b2"],
            activation="relu")
    x2 = layer_norm(h, layer["ln2_g"], layer["ln2_b"], eps, residual=x1)
    return x2.reshape(B, T, H)


def hierarchical_interview_scorer(input_ids, attention_mask, params, cfg):
    B, T, S = input_ids.shape
    H = cfg["hidden"]
    ids = input_ids.reshape(B * T, S)
    mask = attention_mask.reshape(B * T, S)
    turn_emb = turn_encoder_forward(ids, mask, params["turn_encoder"],
                                    cfg).reshape(B, T, H)    # CLS pooling
    x = turn_emb                                             # (B, T, H)
    for layer in params["dialogue"]:
        x = dialogue_layer_forward(x, layer, cfg["dlg_heads"])
    # Mean over turns == mean(dim=0) in (T, B, H).  Shapes are tiny (B, T, H);
    # Pallas launch overhead would dominate, so leave it to XLA (perf review).
    rep = jnp.mean(x.astype(jnp.float32), axis=1)            # (B, H)
    h = linear(rep, params["cls_w1"], params["cls_b1"], activation="relu")
    # dropout is identity in eval mode; 3-wide projection left to XLA
    # (3 output lanes would force masked partial stores in a Pallas kernel).
    scores = jnp.dot(h.astype(jnp.float32), params["cls_w2"]) + params["cls_b2"]
    return scores


# ----------------------------------------------------------------------------
# Deterministic synthetic parameters (bf16 matmul weights, f32 biases/LN)
# ----------------------------------------------------------------------------
def init_params(cfg, seed=42):
    keys = iter(jax.random.split(jax.random.PRNGKey(seed), 512))
    H, F = cfg["hidden"], cfg["ffn"]

    def W(i, o):
        return (jax.random.normal(next(keys), (i, o)) * 0.02).astype(jnp.float32)

    def b(o):
        return jnp.zeros((o,), jnp.float32)

    def attn_params(n_heads):
        d = H // n_heads
        scale = 1.0 / (d ** 0.5)
        wqkv = W(H, 3 * H)
        bqkv = b(3 * H)
        # Fold the 1/sqrt(d) attention scale into the Q projection (w + b).
        wqkv = wqkv.at[:, :H].multiply(scale)
        bqkv = bqkv.at[:H].multiply(scale)
        return dict(wqkv=wqkv.astype(WGT_DTYPE), bqkv=bqkv,
                    wo=W(H, H).astype(WGT_DTYPE), bo=b(H))

    turn_layers = []
    for _ in range(cfg["n_layers"]):
        turn_layers.append(dict(
            attn=attn_params(cfg["n_heads"]),
            sa_ln_g=jnp.ones((H,), jnp.float32), sa_ln_b=jnp.zeros((H,), jnp.float32),
            w1=W(H, F).astype(WGT_DTYPE), b1=b(F),
            w2=W(F, H).astype(WGT_DTYPE), b2=b(H),
            out_ln_g=jnp.ones((H,), jnp.float32), out_ln_b=jnp.zeros((H,), jnp.float32),
        ))
    turn = dict(
        word_emb=(jax.random.normal(next(keys), (cfg["vocab"], H)) * 0.02).astype(jnp.float32),
        pos_emb=(jax.random.normal(next(keys), (cfg["max_pos"], H)) * 0.02).astype(jnp.float32),
        emb_ln_g=jnp.ones((H,), jnp.float32), emb_ln_b=jnp.zeros((H,), jnp.float32),
        layers=turn_layers,
    )
    dlg_layers = []
    for _ in range(cfg["dlg_layers"]):
        dlg_layers.append(dict(
            attn=attn_params(cfg["dlg_heads"]),
            ln1_g=jnp.ones((H,), jnp.float32), ln1_b=jnp.zeros((H,), jnp.float32),
            w1=W(H, cfg["dlg_ffn"]).astype(WGT_DTYPE), b1=b(cfg["dlg_ffn"]),
            w2=W(cfg["dlg_ffn"], H).astype(WGT_DTYPE), b2=b(H),
            ln2_g=jnp.ones((H,), jnp.float32), ln2_b=jnp.zeros((H,), jnp.float32),
        ))
    return dict(
        turn_encoder=turn,
        dialogue=dlg_layers,
        cls_w1=W(H, cfg["cls_hidden"]).astype(WGT_DTYPE), cls_b1=b(cfg["cls_hidden"]),
        cls_w2=W(cfg["cls_hidden"], 3), cls_b2=b(3),
    )


# ----------------------------------------------------------------------------
if __name__ == "__main__":
    # Scaled-down config (module defaults hidden=768, 12-layer DistilBERT,
    # ffn=3072/2048, classifier 768->256->3).  Structure is identical.
    cfg = dict(hidden=64, n_heads=4, n_layers=2, ffn=128,
               vocab=64, max_pos=16,
               dlg_heads=8, dlg_layers=2, dlg_ffn=128,
               cls_hidden=32)
    B, T, S = 2, 4, 8

    key = jax.random.PRNGKey(0)
    k_ids, _ = jax.random.split(key)
    input_ids = jax.random.randint(k_ids, (B, T, S), 0, cfg["vocab"], dtype=jnp.int32)
    attention_mask = jnp.ones((B, T, S), jnp.int32)
    # pad the last 2 tokens of every other turn to exercise the attention mask
    attention_mask = attention_mask.at[:, 1::2, -2:].set(0)

    params = init_params(cfg, seed=42)

    fwd = jax.jit(functools.partial(hierarchical_interview_scorer, cfg=cfg))
    scores = fwd(input_ids, attention_mask, params)
    jax.block_until_ready(scores)

    assert scores.shape == (B, 3), scores.shape
    assert scores.dtype == jnp.float32
    print("KERNEL_OK")
</pallas_src>

<mosaic_0001>
module attributes {stable_mosaic.version = 11 : i64} {
  func.func @_layernorm_kernel(%arg0: i32, %arg1: memref<64x64xf32, #tpu.memory_space<vmem>>, %arg2: memref<1x64xf32, #tpu.memory_space<vmem>>, %arg3: memref<1x64xf32, #tpu.memory_space<vmem>>, %arg4: memref<64x64xbf16, #tpu.memory_space<vmem>>) attributes {dimension_semantics = [#tpu.dimension_semantics<parallel>], iteration_bounds = array<i64: 1>, scalar_prefetch = 0 : i64, scratch_operands = 0 : i64, tpu.core_type = #tpu.core_type<tc>, window_params = [{transform_indices = @transform_0, window_bounds = array<i64: 64, 64>}, {pipeline_mode = #tpu.pipeline_mode<synchronous>, transform_indices = @transform_1, window_bounds = array<i64: 1, 64>}, {pipeline_mode = #tpu.pipeline_mode<synchronous>, transform_indices = @transform_2, window_bounds = array<i64: 1, 64>}, {transform_indices = @transform_3, window_bounds = array<i64: 64, 64>}]} {
    %c0 = arith.constant 0 : index
    %c0_0 = arith.constant 0 : index
    %0 = vector.load %arg1[%c0, %c0_0] : memref<64x64xf32, #tpu.memory_space<vmem>>, vector<64x64xf32>
    %cst = arith.constant dense<0.000000e+00> : vector<64xf32>
    %1 = vector.multi_reduction <add>, %0, %cst [1] : vector<64x64xf32> to vector<64xf32>
    %2 = vector.shape_cast %1 : vector<64xf32> to vector<64x1xf32>
    %cst_1 = arith.constant 6.400000e+01 : f32
    %3 = vector.broadcast %cst_1 : f32 to vector<64x1xf32>
    %4 = arith.divf %2, %3 : vector<64x1xf32>
    %5 = vector.broadcast %4 : vector<64x1xf32> to vector<64x64xf32>
    %6 = arith.subf %0, %5 : vector<64x64xf32>
    %7 = arith.mulf %6, %6 : vector<64x64xf32>
    %cst_2 = arith.constant dense<0.000000e+00> : vector<64xf32>
    %8 = vector.multi_reduction <add>, %7, %cst_2 [1] : vector<64x64xf32> to vector<64xf32>
    %9 = vector.shape_cast %8 : vector<64xf32> to vector<64x1xf32>
    %cst_3 = arith.constant 6.400000e+01 : f32
    %10 = vector.broadcast %cst_3 : f32 to vector<64x1xf32>
    %11 = arith.divf %9, %10 : vector<64x1xf32>
    %cst_4 = arith.constant 9.99999996E-13 : f32
    %12 = vector.broadcast %cst_4 : f32 to vector<64x1xf32>
    %13 = arith.addf %11, %12 : vector<64x1xf32>
    %14 = math.rsqrt %13 : vector<64x1xf32>
    %15 = vector.broadcast %14 : vector<64x1xf32> to vector<64x64xf32>
    %16 = arith.mulf %6, %15 : vector<64x64xf32>
    %c0_5 = arith.constant 0 : index
    %c0_6 = arith.constant 0 : index
    %17 = vector.load %arg2[%c0_5, %c0_6] : memref<1x64xf32, #tpu.memory_space<vmem>>, vector<1x64xf32>
    %18 = vector.broadcast %17 : vector<1x64xf32> to vector<64x64xf32>
    %19 = arith.mulf %16, %18 : vector<64x64xf32>
    %c0_7 = arith.constant 0 : index
    %c0_8 = arith.constant 0 : index
    %20 = vector.load %arg3[%c0_7, %c0_8] : memref<1x64xf32, #tpu.memory_space<vmem>>, vector<1x64xf32>
    %21 = vector.broadcast %20 : vector<1x64xf32> to vector<64x64xf32>
    %22 = arith.addf %19, %21 : vector<64x64xf32>
    %23 = arith.truncf %22 : vector<64x64xf32> to vector<64x64xbf16>
    %c0_9 = arith.constant 0 : index
    %c0_10 = arith.constant 0 : index
    %24 = vector.load %arg4[%c0_9, %c0_10] : memref<64x64xbf16, #tpu.memory_space<vmem>>, vector<64x64xbf16>
    tpu.vector_store %arg4[%c0_9, %c0_10], %23 {strides = array<i32>} : memref<64x64xbf16, #tpu.memory_space<vmem>>, vector<64x64xbf16>,
    return
  }
  func.func @transform_0(%arg0: i32) -> (i32, i32) {
    %c0_i32 = arith.constant 0 : i32
    %c0_i32_0 = arith.constant 0 : i32
    return %arg0, %c0_i32 : i32, i32
  }
  func.func @transform_1(%arg0: i32) -> (i32, i32) {
    %c0_i32 = arith.constant 0 : i32
    %c0_i32_0 = arith.constant 0 : i32
    %c0_i32_1 = arith.constant 0 : i32
    return %c0_i32, %c0_i32_0 : i32, i32
  }
  func.func @transform_2(%arg0: i32) -> (i32, i32) {
    %c0_i32 = arith.constant 0 : i32
    %c0_i32_0 = arith.constant 0 : i32
    %c0_i32_1 = arith.constant 0 : i32
    return %c0_i32, %c0_i32_0 : i32, i32
  }
  func.func @transform_3(%arg0: i32) -> (i32, i32) {
    %c0_i32 = arith.constant 0 : i32
    %c0_i32_0 = arith.constant 0 : i32
    return %arg0, %c0_i32 : i32, i32
  }
}

module attributes {stable_mosaic.version = 11 : i64} {
  func.func @_matmul_kernel(%arg0: i32, %arg1: i32, %arg2: i32, %arg3: memref<64x64xbf16, #tpu.memory_space<vmem>>, %arg4: memref<64x192xbf16, #tpu.memory_space<vmem>>, %arg5: memref<1x192xf32, #tpu.memory_space<vmem>>, %arg6: memref<64x192xbf16, #tpu.memory_space<vmem>>, %arg7: memref<64x192xf32, #tpu.memory_space<vmem>>) attributes {dimension_semantics = [#tpu.dimension_semantics<parallel>, #tpu.dimension_semantics<parallel>, #tpu.dimension_semantics<arbitrary>], iteration_bounds = array<i64: 1, 1, 1>, scalar_prefetch = 0 : i64, scratch_operands = 1 : i64, tpu.core_type = #tpu.core_type<tc>, window_params = [{transform_indices = @transform_0, window_bounds = array<i64: 64, 64>}, {transform_indices = @transform_1, window_bounds = array<i64: 64, 192>}, {transform_indices = @transform_2, window_bounds = array<i64: 1, 192>}, {transform_indices = @transform_3, window_bounds = array<i64: 64, 192>}]} {
    %c0_i32 = arith.constant 0 : i32
    %0 = arith.cmpi eq, %arg2, %c0_i32 : i32
    %1 = arith.extui %0 : i1 to i32
    %c0_i32_0 = arith.constant 0 : i32
    %2 = arith.cmpi ne, %1, %c0_i32_0 : i32
    scf.if %2 {
      %cst_10 = arith.constant 0.000000e+00 : f32
      %12 = vector.broadcast %cst_10 : f32 to vector<64x192xf32>
      %c0_11 = arith.constant 0 : index
      %c0_12 = arith.constant 0 : index
      %13 = vector.load %arg7[%c0_11, %c0_12] : memref<64x192xf32, #tpu.memory_space<vmem>>, vector<64x192xf32>
      tpu.vector_store %arg7[%c0_11, %c0_12], %12 {strides = array<i32>} : memref<64x192xf32, #tpu.memory_space<vmem>>, vector<64x192xf32>,
    } else {
    }
    %c0 = arith.constant 0 : index
    %c0_1 = arith.constant 0 : index
    %3 = vector.load %arg7[%c0, %c0_1] : memref<64x192xf32, #tpu.memory_space<vmem>>, vector<64x192xf32>
    %c0_2 = arith.constant 0 : index
    %c0_3 = arith.constant 0 : index
    %4 = vector.load %arg3[%c0_2, %c0_3] : memref<64x64xbf16, #tpu.memory_space<vmem>>, vector<64x64xbf16>
    %c0_4 = arith.constant 0 : index
    %c0_5 = arith.constant 0 : index
    %5 = vector.load %arg4[%c0_4, %c0_5] : memref<64x192xbf16, #tpu.memory_space<vmem>>, vector<64x192xbf16>
    %cst = arith.constant dense<0.000000e+00> : vector<64x192xf32>
    %6 = tpu.matmul %4, %5, %cst {dimension_numbers = #tpu.dot_dimension_numbers<[1], [0], [0], [1], [0, 0, 1, 1], [], []>} : vector<64x64xbf16>, vector<64x192xbf16>, vector<64x192xf32> -> vector<64x192xf32>
    %7 = arith.addf %3, %6 : vector<64x192xf32>
    %c0_6 = arith.constant 0 : index
    %c0_7 = arith.constant 0 : index
    %8 = vector.load %arg7[%c0_6, %c0_7] : memref<64x192xf32, #tpu.memory_space<vmem>>, vector<64x192xf32>
    tpu.vector_store %arg7[%c0_6, %c0_7], %7 {strides = array<i32>} : memref<64x192xf32, #tpu.memory_space<vmem>>, vector<64x192xf32>,
    %c0_i32_8 = arith.constant 0 : i32
    %9 = arith.cmpi eq, %arg2, %c0_i32_8 : i32
    %10 = arith.extui %9 : i1 to i32
    %c0_i32_9 = arith.constant 0 : i32
    %11 = arith.cmpi ne, %10, %c0_i32_9 : i32
    scf.if %11 {
      %c0_10 = arith.constant 0 : index
      %c0_11 = arith.constant 0 : index
      %12 = vector.load %arg7[%c0_10, %c0_11] : memref<64x192xf32, #tpu.memory_space<vmem>>, vector<64x192xf32>
      %c0_12 = arith.constant 0 : index
      %c0_13 = arith.constant 0 : index
      %13 = vector.load %arg5[%c0_12, %c0_13] : memref<1x192xf32, #tpu.memory_space<vmem>>, vector<1x192xf32>
      %14 = vector.broadcast %13 : vector<1x192xf32> to vector<64x192xf32>
      %15 = arith.addf %12, %14 : vector<64x192xf32>
      %16 = arith.truncf %15 : vector<64x192xf32> to vector<64x192xbf16>
      %c0_14 = arith.constant 0 : index
      %c0_15 = arith.constant 0 : index
      %17 = vector.load %arg6[%c0_14, %c0_15] : memref<64x192xbf16, #tpu.memory_space<vmem>>, vector<64x192xbf16>
      tpu.vector_store %arg6[%c0_14, %c0_15], %16 {strides = array<i32>} : memref<64x192xbf16, #tpu.memory_space<vmem>>, vector<64x192xbf16>,
    } else {
    }
    return
  }
  func.func @transform_0(%arg0: i32, %arg1: i32, %arg2: i32) -> (i32, i32) {
    %c0_i32 = arith.constant 0 : i32
    return %arg0, %arg2 : i32, i32
  }
  func.func @transform_1(%arg0: i32, %arg1: i32, %arg2: i32) -> (i32, i32) {
    %c0_i32 = arith.constant 0 : i32
    return %arg2, %arg1 : i32, i32
  }
  func.func @transform_2(%arg0: i32, %arg1: i32, %arg2: i32) -> (i32, i32) {
    %c0_i32 = arith.constant 0 : i32
    %c0_i32_0 = arith.constant 0 : i32
    return %c0_i32, %arg1 : i32, i32
  }
  func.func @transform_3(%arg0: i32, %arg1: i32, %arg2: i32) -> (i32, i32) {
    %c0_i32 = arith.constant 0 : i32
    return %arg0, %arg1 : i32, i32
  }
}

module attributes {stable_mosaic.version = 11 : i64} {
  func.func @_attention_kernel(%arg0: i32, %arg1: memref<1x8x192xbf16, #tpu.memory_space<vmem>>, %arg2: memref<1x1x8xf32, #tpu.memory_space<vmem>>, %arg3: memref<1x8x64xbf16, #tpu.memory_space<vmem>>) attributes {dimension_semantics = [#tpu.dimension_semantics<parallel>], iteration_bounds = array<i64: 8>, scalar_prefetch = 0 : i64, scratch_operands = 0 : i64, tpu.core_type = #tpu.core_type<tc>, window_params = [{transform_indices = @transform_0, window_bounds = array<i64: 1, 8, 192>}, {transform_indices = @transform_1, window_bounds = array<i64: 1, 1, 8>}, {transform_indices = @transform_2, window_bounds = array<i64: 1, 8, 64>}]} {
    %c0 = arith.constant 0 : index
    %c0_0 = arith.constant 0 : index
    %c0_1 = arith.constant 0 : index
    %0 = vector.load %arg1[%c0, %c0_0, %c0_1] : memref<1x8x192xbf16, #tpu.memory_space<vmem>>, vector<1x8x192xbf16>
    %1 = vector.shape_cast %0 : vector<1x8x192xbf16> to vector<8x192xbf16>
    %c0_2 = arith.constant 0 : index
    %c0_3 = arith.constant 0 : index
    %c0_4 = arith.constant 0 : index
    %2 = vector.load %arg2[%c0_2, %c0_3, %c0_4] : memref<1x1x8xf32, #tpu.memory_space<vmem>>, vector<1x1x8xf32>
    %3 = vector.shape_cast %2 : vector<1x1x8xf32> to vector<1x8xf32>
    %4 = vector.extract_strided_slice %1 {offsets = [0, 0], sizes = [8, 16], strides = [1, 1]} : vector<8x192xbf16> to vector<8x16xbf16>
    %5 = vector.extract_strided_slice %1 {offsets = [0, 64], sizes = [8, 16], strides = [1, 1]} : vector<8x192xbf16> to vector<8x16xbf16>
    %6 = vector.extract_strided_slice %1 {offsets = [0, 128], sizes = [8, 16], strides = [1, 1]} : vector<8x192xbf16> to vector<8x16xbf16>
    %cst = arith.constant dense<0.000000e+00> : vector<8x8xf32>
    %7 = tpu.matmul %4, %5, %cst {dimension_numbers = #tpu.dot_dimension_numbers<[1], [1], [0], [0], [0, 0, 1, 0], [], []>} : vector<8x16xbf16>, vector<8x16xbf16>, vector<8x8xf32> -> vector<8x8xf32>
    %8 = vector.broadcast %3 : vector<1x8xf32> to vector<8x8xf32>
    %9 = arith.addf %7, %8 : vector<8x8xf32>
    %cst_5 = arith.constant dense<0xFF800000> : vector<8xf32>
    %10 = vector.multi_reduction <maximumf>, %9, %cst_5 [1] : vector<8x8xf32> to vector<8xf32>
    %11 = vector.shape_cast %10 : vector<8xf32> to vector<8x1xf32>
    %12 = vector.broadcast %11 : vector<8x1xf32> to vector<8x8xf32>
    %13 = arith.subf %9, %12 : vector<8x8xf32>
    %14 = math.exp %13 : vector<8x8xf32>
    %cst_6 = arith.constant dense<0.000000e+00> : vector<8xf32>
    %15 = vector.multi_reduction <add>, %14, %cst_6 [1] : vector<8x8xf32> to vector<8xf32>
    %16 = vector.shape_cast %15 : vector<8xf32> to vector<8x1xf32>
    %17 = tpu.reciprocal %16 {approx = true} : vector<8x1xf32> -> vector<8x1xf32>
    %18 = vector.broadcast %17 : vector<8x1xf32> to vector<8x8xf32>
    %19 = arith.mulf %14, %18 : vector<8x8xf32>
    %20 = arith.truncf %19 : vector<8x8xf32> to vector<8x8xbf16>
    %cst_7 = arith.constant dense<0.000000e+00> : vector<8x16xf32>
    %21 = tpu.matmul %20, %6, %cst_7 {dimension_numbers = #tpu.dot_dimension_numbers<[1], [0], [0], [1], [0, 0, 1, 1], [], []>} : vector<8x8xbf16>, vector<8x16xbf16>, vector<8x16xf32> -> vector<8x16xf32>
    %22 = arith.truncf %21 : vector<8x16xf32> to vector<8x16xbf16>
    %c0_8 = arith.constant 0 : index
    %c0_9 = arith.constant 0 : index
    %c0_10 = arith.constant 0 : index
    %23 = vector.load %arg3[%c0_8, %c0_9, %c0_10] : memref<1x8x64xbf16, #tpu.memory_space<vmem>>, vector<1x8x16xbf16>
    %24 = vector.shape_cast %23 : vector<1x8x16xbf16> to vector<8x16xbf16>
    %25 = vector.shape_cast %22 : vector<8x16xbf16> to vector<1x8x16xbf16>
    tpu.vector_store %arg3[%c0_8, %c0_9, %c0_10], %25 {strides = array<i32>} : memref<1x8x64xbf16, #tpu.memory_space<vmem>>, vector<1x8x16xbf16>,
    %26 = vector.extract_strided_slice %1 {offsets = [0, 16], sizes = [8, 16], strides = [1, 1]} : vector<8x192xbf16> to vector<8x16xbf16>
    %27 = vector.extract_strided_slice %1 {offsets = [0, 80], sizes = [8, 16], strides = [1, 1]} : vector<8x192xbf16> to vector<8x16xbf16>
    %28 = vector.extract_strided_slice %1 {offsets = [0, 144], sizes = [8, 16], strides = [1, 1]} : vector<8x192xbf16> to vector<8x16xbf16>
    %cst_11 = arith.constant dense<0.000000e+00> : vector<8x8xf32>
    %29 = tpu.matmul %26, %27, %cst_11 {dimension_numbers = #tpu.dot_dimension_numbers<[1], [1], [0], [0], [0, 0, 1, 0], [], []>} : vector<8x16xbf16>, vector<8x16xbf16>, vector<8x8xf32> -> vector<8x8xf32>
    %30 = vector.broadcast %3 : vector<1x8xf32> to vector<8x8xf32>
    %31 = arith.addf %29, %30 : vector<8x8xf32>
    %cst_12 = arith.constant dense<0xFF800000> : vector<8xf32>
    %32 = vector.multi_reduction <maximumf>, %31, %cst_12 [1] : vector<8x8xf32> to vector<8xf32>
    %33 = vector.shape_cast %32 : vector<8xf32> to vector<8x1xf32>
    %34 = vector.broadcast %33 : vector<8x1xf32> to vector<8x8xf32>
    %35 = arith.subf %31, %34 : vector<8x8xf32>
    %36 = math.exp %35 : vector<8x8xf32>
    %cst_13 = arith.constant dense<0.000000e+00> : vector<8xf32>
    %37 = vector.multi_reduction <add>, %36, %cst_13 [1] : vector<8x8xf32> to vector<8xf32>
    %38 = vector.shape_cast %37 : vector<8xf32> to vector<8x1xf32>
    %39 = tpu.reciprocal %38 {approx = true} : vector<8x1xf32> -> vector<8x1xf32>
    %40 = vector.broadcast %39 : vector<8x1xf32> to vector<8x8xf32>
    %41 = arith.mulf %36, %40 : vector<8x8xf32>
    %42 = arith.truncf %41 : vector<8x8xf32> to vector<8x8xbf16>
    %cst_14 = arith.constant dense<0.000000e+00> : vector<8x16xf32>
    %43 = tpu.matmul %42, %28, %cst_14 {dimension_numbers = #tpu.dot_dimension_numbers<[1], [0], [0], [1], [0, 0, 1, 1], [], []>} : vector<8x8xbf16>, vector<8x16xbf16>, vector<8x16xf32> -> vector<8x16xf32>
    %44 = arith.truncf %43 : vector<8x16xf32> to vector<8x16xbf16>
    %c0_15 = arith.constant 0 : index
    %c0_16 = arith.constant 0 : index
    %c16 = arith.constant 16 : index
    %45 = vector.load %arg3[%c0_15, %c0_16, %c16] : memref<1x8x64xbf16, #tpu.memory_space<vmem>>, vector<1x8x16xbf16>
    %46 = vector.shape_cast %45 : vector<1x8x16xbf16> to vector<8x16xbf16>
    %47 = vector.shape_cast %44 : vector<8x16xbf16> to vector<1x8x16xbf16>
    tpu.vector_store %arg3[%c0_15, %c0_16, %c16], %47 {strides = array<i32>} : memref<1x8x64xbf16, #tpu.memory_space<vmem>>, vector<1x8x16xbf16>,
    %48 = vector.extract_strided_slice %1 {offsets = [0, 32], sizes = [8, 16], strides = [1, 1]} : vector<8x192xbf16> to vector<8x16xbf16>
    %49 = vector.extract_strided_slice %1 {offsets = [0, 96], sizes = [8, 16], strides = [1, 1]} : vector<8x192xbf16> to vector<8x16xbf16>
    %50 = vector.extract_strided_slice %1 {offsets = [0, 160], sizes = [8, 16], strides = [1, 1]} : vector<8x192xbf16> to vector<8x16xbf16>
    %cst_17 = arith.constant dense<0.000000e+00> : vector<8x8xf32>
    %51 = tpu.matmul %48, %49, %cst_17 {dimension_numbers = #tpu.dot_dimension_numbers<[1], [1], [0], [0], [0, 0, 1, 0], [], []>} : vector<8x16xbf16>, vector<8x16xbf16>, vector<8x8xf32> -> vector<8x8xf32>
    %52 = vector.broadcast %3 : vector<1x8xf32> to vector<8x8xf32>
    %53 = arith.addf %51, %52 : vector<8x8xf32>
    %cst_18 = arith.constant dense<0xFF800000> : vector<8xf32>
    %54 = vector.multi_reduction <maximumf>, %53, %cst_18 [1] : vector<8x8xf32> to vector<8xf32>
    %55 = vector.shape_cast %54 : vector<8xf32> to vector<8x1xf32>
    %56 = vector.broadcast %55 : vector<8x1xf32> to vector<8x8xf32>
    %57 = arith.subf %53, %56 : vector<8x8xf32>
    %58 = math.exp %57 : vector<8x8xf32>
    %cst_19 = arith.constant dense<0.000000e+00> : vector<8xf32>
    %59 = vector.multi_reduction <add>, %58, %cst_19 [1] : vector<8x8xf32> to vector<8xf32>
    %60 = vector.shape_cast %59 : vector<8xf32> to vector<8x1xf32>
    %61 = tpu.reciprocal %60 {approx = true} : vector<8x1xf32> -> vector<8x1xf32>
    %62 = vector.broadcast %61 : vector<8x1xf32> to vector<8x8xf32>
    %63 = arith.mulf %58, %62 : vector<8x8xf32>
    %64 = arith.truncf %63 : vector<8x8xf32> to vector<8x8xbf16>
    %cst_20 = arith.constant dense<0.000000e+00> : vector<8x16xf32>
    %65 = tpu.matmul %64, %50, %cst_20 {dimension_numbers = #tpu.dot_dimension_numbers<[1], [0], [0], [1], [0, 0, 1, 1], [], []>} : vector<8x8xbf16>, vector<8x16xbf16>, vector<8x16xf32> -> vector<8x16xf32>
    %66 = arith.truncf %65 : vector<8x16xf32> to vector<8x16xbf16>
    %c0_21 = arith.constant 0 : index
    %c0_22 = arith.constant 0 : index
    %c32 = arith.constant 32 : index
    %67 = vector.load %arg3[%c0_21, %c0_22, %c32] : memref<1x8x64xbf16, #tpu.memory_space<vmem>>, vector<1x8x16xbf16>
    %68 = vector.shape_cast %67 : vector<1x8x16xbf16> to vector<8x16xbf16>
    %69 = vector.shape_cast %66 : vector<8x16xbf16> to vector<1x8x16xbf16>
    tpu.vector_store %arg3[%c0_21, %c0_22, %c32], %69 {strides = array<i32>} : memref<1x8x64xbf16, #tpu.memory_space<vmem>>, vector<1x8x16xbf16>,
    %70 = vector.extract_strided_slice %1 {offsets = [0, 48], sizes = [8, 16], strides = [1, 1]} : vector<8x192xbf16> to vector<8x16xbf16>
    %71 = vector.extract_strided_slice %1 {offsets = [0, 112], sizes = [8, 16], strides = [1, 1]} : vector<8x192xbf16> to vector<8x16xbf16>
    %72 = vector.extract_strided_slice %1 {offsets = [0, 176], sizes = [8, 16], strides = [1, 1]} : vector<8x192xbf16> to vector<8x16xbf16>
    %cst_23 = arith.constant dense<0.000000e+00> : vector<8x8xf32>
    %73 = tpu.matmul %70, %71, %cst_23 {dimension_numbers = #tpu.dot_dimension_numbers<[1], [1], [0], [0], [0, 0, 1, 0], [], []>} : vector<8x16xbf16>, vector<8x16xbf16>, vector<8x8xf32> -> vector<8x8xf32>
    %74 = vector.broadcast %3 : vector<1x8xf32> to vector<8x8xf32>
    %75 = arith.addf %73, %74 : vector<8x8xf32>
    %cst_24 = arith.constant dense<0xFF800000> : vector<8xf32>
    %76 = vector.multi_reduction <maximumf>, %75, %cst_24 [1] : vector<8x8xf32> to vector<8xf32>
    %77 = vector.shape_cast %76 : vector<8xf32> to vector<8x1xf32>
    %78 = vector.broadcast %77 : vector<8x1xf32> to vector<8x8xf32>
    %79 = arith.subf %75, %78 : vector<8x8xf32>
    %80 = math.exp %79 : vector<8x8xf32>
    %cst_25 = arith.constant dense<0.000000e+00> : vector<8xf32>
    %81 = vector.multi_reduction <add>, %80, %cst_25 [1] : vector<8x8xf32> to vector<8xf32>
    %82 = vector.shape_cast %81 : vector<8xf32> to vector<8x1xf32>
    %83 = tpu.reciprocal %82 {approx = true} : vector<8x1xf32> -> vector<8x1xf32>
    %84 = vector.broadcast %83 : vector<8x1xf32> to vector<8x8xf32>
    %85 = arith.mulf %80, %84 : vector<8x8xf32>
    %86 = arith.truncf %85 : vector<8x8xf32> to vector<8x8xbf16>
    %cst_26 = arith.constant dense<0.000000e+00> : vector<8x16xf32>
    %87 = tpu.matmul %86, %72, %cst_26 {dimension_numbers = #tpu.dot_dimension_numbers<[1], [0], [0], [1], [0, 0, 1, 1], [], []>} : vector<8x8xbf16>, vector<8x16xbf16>, vector<8x16xf32> -> vector<8x16xf32>
    %88 = arith.truncf %87 : vector<8x16xf32> to vector<8x16xbf16>
    %c0_27 = arith.constant 0 : index
    %c0_28 = arith.constant 0 : index
    %c48 = arith.constant 48 : index
    %89 = vector.load %arg3[%c0_27, %c0_28, %c48] : memref<1x8x64xbf16, #tpu.memory_space<vmem>>, vector<1x8x16xbf16>
    %90 = vector.shape_cast %89 : vector<1x8x16xbf16> to vector<8x16xbf16>
    %91 = vector.shape_cast %88 : vector<8x16xbf16> to vector<1x8x16xbf16>
    tpu.vector_store %arg3[%c0_27, %c0_28, %c48], %91 {strides = array<i32>} : memref<1x8x64xbf16, #tpu.memory_space<vmem>>, vector<1x8x16xbf16>,
    return
  }
  func.func @transform_0(%arg0: i32) -> (i32, i32, i32) {
    %c0_i32 = arith.constant 0 : i32
    %c0_i32_0 = arith.constant 0 : i32
    %c0_i32_1 = arith.constant 0 : i32
    return %arg0, %c0_i32, %c0_i32_0 : i32, i32, i32
  }
  func.func @transform_1(%arg0: i32) -> (i32, i32, i32) {
    %c0_i32 = arith.constant 0 : i32
    %c0_i32_0 = arith.constant 0 : i32
    %c0_i32_1 = arith.constant 0 : i32
    return %arg0, %c0_i32, %c0_i32_0 : i32, i32, i32
  }
  func.func @transform_2(%arg0: i32) -> (i32, i32, i32) {
    %c0_i32 = arith.constant 0 : i32
    %c0_i32_0 = arith.constant 0 : i32
    %c0_i32_1 = arith.constant 0 : i32
    return %arg0, %c0_i32, %c0_i32_0 : i32, i32, i32
  }
}

module attributes {stable_mosaic.version = 11 : i64} {
  func.func @_matmul_kernel(%arg0: i32, %arg1: i32, %arg2: i32, %arg3: memref<64x64xbf16, #tpu.memory_space<vmem>>, %arg4: memref<64x64xbf16, #tpu.memory_space<vmem>>, %arg5: memref<1x64xf32, #tpu.memory_space<vmem>>, %arg6: memref<64x64xbf16, #tpu.memory_space<vmem>>, %arg7: memref<64x64xf32, #tpu.memory_space<vmem>>) attributes {dimension_semantics = [#tpu.dimension_semantics<parallel>, #tpu.dimension_semantics<parallel>, #tpu.dimension_semantics<arbitrary>], iteration_bounds = array<i64: 1, 1, 1>, scalar_prefetch = 0 : i64, scratch_operands = 1 : i64, tpu.core_type = #tpu.core_type<tc>, window_params = [{transform_indices = @transform_0, window_bounds = array<i64: 64, 64>}, {transform_indices = @transform_1, window_bounds = array<i64: 64, 64>}, {transform_indices = @transform_2, window_bounds = array<i64: 1, 64>}, {transform_indices = @transform_3, window_bounds = array<i64: 64, 64>}]} {
    %c0_i32 = arith.constant 0 : i32
    %0 = arith.cmpi eq, %arg2, %c0_i32 : i32
    %1 = arith.extui %0 : i1 to i32
    %c0_i32_0 = arith.constant 0 : i32
    %2 = arith.cmpi ne, %1, %c0_i32_0 : i32
    scf.if %2 {
      %cst_10 = arith.constant 0.000000e+00 : f32
      %12 = vector.broadcast %cst_10 : f32 to vector<64x64xf32>
      %c0_11 = arith.constant 0 : index
      %c0_12 = arith.constant 0 : index
      %13 = vector.load %arg7[%c0_11, %c0_12] : memref<64x64xf32, #tpu.memory_space<vmem>>, vector<64x64xf32>
      tpu.vector_store %arg7[%c0_11, %c0_12], %12 {strides = array<i32>} : memref<64x64xf32, #tpu.memory_space<vmem>>, vector<64x64xf32>,
    } else {
    }
    %c0 = arith.constant 0 : index
    %c0_1 = arith.constant 0 : index
    %3 = vector.load %arg7[%c0, %c0_1] : memref<64x64xf32, #tpu.memory_space<vmem>>, vector<64x64xf32>
    %c0_2 = arith.constant 0 : index
    %c0_3 = arith.constant 0 : index
    %4 = vector.load %arg3[%c0_2, %c0_3] : memref<64x64xbf16, #tpu.memory_space<vmem>>, vector<64x64xbf16>
    %c0_4 = arith.constant 0 : index
    %c0_5 = arith.constant 0 : index
    %5 = vector.load %arg4[%c0_4, %c0_5] : memref<64x64xbf16, #tpu.memory_space<vmem>>, vector<64x64xbf16>
    %cst = arith.constant dense<0.000000e+00> : vector<64x64xf32>
    %6 = tpu.matmul %4, %5, %cst {dimension_numbers = #tpu.dot_dimension_numbers<[1], [0], [0], [1], [0, 0, 1, 1], [], []>} : vector<64x64xbf16>, vector<64x64xbf16>, vector<64x64xf32> -> vector<64x64xf32>
    %7 = arith.addf %3, %6 : vector<64x64xf32>
    %c0_6 = arith.constant 0 : index
    %c0_7 = arith.constant 0 : index
    %8 = vector.load %arg7[%c0_6, %c0_7] : memref<64x64xf32, #tpu.memory_space<vmem>>, vector<64x64xf32>
    tpu.vector_store %arg7[%c0_6, %c0_7], %7 {strides = array<i32>} : memref<64x64xf32, #tpu.memory_space<vmem>>, vector<64x64xf32>,
    %c0_i32_8 = arith.constant 0 : i32
    %9 = arith.cmpi eq, %arg2, %c0_i32_8 : i32
    %10 = arith.extui %9 : i1 to i32
    %c0_i32_9 = arith.constant 0 : i32
    %11 = arith.cmpi ne, %10, %c0_i32_9 : i32
    scf.if %11 {
      %c0_10 = arith.constant 0 : index
      %c0_11 = arith.constant 0 : index
      %12 = vector.load %arg7[%c0_10, %c0_11] : memref<64x64xf32, #tpu.memory_space<vmem>>, vector<64x64xf32>
      %c0_12 = arith.constant 0 : index
      %c0_13 = arith.constant 0 : index
      %13 = vector.load %arg5[%c0_12, %c0_13] : memref<1x64xf32, #tpu.memory_space<vmem>>, vector<1x64xf32>
      %14 = vector.broadcast %13 : vector<1x64xf32> to vector<64x64xf32>
      %15 = arith.addf %12, %14 : vector<64x64xf32>
      %16 = arith.truncf %15 : vector<64x64xf32> to vector<64x64xbf16>
      %c0_14 = arith.constant 0 : index
      %c0_15 = arith.constant 0 : index
      %17 = vector.load %arg6[%c0_14, %c0_15] : memref<64x64xbf16, #tpu.memory_space<vmem>>, vector<64x64xbf16>
      tpu.vector_store %arg6[%c0_14, %c0_15], %16 {strides = array<i32>} : memref<64x64xbf16, #tpu.memory_space<vmem>>, vector<64x64xbf16>,
    } else {
    }
    return
  }
  func.func @transform_0(%arg0: i32, %arg1: i32, %arg2: i32) -> (i32, i32) {
    %c0_i32 = arith.constant 0 : i32
    return %arg0, %arg2 : i32, i32
  }
  func.func @transform_1(%arg0: i32, %arg1: i32, %arg2: i32) -> (i32, i32) {
    %c0_i32 = arith.constant 0 : i32
    return %arg2, %arg1 : i32, i32
  }
  func.func @transform_2(%arg0: i32, %arg1: i32, %arg2: i32) -> (i32, i32) {
    %c0_i32 = arith.constant 0 : i32
    %c0_i32_0 = arith.constant 0 : i32
    return %c0_i32, %arg1 : i32, i32
  }
  func.func @transform_3(%arg0: i32, %arg1: i32, %arg2: i32) -> (i32, i32) {
    %c0_i32 = arith.constant 0 : i32
    return %arg0, %arg1 : i32, i32
  }
}

module attributes {stable_mosaic.version = 11 : i64} {
  func.func @_layernorm_res_kernel(%arg0: i32, %arg1: memref<64x64xbf16, #tpu.memory_space<vmem>>, %arg2: memref<64x64xbf16, #tpu.memory_space<vmem>>, %arg3: memref<1x64xf32, #tpu.memory_space<vmem>>, %arg4: memref<1x64xf32, #tpu.memory_space<vmem>>, %arg5: memref<64x64xbf16, #tpu.memory_space<vmem>>) attributes {dimension_semantics = [#tpu.dimension_semantics<parallel>], iteration_bounds = array<i64: 1>, scalar_prefetch = 0 : i64, scratch_operands = 0 : i64, tpu.core_type = #tpu.core_type<tc>, window_params = [{transform_indices = @transform_0, window_bounds = array<i64: 64, 64>}, {transform_indices = @transform_1, window_bounds = array<i64: 64, 64>}, {pipeline_mode = #tpu.pipeline_mode<synchronous>, transform_indices = @transform_2, window_bounds = array<i64: 1, 64>}, {pipeline_mode = #tpu.pipeline_mode<synchronous>, transform_indices = @transform_3, window_bounds = array<i64: 1, 64>}, {transform_indices = @transform_4, window_bounds = array<i64: 64, 64>}]} {
    %c0 = arith.constant 0 : index
    %c0_0 = arith.constant 0 : index
    %0 = vector.load %arg1[%c0, %c0_0] : memref<64x64xbf16, #tpu.memory_space<vmem>>, vector<64x64xbf16>
    %1 = arith.extf %0 : vector<64x64xbf16> to vector<64x64xf32>
    %c0_1 = arith.constant 0 : index
    %c0_2 = arith.constant 0 : index
    %2 = vector.load %arg2[%c0_1, %c0_2] : memref<64x64xbf16, #tpu.memory_space<vmem>>, vector<64x64xbf16>
    %3 = arith.extf %2 : vector<64x64xbf16> to vector<64x64xf32>
    %4 = arith.addf %1, %3 : vector<64x64xf32>
    %cst = arith.constant dense<0.000000e+00> : vector<64xf32>
    %5 = vector.multi_reduction <add>, %4, %cst [1] : vector<64x64xf32> to vector<64xf32>
    %6 = vector.shape_cast %5 : vector<64xf32> to vector<64x1xf32>
    %cst_3 = arith.constant 6.400000e+01 : f32
    %7 = vector.broadcast %cst_3 : f32 to vector<64x1xf32>
    %8 = arith.divf %6, %7 : vector<64x1xf32>
    %9 = vector.broadcast %8 : vector<64x1xf32> to vector<64x64xf32>
    %10 = arith.subf %4, %9 : vector<64x64xf32>
    %11 = arith.mulf %10, %10 : vector<64x64xf32>
    %cst_4 = arith.constant dense<0.000000e+00> : vector<64xf32>
    %12 = vector.multi_reduction <add>, %11, %cst_4 [1] : vector<64x64xf32> to vector<64xf32>
    %13 = vector.shape_cast %12 : vector<64xf32> to vector<64x1xf32>
    %cst_5 = arith.constant 6.400000e+01 : f32
    %14 = vector.broadcast %cst_5 : f32 to vector<64x1xf32>
    %15 = arith.divf %13, %14 : vector<64x1xf32>
    %cst_6 = arith.constant 9.99999996E-13 : f32
    %16 = vector.broadcast %cst_6 : f32 to vector<64x1xf32>
    %17 = arith.addf %15, %16 : vector<64x1xf32>
    %18 = math.rsqrt %17 : vector<64x1xf32>
    %19 = vector.broadcast %18 : vector<64x1xf32> to vector<64x64xf32>
    %20 = arith.mulf %10, %19 : vector<64x64xf32>
    %c0_7 = arith.constant 0 : index
    %c0_8 = arith.constant 0 : index
    %21 = vector.load %arg3[%c0_7, %c0_8] : memref<1x64xf32, #tpu.memory_space<vmem>>, vector<1x64xf32>
    %22 = vector.broadcast %21 : vector<1x64xf32> to vector<64x64xf32>
    %23 = arith.mulf %20, %22 : vector<64x64xf32>
    %c0_9 = arith.constant 0 : index
    %c0_10 = arith.constant 0 : index
    %24 = vector.load %arg4[%c0_9, %c0_10] : memref<1x64xf32, #tpu.memory_space<vmem>>, vector<1x64xf32>
    %25 = vector.broadcast %24 : vector<1x64xf32> to vector<64x64xf32>
    %26 = arith.addf %23, %25 : vector<64x64xf32>
    %27 = arith.truncf %26 : vector<64x64xf32> to vector<64x64xbf16>
    %c0_11 = arith.constant 0 : index
    %c0_12 = arith.constant 0 : index
    %28 = vector.load %arg5[%c0_11, %c0_12] : memref<64x64xbf16, #tpu.memory_space<vmem>>, vector<64x64xbf16>
    tpu.vector_store %arg5[%c0_11, %c0_12], %27 {strides = array<i32>} : memref<64x64xbf16, #tpu.memory_space<vmem>>, vector<64x64xbf16>,
    return
  }
  func.func @transform_0(%arg0: i32) -> (i32, i32) {
    %c0_i32 = arith.constant 0 : i32
    %c0_i32_0 = arith.constant 0 : i32
    return %arg0, %c0_i32 : i32, i32
  }
  func.func @transform_1(%arg0: i32) -> (i32, i32) {
    %c0_i32 = arith.constant 0 : i32
    %c0_i32_0 = arith.constant 0 : i32
    return %arg0, %c0_i32 : i32, i32
  }
  func.func @transform_2(%arg0: i32) -> (i32, i32) {
    %c0_i32 = arith.constant 0 : i32
    %c0_i32_0 = arith.constant 0 : i32
    %c0_i32_1 = arith.constant 0 : i32
    return %c0_i32, %c0_i32_0 : i32, i32
  }
  func.func @transform_3(%arg0: i32) -> (i32, i32) {
    %c0_i32 = arith.constant 0 : i32
    %c0_i32_0 = arith.constant 0 : i32
    %c0_i32_1 = arith.constant 0 : i32
    return %c0_i32, %c0_i32_0 : i32, i32
  }
  func.func @transform_4(%arg0: i32) -> (i32, i32) {
    %c0_i32 = arith.constant 0 : i32
    %c0_i32_0 = arith.constant 0 : i32
    return %arg0, %c0_i32 : i32, i32
  }
}

module attributes {stable_mosaic.version = 11 : i64} {
  func.func @_ffn_kernel(%arg0: i32, %arg1: i32, %arg2: memref<64x64xbf16, #tpu.memory_space<vmem>>, %arg3: memref<64x128xbf16, #tpu.memory_space<vmem>>, %arg4: memref<1x128xf32, #tpu.memory_space<vmem>>, %arg5: memref<128x64xbf16, #tpu.memory_space<vmem>>, %arg6: memref<1x64xf32, #tpu.memory_space<vmem>>, %arg7: memref<64x64xbf16, #tpu.memory_space<vmem>>, %arg8: memref<64x64xf32, #tpu.memory_space<vmem>>) attributes {dimension_semantics = [#tpu.dimension_semantics<parallel>, #tpu.dimension_semantics<arbitrary>], iteration_bounds = array<i64: 1, 1>, scalar_prefetch = 0 : i64, scratch_operands = 1 : i64, tpu.core_type = #tpu.core_type<tc>, window_params = [{transform_indices = @transform_0, window_bounds = array<i64: 64, 64>}, {transform_indices = @transform_1, window_bounds = array<i64: 64, 128>}, {transform_indices = @transform_2, window_bounds = array<i64: 1, 128>}, {transform_indices = @transform_3, window_bounds = array<i64: 128, 64>}, {pipeline_mode = #tpu.pipeline_mode<synchronous>, transform_indices = @transform_4, window_bounds = array<i64: 1, 64>}, {transform_indices = @transform_5, window_bounds = array<i64: 64, 64>}]} {
    %c0_i32 = arith.constant 0 : i32
    %0 = arith.cmpi eq, %arg1, %c0_i32 : i32
    %1 = arith.extui %0 : i1 to i32
    %c0_i32_0 = arith.constant 0 : i32
    %2 = arith.cmpi ne, %1, %c0_i32_0 : i32
    scf.if %2 {
      %cst_19 = arith.constant 0.000000e+00 : f32
      %31 = vector.broadcast %cst_19 : f32 to vector<64x64xf32>
      %c0_20 = arith.constant 0 : index
      %c0_21 = arith.constant 0 : index
      %32 = vector.load %arg8[%c0_20, %c0_21] : memref<64x64xf32, #tpu.memory_space<vmem>>, vector<64x64xf32>
      tpu.vector_store %arg8[%c0_20, %c0_21], %31 {strides = array<i32>} : memref<64x64xf32, #tpu.memory_space<vmem>>, vector<64x64xf32>,
    } else {
    }
    %c0 = arith.constant 0 : index
    %c0_1 = arith.constant 0 : index
    %3 = vector.load %arg2[%c0, %c0_1] : memref<64x64xbf16, #tpu.memory_space<vmem>>, vector<64x64xbf16>
    %c0_2 = arith.constant 0 : index
    %c0_3 = arith.constant 0 : index
    %4 = vector.load %arg3[%c0_2, %c0_3] : memref<64x128xbf16, #tpu.memory_space<vmem>>, vector<64x128xbf16>
    %cst = arith.constant dense<0.000000e+00> : vector<64x128xf32>
    %5 = tpu.matmul %3, %4, %cst {dimension_numbers = #tpu.dot_dimension_numbers<[1], [0], [0], [1], [0, 0, 1, 1], [], []>} : vector<64x64xbf16>, vector<64x128xbf16>, vector<64x128xf32> -> vector<64x128xf32>
    %c0_4 = arith.constant 0 : index
    %c0_5 = arith.constant 0 : index
    %6 = vector.load %arg4[%c0_4, %c0_5] : memref<1x128xf32, #tpu.memory_space<vmem>>, vector<1x128xf32>
    %7 = vector.broadcast %6 : vector<1x128xf32> to vector<64x128xf32>
    %8 = arith.addf %5, %7 : vector<64x128xf32>
    %cst_6 = arith.constant 5.000000e-01 : f32
    %9 = vector.broadcast %cst_6 : f32 to vector<64x128xf32>
    %10 = arith.mulf %9, %8 : vector<64x128xf32>
    %cst_7 = arith.constant 4.471500e-02 : f32
    %11 = vector.broadcast %cst_7 : f32 to vector<64x128xf32>
    %12 = arith.mulf %11, %8 : vector<64x128xf32>
    %13 = arith.mulf %12, %8 : vector<64x128xf32>
    %14 = arith.mulf %13, %8 : vector<64x128xf32>
    %15 = arith.addf %8, %14 : vector<64x128xf32>
    %cst_8 = arith.constant 0.797884583 : f32
    %16 = vector.broadcast %cst_8 : f32 to vector<64x128xf32>
    %17 = arith.mulf %16, %15 : vector<64x128xf32>
    %18 = math.tanh %17 : vector<64x128xf32>
    %cst_9 = arith.constant 1.000000e+00 : f32
    %19 = vector.broadcast %cst_9 : f32 to vector<64x128xf32>
    %20 = arith.addf %19, %18 : vector<64x128xf32>
    %21 = arith.mulf %10, %20 : vector<64x128xf32>
    %c0_10 = arith.constant 0 : index
    %c0_11 = arith.constant 0 : index
    %22 = vector.load %arg8[%c0_10, %c0_11] : memref<64x64xf32, #tpu.memory_space<vmem>>, vector<64x64xf32>
    %23 = arith.truncf %21 : vector<64x128xf32> to vector<64x128xbf16>
    %c0_12 = arith.constant 0 : index
    %c0_13 = arith.constant 0 : index
    %24 = vector.load %arg5[%c0_12, %c0_13] : memref<128x64xbf16, #tpu.memory_space<vmem>>, vector<128x64xbf16>
    %cst_14 = arith.constant dense<0.000000e+00> : vector<64x64xf32>
    %25 = tpu.matmul %23, %24, %cst_14 {dimension_numbers = #tpu.dot_dimension_numbers<[1], [0], [0], [1], [0, 0, 1, 1], [], []>} : vector<64x128xbf16>, vector<128x64xbf16>, vector<64x64xf32> -> vector<64x64xf32>
    %26 = arith.addf %22, %25 : vector<64x64xf32>
    %c0_15 = arith.constant 0 : index
    %c0_16 = arith.constant 0 : index
    %27 = vector.load %arg8[%c0_15, %c0_16] : memref<64x64xf32, #tpu.memory_space<vmem>>, vector<64x64xf32>
    tpu.vector_store %arg8[%c0_15, %c0_16], %26 {strides = array<i32>} : memref<64x64xf32, #tpu.memory_space<vmem>>, vector<64x64xf32>,
    %c0_i32_17 = arith.constant 0 : i32
    %28 = arith.cmpi eq, %arg1, %c0_i32_17 : i32
    %29 = arith.extui %28 : i1 to i32
    %c0_i32_18 = arith.constant 0 : i32
    %30 = arith.cmpi ne, %29, %c0_i32_18 : i32
    scf.if %30 {
      %c0_19 = arith.constant 0 : index
      %c0_20 = arith.constant 0 : index
      %31 = vector.load %arg8[%c0_19, %c0_20] : memref<64x64xf32, #tpu.memory_space<vmem>>, vector<64x64xf32>
      %c0_21 = arith.constant 0 : index
      %c0_22 = arith.constant 0 : index
      %32 = vector.load %arg6[%c0_21, %c0_22] : memref<1x64xf32, #tpu.memory_space<vmem>>, vector<1x64xf32>
      %33 = vector.broadcast %32 : vector<1x64xf32> to vector<64x64xf32>
      %34 = arith.addf %31, %33 : vector<64x64xf32>
      %35 = arith.truncf %34 : vector<64x64xf32> to vector<64x64xbf16>
      %c0_23 = arith.constant 0 : index
      %c0_24 = arith.constant 0 : index
      %36 = vector.load %arg7[%c0_23, %c0_24] : memref<64x64xbf16, #tpu.memory_space<vmem>>, vector<64x64xbf16>
      tpu.vector_store %arg7[%c0_23, %c0_24], %35 {strides = array<i32>} : memref<64x64xbf16, #tpu.memory_space<vmem>>, vector<64x64xbf16>,
    } else {
    }
    return
  }
  func.func @transform_0(%arg0: i32, %arg1: i32) -> (i32, i32) {
    %c0_i32 = arith.constant 0 : i32
    %c0_i32_0 = arith.constant 0 : i32
    return %arg0, %c0_i32 : i32, i32
  }
  func.func @transform_1(%arg0: i32, %arg1: i32) -> (i32, i32) {
    %c0_i32 = arith.constant 0 : i32
    %c0_i32_0 = arith.constant 0 : i32
    return %c0_i32, %arg1 : i32, i32
  }
  func.func @transform_2(%arg0: i32, %arg1: i32) -> (i32, i32) {
    %c0_i32 = arith.constant 0 : i32
    %c0_i32_0 = arith.constant 0 : i32
    return %c0_i32, %arg1 : i32, i32
  }
  func.func @transform_3(%arg0: i32, %arg1: i32) -> (i32, i32) {
    %c0_i32 = arith.constant 0 : i32
    %c0_i32_0 = arith.constant 0 : i32
    return %arg1, %c0_i32 : i32, i32
  }
  func.func @transform_4(%arg0: i32, %arg1: i32) -> (i32, i32) {
    %c0_i32 = arith.constant 0 : i32
    %c0_i32_0 = arith.constant 0 : i32
    %c0_i32_1 = arith.constant 0 : i32
    return %c0_i32, %c0_i32_0 : i32, i32
  }
  func.func @transform_5(%arg0: i32, %arg1: i32) -> (i32, i32) {
    %c0_i32 = arith.constant 0 : i32
    %c0_i32_0 = arith.constant 0 : i32
    return %arg0, %c0_i32 : i32, i32
  }
}

module attributes {stable_mosaic.version = 11 : i64} {
  func.func @_attention_kernel(%arg0: i32, %arg1: memref<1x8x192xbf16, #tpu.memory_space<vmem>>, %arg2: memref<1x1x8xf32, #tpu.memory_space<vmem>>, %arg3: memref<1x1x64xbf16, #tpu.memory_space<vmem>>) attributes {dimension_semantics = [#tpu.dimension_semantics<parallel>], iteration_bounds = array<i64: 8>, scalar_prefetch = 0 : i64, scratch_operands = 0 : i64, tpu.core_type = #tpu.core_type<tc>, window_params = [{transform_indices = @transform_0, window_bounds = array<i64: 1, 8, 192>}, {transform_indices = @transform_1, window_bounds = array<i64: 1, 1, 8>}, {transform_indices = @transform_2, window_bounds = array<i64: 1, 1, 64>}]} {
    %c0 = arith.constant 0 : index
    %c0_0 = arith.constant 0 : index
    %c0_1 = arith.constant 0 : index
    %0 = vector.load %arg1[%c0, %c0_0, %c0_1] : memref<1x8x192xbf16, #tpu.memory_space<vmem>>, vector<1x8x192xbf16>
    %1 = vector.shape_cast %0 : vector<1x8x192xbf16> to vector<8x192xbf16>
    %c0_2 = arith.constant 0 : index
    %c0_3 = arith.constant 0 : index
    %c0_4 = arith.constant 0 : index
    %2 = vector.load %arg2[%c0_2, %c0_3, %c0_4] : memref<1x1x8xf32, #tpu.memory_space<vmem>>, vector<1x1x8xf32>
    %3 = vector.shape_cast %2 : vector<1x1x8xf32> to vector<1x8xf32>
    %4 = vector.extract_strided_slice %1 {offsets = [0, 0], sizes = [1, 16], strides = [1, 1]} : vector<8x192xbf16> to vector<1x16xbf16>
    %5 = vector.extract_strided_slice %1 {offsets = [0, 64], sizes = [8, 16], strides = [1, 1]} : vector<8x192xbf16> to vector<8x16xbf16>
    %6 = vector.extract_strided_slice %1 {offsets = [0, 128], sizes = [8, 16], strides = [1, 1]} : vector<8x192xbf16> to vector<8x16xbf16>
    %cst = arith.constant dense<0.000000e+00> : vector<1x8xf32>
    %7 = tpu.matmul %4, %5, %cst {dimension_numbers = #tpu.dot_dimension_numbers<[1], [1], [0], [0], [0, 0, 1, 0], [], []>} : vector<1x16xbf16>, vector<8x16xbf16>, vector<1x8xf32> -> vector<1x8xf32>
    %8 = arith.addf %7, %3 : vector<1x8xf32>
    %cst_5 = arith.constant dense<0xFF800000> : vector<1xf32>
    %9 = vector.multi_reduction <maximumf>, %8, %cst_5 [1] : vector<1x8xf32> to vector<1xf32>
    %10 = vector.shape_cast %9 : vector<1xf32> to vector<1x1xf32>
    %11 = vector.broadcast %10 : vector<1x1xf32> to vector<1x8xf32>
    %12 = arith.subf %8, %11 : vector<1x8xf32>
    %13 = math.exp %12 : vector<1x8xf32>
    %cst_6 = arith.constant dense<0.000000e+00> : vector<1xf32>
    %14 = vector.multi_reduction <add>, %13, %cst_6 [1] : vector<1x8xf32> to vector<1xf32>
    %15 = vector.shape_cast %14 : vector<1xf32> to vector<1x1xf32>
    %16 = tpu.reciprocal %15 {approx = true} : vector<1x1xf32> -> vector<1x1xf32>
    %17 = vector.broadcast %16 : vector<1x1xf32> to vector<1x8xf32>
    %18 = arith.mulf %13, %17 : vector<1x8xf32>
    %19 = arith.truncf %18 : vector<1x8xf32> to vector<1x8xbf16>
    %cst_7 = arith.constant dense<0.000000e+00> : vector<1x16xf32>
    %20 = tpu.matmul %19, %6, %cst_7 {dimension_numbers = #tpu.dot_dimension_numbers<[1], [0], [0], [1], [0, 0, 1, 1], [], []>} : vector<1x8xbf16>, vector<8x16xbf16>, vector<1x16xf32> -> vector<1x16xf32>
    %21 = arith.truncf %20 : vector<1x16xf32> to vector<1x16xbf16>
    %c0_8 = arith.constant 0 : index
    %c0_9 = arith.constant 0 : index
    %c0_10 = arith.constant 0 : index
    %22 = vector.load %arg3[%c0_8, %c0_9, %c0_10] : memref<1x1x64xbf16, #tpu.memory_space<vmem>>, vector<1x1x16xbf16>
    %23 = vector.shape_cast %22 : vector<1x1x16xbf16> to vector<1x16xbf16>
    %24 = vector.shape_cast %21 : vector<1x16xbf16> to vector<1x1x16xbf16>
    tpu.vector_store %arg3[%c0_8, %c0_9, %c0_10], %24 {strides = array<i32>} : memref<1x1x64xbf16, #tpu.memory_space<vmem>>, vector<1x1x16xbf16>,
    %25 = vector.extract_strided_slice %1 {offsets = [0, 16], sizes = [1, 16], strides = [1, 1]} : vector<8x192xbf16> to vector<1x16xbf16>
    %26 = vector.extract_strided_slice %1 {offsets = [0, 80], sizes = [8, 16], strides = [1, 1]} : vector<8x192xbf16> to vector<8x16xbf16>
    %27 = vector.extract_strided_slice %1 {offsets = [0, 144], sizes = [8, 16], strides = [1, 1]} : vector<8x192xbf16> to vector<8x16xbf16>
    %cst_11 = arith.constant dense<0.000000e+00> : vector<1x8xf32>
    %28 = tpu.matmul %25, %26, %cst_11 {dimension_numbers = #tpu.dot_dimension_numbers<[1], [1], [0], [0], [0, 0, 1, 0], [], []>} : vector<1x16xbf16>, vector<8x16xbf16>, vector<1x8xf32> -> vector<1x8xf32>
    %29 = arith.addf %28, %3 : vector<1x8xf32>
    %cst_12 = arith.constant dense<0xFF800000> : vector<1xf32>
    %30 = vector.multi_reduction <maximumf>, %29, %cst_12 [1] : vector<1x8xf32> to vector<1xf32>
    %31 = vector.shape_cast %30 : vector<1xf32> to vector<1x1xf32>
    %32 = vector.broadcast %31 : vector<1x1xf32> to vector<1x8xf32>
    %33 = arith.subf %29, %32 : vector<1x8xf32>
    %34 = math.exp %33 : vector<1x8xf32>
    %cst_13 = arith.constant dense<0.000000e+00> : vector<1xf32>
    %35 = vector.multi_reduction <add>, %34, %cst_13 [1] : vector<1x8xf32> to vector<1xf32>
    %36 = vector.shape_cast %35 : vector<1xf32> to vector<1x1xf32>
    %37 = tpu.reciprocal %36 {approx = true} : vector<1x1xf32> -> vector<1x1xf32>
    %38 = vector.broadcast %37 : vector<1x1xf32> to vector<1x8xf32>
    %39 = arith.mulf %34, %38 : vector<1x8xf32>
    %40 = arith.truncf %39 : vector<1x8xf32> to vector<1x8xbf16>
    %cst_14 = arith.constant dense<0.000000e+00> : vector<1x16xf32>
    %41 = tpu.matmul %40, %27, %cst_14 {dimension_numbers = #tpu.dot_dimension_numbers<[1], [0], [0], [1], [0, 0, 1, 1], [], []>} : vector<1x8xbf16>, vector<8x16xbf16>, vector<1x16xf32> -> vector<1x16xf32>
    %42 = arith.truncf %41 : vector<1x16xf32> to vector<1x16xbf16>
    %c0_15 = arith.constant 0 : index
    %c0_16 = arith.constant 0 : index
    %c16 = arith.constant 16 : index
    %43 = vector.load %arg3[%c0_15, %c0_16, %c16] : memref<1x1x64xbf16, #tpu.memory_space<vmem>>, vector<1x1x16xbf16>
    %44 = vector.shape_cast %43 : vector<1x1x16xbf16> to vector<1x16xbf16>
    %45 = vector.shape_cast %42 : vector<1x16xbf16> to vector<1x1x16xbf16>
    tpu.vector_store %arg3[%c0_15, %c0_16, %c16], %45 {strides = array<i32>} : memref<1x1x64xbf16, #tpu.memory_space<vmem>>, vector<1x1x16xbf16>,
    %46 = vector.extract_strided_slice %1 {offsets = [0, 32], sizes = [1, 16], strides = [1, 1]} : vector<8x192xbf16> to vector<1x16xbf16>
    %47 = vector.extract_strided_slice %1 {offsets = [0, 96], sizes = [8, 16], strides = [1, 1]} : vector<8x192xbf16> to vector<8x16xbf16>
    %48 = vector.extract_strided_slice %1 {offsets = [0, 160], sizes = [8, 16], strides = [1, 1]} : vector<8x192xbf16> to vector<8x16xbf16>
    %cst_17 = arith.constant dense<0.000000e+00> : vector<1x8xf32>
    %49 = tpu.matmul %46, %47, %cst_17 {dimension_numbers = #tpu.dot_dimension_numbers<[1], [1], [0], [0], [0, 0, 1, 0], [], []>} : vector<1x16xbf16>, vector<8x16xbf16>, vector<1x8xf32> -> vector<1x8xf32>
    %50 = arith.addf %49, %3 : vector<1x8xf32>
    %cst_18 = arith.constant dense<0xFF800000> : vector<1xf32>
    %51 = vector.multi_reduction <maximumf>, %50, %cst_18 [1] : vector<1x8xf32> to vector<1xf32>
    %52 = vector.shape_cast %51 : vector<1xf32> to vector<1x1xf32>
    %53 = vector.broadcast %52 : vector<1x1xf32> to vector<1x8xf32>
    %54 = arith.subf %50, %53 : vector<1x8xf32>
    %55 = math.exp %54 : vector<1x8xf32>
    %cst_19 = arith.constant dense<0.000000e+00> : vector<1xf32>
    %56 = vector.multi_reduction <add>, %55, %cst_19 [1] : vector<1x8xf32> to vector<1xf32>
    %57 = vector.shape_cast %56 : vector<1xf32> to vector<1x1xf32>
    %58 = tpu.reciprocal %57 {approx = true} : vector<1x1xf32> -> vector<1x1xf32>
    %59 = vector.broadcast %58 : vector<1x1xf32> to vector<1x8xf32>
    %60 = arith.mulf %55, %59 : vector<1x8xf32>
    %61 = arith.truncf %60 : vector<1x8xf32> to vector<1x8xbf16>
    %cst_20 = arith.constant dense<0.000000e+00> : vector<1x16xf32>
    %62 = tpu.matmul %61, %48, %cst_20 {dimension_numbers = #tpu.dot_dimension_numbers<[1], [0], [0], [1], [0, 0, 1, 1], [], []>} : vector<1x8xbf16>, vector<8x16xbf16>, vector<1x16xf32> -> vector<1x16xf32>
    %63 = arith.truncf %62 : vector<1x16xf32> to vector<1x16xbf16>
    %c0_21 = arith.constant 0 : index
    %c0_22 = arith.constant 0 : index
    %c32 = arith.constant 32 : index
    %64 = vector.load %arg3[%c0_21, %c0_22, %c32] : memref<1x1x64xbf16, #tpu.memory_space<vmem>>, vector<1x1x16xbf16>
    %65 = vector.shape_cast %64 : vector<1x1x16xbf16> to vector<1x16xbf16>
    %66 = vector.shape_cast %63 : vector<1x16xbf16> to vector<1x1x16xbf16>
    tpu.vector_store %arg3[%c0_21, %c0_22, %c32], %66 {strides = array<i32>} : memref<1x1x64xbf16, #tpu.memory_space<vmem>>, vector<1x1x16xbf16>,
    %67 = vector.extract_strided_slice %1 {offsets = [0, 48], sizes = [1, 16], strides = [1, 1]} : vector<8x192xbf16> to vector<1x16xbf16>
    %68 = vector.extract_strided_slice %1 {offsets = [0, 112], sizes = [8, 16], strides = [1, 1]} : vector<8x192xbf16> to vector<8x16xbf16>
    %69 = vector.extract_strided_slice %1 {offsets = [0, 176], sizes = [8, 16], strides = [1, 1]} : vector<8x192xbf16> to vector<8x16xbf16>
    %cst_23 = arith.constant dense<0.000000e+00> : vector<1x8xf32>
    %70 = tpu.matmul %67, %68, %cst_23 {dimension_numbers = #tpu.dot_dimension_numbers<[1], [1], [0], [0], [0, 0, 1, 0], [], []>} : vector<1x16xbf16>, vector<8x16xbf16>, vector<1x8xf32> -> vector<1x8xf32>
    %71 = arith.addf %70, %3 : vector<1x8xf32>
    %cst_24 = arith.constant dense<0xFF800000> : vector<1xf32>
    %72 = vector.multi_reduction <maximumf>, %71, %cst_24 [1] : vector<1x8xf32> to vector<1xf32>
    %73 = vector.shape_cast %72 : vector<1xf32> to vector<1x1xf32>
    %74 = vector.broadcast %73 : vector<1x1xf32> to vector<1x8xf32>
    %75 = arith.subf %71, %74 : vector<1x8xf32>
    %76 = math.exp %75 : vector<1x8xf32>
    %cst_25 = arith.constant dense<0.000000e+00> : vector<1xf32>
    %77 = vector.multi_reduction <add>, %76, %cst_25 [1] : vector<1x8xf32> to vector<1xf32>
    %78 = vector.shape_cast %77 : vector<1xf32> to vector<1x1xf32>
    %79 = tpu.reciprocal %78 {approx = true} : vector<1x1xf32> -> vector<1x1xf32>
    %80 = vector.broadcast %79 : vector<1x1xf32> to vector<1x8xf32>
    %81 = arith.mulf %76, %80 : vector<1x8xf32>
    %82 = arith.truncf %81 : vector<1x8xf32> to vector<1x8xbf16>
    %cst_26 = arith.constant dense<0.000000e+00> : vector<1x16xf32>
    %83 = tpu.matmul %82, %69, %cst_26 {dimension_numbers = #tpu.dot_dimension_numbers<[1], [0], [0], [1], [0, 0, 1, 1], [], []>} : vector<1x8xbf16>, vector<8x16xbf16>, vector<1x16xf32> -> vector<1x16xf32>
    %84 = arith.truncf %83 : vector<1x16xf32> to vector<1x16xbf16>
    %c0_27 = arith.constant 0 : index
    %c0_28 = arith.constant 0 : index
    %c48 = arith.constant 48 : index
    %85 = vector.load %arg3[%c0_27, %c0_28, %c48] : memref<1x1x64xbf16, #tpu.memory_space<vmem>>, vector<1x1x16xbf16>
    %86 = vector.shape_cast %85 : vector<1x1x16xbf16> to vector<1x16xbf16>
    %87 = vector.shape_cast %84 : vector<1x16xbf16> to vector<1x1x16xbf16>
    tpu.vector_store %arg3[%c0_27, %c0_28, %c48], %87 {strides = array<i32>} : memref<1x1x64xbf16, #tpu.memory_space<vmem>>, vector<1x1x16xbf16>,
    return
  }
  func.func @transform_0(%arg0: i32) -> (i32, i32, i32) {
    %c0_i32 = arith.constant 0 : i32
    %c0_i32_0 = arith.constant 0 : i32
    %c0_i32_1 = arith.constant 0 : i32
    return %arg0, %c0_i32, %c0_i32_0 : i32, i32, i32
  }
  func.func @transform_1(%arg0: i32) -> (i32, i32, i32) {
    %c0_i32 = arith.constant 0 : i32
    %c0_i32_0 = arith.constant 0 : i32
    %c0_i32_1 = arith.constant 0 : i32
    return %arg0, %c0_i32, %c0_i32_0 : i32, i32, i32
  }
  func.func @transform_2(%arg0: i32) -> (i32, i32, i32) {
    %c0_i32 = arith.constant 0 : i32
    %c0_i32_0 = arith.constant 0 : i32
    %c0_i32_1 = arith.constant 0 : i32
    return %arg0, %c0_i32, %c0_i32_0 : i32, i32, i32
  }
}

module attributes {stable_mosaic.version = 11 : i64} {
  func.func @_matmul_kernel(%arg0: i32, %arg1: i32, %arg2: i32, %arg3: memref<8x64xbf16, #tpu.memory_space<vmem>>, %arg4: memref<64x64xbf16, #tpu.memory_space<vmem>>, %arg5: memref<1x64xf32, #tpu.memory_space<vmem>>, %arg6: memref<8x64xbf16, #tpu.memory_space<vmem>>, %arg7: memref<8x64xf32, #tpu.memory_space<vmem>>) attributes {dimension_semantics = [#tpu.dimension_semantics<parallel>, #tpu.dimension_semantics<parallel>, #tpu.dimension_semantics<arbitrary>], iteration_bounds = array<i64: 1, 1, 1>, scalar_prefetch = 0 : i64, scratch_operands = 1 : i64, tpu.core_type = #tpu.core_type<tc>, window_params = [{transform_indices = @transform_0, window_bounds = array<i64: 8, 64>}, {transform_indices = @transform_1, window_bounds = array<i64: 64, 64>}, {transform_indices = @transform_2, window_bounds = array<i64: 1, 64>}, {transform_indices = @transform_3, window_bounds = array<i64: 8, 64>}]} {
    %c0_i32 = arith.constant 0 : i32
    %0 = arith.cmpi eq, %arg2, %c0_i32 : i32
    %1 = arith.extui %0 : i1 to i32
    %c0_i32_0 = arith.constant 0 : i32
    %2 = arith.cmpi ne, %1, %c0_i32_0 : i32
    scf.if %2 {
      %cst_10 = arith.constant 0.000000e+00 : f32
      %12 = vector.broadcast %cst_10 : f32 to vector<8x64xf32>
      %c0_11 = arith.constant 0 : index
      %c0_12 = arith.constant 0 : index
      %13 = vector.load %arg7[%c0_11, %c0_12] : memref<8x64xf32, #tpu.memory_space<vmem>>, vector<8x64xf32>
      tpu.vector_store %arg7[%c0_11, %c0_12], %12 {strides = array<i32>} : memref<8x64xf32, #tpu.memory_space<vmem>>, vector<8x64xf32>,
    } else {
    }
    %c0 = arith.constant 0 : index
    %c0_1 = arith.constant 0 : index
    %3 = vector.load %arg7[%c0, %c0_1] : memref<8x64xf32, #tpu.memory_space<vmem>>, vector<8x64xf32>
    %c0_2 = arith.constant 0 : index
    %c0_3 = arith.constant 0 : index
    %4 = vector.load %arg3[%c0_2, %c0_3] : memref<8x64xbf16, #tpu.memory_space<vmem>>, vector<8x64xbf16>
    %c0_4 = arith.constant 0 : index
    %c0_5 = arith.constant 0 : index
    %5 = vector.load %arg4[%c0_4, %c0_5] : memref<64x64xbf16, #tpu.memory_space<vmem>>, vector<64x64xbf16>
    %cst = arith.constant dense<0.000000e+00> : vector<8x64xf32>
    %6 = tpu.matmul %4, %5, %cst {dimension_numbers = #tpu.dot_dimension_numbers<[1], [0], [0], [1], [0, 0, 1, 1], [], []>} : vector<8x64xbf16>, vector<64x64xbf16>, vector<8x64xf32> -> vector<8x64xf32>
    %7 = arith.addf %3, %6 : vector<8x64xf32>
    %c0_6 = arith.constant 0 : index
    %c0_7 = arith.constant 0 : index
    %8 = vector.load %arg7[%c0_6, %c0_7] : memref<8x64xf32, #tpu.memory_space<vmem>>, vector<8x64xf32>
    tpu.vector_store %arg7[%c0_6, %c0_7], %7 {strides = array<i32>} : memref<8x64xf32, #tpu.memory_space<vmem>>, vector<8x64xf32>,
    %c0_i32_8 = arith.constant 0 : i32
    %9 = arith.cmpi eq, %arg2, %c0_i32_8 : i32
    %10 = arith.extui %9 : i1 to i32
    %c0_i32_9 = arith.constant 0 : i32
    %11 = arith.cmpi ne, %10, %c0_i32_9 : i32
    scf.if %11 {
      %c0_10 = arith.constant 0 : index
      %c0_11 = arith.constant 0 : index
      %12 = vector.load %arg7[%c0_10, %c0_11] : memref<8x64xf32, #tpu.memory_space<vmem>>, vector<8x64xf32>
      %c0_12 = arith.constant 0 : index
      %c0_13 = arith.constant 0 : index
      %13 = vector.load %arg5[%c0_12, %c0_13] : memref<1x64xf32, #tpu.memory_space<vmem>>, vector<1x64xf32>
      %14 = vector.broadcast %13 : vector<1x64xf32> to vector<8x64xf32>
      %15 = arith.addf %12, %14 : vector<8x64xf32>
      %16 = arith.truncf %15 : vector<8x64xf32> to vector<8x64xbf16>
      %c0_14 = arith.constant 0 : index
      %c0_15 = arith.constant 0 : index
      %17 = vector.load %arg6[%c0_14, %c0_15] : memref<8x64xbf16, #tpu.memory_space<vmem>>, vector<8x64xbf16>
      tpu.vector_store %arg6[%c0_14, %c0_15], %16 {strides = array<i32>} : memref<8x64xbf16, #tpu.memory_space<vmem>>, vector<8x64xbf16>,
    } else {
    }
    return
  }
  func.func @transform_0(%arg0: i32, %arg1: i32, %arg2: i32) -> (i32, i32) {
    %c0_i32 = arith.constant 0 : i32
    return %arg0, %arg2 : i32, i32
  }
  func.func @transform_1(%arg0: i32, %arg1: i32, %arg2: i32) -> (i32, i32) {
    %c0_i32 = arith.constant 0 : i32
    return %arg2, %arg1 : i32, i32
  }
  func.func @transform_2(%arg0: i32, %arg1: i32, %arg2: i32) -> (i32, i32) {
    %c0_i32 = arith.constant 0 : i32
    %c0_i32_0 = arith.constant 0 : i32
    return %c0_i32, %arg1 : i32, i32
  }
  func.func @transform_3(%arg0: i32, %arg1: i32, %arg2: i32) -> (i32, i32) {
    %c0_i32 = arith.constant 0 : i32
    return %arg0, %arg1 : i32, i32
  }
}

module attributes {stable_mosaic.version = 11 : i64} {
  func.func @_layernorm_res_kernel(%arg0: i32, %arg1: memref<8x64xbf16, #tpu.memory_space<vmem>>, %arg2: memref<8x64xbf16, #tpu.memory_space<vmem>>, %arg3: memref<1x64xf32, #tpu.memory_space<vmem>>, %arg4: memref<1x64xf32, #tpu.memory_space<vmem>>, %arg5: memref<8x64xbf16, #tpu.memory_space<vmem>>) attributes {dimension_semantics = [#tpu.dimension_semantics<parallel>], iteration_bounds = array<i64: 1>, scalar_prefetch = 0 : i64, scratch_operands = 0 : i64, tpu.core_type = #tpu.core_type<tc>, window_params = [{transform_indices = @transform_0, window_bounds = array<i64: 8, 64>}, {transform_indices = @transform_1, window_bounds = array<i64: 8, 64>}, {pipeline_mode = #tpu.pipeline_mode<synchronous>, transform_indices = @transform_2, window_bounds = array<i64: 1, 64>}, {pipeline_mode = #tpu.pipeline_mode<synchronous>, transform_indices = @transform_3, window_bounds = array<i64: 1, 64>}, {transform_indices = @transform_4, window_bounds = array<i64: 8, 64>}]} {
    %c0 = arith.constant 0 : index
    %c0_0 = arith.constant 0 : index
    %0 = vector.load %arg1[%c0, %c0_0] : memref<8x64xbf16, #tpu.memory_space<vmem>>, vector<8x64xbf16>
    %1 = arith.extf %0 : vector<8x64xbf16> to vector<8x64xf32>
    %c0_1 = arith.constant 0 : index
    %c0_2 = arith.constant 0 : index
    %2 = vector.load %arg2[%c0_1, %c0_2] : memref<8x64xbf16, #tpu.memory_space<vmem>>, vector<8x64xbf16>
    %3 = arith.extf %2 : vector<8x64xbf16> to vector<8x64xf32>
    %4 = arith.addf %1, %3 : vector<8x64xf32>
    %cst = arith.constant dense<0.000000e+00> : vector<8xf32>
    %5 = vector.multi_reduction <add>, %4, %cst [1] : vector<8x64xf32> to vector<8xf32>
    %6 = vector.shape_cast %5 : vector<8xf32> to vector<8x1xf32>
    %cst_3 = arith.constant 6.400000e+01 : f32
    %7 = vector.broadcast %cst_3 : f32 to vector<8x1xf32>
    %8 = arith.divf %6, %7 : vector<8x1xf32>
    %9 = vector.broadcast %8 : vector<8x1xf32> to vector<8x64xf32>
    %10 = arith.subf %4, %9 : vector<8x64xf32>
    %11 = arith.mulf %10, %10 : vector<8x64xf32>
    %cst_4 = arith.constant dense<0.000000e+00> : vector<8xf32>
    %12 = vector.multi_reduction <add>, %11, %cst_4 [1] : vector<8x64xf32> to vector<8xf32>
    %13 = vector.shape_cast %12 : vector<8xf32> to vector<8x1xf32>
    %cst_5 = arith.constant 6.400000e+01 : f32
    %14 = vector.broadcast %cst_5 : f32 to vector<8x1xf32>
    %15 = arith.divf %13, %14 : vector<8x1xf32>
    %cst_6 = arith.constant 9.99999996E-13 : f32
    %16 = vector.broadcast %cst_6 : f32 to vector<8x1xf32>
    %17 = arith.addf %15, %16 : vector<8x1xf32>
    %18 = math.rsqrt %17 : vector<8x1xf32>
    %19 = vector.broadcast %18 : vector<8x1xf32> to vector<8x64xf32>
    %20 = arith.mulf %10, %19 : vector<8x64xf32>
    %c0_7 = arith.constant 0 : index
    %c0_8 = arith.constant 0 : index
    %21 = vector.load %arg3[%c0_7, %c0_8] : memref<1x64xf32, #tpu.memory_space<vmem>>, vector<1x64xf32>
    %22 = vector.broadcast %21 : vector<1x64xf32> to vector<8x64xf32>
    %23 = arith.mulf %20, %22 : vector<8x64xf32>
    %c0_9 = arith.constant 0 : index
    %c0_10 = arith.constant 0 : index
    %24 = vector.load %arg4[%c0_9, %c0_10] : memref<1x64xf32, #tpu.memory_space<vmem>>, vector<1x64xf32>
    %25 = vector.broadcast %24 : vector<1x64xf32> to vector<8x64xf32>
    %26 = arith.addf %23, %25 : vector<8x64xf32>
    %27 = arith.truncf %26 : vector<8x64xf32> to vector<8x64xbf16>
    %c0_11 = arith.constant 0 : index
    %c0_12 = arith.constant 0 : index
    %28 = vector.load %arg5[%c0_11, %c0_12] : memref<8x64xbf16, #tpu.memory_space<vmem>>, vector<8x64xbf16>
    tpu.vector_store %arg5[%c0_11, %c0_12], %27 {strides = array<i32>} : memref<8x64xbf16, #tpu.memory_space<vmem>>, vector<8x64xbf16>,
    return
  }
  func.func @transform_0(%arg0: i32) -> (i32, i32) {
    %c0_i32 = arith.constant 0 : i32
    %c0_i32_0 = arith.constant 0 : i32
    return %arg0, %c0_i32 : i32, i32
  }
  func.func @transform_1(%arg0: i32) -> (i32, i32) {
    %c0_i32 = arith.constant 0 : i32
    %c0_i32_0 = arith.constant 0 : i32
    return %arg0, %c0_i32 : i32, i32
  }
  func.func @transform_2(%arg0: i32) -> (i32, i32) {
    %c0_i32 = arith.constant 0 : i32
    %c0_i32_0 = arith.constant 0 : i32
    %c0_i32_1 = arith.constant 0 : i32
    return %c0_i32, %c0_i32_0 : i32, i32
  }
  func.func @transform_3(%arg0: i32) -> (i32, i32) {
    %c0_i32 = arith.constant 0 : i32
    %c0_i32_0 = arith.constant 0 : i32
    %c0_i32_1 = arith.constant 0 : i32
    return %c0_i32, %c0_i32_0 : i32, i32
  }
  func.func @transform_4(%arg0: i32) -> (i32, i32) {
    %c0_i32 = arith.constant 0 : i32
    %c0_i32_0 = arith.constant 0 : i32
    return %arg0, %c0_i32 : i32, i32
  }
}

module attributes {stable_mosaic.version = 11 : i64} {
  func.func @_ffn_kernel(%arg0: i32, %arg1: i32, %arg2: memref<8x64xbf16, #tpu.memory_space<vmem>>, %arg3: memref<64x128xbf16, #tpu.memory_space<vmem>>, %arg4: memref<1x128xf32, #tpu.memory_space<vmem>>, %arg5: memref<128x64xbf16, #tpu.memory_space<vmem>>, %arg6: memref<1x64xf32, #tpu.memory_space<vmem>>, %arg7: memref<8x64xbf16, #tpu.memory_space<vmem>>, %arg8: memref<8x64xf32, #tpu.memory_space<vmem>>) attributes {dimension_semantics = [#tpu.dimension_semantics<parallel>, #tpu.dimension_semantics<arbitrary>], iteration_bounds = array<i64: 1, 1>, scalar_prefetch = 0 : i64, scratch_operands = 1 : i64, tpu.core_type = #tpu.core_type<tc>, window_params = [{transform_indices = @transform_0, window_bounds = array<i64: 8, 64>}, {transform_indices = @transform_1, window_bounds = array<i64: 64, 128>}, {transform_indices = @transform_2, window_bounds = array<i64: 1, 128>}, {transform_indices = @transform_3, window_bounds = array<i64: 128, 64>}, {pipeline_mode = #tpu.pipeline_mode<synchronous>, transform_indices = @transform_4, window_bounds = array<i64: 1, 64>}, {transform_indices = @transform_5, window_bounds = array<i64: 8, 64>}]} {
    %c0_i32 = arith.constant 0 : i32
    %0 = arith.cmpi eq, %arg1, %c0_i32 : i32
    %1 = arith.extui %0 : i1 to i32
    %c0_i32_0 = arith.constant 0 : i32
    %2 = arith.cmpi ne, %1, %c0_i32_0 : i32
    scf.if %2 {
      %cst_19 = arith.constant 0.000000e+00 : f32
      %31 = vector.broadcast %cst_19 : f32 to vector<8x64xf32>
      %c0_20 = arith.constant 0 : index
      %c0_21 = arith.constant 0 : index
      %32 = vector.load %arg8[%c0_20, %c0_21] : memref<8x64xf32, #tpu.memory_space<vmem>>, vector<8x64xf32>
      tpu.vector_store %arg8[%c0_20, %c0_21], %31 {strides = array<i32>} : memref<8x64xf32, #tpu.memory_space<vmem>>, vector<8x64xf32>,
    } else {
    }
    %c0 = arith.constant 0 : index
    %c0_1 = arith.constant 0 : index
    %3 = vector.load %arg2[%c0, %c0_1] : memref<8x64xbf16, #tpu.memory_space<vmem>>, vector<8x64xbf16>
    %c0_2 = arith.constant 0 : index
    %c0_3 = arith.constant 0 : index
    %4 = vector.load %arg3[%c0_2, %c0_3] : memref<64x128xbf16, #tpu.memory_space<vmem>>, vector<64x128xbf16>
    %cst = arith.constant dense<0.000000e+00> : vector<8x128xf32>
    %5 = tpu.matmul %3, %4, %cst {dimension_numbers = #tpu.dot_dimension_numbers<[1], [0], [0], [1], [0, 0, 1, 1], [], []>} : vector<8x64xbf16>, vector<64x128xbf16>, vector<8x128xf32> -> vector<8x128xf32>
    %c0_4 = arith.constant 0 : index
    %c0_5 = arith.constant 0 : index
    %6 = vector.load %arg4[%c0_4, %c0_5] : memref<1x128xf32, #tpu.memory_space<vmem>>, vector<1x128xf32>
    %7 = vector.broadcast %6 : vector<1x128xf32> to vector<8x128xf32>
    %8 = arith.addf %5, %7 : vector<8x128xf32>
    %cst_6 = arith.constant 5.000000e-01 : f32
    %9 = vector.broadcast %cst_6 : f32 to vector<8x128xf32>
    %10 = arith.mulf %9, %8 : vector<8x128xf32>
    %cst_7 = arith.constant 4.471500e-02 : f32
    %11 = vector.broadcast %cst_7 : f32 to vector<8x128xf32>
    %12 = arith.mulf %11, %8 : vector<8x128xf32>
    %13 = arith.mulf %12, %8 : vector<8x128xf32>
    %14 = arith.mulf %13, %8 : vector<8x128xf32>
    %15 = arith.addf %8, %14 : vector<8x128xf32>
    %cst_8 = arith.constant 0.797884583 : f32
    %16 = vector.broadcast %cst_8 : f32 to vector<8x128xf32>
    %17 = arith.mulf %16, %15 : vector<8x128xf32>
    %18 = math.tanh %17 : vector<8x128xf32>
    %cst_9 = arith.constant 1.000000e+00 : f32
    %19 = vector.broadcast %cst_9 : f32 to vector<8x128xf32>
    %20 = arith.addf %19, %18 : vector<8x128xf32>
    %21 = arith.mulf %10, %20 : vector<8x128xf32>
    %c0_10 = arith.constant 0 : index
    %c0_11 = arith.constant 0 : index
    %22 = vector.load %arg8[%c0_10, %c0_11] : memref<8x64xf32, #tpu.memory_space<vmem>>, vector<8x64xf32>
    %23 = arith.truncf %21 : vector<8x128xf32> to vector<8x128xbf16>
    %c0_12 = arith.constant 0 : index
    %c0_13 = arith.constant 0 : index
    %24 = vector.load %arg5[%c0_12, %c0_13] : memref<128x64xbf16, #tpu.memory_space<vmem>>, vector<128x64xbf16>
    %cst_14 = arith.constant dense<0.000000e+00> : vector<8x64xf32>
    %25 = tpu.matmul %23, %24, %cst_14 {dimension_numbers = #tpu.dot_dimension_numbers<[1], [0], [0], [1], [0, 0, 1, 1], [], []>} : vector<8x128xbf16>, vector<128x64xbf16>, vector<8x64xf32> -> vector<8x64xf32>
    %26 = arith.addf %22, %25 : vector<8x64xf32>
    %c0_15 = arith.constant 0 : index
    %c0_16 = arith.constant 0 : index
    %27 = vector.load %arg8[%c0_15, %c0_16] : memref<8x64xf32, #tpu.memory_space<vmem>>, vector<8x64xf32>
    tpu.vector_store %arg8[%c0_15, %c0_16], %26 {strides = array<i32>} : memref<8x64xf32, #tpu.memory_space<vmem>>, vector<8x64xf32>,
    %c0_i32_17 = arith.constant 0 : i32
    %28 = arith.cmpi eq, %arg1, %c0_i32_17 : i32
    %29 = arith.extui %28 : i1 to i32
    %c0_i32_18 = arith.constant 0 : i32
    %30 = arith.cmpi ne, %29, %c0_i32_18 : i32
    scf.if %30 {
      %c0_19 = arith.constant 0 : index
      %c0_20 = arith.constant 0 : index
      %31 = vector.load %arg8[%c0_19, %c0_20] : memref<8x64xf32, #tpu.memory_space<vmem>>, vector<8x64xf32>
      %c0_21 = arith.constant 0 : index
      %c0_22 = arith.constant 0 : index
      %32 = vector.load %arg6[%c0_21, %c0_22] : memref<1x64xf32, #tpu.memory_space<vmem>>, vector<1x64xf32>
      %33 = vector.broadcast %32 : vector<1x64xf32> to vector<8x64xf32>
      %34 = arith.addf %31, %33 : vector<8x64xf32>
      %35 = arith.truncf %34 : vector<8x64xf32> to vector<8x64xbf16>
      %c0_23 = arith.constant 0 : index
      %c0_24 = arith.constant 0 : index
      %36 = vector.load %arg7[%c0_23, %c0_24] : memref<8x64xbf16, #tpu.memory_space<vmem>>, vector<8x64xbf16>
      tpu.vector_store %arg7[%c0_23, %c0_24], %35 {strides = array<i32>} : memref<8x64xbf16, #tpu.memory_space<vmem>>, vector<8x64xbf16>,
    } else {
    }
    return
  }
  func.func @transform_0(%arg0: i32, %arg1: i32) -> (i32, i32) {
    %c0_i32 = arith.constant 0 : i32
    %c0_i32_0 = arith.constant 0 : i32
    return %arg0, %c0_i32 : i32, i32
  }
  func.func @transform_1(%arg0: i32, %arg1: i32) -> (i32, i32) {
    %c0_i32 = arith.constant 0 : i32
    %c0_i32_0 = arith.constant 0 : i32
    return %c0_i32, %arg1 : i32, i32
  }
  func.func @transform_2(%arg0: i32, %arg1: i32) -> (i32, i32) {
    %c0_i32 = arith.constant 0 : i32
    %c0_i32_0 = arith.constant 0 : i32
    return %c0_i32, %arg1 : i32, i32
  }
  func.func @transform_3(%arg0: i32, %arg1: i32) -> (i32, i32) {
    %c0_i32 = arith.constant 0 : i32
    %c0_i32_0 = arith.constant 0 : i32
    return %arg1, %c0_i32 : i32, i32
  }
  func.func @transform_4(%arg0: i32, %arg1: i32) -> (i32, i32) {
    %c0_i32 = arith.constant 0 : i32
    %c0_i32_0 = arith.constant 0 : i32
    %c0_i32_1 = arith.constant 0 : i32
    return %c0_i32, %c0_i32_0 : i32, i32
  }
  func.func @transform_5(%arg0: i32, %arg1: i32) -> (i32, i32) {
    %c0_i32 = arith.constant 0 : i32
    %c0_i32_0 = arith.constant 0 : i32
    return %arg0, %c0_i32 : i32, i32
  }
}

module attributes {stable_mosaic.version = 11 : i64} {
  func.func @_matmul_kernel(%arg0: i32, %arg1: i32, %arg2: i32, %arg3: memref<8x64xbf16, #tpu.memory_space<vmem>>, %arg4: memref<64x192xbf16, #tpu.memory_space<vmem>>, %arg5: memref<1x192xf32, #tpu.memory_space<vmem>>, %arg6: memref<8x192xbf16, #tpu.memory_space<vmem>>, %arg7: memref<8x192xf32, #tpu.memory_space<vmem>>) attributes {dimension_semantics = [#tpu.dimension_semantics<parallel>, #tpu.dimension_semantics<parallel>, #tpu.dimension_semantics<arbitrary>], iteration_bounds = array<i64: 1, 1, 1>, scalar_prefetch = 0 : i64, scratch_operands = 1 : i64, tpu.core_type = #tpu.core_type<tc>, window_params = [{transform_indices = @transform_0, window_bounds = array<i64: 8, 64>}, {transform_indices = @transform_1, window_bounds = array<i64: 64, 192>}, {transform_indices = @transform_2, window_bounds = array<i64: 1, 192>}, {transform_indices = @transform_3, window_bounds = array<i64: 8, 192>}]} {
    %c0_i32 = arith.constant 0 : i32
    %0 = arith.cmpi eq, %arg2, %c0_i32 : i32
    %1 = arith.extui %0 : i1 to i32
    %c0_i32_0 = arith.constant 0 : i32
    %2 = arith.cmpi ne, %1, %c0_i32_0 : i32
    scf.if %2 {
      %cst_10 = arith.constant 0.000000e+00 : f32
      %12 = vector.broadcast %cst_10 : f32 to vector<8x192xf32>
      %c0_11 = arith.constant 0 : index
      %c0_12 = arith.constant 0 : index
      %13 = vector.load %arg7[%c0_11, %c0_12] : memref<8x192xf32, #tpu.memory_space<vmem>>, vector<8x192xf32>
      tpu.vector_store %arg7[%c0_11, %c0_12], %12 {strides = array<i32>} : memref<8x192xf32, #tpu.memory_space<vmem>>, vector<8x192xf32>,
    } else {
    }
    %c0 = arith.constant 0 : index
    %c0_1 = arith.constant 0 : index
    %3 = vector.load %arg7[%c0, %c0_1] : memref<8x192xf32, #tpu.memory_space<vmem>>, vector<8x192xf32>
    %c0_2 = arith.constant 0 : index
    %c0_3 = arith.constant 0 : index
    %4 = vector.load %arg3[%c0_2, %c0_3] : memref<8x64xbf16, #tpu.memory_space<vmem>>, vector<8x64xbf16>
    %c0_4 = arith.constant 0 : index
    %c0_5 = arith.constant 0 : index
    %5 = vector.load %arg4[%c0_4, %c0_5] : memref<64x192xbf16, #tpu.memory_space<vmem>>, vector<64x192xbf16>
    %cst = arith.constant dense<0.000000e+00> : vector<8x192xf32>
    %6 = tpu.matmul %4, %5, %cst {dimension_numbers = #tpu.dot_dimension_numbers<[1], [0], [0], [1], [0, 0, 1, 1], [], []>} : vector<8x64xbf16>, vector<64x192xbf16>, vector<8x192xf32> -> vector<8x192xf32>
    %7 = arith.addf %3, %6 : vector<8x192xf32>
    %c0_6 = arith.constant 0 : index
    %c0_7 = arith.constant 0 : index
    %8 = vector.load %arg7[%c0_6, %c0_7] : memref<8x192xf32, #tpu.memory_space<vmem>>, vector<8x192xf32>
    tpu.vector_store %arg7[%c0_6, %c0_7], %7 {strides = array<i32>} : memref<8x192xf32, #tpu.memory_space<vmem>>, vector<8x192xf32>,
    %c0_i32_8 = arith.constant 0 : i32
    %9 = arith.cmpi eq, %arg2, %c0_i32_8 : i32
    %10 = arith.extui %9 : i1 to i32
    %c0_i32_9 = arith.constant 0 : i32
    %11 = arith.cmpi ne, %10, %c0_i32_9 : i32
    scf.if %11 {
      %c0_10 = arith.constant 0 : index
      %c0_11 = arith.constant 0 : index
      %12 = vector.load %arg7[%c0_10, %c0_11] : memref<8x192xf32, #tpu.memory_space<vmem>>, vector<8x192xf32>
      %c0_12 = arith.constant 0 : index
      %c0_13 = arith.constant 0 : index
      %13 = vector.load %arg5[%c0_12, %c0_13] : memref<1x192xf32, #tpu.memory_space<vmem>>, vector<1x192xf32>
      %14 = vector.broadcast %13 : vector<1x192xf32> to vector<8x192xf32>
      %15 = arith.addf %12, %14 : vector<8x192xf32>
      %16 = arith.truncf %15 : vector<8x192xf32> to vector<8x192xbf16>
      %c0_14 = arith.constant 0 : index
      %c0_15 = arith.constant 0 : index
      %17 = vector.load %arg6[%c0_14, %c0_15] : memref<8x192xbf16, #tpu.memory_space<vmem>>, vector<8x192xbf16>
      tpu.vector_store %arg6[%c0_14, %c0_15], %16 {strides = array<i32>} : memref<8x192xbf16, #tpu.memory_space<vmem>>, vector<8x192xbf16>,
    } else {
    }
    return
  }
  func.func @transform_0(%arg0: i32, %arg1: i32, %arg2: i32) -> (i32, i32) {
    %c0_i32 = arith.constant 0 : i32
    return %arg0, %arg2 : i32, i32
  }
  func.func @transform_1(%arg0: i32, %arg1: i32, %arg2: i32) -> (i32, i32) {
    %c0_i32 = arith.constant 0 : i32
    return %arg2, %arg1 : i32, i32
  }
  func.func @transform_2(%arg0: i32, %arg1: i32, %arg2: i32) -> (i32, i32) {
    %c0_i32 = arith.constant 0 : i32
    %c0_i32_0 = arith.constant 0 : i32
    return %c0_i32, %arg1 : i32, i32
  }
  func.func @transform_3(%arg0: i32, %arg1: i32, %arg2: i32) -> (i32, i32) {
    %c0_i32 = arith.constant 0 : i32
    return %arg0, %arg1 : i32, i32
  }
}

module attributes {stable_mosaic.version = 11 : i64} {
  func.func @_attention_kernel(%arg0: i32, %arg1: memref<1x4x192xbf16, #tpu.memory_space<vmem>>, %arg2: memref<1x1x4xf32, #tpu.memory_space<vmem>>, %arg3: memref<1x4x64xbf16, #tpu.memory_space<vmem>>) attributes {dimension_semantics = [#tpu.dimension_semantics<parallel>], iteration_bounds = array<i64: 2>, scalar_prefetch = 0 : i64, scratch_operands = 0 : i64, tpu.core_type = #tpu.core_type<tc>, window_params = [{transform_indices = @transform_0, window_bounds = array<i64: 1, 4, 192>}, {transform_indices = @transform_1, window_bounds = array<i64: 1, 1, 4>}, {transform_indices = @transform_2, window_bounds = array<i64: 1, 4, 64>}]} {
    %c0 = arith.constant 0 : index
    %c0_0 = arith.constant 0 : index
    %c0_1 = arith.constant 0 : index
    %0 = vector.load %arg1[%c0, %c0_0, %c0_1] : memref<1x4x192xbf16, #tpu.memory_space<vmem>>, vector<1x4x192xbf16>
    %1 = vector.shape_cast %0 : vector<1x4x192xbf16> to vector<4x192xbf16>
    %c0_2 = arith.constant 0 : index
    %c0_3 = arith.constant 0 : index
    %c0_4 = arith.constant 0 : index
    %2 = vector.load %arg2[%c0_2, %c0_3, %c0_4] : memref<1x1x4xf32, #tpu.memory_space<vmem>>, vector<1x1x4xf32>
    %3 = vector.shape_cast %2 : vector<1x1x4xf32> to vector<1x4xf32>
    %4 = vector.extract_strided_slice %1 {offsets = [0, 0], sizes = [4, 8], strides = [1, 1]} : vector<4x192xbf16> to vector<4x8xbf16>
    %5 = vector.extract_strided_slice %1 {offsets = [0, 64], sizes = [4, 8], strides = [1, 1]} : vector<4x192xbf16> to vector<4x8xbf16>
    %6 = vector.extract_strided_slice %1 {offsets = [0, 128], sizes = [4, 8], strides = [1, 1]} : vector<4x192xbf16> to vector<4x8xbf16>
    %cst = arith.constant dense<0.000000e+00> : vector<4x4xf32>
    %7 = tpu.matmul %4, %5, %cst {dimension_numbers = #tpu.dot_dimension_numbers<[1], [1], [0], [0], [0, 0, 1, 0], [], []>} : vector<4x8xbf16>, vector<4x8xbf16>, vector<4x4xf32> -> vector<4x4xf32>
    %8 = vector.broadcast %3 : vector<1x4xf32> to vector<4x4xf32>
    %9 = arith.addf %7, %8 : vector<4x4xf32>
    %cst_5 = arith.constant dense<0xFF800000> : vector<4xf32>
    %10 = vector.multi_reduction <maximumf>, %9, %cst_5 [1] : vector<4x4xf32> to vector<4xf32>
    %11 = vector.shape_cast %10 : vector<4xf32> to vector<4x1xf32>
    %12 = vector.broadcast %11 : vector<4x1xf32> to vector<4x4xf32>
    %13 = arith.subf %9, %12 : vector<4x4xf32>
    %14 = math.exp %13 : vector<4x4xf32>
    %cst_6 = arith.constant dense<0.000000e+00> : vector<4xf32>
    %15 = vector.multi_reduction <add>, %14, %cst_6 [1] : vector<4x4xf32> to vector<4xf32>
    %16 = vector.shape_cast %15 : vector<4xf32> to vector<4x1xf32>
    %17 = tpu.reciprocal %16 {approx = true} : vector<4x1xf32> -> vector<4x1xf32>
    %18 = vector.broadcast %17 : vector<4x1xf32> to vector<4x4xf32>
    %19 = arith.mulf %14, %18 : vector<4x4xf32>
    %20 = arith.truncf %19 : vector<4x4xf32> to vector<4x4xbf16>
    %cst_7 = arith.constant dense<0.000000e+00> : vector<4x8xf32>
    %21 = tpu.matmul %20, %6, %cst_7 {dimension_numbers = #tpu.dot_dimension_numbers<[1], [0], [0], [1], [0, 0, 1, 1], [], []>} : vector<4x4xbf16>, vector<4x8xbf16>, vector<4x8xf32> -> vector<4x8xf32>
    %22 = arith.truncf %21 : vector<4x8xf32> to vector<4x8xbf16>
    %c0_8 = arith.constant 0 : index
    %c0_9 = arith.constant 0 : index
    %c0_10 = arith.constant 0 : index
    %23 = vector.load %arg3[%c0_8, %c0_9, %c0_10] : memref<1x4x64xbf16, #tpu.memory_space<vmem>>, vector<1x4x8xbf16>
    %24 = vector.shape_cast %23 : vector<1x4x8xbf16> to vector<4x8xbf16>
    %25 = vector.shape_cast %22 : vector<4x8xbf16> to vector<1x4x8xbf16>
    tpu.vector_store %arg3[%c0_8, %c0_9, %c0_10], %25 {strides = array<i32>} : memref<1x4x64xbf16, #tpu.memory_space<vmem>>, vector<1x4x8xbf16>,
    %26 = vector.extract_strided_slice %1 {offsets = [0, 8], sizes = [4, 8], strides = [1, 1]} : vector<4x192xbf16> to vector<4x8xbf16>
    %27 = vector.extract_strided_slice %1 {offsets = [0, 72], sizes = [4, 8], strides = [1, 1]} : vector<4x192xbf16> to vector<4x8xbf16>
    %28 = vector.extract_strided_slice %1 {offsets = [0, 136], sizes = [4, 8], strides = [1, 1]} : vector<4x192xbf16> to vector<4x8xbf16>
    %cst_11 = arith.constant dense<0.000000e+00> : vector<4x4xf32>
    %29 = tpu.matmul %26, %27, %cst_11 {dimension_numbers = #tpu.dot_dimension_numbers<[1], [1], [0], [0], [0, 0, 1, 0], [], []>} : vector<4x8xbf16>, vector<4x8xbf16>, vector<4x4xf32> -> vector<4x4xf32>
    %30 = vector.broadcast %3 : vector<1x4xf32> to vector<4x4xf32>
    %31 = arith.addf %29, %30 : vector<4x4xf32>
    %cst_12 = arith.constant dense<0xFF800000> : vector<4xf32>
    %32 = vector.multi_reduction <maximumf>, %31, %cst_12 [1] : vector<4x4xf32> to vector<4xf32>
    %33 = vector.shape_cast %32 : vector<4xf32> to vector<4x1xf32>
    %34 = vector.broadcast %33 : vector<4x1xf32> to vector<4x4xf32>
    %35 = arith.subf %31, %34 : vector<4x4xf32>
    %36 = math.exp %35 : vector<4x4xf32>
    %cst_13 = arith.constant dense<0.000000e+00> : vector<4xf32>
    %37 = vector.multi_reduction <add>, %36, %cst_13 [1] : vector<4x4xf32> to vector<4xf32>
    %38 = vector.shape_cast %37 : vector<4xf32> to vector<4x1xf32>
    %39 = tpu.reciprocal %38 {approx = true} : vector<4x1xf32> -> vector<4x1xf32>
    %40 = vector.broadcast %39 : vector<4x1xf32> to vector<4x4xf32>
    %41 = arith.mulf %36, %40 : vector<4x4xf32>
    %42 = arith.truncf %41 : vector<4x4xf32> to vector<4x4xbf16>
    %cst_14 = arith.constant dense<0.000000e+00> : vector<4x8xf32>
    %43 = tpu.matmul %42, %28, %cst_14 {dimension_numbers = #tpu.dot_dimension_numbers<[1], [0], [0], [1], [0, 0, 1, 1], [], []>} : vector<4x4xbf16>, vector<4x8xbf16>, vector<4x8xf32> -> vector<4x8xf32>
    %44 = arith.truncf %43 : vector<4x8xf32> to vector<4x8xbf16>
    %c0_15 = arith.constant 0 : index
    %c0_16 = arith.constant 0 : index
    %c8 = arith.constant 8 : index
    %45 = vector.load %arg3[%c0_15, %c0_16, %c8] : memref<1x4x64xbf16, #tpu.memory_space<vmem>>, vector<1x4x8xbf16>
    %46 = vector.shape_cast %45 : vector<1x4x8xbf16> to vector<4x8xbf16>
    %47 = vector.shape_cast %44 : vector<4x8xbf16> to vector<1x4x8xbf16>
    tpu.vector_store %arg3[%c0_15, %c0_16, %c8], %47 {strides = array<i32>} : memref<1x4x64xbf16, #tpu.memory_space<vmem>>, vector<1x4x8xbf16>,
    %48 = vector.extract_strided_slice %1 {offsets = [0, 16], sizes = [4, 8], strides = [1, 1]} : vector<4x192xbf16> to vector<4x8xbf16>
    %49 = vector.extract_strided_slice %1 {offsets = [0, 80], sizes = [4, 8], strides = [1, 1]} : vector<4x192xbf16> to vector<4x8xbf16>
    %50 = vector.extract_strided_slice %1 {offsets = [0, 144], sizes = [4, 8], strides = [1, 1]} : vector<4x192xbf16> to vector<4x8xbf16>
    %cst_17 = arith.constant dense<0.000000e+00> : vector<4x4xf32>
    %51 = tpu.matmul %48, %49, %cst_17 {dimension_numbers = #tpu.dot_dimension_numbers<[1], [1], [0], [0], [0, 0, 1, 0], [], []>} : vector<4x8xbf16>, vector<4x8xbf16>, vector<4x4xf32> -> vector<4x4xf32>
    %52 = vector.broadcast %3 : vector<1x4xf32> to vector<4x4xf32>
    %53 = arith.addf %51, %52 : vector<4x4xf32>
    %cst_18 = arith.constant dense<0xFF800000> : vector<4xf32>
    %54 = vector.multi_reduction <maximumf>, %53, %cst_18 [1] : vector<4x4xf32> to vector<4xf32>
    %55 = vector.shape_cast %54 : vector<4xf32> to vector<4x1xf32>
    %56 = vector.broadcast %55 : vector<4x1xf32> to vector<4x4xf32>
    %57 = arith.subf %53, %56 : vector<4x4xf32>
    %58 = math.exp %57 : vector<4x4xf32>
    %cst_19 = arith.constant dense<0.000000e+00> : vector<4xf32>
    %59 = vector.multi_reduction <add>, %58, %cst_19 [1] : vector<4x4xf32> to vector<4xf32>
    %60 = vector.shape_cast %59 : vector<4xf32> to vector<4x1xf32>
    %61 = tpu.reciprocal %60 {approx = true} : vector<4x1xf32> -> vector<4x1xf32>
    %62 = vector.broadcast %61 : vector<4x1xf32> to vector<4x4xf32>
    %63 = arith.mulf %58, %62 : vector<4x4xf32>
    %64 = arith.truncf %63 : vector<4x4xf32> to vector<4x4xbf16>
    %cst_20 = arith.constant dense<0.000000e+00> : vector<4x8xf32>
    %65 = tpu.matmul %64, %50, %cst_20 {dimension_numbers = #tpu.dot_dimension_numbers<[1], [0], [0], [1], [0, 0, 1, 1], [], []>} : vector<4x4xbf16>, vector<4x8xbf16>, vector<4x8xf32> -> vector<4x8xf32>
    %66 = arith.truncf %65 : vector<4x8xf32> to vector<4x8xbf16>
    %c0_21 = arith.constant 0 : index
    %c0_22 = arith.constant 0 : index
    %c16 = arith.constant 16 : index
    %67 = vector.load %arg3[%c0_21, %c0_22, %c16] : memref<1x4x64xbf16, #tpu.memory_space<vmem>>, vector<1x4x8xbf16>
    %68 = vector.shape_cast %67 : vector<1x4x8xbf16> to vector<4x8xbf16>
    %69 = vector.shape_cast %66 : vector<4x8xbf16> to vector<1x4x8xbf16>
    tpu.vector_store %arg3[%c0_21, %c0_22, %c16], %69 {strides = array<i32>} : memref<1x4x64xbf16, #tpu.memory_space<vmem>>, vector<1x4x8xbf16>,
    %70 = vector.extract_strided_slice %1 {offsets = [0, 24], sizes = [4, 8], strides = [1, 1]} : vector<4x192xbf16> to vector<4x8xbf16>
    %71 = vector.extract_strided_slice %1 {offsets = [0, 88], sizes = [4, 8], strides = [1, 1]} : vector<4x192xbf16> to vector<4x8xbf16>
    %72 = vector.extract_strided_slice %1 {offsets = [0, 152], sizes = [4, 8], strides = [1, 1]} : vector<4x192xbf16> to vector<4x8xbf16>
    %cst_23 = arith.constant dense<0.000000e+00> : vector<4x4xf32>
    %73 = tpu.matmul %70, %71, %cst_23 {dimension_numbers = #tpu.dot_dimension_numbers<[1], [1], [0], [0], [0, 0, 1, 0], [], []>} : vector<4x8xbf16>, vector<4x8xbf16>, vector<4x4xf32> -> vector<4x4xf32>
    %74 = vector.broadcast %3 : vector<1x4xf32> to vector<4x4xf32>
    %75 = arith.addf %73, %74 : vector<4x4xf32>
    %cst_24 = arith.constant dense<0xFF800000> : vector<4xf32>
    %76 = vector.multi_reduction <maximumf>, %75, %cst_24 [1] : vector<4x4xf32> to vector<4xf32>
    %77 = vector.shape_cast %76 : vector<4xf32> to vector<4x1xf32>
    %78 = vector.broadcast %77 : vector<4x1xf32> to vector<4x4xf32>
    %79 = arith.subf %75, %78 : vector<4x4xf32>
    %80 = math.exp %79 : vector<4x4xf32>
    %cst_25 = arith.constant dense<0.000000e+00> : vector<4xf32>
    %81 = vector.multi_reduction <add>, %80, %cst_25 [1] : vector<4x4xf32> to vector<4xf32>
    %82 = vector.shape_cast %81 : vector<4xf32> to vector<4x1xf32>
    %83 = tpu.reciprocal %82 {approx = true} : vector<4x1xf32> -> vector<4x1xf32>
    %84 = vector.broadcast %83 : vector<4x1xf32> to vector<4x4xf32>
    %85 = arith.mulf %80, %84 : vector<4x4xf32>
    %86 = arith.truncf %85 : vector<4x4xf32> to vector<4x4xbf16>
    %cst_26 = arith.constant dense<0.000000e+00> : vector<4x8xf32>
    %87 = tpu.matmul %86, %72, %cst_26 {dimension_numbers = #tpu.dot_dimension_numbers<[1], [0], [0], [1], [0, 0, 1, 1], [], []>} : vector<4x4xbf16>, vector<4x8xbf16>, vector<4x8xf32> -> vector<4x8xf32>
    %88 = arith.truncf %87 : vector<4x8xf32> to vector<4x8xbf16>
    %c0_27 = arith.constant 0 : index
    %c0_28 = arith.constant 0 : index
    %c24 = arith.constant 24 : index
    %89 = vector.load %arg3[%c0_27, %c0_28, %c24] : memref<1x4x64xbf16, #tpu.memory_space<vmem>>, vector<1x4x8xbf16>
    %90 = vector.shape_cast %89 : vector<1x4x8xbf16> to vector<4x8xbf16>
    %91 = vector.shape_cast %88 : vector<4x8xbf16> to vector<1x4x8xbf16>
    tpu.vector_store %arg3[%c0_27, %c0_28, %c24], %91 {strides = array<i32>} : memref<1x4x64xbf16, #tpu.memory_space<vmem>>, vector<1x4x8xbf16>,
    %92 = vector.extract_strided_slice %1 {offsets = [0, 32], sizes = [4, 8], strides = [1, 1]} : vector<4x192xbf16> to vector<4x8xbf16>
    %93 = vector.extract_strided_slice %1 {offsets = [0, 96], sizes = [4, 8], strides = [1, 1]} : vector<4x192xbf16> to vector<4x8xbf16>
    %94 = vector.extract_strided_slice %1 {offsets = [0, 160], sizes = [4, 8], strides = [1, 1]} : vector<4x192xbf16> to vector<4x8xbf16>
    %cst_29 = arith.constant dense<0.000000e+00> : vector<4x4xf32>
    %95 = tpu.matmul %92, %93, %cst_29 {dimension_numbers = #tpu.dot_dimension_numbers<[1], [1], [0], [0], [0, 0, 1, 0], [], []>} : vector<4x8xbf16>, vector<4x8xbf16>, vector<4x4xf32> -> vector<4x4xf32>
    %96 = vector.broadcast %3 : vector<1x4xf32> to vector<4x4xf32>
    %97 = arith.addf %95, %96 : vector<4x4xf32>
    %cst_30 = arith.constant dense<0xFF800000> : vector<4xf32>
    %98 = vector.multi_reduction <maximumf>, %97, %cst_30 [1] : vector<4x4xf32> to vector<4xf32>
    %99 = vector.shape_cast %98 : vector<4xf32> to vector<4x1xf32>
    %100 = vector.broadcast %99 : vector<4x1xf32> to vector<4x4xf32>
    %101 = arith.subf %97, %100 : vector<4x4xf32>
    %102 = math.exp %101 : vector<4x4xf32>
    %cst_31 = arith.constant dense<0.000000e+00> : vector<4xf32>
    %103 = vector.multi_reduction <add>, %102, %cst_31 [1] : vector<4x4xf32> to vector<4xf32>
    %104 = vector.shape_cast %103 : vector<4xf32> to vector<4x1xf32>
    %105 = tpu.reciprocal %104 {approx = true} : vector<4x1xf32> -> vector<4x1xf32>
    %106 = vector.broadcast %105 : vector<4x1xf32> to vector<4x4xf32>
    %107 = arith.mulf %102, %106 : vector<4x4xf32>
    %108 = arith.truncf %107 : vector<4x4xf32> to vector<4x4xbf16>
    %cst_32 = arith.constant dense<0.000000e+00> : vector<4x8xf32>
    %109 = tpu.matmul %108, %94, %cst_32 {dimension_numbers = #tpu.dot_dimension_numbers<[1], [0], [0], [1], [0, 0, 1, 1], [], []>} : vector<4x4xbf16>, vector<4x8xbf16>, vector<4x8xf32> -> vector<4x8xf32>
    %110 = arith.truncf %109 : vector<4x8xf32> to vector<4x8xbf16>
    %c0_33 = arith.constant 0 : index
    %c0_34 = arith.constant 0 : index
    %c32 = arith.constant 32 : index
    %111 = vector.load %arg3[%c0_33, %c0_34, %c32] : memref<1x4x64xbf16, #tpu.memory_space<vmem>>, vector<1x4x8xbf16>
    %112 = vector.shape_cast %111 : vector<1x4x8xbf16> to vector<4x8xbf16>
    %113 = vector.shape_cast %110 : vector<4x8xbf16> to vector<1x4x8xbf16>
    tpu.vector_store %arg3[%c0_33, %c0_34, %c32], %113 {strides = array<i32>} : memref<1x4x64xbf16, #tpu.memory_space<vmem>>, vector<1x4x8xbf16>,
    %114 = vector.extract_strided_slice %1 {offsets = [0, 40], sizes = [4, 8], strides = [1, 1]} : vector<4x192xbf16> to vector<4x8xbf16>
    %115 = vector.extract_strided_slice %1 {offsets = [0, 104], sizes = [4, 8], strides = [1, 1]} : vector<4x192xbf16> to vector<4x8xbf16>
    %116 = vector.extract_strided_slice %1 {offsets = [0, 168], sizes = [4, 8], strides = [1, 1]} : vector<4x192xbf16> to vector<4x8xbf16>
    %cst_35 = arith.constant dense<0.000000e+00> : vector<4x4xf32>
    %117 = tpu.matmul %114, %115, %cst_35 {dimension_numbers = #tpu.dot_dimension_numbers<[1], [1], [0], [0], [0, 0, 1, 0], [], []>} : vector<4x8xbf16>, vector<4x8xbf16>, vector<4x4xf32> -> vector<4x4xf32>
    %118 = vector.broadcast %3 : vector<1x4xf32> to vector<4x4xf32>
    %119 = arith.addf %117, %118 : vector<4x4xf32>
    %cst_36 = arith.constant dense<0xFF800000> : vector<4xf32>
    %120 = vector.multi_reduction <maximumf>, %119, %cst_36 [1] : vector<4x4xf32> to vector<4xf32>
    %121 = vector.shape_cast %120 : vector<4xf32> to vector<4x1xf32>
    %122 = vector.broadcast %121 : vector<4x1xf32> to vector<4x4xf32>
    %123 = arith.subf %119, %122 : vector<4x4xf32>
    %124 = math.exp %123 : vector<4x4xf32>
    %cst_37 = arith.constant dense<0.000000e+00> : vector<4xf32>
    %125 = vector.multi_reduction <add>, %124, %cst_37 [1] : vector<4x4xf32> to vector<4xf32>
    %126 = vector.shape_cast %125 : vector<4xf32> to vector<4x1xf32>
    %127 = tpu.reciprocal %126 {approx = true} : vector<4x1xf32> -> vector<4x1xf32>
    %128 = vector.broadcast %127 : vector<4x1xf32> to vector<4x4xf32>
    %129 = arith.mulf %124, %128 : vector<4x4xf32>
    %130 = arith.truncf %129 : vector<4x4xf32> to vector<4x4xbf16>
    %cst_38 = arith.constant dense<0.000000e+00> : vector<4x8xf32>
    %131 = tpu.matmul %130, %116, %cst_38 {dimension_numbers = #tpu.dot_dimension_numbers<[1], [0], [0], [1], [0, 0, 1, 1], [], []>} : vector<4x4xbf16>, vector<4x8xbf16>, vector<4x8xf32> -> vector<4x8xf32>
    %132 = arith.truncf %131 : vector<4x8xf32> to vector<4x8xbf16>
    %c0_39 = arith.constant 0 : index
    %c0_40 = arith.constant 0 : index
    %c40 = arith.constant 40 : index
    %133 = vector.load %arg3[%c0_39, %c0_40, %c40] : memref<1x4x64xbf16, #tpu.memory_space<vmem>>, vector<1x4x8xbf16>
    %134 = vector.shape_cast %133 : vector<1x4x8xbf16> to vector<4x8xbf16>
    %135 = vector.shape_cast %132 : vector<4x8xbf16> to vector<1x4x8xbf16>
    tpu.vector_store %arg3[%c0_39, %c0_40, %c40], %135 {strides = array<i32>} : memref<1x4x64xbf16, #tpu.memory_space<vmem>>, vector<1x4x8xbf16>,
    %136 = vector.extract_strided_slice %1 {offsets = [0, 48], sizes = [4, 8], strides = [1, 1]} : vector<4x192xbf16> to vector<4x8xbf16>
    %137 = vector.extract_strided_slice %1 {offsets = [0, 112], sizes = [4, 8], strides = [1, 1]} : vector<4x192xbf16> to vector<4x8xbf16>
    %138 = vector.extract_strided_slice %1 {offsets = [0, 176], sizes = [4, 8], strides = [1, 1]} : vector<4x192xbf16> to vector<4x8xbf16>
    %cst_41 = arith.constant dense<0.000000e+00> : vector<4x4xf32>
    %139 = tpu.matmul %136, %137, %cst_41 {dimension_numbers = #tpu.dot_dimension_numbers<[1], [1], [0], [0], [0, 0, 1, 0], [], []>} : vector<4x8xbf16>, vector<4x8xbf16>, vector<4x4xf32> -> vector<4x4xf32>
    %140 = vector.broadcast %3 : vector<1x4xf32> to vector<4x4xf32>
    %141 = arith.addf %139, %140 : vector<4x4xf32>
    %cst_42 = arith.constant dense<0xFF800000> : vector<4xf32>
    %142 = vector.multi_reduction <maximumf>, %141, %cst_42 [1] : vector<4x4xf32> to vector<4xf32>
    %143 = vector.shape_cast %142 : vector<4xf32> to vector<4x1xf32>
    %144 = vector.broadcast %143 : vector<4x1xf32> to vector<4x4xf32>
    %145 = arith.subf %141, %144 : vector<4x4xf32>
    %146 = math.exp %145 : vector<4x4xf32>
    %cst_43 = arith.constant dense<0.000000e+00> : vector<4xf32>
    %147 = vector.multi_reduction <add>, %146, %cst_43 [1] : vector<4x4xf32> to vector<4xf32>
    %148 = vector.shape_cast %147 : vector<4xf32> to vector<4x1xf32>
    %149 = tpu.reciprocal %148 {approx = true} : vector<4x1xf32> -> vector<4x1xf32>
    %150 = vector.broadcast %149 : vector<4x1xf32> to vector<4x4xf32>
    %151 = arith.mulf %146, %150 : vector<4x4xf32>
    %152 = arith.truncf %151 : vector<4x4xf32> to vector<4x4xbf16>
    %cst_44 = arith.constant dense<0.000000e+00> : vector<4x8xf32>
    %153 = tpu.matmul %152, %138, %cst_44 {dimension_numbers = #tpu.dot_dimension_numbers<[1], [0], [0], [1], [0, 0, 1, 1], [], []>} : vector<4x4xbf16>, vector<4x8xbf16>, vector<4x8xf32> -> vector<4x8xf32>
    %154 = arith.truncf %153 : vector<4x8xf32> to vector<4x8xbf16>
    %c0_45 = arith.constant 0 : index
    %c0_46 = arith.constant 0 : index
    %c48 = arith.constant 48 : index
    %155 = vector.load %arg3[%c0_45, %c0_46, %c48] : memref<1x4x64xbf16, #tpu.memory_space<vmem>>, vector<1x4x8xbf16>
    %156 = vector.shape_cast %155 : vector<1x4x8xbf16> to vector<4x8xbf16>
    %157 = vector.shape_cast %154 : vector<4x8xbf16> to vector<1x4x8xbf16>
    tpu.vector_store %arg3[%c0_45, %c0_46, %c48], %157 {strides = array<i32>} : memref<1x4x64xbf16, #tpu.memory_space<vmem>>, vector<1x4x8xbf16>,
    %158 = vector.extract_strided_slice %1 {offsets = [0, 56], sizes = [4, 8], strides = [1, 1]} : vector<4x192xbf16> to vector<4x8xbf16>
    %159 = vector.extract_strided_slice %1 {offsets = [0, 120], sizes = [4, 8], strides = [1, 1]} : vector<4x192xbf16> to vector<4x8xbf16>
    %160 = vector.extract_strided_slice %1 {offsets = [0, 184], sizes = [4, 8], strides = [1, 1]} : vector<4x192xbf16> to vector<4x8xbf16>
    %cst_47 = arith.constant dense<0.000000e+00> : vector<4x4xf32>
    %161 = tpu.matmul %158, %159, %cst_47 {dimension_numbers = #tpu.dot_dimension_numbers<[1], [1], [0], [0], [0, 0, 1, 0], [], []>} : vector<4x8xbf16>, vector<4x8xbf16>, vector<4x4xf32> -> vector<4x4xf32>
    %162 = vector.broadcast %3 : vector<1x4xf32> to vector<4x4xf32>
    %163 = arith.addf %161, %162 : vector<4x4xf32>
    %cst_48 = arith.constant dense<0xFF800000> : vector<4xf32>
    %164 = vector.multi_reduction <maximumf>, %163, %cst_48 [1] : vector<4x4xf32> to vector<4xf32>
    %165 = vector.shape_cast %164 : vector<4xf32> to vector<4x1xf32>
    %166 = vector.broadcast %165 : vector<4x1xf32> to vector<4x4xf32>
    %167 = arith.subf %163, %166 : vector<4x4xf32>
    %168 = math.exp %167 : vector<4x4xf32>
    %cst_49 = arith.constant dense<0.000000e+00> : vector<4xf32>
    %169 = vector.multi_reduction <add>, %168, %cst_49 [1] : vector<4x4xf32> to vector<4xf32>
    %170 = vector.shape_cast %169 : vector<4xf32> to vector<4x1xf32>
    %171 = tpu.reciprocal %170 {approx = true} : vector<4x1xf32> -> vector<4x1xf32>
    %172 = vector.broadcast %171 : vector<4x1xf32> to vector<4x4xf32>
    %173 = arith.mulf %168, %172 : vector<4x4xf32>
    %174 = arith.truncf %173 : vector<4x4xf32> to vector<4x4xbf16>
    %cst_50 = arith.constant dense<0.000000e+00> : vector<4x8xf32>
    %175 = tpu.matmul %174, %160, %cst_50 {dimension_numbers = #tpu.dot_dimension_numbers<[1], [0], [0], [1], [0, 0, 1, 1], [], []>} : vector<4x4xbf16>, vector<4x8xbf16>, vector<4x8xf32> -> vector<4x8xf32>
    %176 = arith.truncf %175 : vector<4x8xf32> to vector<4x8xbf16>
    %c0_51 = arith.constant 0 : index
    %c0_52 = arith.constant 0 : index
    %c56 = arith.constant 56 : index
    %177 = vector.load %arg3[%c0_51, %c0_52, %c56] : memref<1x4x64xbf16, #tpu.memory_space<vmem>>, vector<1x4x8xbf16>
    %178 = vector.shape_cast %177 : vector<1x4x8xbf16> to vector<4x8xbf16>
    %179 = vector.shape_cast %176 : vector<4x8xbf16> to vector<1x4x8xbf16>
    tpu.vector_store %arg3[%c0_51, %c0_52, %c56], %179 {strides = array<i32>} : memref<1x4x64xbf16, #tpu.memory_space<vmem>>, vector<1x4x8xbf16>,
    return
  }
  func.func @transform_0(%arg0: i32) -> (i32, i32, i32) {
    %c0_i32 = arith.constant 0 : i32
    %c0_i32_0 = arith.constant 0 : i32
    %c0_i32_1 = arith.constant 0 : i32
    return %arg0, %c0_i32, %c0_i32_0 : i32, i32, i32
  }
  func.func @transform_1(%arg0: i32) -> (i32, i32, i32) {
    %c0_i32 = arith.constant 0 : i32
    %c0_i32_0 = arith.constant 0 : i32
    %c0_i32_1 = arith.constant 0 : i32
    return %arg0, %c0_i32, %c0_i32_0 : i32, i32, i32
  }
  func.func @transform_2(%arg0: i32) -> (i32, i32, i32) {
    %c0_i32 = arith.constant 0 : i32
    %c0_i32_0 = arith.constant 0 : i32
    %c0_i32_1 = arith.constant 0 : i32
    return %arg0, %c0_i32, %c0_i32_0 : i32, i32, i32
  }
}

module attributes {stable_mosaic.version = 11 : i64} {
  func.func @_layernorm_res_kernel(%arg0: i32, %arg1: memref<8x64xbf16, #tpu.memory_space<vmem>>, %arg2: memref<8x64xbf16, #tpu.memory_space<vmem>>, %arg3: memref<1x64xf32, #tpu.memory_space<vmem>>, %arg4: memref<1x64xf32, #tpu.memory_space<vmem>>, %arg5: memref<8x64xbf16, #tpu.memory_space<vmem>>) attributes {dimension_semantics = [#tpu.dimension_semantics<parallel>], iteration_bounds = array<i64: 1>, scalar_prefetch = 0 : i64, scratch_operands = 0 : i64, tpu.core_type = #tpu.core_type<tc>, window_params = [{transform_indices = @transform_0, window_bounds = array<i64: 8, 64>}, {transform_indices = @transform_1, window_bounds = array<i64: 8, 64>}, {pipeline_mode = #tpu.pipeline_mode<synchronous>, transform_indices = @transform_2, window_bounds = array<i64: 1, 64>}, {pipeline_mode = #tpu.pipeline_mode<synchronous>, transform_indices = @transform_3, window_bounds = array<i64: 1, 64>}, {transform_indices = @transform_4, window_bounds = array<i64: 8, 64>}]} {
    %c0 = arith.constant 0 : index
    %c0_0 = arith.constant 0 : index
    %0 = vector.load %arg1[%c0, %c0_0] : memref<8x64xbf16, #tpu.memory_space<vmem>>, vector<8x64xbf16>
    %1 = arith.extf %0 : vector<8x64xbf16> to vector<8x64xf32>
    %c0_1 = arith.constant 0 : index
    %c0_2 = arith.constant 0 : index
    %2 = vector.load %arg2[%c0_1, %c0_2] : memref<8x64xbf16, #tpu.memory_space<vmem>>, vector<8x64xbf16>
    %3 = arith.extf %2 : vector<8x64xbf16> to vector<8x64xf32>
    %4 = arith.addf %1, %3 : vector<8x64xf32>
    %cst = arith.constant dense<0.000000e+00> : vector<8xf32>
    %5 = vector.multi_reduction <add>, %4, %cst [1] : vector<8x64xf32> to vector<8xf32>
    %6 = vector.shape_cast %5 : vector<8xf32> to vector<8x1xf32>
    %cst_3 = arith.constant 6.400000e+01 : f32
    %7 = vector.broadcast %cst_3 : f32 to vector<8x1xf32>
    %8 = arith.divf %6, %7 : vector<8x1xf32>
    %9 = vector.broadcast %8 : vector<8x1xf32> to vector<8x64xf32>
    %10 = arith.subf %4, %9 : vector<8x64xf32>
    %11 = arith.mulf %10, %10 : vector<8x64xf32>
    %cst_4 = arith.constant dense<0.000000e+00> : vector<8xf32>
    %12 = vector.multi_reduction <add>, %11, %cst_4 [1] : vector<8x64xf32> to vector<8xf32>
    %13 = vector.shape_cast %12 : vector<8xf32> to vector<8x1xf32>
    %cst_5 = arith.constant 6.400000e+01 : f32
    %14 = vector.broadcast %cst_5 : f32 to vector<8x1xf32>
    %15 = arith.divf %13, %14 : vector<8x1xf32>
    %cst_6 = arith.constant 9.99999974E-6 : f32
    %16 = vector.broadcast %cst_6 : f32 to vector<8x1xf32>
    %17 = arith.addf %15, %16 : vector<8x1xf32>
    %18 = math.rsqrt %17 : vector<8x1xf32>
    %19 = vector.broadcast %18 : vector<8x1xf32> to vector<8x64xf32>
    %20 = arith.mulf %10, %19 : vector<8x64xf32>
    %c0_7 = arith.constant 0 : index
    %c0_8 = arith.constant 0 : index
    %21 = vector.load %arg3[%c0_7, %c0_8] : memref<1x64xf32, #tpu.memory_space<vmem>>, vector<1x64xf32>
    %22 = vector.broadcast %21 : vector<1x64xf32> to vector<8x64xf32>
    %23 = arith.mulf %20, %22 : vector<8x64xf32>
    %c0_9 = arith.constant 0 : index
    %c0_10 = arith.constant 0 : index
    %24 = vector.load %arg4[%c0_9, %c0_10] : memref<1x64xf32, #tpu.memory_space<vmem>>, vector<1x64xf32>
    %25 = vector.broadcast %24 : vector<1x64xf32> to vector<8x64xf32>
    %26 = arith.addf %23, %25 : vector<8x64xf32>
    %27 = arith.truncf %26 : vector<8x64xf32> to vector<8x64xbf16>
    %c0_11 = arith.constant 0 : index
    %c0_12 = arith.constant 0 : index
    %28 = vector.load %arg5[%c0_11, %c0_12] : memref<8x64xbf16, #tpu.memory_space<vmem>>, vector<8x64xbf16>
    tpu.vector_store %arg5[%c0_11, %c0_12], %27 {strides = array<i32>} : memref<8x64xbf16, #tpu.memory_space<vmem>>, vector<8x64xbf16>,
    return
  }
  func.func @transform_0(%arg0: i32) -> (i32, i32) {
    %c0_i32 = arith.constant 0 : i32
    %c0_i32_0 = arith.constant 0 : i32
    return %arg0, %c0_i32 : i32, i32
  }
  func.func @transform_1(%arg0: i32) -> (i32, i32) {
    %c0_i32 = arith.constant 0 : i32
    %c0_i32_0 = arith.constant 0 : i32
    return %arg0, %c0_i32 : i32, i32
  }
  func.func @transform_2(%arg0: i32) -> (i32, i32) {
    %c0_i32 = arith.constant 0 : i32
    %c0_i32_0 = arith.constant 0 : i32
    %c0_i32_1 = arith.constant 0 : i32
    return %c0_i32, %c0_i32_0 : i32, i32
  }
  func.func @transform_3(%arg0: i32) -> (i32, i32) {
    %c0_i32 = arith.constant 0 : i32
    %c0_i32_0 = arith.constant 0 : i32
    %c0_i32_1 = arith.constant 0 : i32
    return %c0_i32, %c0_i32_0 : i32, i32
  }
  func.func @transform_4(%arg0: i32) -> (i32, i32) {
    %c0_i32 = arith.constant 0 : i32
    %c0_i32_0 = arith.constant 0 : i32
    return %arg0, %c0_i32 : i32, i32
  }
}

module attributes {stable_mosaic.version = 11 : i64} {
  func.func @_layernorm_res_kernel(%arg0: i32, %arg1: memref<8x64xbf16, #tpu.memory_space<vmem>>, %arg2: memref<8x64xbf16, #tpu.memory_space<vmem>>, %arg3: memref<1x64xf32, #tpu.memory_space<vmem>>, %arg4: memref<1x64xf32, #tpu.memory_space<vmem>>, %arg5: memref<8x64xbf16, #tpu.memory_space<vmem>>) attributes {dimension_semantics = [#tpu.dimension_semantics<parallel>], iteration_bounds = array<i64: 1>, scalar_prefetch = 0 : i64, scratch_operands = 0 : i64, tpu.core_type = #tpu.core_type<tc>, window_params = [{transform_indices = @transform_0, window_bounds = array<i64: 8, 64>}, {transform_indices = @transform_1, window_bounds = array<i64: 8, 64>}, {pipeline_mode = #tpu.pipeline_mode<synchronous>, transform_indices = @transform_2, window_bounds = array<i64: 1, 64>}, {pipeline_mode = #tpu.pipeline_mode<synchronous>, transform_indices = @transform_3, window_bounds = array<i64: 1, 64>}, {transform_indices = @transform_4, window_bounds = array<i64: 8, 64>}]} {
    %c0 = arith.constant 0 : index
    %c0_0 = arith.constant 0 : index
    %0 = vector.load %arg1[%c0, %c0_0] : memref<8x64xbf16, #tpu.memory_space<vmem>>, vector<8x64xbf16>
    %1 = arith.extf %0 : vector<8x64xbf16> to vector<8x64xf32>
    %c0_1 = arith.constant 0 : index
    %c0_2 = arith.constant 0 : index
    %2 = vector.load %arg2[%c0_1, %c0_2] : memref<8x64xbf16, #tpu.memory_space<vmem>>, vector<8x64xbf16>
    %3 = arith.extf %2 : vector<8x64xbf16> to vector<8x64xf32>
    %4 = arith.addf %1, %3 : vector<8x64xf32>
    %cst = arith.constant dense<0.000000e+00> : vector<8xf32>
    %5 = vector.multi_reduction <add>, %4, %cst [1] : vector<8x64xf32> to vector<8xf32>
    %6 = vector.shape_cast %5 : vector<8xf32> to vector<8x1xf32>
    %cst_3 = arith.constant 6.400000e+01 : f32
    %7 = vector.broadcast %cst_3 : f32 to vector<8x1xf32>
    %8 = arith.divf %6, %7 : vector<8x1xf32>
    %9 = vector.broadcast %8 : vector<8x1xf32> to vector<8x64xf32>
    %10 = arith.subf %4, %9 : vector<8x64xf32>
    %11 = arith.mulf %10, %10 : vector<8x64xf32>
    %cst_4 = arith.constant dense<0.000000e+00> : vector<8xf32>
    %12 = vector.multi_reduction <add>, %11, %cst_4 [1] : vector<8x64xf32> to vector<8xf32>
    %13 = vector.shape_cast %12 : vector<8xf32> to vector<8x1xf32>
    %cst_5 = arith.constant 6.400000e+01 : f32
    %14 = vector.broadcast %cst_5 : f32 to vector<8x1xf32>
    %15 = arith.divf %13, %14 : vector<8x1xf32>
    %cst_6 = arith.constant 9.99999974E-6 : f32
    %16 = vector.broadcast %cst_6 : f32 to vector<8x1xf32>
    %17 = arith.addf %15, %16 : vector<8x1xf32>
    %18 = math.rsqrt %17 : vector<8x1xf32>
    %19 = vector.broadcast %18 : vector<8x1xf32> to vector<8x64xf32>
    %20 = arith.mulf %10, %19 : vector<8x64xf32>
    %c0_7 = arith.constant 0 : index
    %c0_8 = arith.constant 0 : index
    %21 = vector.load %arg3[%c0_7, %c0_8] : memref<1x64xf32, #tpu.memory_space<vmem>>, vector<1x64xf32>
    %22 = vector.broadcast %21 : vector<1x64xf32> to vector<8x64xf32>
    %23 = arith.mulf %20, %22 : vector<8x64xf32>
    %c0_9 = arith.constant 0 : index
    %c0_10 = arith.constant 0 : index
    %24 = vector.load %arg4[%c0_9, %c0_10] : memref<1x64xf32, #tpu.memory_space<vmem>>, vector<1x64xf32>
    %25 = vector.broadcast %24 : vector<1x64xf32> to vector<8x64xf32>
    %26 = arith.addf %23, %25 : vector<8x64xf32>
    %27 = arith.truncf %26 : vector<8x64xf32> to vector<8x64xbf16>
    %c0_11 = arith.constant 0 : index
    %c0_12 = arith.constant 0 : index
    %28 = vector.load %arg5[%c0_11, %c0_12] : memref<8x64xbf16, #tpu.memory_space<vmem>>, vector<8x64xbf16>
    tpu.vector_store %arg5[%c0_11, %c0_12], %27 {strides = array<i32>} : memref<8x64xbf16, #tpu.memory_space<vmem>>, vector<8x64xbf16>,
    return
  }
  func.func @transform_0(%arg0: i32) -> (i32, i32) {
    %c0_i32 = arith.constant 0 : i32
    %c0_i32_0 = arith.constant 0 : i32
    return %arg0, %c0_i32 : i32, i32
  }
  func.func @transform_1(%arg0: i32) -> (i32, i32) {
    %c0_i32 = arith.constant 0 : i32
    %c0_i32_0 = arith.constant 0 : i32
    return %arg0, %c0_i32 : i32, i32
  }
  func.func @transform_2(%arg0: i32) -> (i32, i32) {
    %c0_i32 = arith.constant 0 : i32
    %c0_i32_0 = arith.constant 0 : i32
    %c0_i32_1 = arith.constant 0 : i32
    return %c0_i32, %c0_i32_0 : i32, i32
  }
  func.func @transform_3(%arg0: i32) -> (i32, i32) {
    %c0_i32 = arith.constant 0 : i32
    %c0_i32_0 = arith.constant 0 : i32
    %c0_i32_1 = arith.constant 0 : i32
    return %c0_i32, %c0_i32_0 : i32, i32
  }
  func.func @transform_4(%arg0: i32) -> (i32, i32) {
    %c0_i32 = arith.constant 0 : i32
    %c0_i32_0 = arith.constant 0 : i32
    return %arg0, %c0_i32 : i32, i32
  }
}

module attributes {stable_mosaic.version = 11 : i64} {
  func.func @_ffn_kernel(%arg0: i32, %arg1: i32, %arg2: memref<8x64xbf16, #tpu.memory_space<vmem>>, %arg3: memref<64x128xbf16, #tpu.memory_space<vmem>>, %arg4: memref<1x128xf32, #tpu.memory_space<vmem>>, %arg5: memref<128x64xbf16, #tpu.memory_space<vmem>>, %arg6: memref<1x64xf32, #tpu.memory_space<vmem>>, %arg7: memref<8x64xbf16, #tpu.memory_space<vmem>>, %arg8: memref<8x64xf32, #tpu.memory_space<vmem>>) attributes {dimension_semantics = [#tpu.dimension_semantics<parallel>, #tpu.dimension_semantics<arbitrary>], iteration_bounds = array<i64: 1, 1>, scalar_prefetch = 0 : i64, scratch_operands = 1 : i64, tpu.core_type = #tpu.core_type<tc>, window_params = [{transform_indices = @transform_0, window_bounds = array<i64: 8, 64>}, {transform_indices = @transform_1, window_bounds = array<i64: 64, 128>}, {transform_indices = @transform_2, window_bounds = array<i64: 1, 128>}, {transform_indices = @transform_3, window_bounds = array<i64: 128, 64>}, {pipeline_mode = #tpu.pipeline_mode<synchronous>, transform_indices = @transform_4, window_bounds = array<i64: 1, 64>}, {transform_indices = @transform_5, window_bounds = array<i64: 8, 64>}]} {
    %c0_i32 = arith.constant 0 : i32
    %0 = arith.cmpi eq, %arg1, %c0_i32 : i32
    %1 = arith.extui %0 : i1 to i32
    %c0_i32_0 = arith.constant 0 : i32
    %2 = arith.cmpi ne, %1, %c0_i32_0 : i32
    scf.if %2 {
      %cst_16 = arith.constant 0.000000e+00 : f32
      %20 = vector.broadcast %cst_16 : f32 to vector<8x64xf32>
      %c0_17 = arith.constant 0 : index
      %c0_18 = arith.constant 0 : index
      %21 = vector.load %arg8[%c0_17, %c0_18] : memref<8x64xf32, #tpu.memory_space<vmem>>, vector<8x64xf32>
      tpu.vector_store %arg8[%c0_17, %c0_18], %20 {strides = array<i32>} : memref<8x64xf32, #tpu.memory_space<vmem>>, vector<8x64xf32>,
    } else {
    }
    %c0 = arith.constant 0 : index
    %c0_1 = arith.constant 0 : index
    %3 = vector.load %arg2[%c0, %c0_1] : memref<8x64xbf16, #tpu.memory_space<vmem>>, vector<8x64xbf16>
    %c0_2 = arith.constant 0 : index
    %c0_3 = arith.constant 0 : index
    %4 = vector.load %arg3[%c0_2, %c0_3] : memref<64x128xbf16, #tpu.memory_space<vmem>>, vector<64x128xbf16>
    %cst = arith.constant dense<0.000000e+00> : vector<8x128xf32>
    %5 = tpu.matmul %3, %4, %cst {dimension_numbers = #tpu.dot_dimension_numbers<[1], [0], [0], [1], [0, 0, 1, 1], [], []>} : vector<8x64xbf16>, vector<64x128xbf16>, vector<8x128xf32> -> vector<8x128xf32>
    %c0_4 = arith.constant 0 : index
    %c0_5 = arith.constant 0 : index
    %6 = vector.load %arg4[%c0_4, %c0_5] : memref<1x128xf32, #tpu.memory_space<vmem>>, vector<1x128xf32>
    %7 = vector.broadcast %6 : vector<1x128xf32> to vector<8x128xf32>
    %8 = arith.addf %5, %7 : vector<8x128xf32>
    %cst_6 = arith.constant 0.000000e+00 : f32
    %9 = vector.broadcast %cst_6 : f32 to vector<8x128xf32>
    %10 = arith.maximumf %8, %9 : vector<8x128xf32>
    %c0_7 = arith.constant 0 : index
    %c0_8 = arith.constant 0 : index
    %11 = vector.load %arg8[%c0_7, %c0_8] : memref<8x64xf32, #tpu.memory_space<vmem>>, vector<8x64xf32>
    %12 = arith.truncf %10 : vector<8x128xf32> to vector<8x128xbf16>
    %c0_9 = arith.constant 0 : index
    %c0_10 = arith.constant 0 : index
    %13 = vector.load %arg5[%c0_9, %c0_10] : memref<128x64xbf16, #tpu.memory_space<vmem>>, vector<128x64xbf16>
    %cst_11 = arith.constant dense<0.000000e+00> : vector<8x64xf32>
    %14 = tpu.matmul %12, %13, %cst_11 {dimension_numbers = #tpu.dot_dimension_numbers<[1], [0], [0], [1], [0, 0, 1, 1], [], []>} : vector<8x128xbf16>, vector<128x64xbf16>, vector<8x64xf32> -> vector<8x64xf32>
    %15 = arith.addf %11, %14 : vector<8x64xf32>
    %c0_12 = arith.constant 0 : index
    %c0_13 = arith.constant 0 : index
    %16 = vector.load %arg8[%c0_12, %c0_13] : memref<8x64xf32, #tpu.memory_space<vmem>>, vector<8x64xf32>
    tpu.vector_store %arg8[%c0_12, %c0_13], %15 {strides = array<i32>} : memref<8x64xf32, #tpu.memory_space<vmem>>, vector<8x64xf32>,
    %c0_i32_14 = arith.constant 0 : i32
    %17 = arith.cmpi eq, %arg1, %c0_i32_14 : i32
    %18 = arith.extui %17 : i1 to i32
    %c0_i32_15 = arith.constant 0 : i32
    %19 = arith.cmpi ne, %18, %c0_i32_15 : i32
    scf.if %19 {
      %c0_16 = arith.constant 0 : index
      %c0_17 = arith.constant 0 : index
      %20 = vector.load %arg8[%c0_16, %c0_17] : memref<8x64xf32, #tpu.memory_space<vmem>>, vector<8x64xf32>
      %c0_18 = arith.constant 0 : index
      %c0_19 = arith.constant 0 : index
      %21 = vector.load %arg6[%c0_18, %c0_19] : memref<1x64xf32, #tpu.memory_space<vmem>>, vector<1x64xf32>
      %22 = vector.broadcast %21 : vector<1x64xf32> to vector<8x64xf32>
      %23 = arith.addf %20, %22 : vector<8x64xf32>
      %24 = arith.truncf %23 : vector<8x64xf32> to vector<8x64xbf16>
      %c0_20 = arith.constant 0 : index
      %c0_21 = arith.constant 0 : index
      %25 = vector.load %arg7[%c0_20, %c0_21] : memref<8x64xbf16, #tpu.memory_space<vmem>>, vector<8x64xbf16>
      tpu.vector_store %arg7[%c0_20, %c0_21], %24 {strides = array<i32>} : memref<8x64xbf16, #tpu.memory_space<vmem>>, vector<8x64xbf16>,
    } else {
    }
    return
  }
  func.func @transform_0(%arg0: i32, %arg1: i32) -> (i32, i32) {
    %c0_i32 = arith.constant 0 : i32
    %c0_i32_0 = arith.constant 0 : i32
    return %arg0, %c0_i32 : i32, i32
  }
  func.func @transform_1(%arg0: i32, %arg1: i32) -> (i32, i32) {
    %c0_i32 = arith.constant 0 : i32
    %c0_i32_0 = arith.constant 0 : i32
    return %c0_i32, %arg1 : i32, i32
  }
  func.func @transform_2(%arg0: i32, %arg1: i32) -> (i32, i32) {
    %c0_i32 = arith.constant 0 : i32
    %c0_i32_0 = arith.constant 0 : i32
    return %c0_i32, %arg1 : i32, i32
  }
  func.func @transform_3(%arg0: i32, %arg1: i32) -> (i32, i32) {
    %c0_i32 = arith.constant 0 : i32
    %c0_i32_0 = arith.constant 0 : i32
    return %arg1, %c0_i32 : i32, i32
  }
  func.func @transform_4(%arg0: i32, %arg1: i32) -> (i32, i32) {
    %c0_i32 = arith.constant 0 : i32
    %c0_i32_0 = arith.constant 0 : i32
    %c0_i32_1 = arith.constant 0 : i32
    return %c0_i32, %c0_i32_0 : i32, i32
  }
  func.func @transform_5(%arg0: i32, %arg1: i32) -> (i32, i32) {
    %c0_i32 = arith.constant 0 : i32
    %c0_i32_0 = arith.constant 0 : i32
    return %arg0, %c0_i32 : i32, i32
  }
}

module attributes {stable_mosaic.version = 11 : i64} {
  func.func @_matmul_kernel(%arg0: i32, %arg1: i32, %arg2: i32, %arg3: memref<2x64xf32, #tpu.memory_space<vmem>>, %arg4: memref<64x32xbf16, #tpu.memory_space<vmem>>, %arg5: memref<1x32xf32, #tpu.memory_space<vmem>>, %arg6: memref<2x32xbf16, #tpu.memory_space<vmem>>, %arg7: memref<2x32xf32, #tpu.memory_space<vmem>>) attributes {dimension_semantics = [#tpu.dimension_semantics<parallel>, #tpu.dimension_semantics<parallel>, #tpu.dimension_semantics<arbitrary>], iteration_bounds = array<i64: 1, 1, 1>, scalar_prefetch = 0 : i64, scratch_operands = 1 : i64, tpu.core_type = #tpu.core_type<tc>, window_params = [{transform_indices = @transform_0, window_bounds = array<i64: 2, 64>}, {transform_indices = @transform_1, window_bounds = array<i64: 64, 32>}, {transform_indices = @transform_2, window_bounds = array<i64: 1, 32>}, {transform_indices = @transform_3, window_bounds = array<i64: 2, 32>}]} {
    %c0_i32 = arith.constant 0 : i32
    %0 = arith.cmpi eq, %arg2, %c0_i32 : i32
    %1 = arith.extui %0 : i1 to i32
    %c0_i32_0 = arith.constant 0 : i32
    %2 = arith.cmpi ne, %1, %c0_i32_0 : i32
    scf.if %2 {
      %cst_10 = arith.constant 0.000000e+00 : f32
      %13 = vector.broadcast %cst_10 : f32 to vector<2x32xf32>
      %c0_11 = arith.constant 0 : index
      %c0_12 = arith.constant 0 : index
      %14 = vector.load %arg7[%c0_11, %c0_12] : memref<2x32xf32, #tpu.memory_space<vmem>>, vector<2x32xf32>
      tpu.vector_store %arg7[%c0_11, %c0_12], %13 {strides = array<i32>} : memref<2x32xf32, #tpu.memory_space<vmem>>, vector<2x32xf32>,
    } else {
    }
    %c0 = arith.constant 0 : index
    %c0_1 = arith.constant 0 : index
    %3 = vector.load %arg7[%c0, %c0_1] : memref<2x32xf32, #tpu.memory_space<vmem>>, vector<2x32xf32>
    %c0_2 = arith.constant 0 : index
    %c0_3 = arith.constant 0 : index
    %4 = vector.load %arg3[%c0_2, %c0_3] : memref<2x64xf32, #tpu.memory_space<vmem>>, vector<2x64xf32>
    %5 = arith.truncf %4 : vector<2x64xf32> to vector<2x64xbf16>
    %c0_4 = arith.constant 0 : index
    %c0_5 = arith.constant 0 : index
    %6 = vector.load %arg4[%c0_4, %c0_5] : memref<64x32xbf16, #tpu.memory_space<vmem>>, vector<64x32xbf16>
    %cst = arith.constant dense<0.000000e+00> : vector<2x32xf32>
    %7 = tpu.matmul %5, %6, %cst {dimension_numbers = #tpu.dot_dimension_numbers<[1], [0], [0], [1], [0, 0, 1, 1], [], []>} : vector<2x64xbf16>, vector<64x32xbf16>, vector<2x32xf32> -> vector<2x32xf32>
    %8 = arith.addf %3, %7 : vector<2x32xf32>
    %c0_6 = arith.constant 0 : index
    %c0_7 = arith.constant 0 : index
    %9 = vector.load %arg7[%c0_6, %c0_7] : memref<2x32xf32, #tpu.memory_space<vmem>>, vector<2x32xf32>
    tpu.vector_store %arg7[%c0_6, %c0_7], %8 {strides = array<i32>} : memref<2x32xf32, #tpu.memory_space<vmem>>, vector<2x32xf32>,
    %c0_i32_8 = arith.constant 0 : i32
    %10 = arith.cmpi eq, %arg2, %c0_i32_8 : i32
    %11 = arith.extui %10 : i1 to i32
    %c0_i32_9 = arith.constant 0 : i32
    %12 = arith.cmpi ne, %11, %c0_i32_9 : i32
    scf.if %12 {
      %c0_10 = arith.constant 0 : index
      %c0_11 = arith.constant 0 : index
      %13 = vector.load %arg7[%c0_10, %c0_11] : memref<2x32xf32, #tpu.memory_space<vmem>>, vector<2x32xf32>
      %c0_12 = arith.constant 0 : index
      %c0_13 = arith.constant 0 : index
      %14 = vector.load %arg5[%c0_12, %c0_13] : memref<1x32xf32, #tpu.memory_space<vmem>>, vector<1x32xf32>
      %15 = vector.broadcast %14 : vector<1x32xf32> to vector<2x32xf32>
      %16 = arith.addf %13, %15 : vector<2x32xf32>
      %cst_14 = arith.constant 0.000000e+00 : f32
      %17 = vector.broadcast %cst_14 : f32 to vector<2x32xf32>
      %18 = arith.maximumf %16, %17 : vector<2x32xf32>
      %19 = arith.truncf %18 : vector<2x32xf32> to vector<2x32xbf16>
      %c0_15 = arith.constant 0 : index
      %c0_16 = arith.constant 0 : index
      %20 = vector.load %arg6[%c0_15, %c0_16] : memref<2x32xbf16, #tpu.memory_space<vmem>>, vector<2x32xbf16>
      tpu.vector_store %arg6[%c0_15, %c0_16], %19 {strides = array<i32>} : memref<2x32xbf16, #tpu.memory_space<vmem>>, vector<2x32xbf16>,
    } else {
    }
    return
  }
  func.func @transform_0(%arg0: i32, %arg1: i32, %arg2: i32) -> (i32, i32) {
    %c0_i32 = arith.constant 0 : i32
    return %arg0, %arg2 : i32, i32
  }
  func.func @transform_1(%arg0: i32, %arg1: i32, %arg2: i32) -> (i32, i32) {
    %c0_i32 = arith.constant 0 : i32
    return %arg2, %arg1 : i32, i32
  }
  func.func @transform_2(%arg0: i32, %arg1: i32, %arg2: i32) -> (i32, i32) {
    %c0_i32 = arith.constant 0 : i32
    %c0_i32_0 = arith.constant 0 : i32
    return %c0_i32, %arg1 : i32, i32
  }
  func.func @transform_3(%arg0: i32, %arg1: i32, %arg2: i32) -> (i32, i32) {
    %c0_i32 = arith.constant 0 : i32
    return %arg0, %arg1 : i32, i32
  }
}

</mosaic_0001>

<llo_original>
// kernel: hierarchical_interview_scorer.26
$region0: #{hierarchical_interview_scorer.26}
  #allocation0 [shape = 'u32[]', space=smem, size = 0x4, offset = 0x4, fixed_abs, tag = 'smem constant byte address 0x4 - core index']
  #allocation1 [shape = 'u32[72,128]{1,0:T(1,128)}', space=vmem, size = 0x9000, scoped, tag = 'internal scratch']
  %s0 = inlined_call_operand.vmem [shape: f32[64,64], index: 0, kind: input, shape index: {}]
  %s1 = inlined_call_operand.vmem [shape: f32[1,64], index: 1, kind: input, shape index: {}]
  %s2 = inlined_call_operand.vmem [shape: f32[1,64], index: 2, kind: input, shape index: {}]
  %s3 = inlined_call_operand.vmem [shape: bf16[64,64], index: 3, kind: output, shape index: {}]
  %s4 = sld [smem:[#allocation0]]
  $region22: #{hierarchical_interview_scorer.26} parent=0
    _
  %s6 = ssub.s32 1, %s4
  %s7 = scalar_select 0, %s6, %s4
  // Predicated region
  $region2: #{hierarchical_interview_scorer.26} parent=0 // pred_check
    _
  $region3: #{hierarchical_interview_scorer.26} parent=0 // pred_check_branch
    %9 = sbr.rel (0) target = $region5
  $region4: #{hierarchical_interview_scorer.26} parent=0 // pred_region
    _
  $region5: #{hierarchical_interview_scorer.26} parent=0 // pred_fallthru
    _
  // Predicated region
  $region6: #{hierarchical_interview_scorer.26} parent=0 // pred_check
    _
  $region7: #{hierarchical_interview_scorer.26} parent=0 // pred_check_branch
    %11 = sbr.rel (0) target = $region9
  $region8: #{hierarchical_interview_scorer.26} parent=0 // pred_region
    _
  $region9: #{hierarchical_interview_scorer.26} parent=0 // pred_fallthru
    _
  // Predicated region
  $region10: #{hierarchical_interview_scorer.26} parent=0 // pred_check
    _
  $region11: #{hierarchical_interview_scorer.26} parent=0 // pred_check_branch
    %13 = sbr.rel (0) target = $region13
  $region12: #{hierarchical_interview_scorer.26} parent=0 // pred_region
    _
  $region13: #{hierarchical_interview_scorer.26} parent=0 // pred_fallthru
    _
  %v14 = vld [vmem:[%s0] sm:$0xff]
  %v15 = vld [vmem:[%s0 + $0x8] sm:$0xff]
  %v16 = vld [vmem:[%s0 + $0x10] sm:$0xff]
  %v17 = vld [vmem:[%s0 + $0x18] sm:$0xff]
  %v18 = vld [vmem:[%s0 + $0x20] sm:$0xff]
  %v19 = vld [vmem:[%s0 + $0x28] sm:$0xff]
  %v20 = vld [vmem:[%s0 + $0x30] sm:$0xff]
  %v21 = vld [vmem:[%s0 + $0x38] sm:$0xff]
  %vm22 = vcmask 523264
  %v23 = vsel %vm22, %v14, 0.0
  %24 = vadd.xlane.f32.xlu0 %v23
  %v25 = vpop.xlane.xlu0 %24
  %v26 = vsel %vm22, %v15, 0.0
  %27 = vadd.xlane.f32.xlu0 %v26
  %v28 = vpop.xlane.xlu0 %27
  %v29 = vsel %vm22, %v16, 0.0
  %30 = vadd.xlane.f32.xlu0 %v29
  %v31 = vpop.xlane.xlu0 %30
  %v32 = vsel %vm22, %v17, 0.0
  %33 = vadd.xlane.f32.xlu0 %v32
  %v34 = vpop.xlane.xlu0 %33
  %v35 = vsel %vm22, %v18, 0.0
  %36 = vadd.xlane.f32.xlu0 %v35
  %v37 = vpop.xlane.xlu0 %36
  %v38 = vsel %vm22, %v19, 0.0
  %39 = vadd.xlane.f32.xlu0 %v38
  %v40 = vpop.xlane.xlu0 %39
  %v41 = vsel %vm22, %v20, 0.0
  %42 = vadd.xlane.f32.xlu0 %v41
  %v43 = vpop.xlane.xlu0 %42
  %v44 = vsel %vm22, %v21, 0.0
  %45 = vadd.xlane.f32.xlu0 %v44
  %v46 = vpop.xlane.xlu0 %45
  %v47 = vrcp.pop 64.0
  %v48 = vmul.f32 64.0, %v47
  %v49 = vsub.f32 1.0, %v48
  %v50 = vmul.f32 %v47, %v49
  %v51 = vadd.f32 %v47, %v50
  %vm52 = vweird.f32 %v47
  %v53 = vsel %vm52, %v47, %v51
  %v54 = vmul.f32 %v25, %v53
  %v55 = vmul.f32 %v28, %v53
  %v56 = vmul.f32 %v31, %v53
  %v57 = vmul.f32 %v34, %v53
  %v58 = vmul.f32 %v37, %v53
  %v59 = vmul.f32 %v40, %v53
  %v60 = vmul.f32 %v43, %v53
  %v61 = vmul.f32 %v46, %v53
  %v62 = vsub.f32 %v14, %v54
  %v63 = vsub.f32 %v15, %v55
  %v64 = vsub.f32 %v16, %v56
  %v65 = vsub.f32 %v17, %v57
  %v66 = vsub.f32 %v18, %v58
  %v67 = vsub.f32 %v19, %v59
  %v68 = vsub.f32 %v20, %v60
  %v69 = vsub.f32 %v21, %v61
  %v70 = vmul.f32 %v62, %v62
  %v71 = vmul.f32 %v63, %v63
  %v72 = vmul.f32 %v64, %v64
  %v73 = vmul.f32 %v65, %v65
  %v74 = vmul.f32 %v66, %v66
  %v75 = vmul.f32 %v67, %v67
  %v76 = vmul.f32 %v68, %v68
  %v77 = vmul.f32 %v69, %v69
  %v78 = vsel %vm22, %v70, 0.0
  %79 = vadd.xlane.f32.xlu0 %v78
  %v80 = vpop.xlane.xlu0 %79
  %v81 = vsel %vm22, %v71, 0.0
  %82 = vadd.xlane.f32.xlu0 %v81
  %v83 = vpop.xlane.xlu0 %82
  %v84 = vsel %vm22, %v72, 0.0
  %85 = vadd.xlane.f32.xlu0 %v84
  %v86 = vpop.xlane.xlu0 %85
  %v87 = vsel %vm22, %v73, 0.0
  %88 = vadd.xlane.f32.xlu0 %v87
  %v89 = vpop.xlane.xlu0 %88
  %v90 = vsel %vm22, %v74, 0.0
  %91 = vadd.xlane.f32.xlu0 %v90
  %v92 = vpop.xlane.xlu0 %91
  %v93 = vsel %vm22, %v75, 0.0
  %94 = vadd.xlane.f32.xlu0 %v93
  %v95 = vpop.xlane.xlu0 %94
  %v96 = vsel %vm22, %v76, 0.0
  %97 = vadd.xlane.f32.xlu0 %v96
  %v98 = vpop.xlane.xlu0 %97
  %v99 = vsel %vm22, %v77, 0.0
  %100 = vadd.xlane.f32.xlu0 %v99
  %v101 = vpop.xlane.xlu0 %100
  %v102 = vmul.f32 %v80, %v53
  %v103 = vmul.f32 %v83, %v53
  %v104 = vmul.f32 %v86, %v53
  %v105 = vmul.f32 %v89, %v53
  %v106 = vmul.f32 %v92, %v53
  %v107 = vmul.f32 %v95, %v53
  %v108 = vmul.f32 %v98, %v53
  %v109 = vmul.f32 %v101, %v53
  %v110 = vadd.f32 %v102, 1e-12
  %v111 = vadd.f32 %v103, 1e-12
  %v112 = vadd.f32 %v104, 1e-12
  %v113 = vadd.f32 %v105, 1e-12
  %v114 = vadd.f32 %v106, 1e-12
  %v115 = vadd.f32 %v107, 1e-12
  %v116 = vadd.f32 %v108, 1e-12
  %v117 = vadd.f32 %v109, 1e-12
  %v118 = vrsqrt.pop %v110
  %v119 = vmul.f32 %v118, %v110
  %v120 = vmul.f32 %v119, %v118
  %v121 = vmul.f32 0.5, %v120
  %v122 = vsub.f32 1.5, %v121
  %v123 = vmul.f32 %v118, %v122
  %vm124 = vweird.f32 %v110
  %vm125 = vweird.f32 %v118
  %vm126 = vmor %vm124, %vm125
  %v127 = vsel %vm126, %v118, %v123
  %v128 = vrsqrt.pop %v111
  %v129 = vmul.f32 %v128, %v111
  %v130 = vmul.f32 %v129, %v128
  %v131 = vmul.f32 0.5, %v130
  %v132 = vsub.f32 1.5, %v131
  %v133 = vmul.f32 %v128, %v132
  %vm134 = vweird.f32 %v111
  %vm135 = vweird.f32 %v128
  %vm136 = vmor %vm134, %vm135
  %v137 = vsel %vm136, %v128, %v133
  %v138 = vrsqrt.pop %v112
  %v139 = vmul.f32 %v138, %v112
  %v140 = vmul.f32 %v139, %v138
  %v141 = vmul.f32 0.5, %v140
  %v142 = vsub.f32 1.5, %v141
  %v143 = vmul.f32 %v138, %v142
  %vm144 = vweird.f32 %v112
  %vm145 = vweird.f32 %v138
  %vm146 = vmor %vm144, %vm145
  %v147 = vsel %vm146, %v138, %v143
  %v148 = vrsqrt.pop %v113
  %v149 = vmul.f32 %v148, %v113
  %v150 = vmul.f32 %v149, %v148
  %v151 = vmul.f32 0.5, %v150
  %v152 = vsub.f32 1.5, %v151
  %v153 = vmul.f32 %v148, %v152
  %vm154 = vweird.f32 %v113
  %vm155 = vweird.f32 %v148
  %vm156 = vmor %vm154, %vm155
  %v157 = vsel %vm156, %v148, %v153
  %v158 = vrsqrt.pop %v114
  %v159 = vmul.f32 %v158, %v114
  %v160 = vmul.f32 %v159, %v158
  %v161 = vmul.f32 0.5, %v160
  %v162 = vsub.f32 1.5, %v161
  %v163 = vmul.f32 %v158, %v162
  %vm164 = vweird.f32 %v114
  %vm165 = vweird.f32 %v158
  %vm166 = vmor %vm164, %vm165
  %v167 = vsel %vm166, %v158, %v163
  %v168 = vrsqrt.pop %v115
  %v169 = vmul.f32 %v168, %v115
  %v170 = vmul.f32 %v169, %v168
  %v171 = vmul.f32 0.5, %v170
  %v172 = vsub.f32 1.5, %v171
  %v173 = vmul.f32 %v168, %v172
  %vm174 = vweird.f32 %v115
  %vm175 = vweird.f32 %v168
  %vm176 = vmor %vm174, %vm175
  %v177 = vsel %vm176, %v168, %v173
  %v178 = vrsqrt.pop %v116
  %v179 = vmul.f32 %v178, %v116
  %v180 = vmul.f32 %v179, %v178
  %v181 = vmul.f32 0.5, %v180
  %v182 = vsub.f32 1.5, %v181
  %v183 = vmul.f32 %v178, %v182
  %vm184 = vweird.f32 %v116
  %vm185 = vweird.f32 %v178
  %vm186 = vmor %vm184, %vm185
  %v187 = vsel %vm186, %v178, %v183
  %v188 = vrsqrt.pop %v117
  %v189 = vmul.f32 %v188, %v117
  %v190 = vmul.f32 %v189, %v188
  %v191 = vmul.f32 0.5, %v190
  %v192 = vsub.f32 1.5, %v191
  %v193 = vmul.f32 %v188, %v192
  %vm194 = vweird.f32 %v117
  %vm195 = vweird.f32 %v188
  %vm196 = vmor %vm194, %vm195
  %v197 = vsel %vm196, %v188, %v193
  %v198 = vmul.f32 %v62, %v127
  %v199 = vmul.f32 %v63, %v137
  %v200 = vmul.f32 %v64, %v147
  %v201 = vmul.f32 %v65, %v157
  %v202 = vmul.f32 %v66, %v167
  %v203 = vmul.f32 %v67, %v177
  %v204 = vmul.f32 %v68, %v187
  %v205 = vmul.f32 %v69, %v197
  %v206 = vld [vmem:[%s1] sm:$0x1]
  %v208 = vperm.slane %v206, 0
  %v210 = vmul.f32 %v198, %v208
  %v211 = vmul.f32 %v199, %v208
  %v212 = vmul.f32 %v200, %v208
  %v213 = vmul.f32 %v201, %v208
  %v214 = vmul.f32 %v202, %v208
  %v215 = vmul.f32 %v203, %v208
  %v216 = vmul.f32 %v204, %v208
  %v217 = vmul.f32 %v205, %v208
  %v218 = vld [vmem:[%s2] sm:$0x1]
  %v220 = vperm.slane %v218, 0
  %v222 = vadd.f32 %v210, %v220
  %v223 = vadd.f32 %v211, %v220
  %v224 = vadd.f32 %v212, %v220
  %v225 = vadd.f32 %v213, %v220
  %v226 = vadd.f32 %v214, %v220
  %v227 = vadd.f32 %v215, %v220
  %v228 = vadd.f32 %v216, %v220
  %v229 = vadd.f32 %v217, %v220
  %v230 = vpack.c.bf16 %v222, %v222
  %v231 = vpack.c.bf16 %v223, %v223
  %v232 = vpack.c.bf16 %v224, %v224
  %v233 = vpack.c.bf16 %v225, %v225
  %v234 = vpack.c.bf16 %v226, %v226
  %v235 = vpack.c.bf16 %v227, %v227
  %v236 = vpack.c.bf16 %v228, %v228
  %v237 = vpack.c.bf16 %v229, %v229
  %vm238 = vcmask 519168
  %239 = vst.msk [vmem:[%s3] sm:$0xf] %vm238, %v230
  %240 = vst.msk [vmem:[%s3 + $0x4] sm:$0xf] %vm238, %v231
  %241 = vst.msk [vmem:[%s3 + $0x8] sm:$0xf] %vm238, %v232
  %242 = vst.msk [vmem:[%s3 + $0xc] sm:$0xf] %vm238, %v233
  %243 = vst.msk [vmem:[%s3 + $0x10] sm:$0xf] %vm238, %v234
  %244 = vst.msk [vmem:[%s3 + $0x14] sm:$0xf] %vm238, %v235
  %245 = vst.msk [vmem:[%s3 + $0x18] sm:$0xf] %vm238, %v236
  %246 = vst.msk [vmem:[%s3 + $0x1c] sm:$0xf] %vm238, %v237
  // Predicated region
  $region14: #{hierarchical_interview_scorer.26} parent=0 // pred_check
    _
  $region15: #{hierarchical_interview_scorer.26} parent=0 // pred_check_branch
    %248 = sbr.rel (0) target = $region17
  $region16: #{hierarchical_interview_scorer.26} parent=0 // pred_region
    _
  $region17: #{hierarchical_interview_scorer.26} parent=0 // pred_fallthru
    _
  // Predicated region
  $region18: #{hierarchical_interview_scorer.26} parent=0 // pred_check
    _
  $region19: #{hierarchical_interview_scorer.26} parent=0 // pred_check_branch
    %250 = sbr.rel (0) target = $region21
  $region20: #{hierarchical_interview_scorer.26} parent=0 // pred_region
    _
  $region21: #{hierarchical_interview_scorer.26} parent=0 // pred_fallthru
    _

// kernel: hierarchical_interview_scorer.28
$region0: #{hierarchical_interview_scorer.28}
  #allocation0 [shape = 'u32[]', space=smem, size = 0x4, offset = 0x4, fixed_abs, tag = 'smem constant byte address 0x4 - core index']
  #allocation1 [shape = 'u32[72,128]{1,0:T(1,128)}', space=vmem, size = 0x9000, scoped, tag = 'internal scratch']
  %s0 = inlined_call_operand.vmem [shape: bf16[8,8,192], index: 0, kind: input, shape index: {}]
  %s1 = inlined_call_operand.vmem [shape: f32[8,1,8], index: 1, kind: input, shape index: {}]
  %s2 = inlined_call_operand.vmem [shape: bf16[8,8,64], index: 2, kind: output, shape index: {}]
  %s3 = sld [smem:[#allocation0]]
  $region41: #{hierarchical_interview_scorer.28} parent=0
    _
  %s5 = ssub.s32 1, %s3
  %s6 = scalar_select 0, %s5, %s3
  loop: start=0, step=1, limit=10
  $region2: #{hierarchical_interview_scorer.28} parent=0 // loop_pre_header
    _
  $region3: #{hierarchical_interview_scorer.28} parent=0 // loop_header
    %s8 = sphi 0, %s12
    %p9 = scmp.ge.s32.totalorder %s8, 10
    %s18 = sphi 0, %s20
    %s21 = sphi 0, %s18
    %s22 = sphi 0, %s21
    %s38 = sphi 0, %s22
    %s44 = sphi 0, %s46
    %s47 = sphi 0, %s44
    %s48 = sphi 0, %s47
    %s64 = sphi 0, %s48
    %s70 = sphi 0, %s72
    %s73 = sphi 0, %s70
    %s74 = sphi 0, %s73
    %s90 = sphi 0, %s74
  $region4: #{hierarchical_interview_scorer.28} parent=0 // loop_header_branch
    %11 = sbr.rel (%p9) target = $region8
  $region5: #{hierarchical_interview_scorer.28} parent=0 // loop_body
    %s13 = ssub.s32 %s8, 1
    %s14 = ssub.s32 %s8, 2
    %s15 = sadd.s32 %s8, 1
    %s16 = ssub.s32 %s8, %s15
    %p17 = scmp.eq.s32.totalorder %s16, 0
    %s19 = sadd.s32 %s18, 1
    %s20 = scalar_select %p17, %s18, %s19
    %p23 = pneg %p17
    %p24 = scmp.eq.s32.totalorder %s8, 7
    %p25 = por %p23, %p24
    %p26 = scmp.ne.s32.totalorder %s18, %s21
    %p27 = scmp.eq.s32.totalorder %s8, 0
    %p28 = por %p26, %p27
    %p29 = scmp.ne.s32.totalorder %s18, %s21
    %p30 = scmp.eq.s32.totalorder %s13, 7
    %p31 = por %p29, %p30
    %p32 = scmp.ne.s32.totalorder %s21, %s22
    %p33 = scmp.eq.s32.totalorder %s13, 0
    %p34 = por %p32, %p33
    %p35 = scmp.ne.s32.totalorder %s21, %s22
    %p36 = scmp.eq.s32.totalorder %s14, 7
    %p37 = por %p35, %p36
    %p39 = scmp.ne.s32.totalorder %s22, %s38
    %p40 = scmp.eq.s32.totalorder %s14, 0
    %p41 = por %p39, %p40
    %s42 = ssub.s32 %s8, %s15
    %p43 = scmp.eq.s32.totalorder %s42, 0
    %s45 = sadd.s32 %s44, 1
    %s46 = scalar_select %p43, %s44, %s45
    %p49 = pneg %p43
    %p50 = scmp.eq.s32.totalorder %s8, 7
    %p51 = por %p49, %p50
    %p52 = scmp.ne.s32.totalorder %s44, %s47
    %p53 = scmp.eq.s32.totalorder %s8, 0
    %p54 = por %p52, %p53
    %p55 = scmp.ne.s32.totalorder %s44, %s47
    %p56 = scmp.eq.s32.totalorder %s13, 7
    %p57 = por %p55, %p56
    %p58 = scmp.ne.s32.totalorder %s47, %s48
    %p59 = scmp.eq.s32.totalorder %s13, 0
    %p60 = por %p58, %p59
    %p61 = scmp.ne.s32.totalorder %s47, %s48
    %p62 = scmp.eq.s32.totalorder %s14, 7
    %p63 = por %p61, %p62
    %p65 = scmp.ne.s32.totalorder %s48, %s64
    %p66 = scmp.eq.s32.totalorder %s14, 0
    %p67 = por %p65, %p66
    %s68 = ssub.s32 %s8, %s15
    %p69 = scmp.eq.s32.totalorder %s68, 0
    %s71 = sadd.s32 %s70, 1
    %s72 = scalar_select %p69, %s70, %s71
    %p75 = pneg %p69
    %p76 = scmp.eq.s32.totalorder %s8, 7
    %p77 = por %p75, %p76
    %p78 = scmp.ne.s32.totalorder %s70, %s73
    %p79 = scmp.eq.s32.totalorder %s8, 0
    %p80 = por %p78, %p79
    %p81 = scmp.ne.s32.totalorder %s70, %s73
    %p82 = scmp.eq.s32.totalorder %s13, 7
    %p83 = por %p81, %p82
    %p84 = scmp.ne.s32.totalorder %s73, %s74
    %p85 = scmp.eq.s32.totalorder %s13, 0
    %p86 = por %p84, %p85
    %p87 = scmp.ne.s32.totalorder %s73, %s74
    %p88 = scmp.eq.s32.totalorder %s14, 7
    %p89 = por %p87, %p88
    %p91 = scmp.ne.s32.totalorder %s74, %s90
    %p92 = scmp.eq.s32.totalorder %s14, 0
    %p93 = por %p91, %p92
    %p94 = scmp.le.s32.totalorder 1, %s8
    %p95 = scmp.lt.s32.totalorder %s8, 9
    %p96 = pnand %p94, %p95
    %p97 = pneg %p96
    // Predicated region
    $region9: #{hierarchical_interview_scorer.28} parent=5 // pred_check
      _
    $region10: #{hierarchical_interview_scorer.28} parent=5 // pred_check_branch
      %99 = sbr.rel (%p96) target = $region12
    $region11: #{hierarchical_interview_scorer.28} parent=5 // pred_region
      %s100 = ssub.s32 %s8, 1
    $region12: #{hierarchical_interview_scorer.28} parent=5 // pred_fallthru
      _
    %p101 = scmp.lt.s32.totalorder %s8, 8
    // Predicated region
    $region13: #{hierarchical_interview_scorer.28} parent=5 // pred_check
      %p102 = pneg %p101
    $region14: #{hierarchical_interview_scorer.28} parent=5 // pred_check_branch
      %104 = sbr.rel (%p102) target = $region16
    $region15: #{hierarchical_interview_scorer.28} parent=5 // pred_region
      // Predicated region
      $region17: #{hierarchical_interview_scorer.28} parent=15 // pred_check
        %p105 = pneg %p28
      $region18: #{hierarchical_interview_scorer.28} parent=15 // pred_check_branch
        %107 = sbr.rel (%p105) target = $region20
      $region19: #{hierarchical_interview_scorer.28} parent=15 // pred_region
        %p108 = scmp.lt.s32.totalorder %s8, 7
        %s109 = scalar_select %p108, %s8, 7
        %s110 = smul.addr %s109, 2
        %s111 = smul.addr %s110, 4
        %s112 = scalar_lea.vmem %s0, %s111
      $region20: #{hierarchical_interview_scorer.28} parent=15 // pred_fallthru
        _
      // Predicated region
      $region21: #{hierarchical_interview_scorer.28} parent=15 // pred_check
        %p113 = pneg %p54
      $region22: #{hierarchical_interview_scorer.28} parent=15 // pred_check_branch
        %115 = sbr.rel (%p113) target = $region24
      $region23: #{hierarchical_interview_scorer.28} parent=15 // pred_region
        %p116 = scmp.lt.s32.totalorder %s8, 7
        %s117 = scalar_select %p116, %s8, 7
        %s118 = scalar_lea.vmem %s1, %s117
      $region24: #{hierarchical_interview_scorer.28} parent=15 // pred_fallthru
        _
    $region16: #{hierarchical_interview_scorer.28} parent=5 // pred_fallthru
      _
    %p119 = scmp.le.s32.totalorder 1, %s8
    %p120 = scmp.lt.s32.totalorder %s8, 9
    %p121 = pnand %p119, %p120
    %p122 = pneg %p121
    // Predicated region
    $region25: #{hierarchical_interview_scorer.28} parent=5 // pred_check
      _
    $region26: #{hierarchical_interview_scorer.28} parent=5 // pred_check_branch
      %124 = sbr.rel (%p121) target = $region28
    $region27: #{hierarchical_interview_scorer.28} parent=5 // pred_region
      %s125 = ssub.s32 %s8, 1
      %p126 = scmp.lt.s32.totalorder %s13, 7
      %s127 = scalar_select %p126, %s13, 7
      %s128 = smul.addr %s127, 2
      %s129 = smul.addr %s128, 4
      %s130 = scalar_lea.vmem %s0, %s129
      %p131 = pneg %p34
      %p132 = pneg %p31
      %p133 = scmp.lt.s32.totalorder %s13, 7
      %s134 = scalar_select %p133, %s13, 7
      %s135 = scalar_lea.vmem %s1, %s134
      %p136 = pneg %p60
      %p137 = pneg %p57
      %p138 = pneg %p86
      %p139 = pneg %p83
      %p140 = scmp.lt.s32.totalorder %s13, 7
      %s141 = scalar_select %p140, %s13, 7
      %s142 = smul.addr %s141, 4
      %s143 = scalar_lea.vmem %s2, %s142
      %p144 = scmp.lt.s32.totalorder %s13, 7
      %s145 = scalar_select %p144, %s13, 7
      %s146 = smul.addr %s145, 2
      %s147 = smul.addr %s146, 4
      %s148 = scalar_lea.vmem %s0, %s147
      %p149 = scmp.lt.s32.totalorder %s13, 7
      %s150 = scalar_select %p149, %s13, 7
      %s151 = scalar_lea.vmem %s1, %s150
      %p152 = scmp.lt.s32.totalorder %s13, 7
      %s153 = scalar_select %p152, %s13, 7
      %s154 = smul.addr %s153, 4
      %s155 = scalar_lea.vmem %s2, %s154
      %v157 = vld [vmem:[%s148] sm:$0xff]
      %v158 = vld [vmem:[%s151] sm:$0x1]
      %v160 = vperm.slane %v158, 0
      %v163 = vunpack.c.l.b16 %v157
      %v164 = vpack.c.b16 %v163, %v163
      %165 = vrot.lane.b32.xlu0 %v164, 64
      %v166 = vpop.permute.xlu0 %165
      %vm167 = vcmask 130048
      %v169 = vsel %vm167, %v157, 0
      %v172 = vsel %vm167, %v166, 0
      %174 = vmatpush.bf16.xpose.msra.mxu0 0
      %175 = vmatpush.bf16.xpose.msra.mxu0 0
      %176 = vmatpush.bf16.xpose.msra.mxu0 0
      %177 = vmatpush.bf16.xpose.msra.mxu0 0
      %178 = vmatpush.bf16.xpose.msra.mxu0 0
      %179 = vmatpush.bf16.xpose.msra.mxu0 0
      %180 = vmatpush.bf16.xpose.msra.mxu0 0
      %181 = vmatpush.bf16.xpose.msra.mxu0 %v172
      %182 = vmatmul.bf16.gmra.mxu0 %v169
      %v183 = vpop.f32.mrf.mxu0
      %v184 = vadd.f32 %v160, %v183
      %v185 = vpop.f32.mrf.mxu0
      %186 = vdwg.mxu0
      %vm187 = vcmask 64512
      %v188 = vsel %vm187, %v184, -inf
      %189 = vmax.xlane.f32.xlu0 %v188
      %v190 = vpop.xlane.xlu0 %189
      %v191 = vsub.f32 %v184, %v190
      %v192 = vmul.f32 %v191, 1.442695
      %v193 = vpow.pop %v192
      %v194 = vsel %vm187, %v193, 0.0
      %195 = vadd.xlane.f32.xlu0 %v194
      %v196 = vpop.xlane.xlu0 %195
      %v197 = vrcp.pop %v196
      %v198 = vmul.f32 %v193, %v197
      %v199 = vpack.c.bf16 %v198, %v198
      %v200 = vunpack.c.h.b16 %v157
      %v201 = vpack.c.b16 %v200, %v200
      %v203 = vsel %vm187, %v199, 0
      %vm205 = vcmask 1043456
      %v207 = vsel %vm205, %v201, 0
      %209 = vmatpush.bf16.msra.mxu0 0
      %210 = vmatpush.bf16.msra.mxu0 0
      %211 = vmatpush.bf16.msra.mxu0 0
      %212 = vmatpush.bf16.msra.mxu0 0
      %213 = vmatpush.bf16.msra.mxu0 0
      %214 = vmatpush.bf16.msra.mxu0 0
      %215 = vmatpush.bf16.msra.mxu0 0
      %216 = vmatpush.bf16.msra.mxu0 %v207
      %217 = vmatmul.bf16.gmra.mxu0 %v203
      %v218 = vpop.f32.mrf.mxu0
      %v219 = vadd.f32 0.0, %v218
      %v220 = vpop.f32.mrf.mxu0
      %221 = vdwg.mxu0
      %v222 = vpack.c.bf16 %v219, %v219
      %vm223 = vcmask 125952
      %224 = vst.msk [vmem:[%s155] sm:$0xf] %vm223, %v222
      %225 = vrot.lane.b32.xlu0 %v164, 112
      %v226 = vpop.permute.xlu0 %225
      %227 = vrot.lane.b32.xlu0 %v164, 48
      %v228 = vpop.permute.xlu0 %227
      %v230 = vsel %vm167, %v226, 0
      %v233 = vsel %vm167, %v228, 0
      %235 = vmatpush.bf16.xpose.msra.mxu0 0
      %236 = vmatpush.bf16.xpose.msra.mxu0 0
      %237 = vmatpush.bf16.xpose.msra.mxu0 0
      %238 = vmatpush.bf16.xpose.msra.mxu0 0
      %239 = vmatpush.bf16.xpose.msra.mxu0 0
      %240 = vmatpush.bf16.xpose.msra.mxu0 0
      %241 = vmatpush.bf16.xpose.msra.mxu0 0
      %242 = vmatpush.bf16.xpose.msra.mxu0 %v233
      %243 = vmatmul.bf16.gmra.mxu0 %v230
      %v244 = vpop.f32.mrf.mxu0
      %v245 = vadd.f32 %v160, %v244
      %v246 = vpop.f32.mrf.mxu0
      %247 = vdwg.mxu0
      %v248 = vsel %vm187, %v245, -inf
      %249 = vmax.xlane.f32.xlu0 %v248
      %v250 = vpop.xlane.xlu0 %249
      %v251 = vsub.f32 %v245, %v250
      %v252 = vmul.f32 %v251, 1.442695
      %v253 = vpow.pop %v252
      %v254 = vsel %vm187, %v253, 0.0
      %255 = vadd.xlane.f32.xlu0 %v254
      %v256 = vpop.xlane.xlu0 %255
      %v257 = vrcp.pop %v256
      %v258 = vmul.f32 %v253, %v257
      %v259 = vpack.c.bf16 %v258, %v258
      %260 = vrot.lane.b32.xlu0 %v201, 112
      %v261 = vpop.permute.xlu0 %260
      %v263 = vsel %vm187, %v259, 0
      %v266 = vsel %vm205, %v261, 0
      %268 = vmatpush.bf16.msra.mxu0 0
      %269 = vmatpush.bf16.msra.mxu0 0
      %270 = vmatpush.bf16.msra.mxu0 0
      %271 = vmatpush.bf16.msra.mxu0 0
      %272 = vmatpush.bf16.msra.mxu0 0
      %273 = vmatpush.bf16.msra.mxu0 0
      %274 = vmatpush.bf16.msra.mxu0 0
      %275 = vmatpush.bf16.msra.mxu0 %v266
      %276 = vmatmul.bf16.gmra.mxu0 %v263
      %v277 = vpop.f32.mrf.mxu0
      %v278 = vadd.f32 0.0, %v277
      %v279 = vpop.f32.mrf.mxu0
      %280 = vdwg.mxu0
      %v281 = vpack.c.bf16 %v278, %v278
      %283 = vrot.lane.b32.xlu0 %v281, 16
      %v284 = vpop.permute.xlu0 %283
      %vm286 = vcmask 257152
      %287 = vst.msk [vmem:[%s155] sm:$0xf] %vm286, %v284
      %288 = vrot.lane.b32.xlu0 %v164, 96
      %v289 = vpop.permute.xlu0 %288
      %290 = vrot.lane.b32.xlu0 %v164, 32
      %v291 = vpop.permute.xlu0 %290
      %v293 = vsel %vm167, %v289, 0
      %v296 = vsel %vm167, %v291, 0
      %298 = vmatpush.bf16.xpose.msra.mxu0 0
      %299 = vmatpush.bf16.xpose.msra.mxu0 0
      %300 = vmatpush.bf16.xpose.msra.mxu0 0
      %301 = vmatpush.bf16.xpose.msra.mxu0 0
      %302 = vmatpush.bf16.xpose.msra.mxu0 0
      %303 = vmatpush.bf16.xpose.msra.mxu0 0
      %304 = vmatpush.bf16.xpose.msra.mxu0 0
      %305 = vmatpush.bf16.xpose.msra.mxu0 %v296
      %306 = vmatmul.bf16.gmra.mxu0 %v293
      %v307 = vpop.f32.mrf.mxu0
      %v308 = vadd.f32 %v160, %v307
      %v309 = vpop.f32.mrf.mxu0
      %310 = vdwg.mxu0
      %v311 = vsel %vm187, %v308, -inf
      %312 = vmax.xlane.f32.xlu0 %v311
      %v313 = vpop.xlane.xlu0 %312
      %v314 = vsub.f32 %v308, %v313
      %v315 = vmul.f32 %v314, 1.442695
      %v316 = vpow.pop %v315
      %v317 = vsel %vm187, %v316, 0.0
      %318 = vadd.xlane.f32.xlu0 %v317
      %v319 = vpop.xlane.xlu0 %318
      %v320 = vrcp.pop %v319
      %v321 = vmul.f32 %v316, %v320
      %v322 = vpack.c.bf16 %v321, %v321
      %323 = vrot.lane.b32.xlu0 %v201, 96
      %v324 = vpop.permute.xlu0 %323
      %v326 = vsel %vm187, %v322, 0
      %v329 = vsel %vm205, %v324, 0
      %331 = vmatpush.bf16.msra.mxu0 0
      %332 = vmatpush.bf16.msra.mxu0 0
      %333 = vmatpush.bf16.msra.mxu0 0
      %334 = vmatpush.bf16.msra.mxu0 0
      %335 = vmatpush.bf16.msra.mxu0 0
      %336 = vmatpush.bf16.msra.mxu0 0
      %337 = vmatpush.bf16.msra.mxu0 0
      %338 = vmatpush.bf16.msra.mxu0 %v329
      %339 = vmatmul.bf16.gmra.mxu0 %v326
      %v340 = vpop.f32.mrf.mxu0
      %v341 = vadd.f32 0.0, %v340
      %v342 = vpop.f32.mrf.mxu0
      %343 = vdwg.mxu0
      %v344 = vpack.c.bf16 %v341, %v341
      %346 = vrot.lane.b32.xlu0 %v344, 32
      %v347 = vpop.permute.xlu0 %346
      %vm349 = vcmask 388352
      %350 = vst.msk [vmem:[%s155] sm:$0xf] %vm349, %v347
      %351 = vrot.lane.b32.xlu0 %v164, 80
      %v352 = vpop.permute.xlu0 %351
      %353 = vrot.lane.b32.xlu0 %v164, 16
      %v354 = vpop.permute.xlu0 %353
      %v356 = vsel %vm167, %v352, 0
      %v359 = vsel %vm167, %v354, 0
      %361 = vmatpush.bf16.xpose.msra.mxu0 0
      %362 = vmatpush.bf16.xpose.msra.mxu0 0
      %363 = vmatpush.bf16.xpose.msra.mxu0 0
      %364 = vmatpush.bf16.xpose.msra.mxu0 0
      %365 = vmatpush.bf16.xpose.msra.mxu0 0
      %366 = vmatpush.bf16.xpose.msra.mxu0 0
      %367 = vmatpush.bf16.xpose.msra.mxu0 0
      %368 = vmatpush.bf16.xpose.msra.mxu0 %v359
      %369 = vmatmul.bf16.gmra.mxu0 %v356
      %v370 = vpop.f32.mrf.mxu0
      %v371 = vadd.f32 %v160, %v370
      %v372 = vpop.f32.mrf.mxu0
      %373 = vdwg.mxu0
      %v374 = vsel %vm187, %v371, -inf
      %375 = vmax.xlane.f32.xlu0 %v374
      %v376 = vpop.xlane.xlu0 %375
      %v377 = vsub.f32 %v371, %v376
      %v378 = vmul.f32 %v377, 1.442695
      %v379 = vpow.pop %v378
      %v380 = vsel %vm187, %v379, 0.0
      %381 = vadd.xlane.f32.xlu0 %v380
      %v382 = vpop.xlane.xlu0 %381
      %v383 = vrcp.pop %v382
      %v384 = vmul.f32 %v379, %v383
      %v385 = vpack.c.bf16 %v384, %v384
      %386 = vrot.lane.b32.xlu0 %v201, 80
      %v387 = vpop.permute.xlu0 %386
      %v389 = vsel %vm187, %v385, 0
      %v392 = vsel %vm205, %v387, 0
      %394 = vmatpush.bf16.msra.mxu0 0
      %395 = vmatpush.bf16.msra.mxu0 0
      %396 = vmatpush.bf16.msra.mxu0 0
      %397 = vmatpush.bf16.msra.mxu0 0
      %398 = vmatpush.bf16.msra.mxu0 0
      %399 = vmatpush.bf16.msra.mxu0 0
      %400 = vmatpush.bf16.msra.mxu0 0
      %401 = vmatpush.bf16.msra.mxu0 %v392
      %402 = vmatmul.bf16.gmra.mxu0 %v389
      %v403 = vpop.f32.mrf.mxu0
      %v404 = vadd.f32 0.0, %v403
      %v405 = vpop.f32.mrf.mxu0
      %406 = vdwg.mxu0
      %v407 = vpack.c.bf16 %v404, %v404
      %409 = vrot.lane.b32.xlu0 %v407, 48
      %v410 = vpop.permute.xlu0 %409
      %vm412 = vcmask 519552
      %413 = vst.msk [vmem:[%s155] sm:$0xf] %vm412, %v410
      %p414 = scmp.lt.s32.totalorder %s13, 7
      %s415 = scalar_select %p414, %s13, 7
      %s416 = smul.addr %s415, 4
      %s417 = scalar_lea.vmem %s2, %s416
      // Predicated region
      $region29: #{hierarchical_interview_scorer.28} parent=27 // pred_check
        %p418 = pneg %p83
      $region30: #{hierarchical_interview_scorer.28} parent=27 // pred_check_branch
        %420 = sbr.rel (%p418) target = $region32
      $region31: #{hierarchical_interview_scorer.28} parent=27 // pred_region
        _
      $region32: #{hierarchical_interview_scorer.28} parent=27 // pred_fallthru
        _
    $region28: #{hierarchical_interview_scorer.28} parent=5 // pred_fallthru
      _
    %p421 = scmp.le.s32.totalorder 2, %s8
    // Predicated region
    $region33: #{hierarchical_interview_scorer.28} parent=5 // pred_check
      %p422 = pneg %p421
    $region34: #{hierarchical_interview_scorer.28} parent=5 // pred_check_branch
      %424 = sbr.rel (%p422) target = $region36
    $region35: #{hierarchical_interview_scorer.28} parent=5 // pred_region
      %s425 = ssub.s32 %s8, 2
      // Predicated region
      $region37: #{hierarchical_interview_scorer.28} parent=35 // pred_check
        %p426 = pneg %p89
      $region38: #{hierarchical_interview_scorer.28} parent=35 // pred_check_branch
        %428 = sbr.rel (%p426) target = $region40
      $region39: #{hierarchical_interview_scorer.28} parent=35 // pred_region
        %p429 = scmp.lt.s32.totalorder %s14, 7
        %s430 = scalar_select %p429, %s14, 7
        %s431 = smul.addr %s430, 4
        %s432 = scalar_lea.vmem %s2, %s431
      $region40: #{hierarchical_interview_scorer.28} parent=35 // pred_fallthru
        _
    $region36: #{hierarchical_interview_scorer.28} parent=5 // pred_fallthru
      _
  $region6: #{hierarchical_interview_scorer.28} parent=0 // loop_footer
    %s12 = sadd.s32 1, %s8
  $region7: #{hierarchical_interview_scorer.28} parent=0 // loop_footer_branch
    %7 = sbr.rel target = $region3
  $region8: #{hierarchical_interview_scorer.28} parent=0 // loop_exit
    _

// kernel: hierarchical_interview_scorer.27
$region0: #{hierarchical_interview_scorer.27}
  #allocation0 [shape = 'u32[]', space=smem, size = 0x4, offset = 0x4, fixed_abs, tag = 'smem constant byte address 0x4 - core index']
  #allocation1 [shape = 'u32[72,128]{1,0:T(1,128)}', space=vmem, size = 0x9000, scoped, tag = 'internal scratch']
  #allocation2 [shape = 'f32[64,192]{1,0:T(8,128)}', space=vmem, size = 0x10000, scoped, tag = 'scratch operand']
  %s0 = inlined_call_operand.vmem [shape: bf16[64,64], index: 0, kind: input, shape index: {}]
  %s1 = inlined_call_operand.vmem [shape: bf16[64,192], index: 1, kind: input, shape index: {}]
  %s2 = inlined_call_operand.vmem [shape: f32[1,192], index: 2, kind: input, shape index: {}]
  %s3 = inlined_call_operand.vmem [shape: bf16[64,192], index: 3, kind: output, shape index: {}]
  %s4 = sld [smem:[#allocation0]]
  $region30: #{hierarchical_interview_scorer.27} parent=0
    _
  %s6 = ssub.s32 1, %s4
  %s7 = scalar_select 0, %s6, %s4
  // Predicated region
  $region2: #{hierarchical_interview_scorer.27} parent=0 // pred_check
    _
  $region3: #{hierarchical_interview_scorer.27} parent=0 // pred_check_branch
    %9 = sbr.rel (0) target = $region5
  $region4: #{hierarchical_interview_scorer.27} parent=0 // pred_region
    _
  $region5: #{hierarchical_interview_scorer.27} parent=0 // pred_fallthru
    _
  // Predicated region
  $region6: #{hierarchical_interview_scorer.27} parent=0 // pred_check
    _
  $region7: #{hierarchical_interview_scorer.27} parent=0 // pred_check_branch
    %11 = sbr.rel (0) target = $region9
  $region8: #{hierarchical_interview_scorer.27} parent=0 // pred_region
    _
  $region9: #{hierarchical_interview_scorer.27} parent=0 // pred_fallthru
    _
  // Predicated region
  $region10: #{hierarchical_interview_scorer.27} parent=0 // pred_check
    _
  $region11: #{hierarchical_interview_scorer.27} parent=0 // pred_check_branch
    %13 = sbr.rel (0) target = $region13
  $region12: #{hierarchical_interview_scorer.27} parent=0 // pred_region
    _
  $region13: #{hierarchical_interview_scorer.27} parent=0 // pred_fallthru
    _
  %p15 = scmp.eq.s32.totalorder 0, 0
  // Predicated region
  $region14: #{hierarchical_interview_scorer.27} parent=0 // pred_check
    %p16 = pneg %p15
  $region15: #{hierarchical_interview_scorer.27} parent=0 // pred_check_branch
    %18 = sbr.rel (%p16) target = $region17
  $region16: #{hierarchical_interview_scorer.27} parent=0 // pred_region
    %19 = vst [vmem:[#allocation2] sm:$0xff] 0.0
    %vm20 = vcmask 523264
    %21 = vst.msk [vmem:[#allocation2 + $0x8] sm:$0xff] %vm20, 0.0
    %22 = vst [vmem:[#allocation2 + $0x10] sm:$0xff] 0.0
    %23 = vst.msk [vmem:[#allocation2 + $0x18] sm:$0xff] %vm20, 0.0
    %24 = vst [vmem:[#allocation2 + $0x20] sm:$0xff] 0.0
    %25 = vst.msk [vmem:[#allocation2 + $0x28] sm:$0xff] %vm20, 0.0
    %26 = vst [vmem:[#allocation2 + $0x30] sm:$0xff] 0.0
    %27 = vst.msk [vmem:[#allocation2 + $0x38] sm:$0xff] %vm20, 0.0
    %28 = vst [vmem:[#allocation2 + $0x40] sm:$0xff] 0.0
    %29 = vst.msk [vmem:[#allocation2 + $0x48] sm:$0xff] %vm20, 0.0
    %30 = vst [vmem:[#allocation2 + $0x50] sm:$0xff] 0.0
    %31 = vst.msk [vmem:[#allocation2 + $0x58] sm:$0xff] %vm20, 0.0
    %32 = vst [vmem:[#allocation2 + $0x60] sm:$0xff] 0.0
    %33 = vst.msk [vmem:[#allocation2 + $0x68] sm:$0xff] %vm20, 0.0
    %34 = vst [vmem:[#allocation2 + $0x70] sm:$0xff] 0.0
    %35 = vst.msk [vmem:[#allocation2 + $0x78] sm:$0xff] %vm20, 0.0
  $region17: #{hierarchical_interview_scorer.27} parent=0 // pred_fallthru
    _
  %v36 = vld [vmem:[#allocation2] sm:$0xff]
  %v37 = vld [vmem:[#allocation2 + $0x8] sm:$0xff]
  %v38 = vld [vmem:[#allocation2 + $0x10] sm:$0xff]
  %v39 = vld [vmem:[#allocation2 + $0x18] sm:$0xff]
  %v40 = vld [vmem:[#allocation2 + $0x20] sm:$0xff]
  %v41 = vld [vmem:[#allocation2 + $0x28] sm:$0xff]
  %v42 = vld [vmem:[#allocation2 + $0x30] sm:$0xff]
  %v43 = vld [vmem:[#allocation2 + $0x38] sm:$0xff]
  %v44 = vld [vmem:[#allocation2 + $0x40] sm:$0xff]
  %v45 = vld [vmem:[#allocation2 + $0x48] sm:$0xff]
  %v46 = vld [vmem:[#allocation2 + $0x50] sm:$0xff]
  %v47 = vld [vmem:[#allocation2 + $0x58] sm:$0xff]
  %v48 = vld [vmem:[#allocation2 + $0x60] sm:$0xff]
  %v49 = vld [vmem:[#allocation2 + $0x68] sm:$0xff]
  %v50 = vld [vmem:[#allocation2 + $0x70] sm:$0xff]
  %v51 = vld [vmem:[#allocation2 + $0x78] sm:$0xff]
  %v52 = vld [vmem:[%s0] sm:$0xf]
  %v53 = vld [vmem:[%s0 + $0x4] sm:$0xf]
  %v54 = vld [vmem:[%s0 + $0x8] sm:$0xf]
  %v55 = vld [vmem:[%s0 + $0xc] sm:$0xf]
  %v56 = vld [vmem:[%s0 + $0x10] sm:$0xf]
  %v57 = vld [vmem:[%s0 + $0x14] sm:$0xf]
  %v58 = vld [vmem:[%s0 + $0x18] sm:$0xf]
  %v59 = vld [vmem:[%s0 + $0x1c] sm:$0xf]
  %v60 = vld [vmem:[%s1] sm:$0xff]
  %v61 = vld [vmem:[%s1 + $0x8] sm:$0xff]
  %v62 = vld [vmem:[%s1 + $0x10] sm:$0xff]
  %v63 = vld [vmem:[%s1 + $0x18] sm:$0xff]
  %v64 = vld [vmem:[%s1 + $0x20] sm:$0xff]
  %v65 = vld [vmem:[%s1 + $0x28] sm:$0xff]
  %v66 = vld [vmem:[%s1 + $0x30] sm:$0xff]
  %v67 = vld [vmem:[%s1 + $0x38] sm:$0xff]
  %v76 = vunpack.c.l.b16 %v52
  %v77 = vunpack.c.l.b16 %v53
  %v78 = vunpack.c.l.b16 %v54
  %v79 = vunpack.c.l.b16 %v55
  %v80 = vunpack.c.l.b16 %v56
  %v81 = vunpack.c.l.b16 %v57
  %v82 = vunpack.c.l.b16 %v58
  %v83 = vunpack.c.l.b16 %v59
  %v84 = vpack.c.b16 %v77, %v76
  %v85 = vpack.c.b16 %v79, %v78
  %v86 = vpack.c.b16 %v81, %v80
  %v87 = vpack.c.b16 %v83, %v82
  %v96 = vunpack.c.l.b16 %v60
  %v97 = vunpack.c.h.b16 %v60
  %v98 = vunpack.c.l.b16 %v61
  %v99 = vunpack.c.h.b16 %v61
  %v100 = vunpack.c.l.b16 %v62
  %v101 = vunpack.c.h.b16 %v62
  %v102 = vunpack.c.l.b16 %v63
  %v103 = vunpack.c.h.b16 %v63
  %v104 = vunpack.c.l.b16 %v64
  %v105 = vunpack.c.h.b16 %v64
  %v106 = vunpack.c.l.b16 %v65
  %v107 = vunpack.c.h.b16 %v65
  %v108 = vunpack.c.l.b16 %v66
  %v109 = vunpack.c.h.b16 %v66
  %v110 = vunpack.c.l.b16 %v67
  %v111 = vunpack.c.h.b16 %v67
  %v112 = vpack.c.b16 %v98, %v96
  %v113 = vpack.c.b16 %v99, %v97
  %v114 = vpack.c.b16 %v102, %v100
  %v115 = vpack.c.b16 %v103, %v101
  %v116 = vpack.c.b16 %v106, %v104
  %v117 = vpack.c.b16 %v107, %v105
  %v118 = vpack.c.b16 %v110, %v108
  %v119 = vpack.c.b16 %v111, %v109
  %vm128 = vcmask 523264
  %v130 = vsel %vm128, %v84, 0
  %v133 = vsel %vm128, %v85, 0
  %v136 = vsel %vm128, %v86, 0
  %v139 = vsel %vm128, %v87, 0
  %141 = vmatpush.bf16.msra.mxu0 0
  %142 = vmatpush.bf16.msra.mxu0 0
  %143 = vmatpush.bf16.msra.mxu0 0
  %144 = vmatpush.bf16.msra.mxu0 0
  %145 = vmatpush.bf16.msra.mxu0 %v118
  %146 = vmatpush.bf16.msra.mxu0 %v116
  %147 = vmatpush.bf16.msra.mxu0 %v114
  %148 = vmatpush.bf16.msra.mxu0 %v112
  %149 = vmatmul.bf16.gmra.mxu0 %v130
  %v150 = vpop.f32.mrf.mxu0
  %v151 = vadd.f32 0.0, %v150
  %v152 = vpop.f32.mrf.mxu0
  %v153 = vadd.f32 0.0, %v152
  %154 = vmatmul.bf16.gmra.mxu0 %v133
  %v155 = vpop.f32.mrf.mxu0
  %v156 = vadd.f32 0.0, %v155
  %v157 = vpop.f32.mrf.mxu0
  %v158 = vadd.f32 0.0, %v157
  %159 = vmatmul.bf16.gmra.mxu0 %v136
  %v160 = vpop.f32.mrf.mxu0
  %v161 = vadd.f32 0.0, %v160
  %v162 = vpop.f32.mrf.mxu0
  %v163 = vadd.f32 0.0, %v162
  %164 = vmatmul.bf16.gmra.mxu0 %v139
  %v165 = vpop.f32.mrf.mxu0
  %v166 = vadd.f32 0.0, %v165
  %v167 = vpop.f32.mrf.mxu0
  %v168 = vadd.f32 0.0, %v167
  %169 = vdwg.mxu0
  %170 = vmatpush.bf16.msra.mxu0 0
  %171 = vmatpush.bf16.msra.mxu0 0
  %172 = vmatpush.bf16.msra.mxu0 0
  %173 = vmatpush.bf16.msra.mxu0 0
  %174 = vmatpush.bf16.msra.mxu0 %v119
  %175 = vmatpush.bf16.msra.mxu0 %v117
  %176 = vmatpush.bf16.msra.mxu0 %v115
  %177 = vmatpush.bf16.msra.mxu0 %v113
  %178 = vmatmul.bf16.gmra.mxu0 %v130
  %v179 = vpop.f32.mrf.mxu0
  %v180 = vadd.f32 0.0, %v179
  %v181 = vpop.f32.mrf.mxu0
  %v182 = vadd.f32 0.0, %v181
  %183 = vmatmul.bf16.gmra.mxu0 %v133
  %v184 = vpop.f32.mrf.mxu0
  %v185 = vadd.f32 0.0, %v184
  %v186 = vpop.f32.mrf.mxu0
  %v187 = vadd.f32 0.0, %v186
  %188 = vmatmul.bf16.gmra.mxu0 %v136
  %v189 = vpop.f32.mrf.mxu0
  %v190 = vadd.f32 0.0, %v189
  %v191 = vpop.f32.mrf.mxu0
  %v192 = vadd.f32 0.0, %v191
  %193 = vmatmul.bf16.gmra.mxu0 %v139
  %v194 = vpop.f32.mrf.mxu0
  %v195 = vadd.f32 0.0, %v194
  %v196 = vpop.f32.mrf.mxu0
  %v197 = vadd.f32 0.0, %v196
  %198 = vdwg.mxu0
  %v199 = vadd.f32 %v36, %v151
  %v200 = vadd.f32 %v37, %v180
  %v201 = vadd.f32 %v38, %v153
  %v202 = vadd.f32 %v39, %v182
  %v203 = vadd.f32 %v40, %v156
  %v204 = vadd.f32 %v41, %v185
  %v205 = vadd.f32 %v42, %v158
  %v206 = vadd.f32 %v43, %v187
  %v207 = vadd.f32 %v44, %v161
  %v208 = vadd.f32 %v45, %v190
  %v209 = vadd.f32 %v46, %v163
  %v210 = vadd.f32 %v47, %v192
  %v211 = vadd.f32 %v48, %v166
  %v212 = vadd.f32 %v49, %v195
  %v213 = vadd.f32 %v50, %v168
  %v214 = vadd.f32 %v51, %v197
  %215 = vst [vmem:[#allocation2] sm:$0xff] %v199
  %216 = vst.msk [vmem:[#allocation2 + $0x8] sm:$0xff] %vm128, %v200
  %217 = vst [vmem:[#allocation2 + $0x10] sm:$0xff] %v201
  %218 = vst.msk [vmem:[#allocation2 + $0x18] sm:$0xff] %vm128, %v202
  %219 = vst [vmem:[#allocation2 + $0x20] sm:$0xff] %v203
  %220 = vst.msk [vmem:[#allocation2 + $0x28] sm:$0xff] %vm128, %v204
  %221 = vst [vmem:[#allocation2 + $0x30] sm:$0xff] %v205
  %222 = vst.msk [vmem:[#allocation2 + $0x38] sm:$0xff] %vm128, %v206
  %223 = vst [vmem:[#allocation2 + $0x40] sm:$0xff] %v207
  %224 = vst.msk [vmem:[#allocation2 + $0x48] sm:$0xff] %vm128, %v208
  %225 = vst [vmem:[#allocation2 + $0x50] sm:$0xff] %v209
  %226 = vst.msk [vmem:[#allocation2 + $0x58] sm:$0xff] %vm128, %v210
  %227 = vst [vmem:[#allocation2 + $0x60] sm:$0xff] %v211
  %228 = vst.msk [vmem:[#allocation2 + $0x68] sm:$0xff] %vm128, %v212
  %229 = vst [vmem:[#allocation2 + $0x70] sm:$0xff] %v213
  %230 = vst.msk [vmem:[#allocation2 + $0x78] sm:$0xff] %vm128, %v214
  // Predicated region
  $region18: #{hierarchical_interview_scorer.27} parent=0 // pred_check
    %p231 = pneg %p15
  $region19: #{hierarchical_interview_scorer.27} parent=0 // pred_check_branch
    %233 = sbr.rel (%p231) target = $region21
  $region20: #{hierarchical_interview_scorer.27} parent=0 // pred_region
    %v234 = vld [vmem:[#allocation2] sm:$0xff]
    %v235 = vld [vmem:[#allocation2 + $0x8] sm:$0xff]
    %v236 = vld [vmem:[#allocation2 + $0x10] sm:$0xff]
    %v237 = vld [vmem:[#allocation2 + $0x18] sm:$0xff]
    %v238 = vld [vmem:[#allocation2 + $0x20] sm:$0xff]
    %v239 = vld [vmem:[#allocation2 + $0x28] sm:$0xff]
    %v240 = vld [vmem:[#allocation2 + $0x30] sm:$0xff]
    %v241 = vld [vmem:[#allocation2 + $0x38] sm:$0xff]
    %v242 = vld [vmem:[#allocation2 + $0x40] sm:$0xff]
    %v243 = vld [vmem:[#allocation2 + $0x48] sm:$0xff]
    %v244 = vld [vmem:[#allocation2 + $0x50] sm:$0xff]
    %v245 = vld [vmem:[#allocation2 + $0x58] sm:$0xff]
    %v246 = vld [vmem:[#allocation2 + $0x60] sm:$0xff]
    %v247 = vld [vmem:[#allocation2 + $0x68] sm:$0xff]
    %v248 = vld [vmem:[#allocation2 + $0x70] sm:$0xff]
    %v249 = vld [vmem:[#allocation2 + $0x78] sm:$0xff]
    %v250 = vld [vmem:[%s2] sm:$0x3]
    %v252 = vperm.slane %v250, 0
    %v253 = vperm.slane %v250, 1
    %v256 = vadd.f32 %v234, %v252
    %v257 = vadd.f32 %v235, %v253
    %v258 = vadd.f32 %v236, %v252
    %v259 = vadd.f32 %v237, %v253
    %v260 = vadd.f32 %v238, %v252
    %v261 = vadd.f32 %v239, %v253
    %v262 = vadd.f32 %v240, %v252
    %v263 = vadd.f32 %v241, %v253
    %v264 = vadd.f32 %v242, %v252
    %v265 = vadd.f32 %v243, %v253
    %v266 = vadd.f32 %v244, %v252
    %v267 = vadd.f32 %v245, %v253
    %v268 = vadd.f32 %v246, %v252
    %v269 = vadd.f32 %v247, %v253
    %v270 = vadd.f32 %v248, %v252
    %v271 = vadd.f32 %v249, %v253
    %v272 = vpack.c.bf16 %v257, %v256
    %v273 = vpack.c.bf16 %v259, %v258
    %v274 = vpack.c.bf16 %v261, %v260
    %v275 = vpack.c.bf16 %v263, %v262
    %v276 = vpack.c.bf16 %v265, %v264
    %v277 = vpack.c.bf16 %v267, %v266
    %v278 = vpack.c.bf16 %v269, %v268
    %v279 = vpack.c.bf16 %v271, %v270
    %vm280 = vcmask 1043456
    %vm281 = vcmask 523268
    %vm282 = vmor %vm281, %vm280
    %283 = vst.msk [vmem:[%s3] sm:$0xff] %vm282, %v272
    %284 = vst.msk [vmem:[%s3 + $0x8] sm:$0xff] %vm282, %v273
    %285 = vst.msk [vmem:[%s3 + $0x10] sm:$0xff] %vm282, %v274
    %286 = vst.msk [vmem:[%s3 + $0x18] sm:$0xff] %vm282, %v275
    %287 = vst.msk [vmem:[%s3 + $0x20] sm:$0xff] %vm282, %v276
    %288 = vst.msk [vmem:[%s3 + $0x28] sm:$0xff] %vm282, %v277
    %289 = vst.msk [vmem:[%s3 + $0x30] sm:$0xff] %vm282, %v278
    %290 = vst.msk [vmem:[%s3 + $0x38] sm:$0xff] %vm282, %v279
  $region21: #{hierarchical_interview_scorer.27} parent=0 // pred_fallthru
    _
  // Predicated region
  $region22: #{hierarchical_interview_scorer.27} parent=0 // pred_check
    _
  $region23: #{hierarchical_interview_scorer.27} parent=0 // pred_check_branch
    %292 = sbr.rel (0) target = $region25
  $region24: #{hierarchical_interview_scorer.27} parent=0 // pred_region
    _
  $region25: #{hierarchical_interview_scorer.27} parent=0 // pred_fallthru
    _
  // Predicated region
  $region26: #{hierarchical_interview_scorer.27} parent=0 // pred_check
    _
  $region27: #{hierarchical_interview_scorer.27} parent=0 // pred_check_branch
    %294 = sbr.rel (0) target = $region29
  $region28: #{hierarchical_interview_scorer.27} parent=0 // pred_region
    _
  $region29: #{hierarchical_interview_scorer.27} parent=0 // pred_fallthru
    _

// kernel: hierarchical_interview_scorer.29
$region0: #{hierarchical_interview_scorer.29}
  #allocation0 [shape = 'u32[]', space=smem, size = 0x4, offset = 0x4, fixed_abs, tag = 'smem constant byte address 0x4 - core index']
  #allocation1 [shape = 'u32[72,128]{1,0:T(1,128)}', space=vmem, size = 0x9000, scoped, tag = 'internal scratch']
  #allocation2 [shape = 'f32[64,64]{1,0:T(8,128)}', space=vmem, size = 0x8000, scoped, tag = 'scratch operand']
  %s0 = inlined_call_operand.vmem [shape: bf16[64,64], index: 0, kind: input, shape index: {}]
  %s1 = inlined_call_operand.vmem [shape: bf16[64,64], index: 1, kind: input, shape index: {}]
  %s2 = inlined_call_operand.vmem [shape: f32[1,64], index: 2, kind: input, shape index: {}]
  %s3 = inlined_call_operand.vmem [shape: bf16[64,64], index: 3, kind: output, shape index: {}]
  %s4 = sld [smem:[#allocation0]]
  $region30: #{hierarchical_interview_scorer.29} parent=0
    _
  %s6 = ssub.s32 1, %s4
  %s7 = scalar_select 0, %s6, %s4
  // Predicated region
  $region2: #{hierarchical_interview_scorer.29} parent=0 // pred_check
    _
  $region3: #{hierarchical_interview_scorer.29} parent=0 // pred_check_branch
    %9 = sbr.rel (0) target = $region5
  $region4: #{hierarchical_interview_scorer.29} parent=0 // pred_region
    _
  $region5: #{hierarchical_interview_scorer.29} parent=0 // pred_fallthru
    _
  // Predicated region
  $region6: #{hierarchical_interview_scorer.29} parent=0 // pred_check
    _
  $region7: #{hierarchical_interview_scorer.29} parent=0 // pred_check_branch
    %11 = sbr.rel (0) target = $region9
  $region8: #{hierarchical_interview_scorer.29} parent=0 // pred_region
    _
  $region9: #{hierarchical_interview_scorer.29} parent=0 // pred_fallthru
    _
  // Predicated region
  $region10: #{hierarchical_interview_scorer.29} parent=0 // pred_check
    _
  $region11: #{hierarchical_interview_scorer.29} parent=0 // pred_check_branch
    %13 = sbr.rel (0) target = $region13
  $region12: #{hierarchical_interview_scorer.29} parent=0 // pred_region
    _
  $region13: #{hierarchical_interview_scorer.29} parent=0 // pred_fallthru
    _
  %p15 = scmp.eq.s32.totalorder 0, 0
  // Predicated region
  $region14: #{hierarchical_interview_scorer.29} parent=0 // pred_check
    %p16 = pneg %p15
  $region15: #{hierarchical_interview_scorer.29} parent=0 // pred_check_branch
    %18 = sbr.rel (%p16) target = $region17
  $region16: #{hierarchical_interview_scorer.29} parent=0 // pred_region
    %vm19 = vcmask 523264
    %20 = vst.msk [vmem:[#allocation2] sm:$0xff] %vm19, 0.0
    %21 = vst.msk [vmem:[#allocation2 + $0x8] sm:$0xff] %vm19, 0.0
    %22 = vst.msk [vmem:[#allocation2 + $0x10] sm:$0xff] %vm19, 0.0
    %23 = vst.msk [vmem:[#allocation2 + $0x18] sm:$0xff] %vm19, 0.0
    %24 = vst.msk [vmem:[#allocation2 + $0x20] sm:$0xff] %vm19, 0.0
    %25 = vst.msk [vmem:[#allocation2 + $0x28] sm:$0xff] %vm19, 0.0
    %26 = vst.msk [vmem:[#allocation2 + $0x30] sm:$0xff] %vm19, 0.0
    %27 = vst.msk [vmem:[#allocation2 + $0x38] sm:$0xff] %vm19, 0.0
  $region17: #{hierarchical_interview_scorer.29} parent=0 // pred_fallthru
    _
  %v28 = vld [vmem:[#allocation2] sm:$0xff]
  %v29 = vld [vmem:[#allocation2 + $0x8] sm:$0xff]
  %v30 = vld [vmem:[#allocation2 + $0x10] sm:$0xff]
  %v31 = vld [vmem:[#allocation2 + $0x18] sm:$0xff]
  %v32 = vld [vmem:[#allocation2 + $0x20] sm:$0xff]
  %v33 = vld [vmem:[#allocation2 + $0x28] sm:$0xff]
  %v34 = vld [vmem:[#allocation2 + $0x30] sm:$0xff]
  %v35 = vld [vmem:[#allocation2 + $0x38] sm:$0xff]
  %v36 = vld [vmem:[%s0] sm:$0xf]
  %v37 = vld [vmem:[%s0 + $0x4] sm:$0xf]
  %v38 = vld [vmem:[%s0 + $0x8] sm:$0xf]
  %v39 = vld [vmem:[%s0 + $0xc] sm:$0xf]
  %v40 = vld [vmem:[%s0 + $0x10] sm:$0xf]
  %v41 = vld [vmem:[%s0 + $0x14] sm:$0xf]
  %v42 = vld [vmem:[%s0 + $0x18] sm:$0xf]
  %v43 = vld [vmem:[%s0 + $0x1c] sm:$0xf]
  %v44 = vld [vmem:[%s1] sm:$0xf]
  %v45 = vld [vmem:[%s1 + $0x4] sm:$0xf]
  %v46 = vld [vmem:[%s1 + $0x8] sm:$0xf]
  %v47 = vld [vmem:[%s1 + $0xc] sm:$0xf]
  %v48 = vld [vmem:[%s1 + $0x10] sm:$0xf]
  %v49 = vld [vmem:[%s1 + $0x14] sm:$0xf]
  %v50 = vld [vmem:[%s1 + $0x18] sm:$0xf]
  %v51 = vld [vmem:[%s1 + $0x1c] sm:$0xf]
  %v60 = vunpack.c.l.b16 %v36
  %v61 = vunpack.c.l.b16 %v37
  %v62 = vunpack.c.l.b16 %v38
  %v63 = vunpack.c.l.b16 %v39
  %v64 = vunpack.c.l.b16 %v40
  %v65 = vunpack.c.l.b16 %v41
  %v66 = vunpack.c.l.b16 %v42
  %v67 = vunpack.c.l.b16 %v43
  %v68 = vpack.c.b16 %v61, %v60
  %v69 = vpack.c.b16 %v63, %v62
  %v70 = vpack.c.b16 %v65, %v64
  %v71 = vpack.c.b16 %v67, %v66
  %v80 = vunpack.c.l.b16 %v44
  %v81 = vunpack.c.l.b16 %v45
  %v82 = vunpack.c.l.b16 %v46
  %v83 = vunpack.c.l.b16 %v47
  %v84 = vunpack.c.l.b16 %v48
  %v85 = vunpack.c.l.b16 %v49
  %v86 = vunpack.c.l.b16 %v50
  %v87 = vunpack.c.l.b16 %v51
  %v88 = vpack.c.b16 %v81, %v80
  %v89 = vpack.c.b16 %v83, %v82
  %v90 = vpack.c.b16 %v85, %v84
  %v91 = vpack.c.b16 %v87, %v86
  %vm96 = vcmask 523264
  %v98 = vsel %vm96, %v68, 0
  %v101 = vsel %vm96, %v69, 0
  %v104 = vsel %vm96, %v70, 0
  %v107 = vsel %vm96, %v71, 0
  %109 = vmatpush.bf16.msra.mxu0 0
  %110 = vmatpush.bf16.msra.mxu0 0
  %111 = vmatpush.bf16.msra.mxu0 0
  %112 = vmatpush.bf16.msra.mxu0 0
  %113 = vmatpush.bf16.msra.mxu0 %v91
  %114 = vmatpush.bf16.msra.mxu0 %v90
  %115 = vmatpush.bf16.msra.mxu0 %v89
  %116 = vmatpush.bf16.msra.mxu0 %v88
  %117 = vmatmul.bf16.gmra.mxu0 %v98
  %v118 = vpop.f32.mrf.mxu0
  %v119 = vadd.f32 0.0, %v118
  %v120 = vpop.f32.mrf.mxu0
  %v121 = vadd.f32 0.0, %v120
  %122 = vmatmul.bf16.gmra.mxu0 %v101
  %v123 = vpop.f32.mrf.mxu0
  %v124 = vadd.f32 0.0, %v123
  %v125 = vpop.f32.mrf.mxu0
  %v126 = vadd.f32 0.0, %v125
  %127 = vmatmul.bf16.gmra.mxu0 %v104
  %v128 = vpop.f32.mrf.mxu0
  %v129 = vadd.f32 0.0, %v128
  %v130 = vpop.f32.mrf.mxu0
  %v131 = vadd.f32 0.0, %v130
  %132 = vmatmul.bf16.gmra.mxu0 %v107
  %v133 = vpop.f32.mrf.mxu0
  %v134 = vadd.f32 0.0, %v133
  %v135 = vpop.f32.mrf.mxu0
  %v136 = vadd.f32 0.0, %v135
  %137 = vdwg.mxu0
  %v138 = vadd.f32 %v28, %v119
  %v139 = vadd.f32 %v29, %v121
  %v140 = vadd.f32 %v30, %v124
  %v141 = vadd.f32 %v31, %v126
  %v142 = vadd.f32 %v32, %v129
  %v143 = vadd.f32 %v33, %v131
  %v144 = vadd.f32 %v34, %v134
  %v145 = vadd.f32 %v35, %v136
  %146 = vst.msk [vmem:[#allocation2] sm:$0xff] %vm96, %v138
  %147 = vst.msk [vmem:[#allocation2 + $0x8] sm:$0xff] %vm96, %v139
  %148 = vst.msk [vmem:[#allocation2 + $0x10] sm:$0xff] %vm96, %v140
  %149 = vst.msk [vmem:[#allocation2 + $0x18] sm:$0xff] %vm96, %v141
  %150 = vst.msk [vmem:[#allocation2 + $0x20] sm:$0xff] %vm96, %v142
  %151 = vst.msk [vmem:[#allocation2 + $0x28] sm:$0xff] %vm96, %v143
  %152 = vst.msk [vmem:[#allocation2 + $0x30] sm:$0xff] %vm96, %v144
  %153 = vst.msk [vmem:[#allocation2 + $0x38] sm:$0xff] %vm96, %v145
  // Predicated region
  $region18: #{hierarchical_interview_scorer.29} parent=0 // pred_check
    %p154 = pneg %p15
  $region19: #{hierarchical_interview_scorer.29} parent=0 // pred_check_branch
    %156 = sbr.rel (%p154) target = $region21
  $region20: #{hierarchical_interview_scorer.29} parent=0 // pred_region
    %v157 = vld [vmem:[#allocation2] sm:$0xff]
    %v158 = vld [vmem:[#allocation2 + $0x8] sm:$0xff]
    %v159 = vld [vmem:[#allocation2 + $0x10] sm:$0xff]
    %v160 = vld [vmem:[#allocation2 + $0x18] sm:$0xff]
    %v161 = vld [vmem:[#allocation2 + $0x20] sm:$0xff]
    %v162 = vld [vmem:[#allocation2 + $0x28] sm:$0xff]
    %v163 = vld [vmem:[#allocation2 + $0x30] sm:$0xff]
    %v164 = vld [vmem:[#allocation2 + $0x38] sm:$0xff]
    %v165 = vld [vmem:[%s2] sm:$0x1]
    %v167 = vperm.slane %v165, 0
    %v169 = vadd.f32 %v157, %v167
    %v170 = vadd.f32 %v158, %v167
    %v171 = vadd.f32 %v159, %v167
    %v172 = vadd.f32 %v160, %v167
    %v173 = vadd.f32 %v161, %v167
    %v174 = vadd.f32 %v162, %v167
    %v175 = vadd.f32 %v163, %v167
    %v176 = vadd.f32 %v164, %v167
    %v177 = vpack.c.bf16 %v169, %v169
    %v178 = vpack.c.bf16 %v170, %v170
    %v179 = vpack.c.bf16 %v171, %v171
    %v180 = vpack.c.bf16 %v172, %v172
    %v181 = vpack.c.bf16 %v173, %v173
    %v182 = vpack.c.bf16 %v174, %v174
    %v183 = vpack.c.bf16 %v175, %v175
    %v184 = vpack.c.bf16 %v176, %v176
    %vm185 = vcmask 519168
    %186 = vst.msk [vmem:[%s3] sm:$0xf] %vm185, %v177
    %187 = vst.msk [vmem:[%s3 + $0x4] sm:$0xf] %vm185, %v178
    %188 = vst.msk [vmem:[%s3 + $0x8] sm:$0xf] %vm185, %v179
    %189 = vst.msk [vmem:[%s3 + $0xc] sm:$0xf] %vm185, %v180
    %190 = vst.msk [vmem:[%s3 + $0x10] sm:$0xf] %vm185, %v181
    %191 = vst.msk [vmem:[%s3 + $0x14] sm:$0xf] %vm185, %v182
    %192 = vst.msk [vmem:[%s3 + $0x18] sm:$0xf] %vm185, %v183
    %193 = vst.msk [vmem:[%s3 + $0x1c] sm:$0xf] %vm185, %v184
  $region21: #{hierarchical_interview_scorer.29} parent=0 // pred_fallthru
    _
  // Predicated region
  $region22: #{hierarchical_interview_scorer.29} parent=0 // pred_check
    _
  $region23: #{hierarchical_interview_scorer.29} parent=0 // pred_check_branch
    %195 = sbr.rel (0) target = $region25
  $region24: #{hierarchical_interview_scorer.29} parent=0 // pred_region
    _
  $region25: #{hierarchical_interview_scorer.29} parent=0 // pred_fallthru
    _
  // Predicated region
  $region26: #{hierarchical_interview_scorer.29} parent=0 // pred_check
    _
  $region27: #{hierarchical_interview_scorer.29} parent=0 // pred_check_branch
    %197 = sbr.rel (0) target = $region29
  $region28: #{hierarchical_interview_scorer.29} parent=0 // pred_region
    _
  $region29: #{hierarchical_interview_scorer.29} parent=0 // pred_fallthru
    _

// kernel: hierarchical_interview_scorer.30
$region0: #{hierarchical_interview_scorer.30}
  #allocation0 [shape = 'u32[]', space=smem, size = 0x4, offset = 0x4, fixed_abs, tag = 'smem constant byte address 0x4 - core index']
  #allocation1 [shape = 'u32[72,128]{1,0:T(1,128)}', space=vmem, size = 0x9000, scoped, tag = 'internal scratch']
  %s0 = inlined_call_operand.vmem [shape: bf16[64,64], index: 0, kind: input, shape index: {}]
  %s1 = inlined_call_operand.vmem [shape: bf16[64,64], index: 1, kind: input, shape index: {}]
  %s2 = inlined_call_operand.vmem [shape: f32[1,64], index: 2, kind: input, shape index: {}]
  %s3 = inlined_call_operand.vmem [shape: f32[1,64], index: 3, kind: input, shape index: {}]
  %s4 = inlined_call_operand.vmem [shape: bf16[64,64], index: 4, kind: output, shape index: {}]
  %s5 = sld [smem:[#allocation0]]
  $region26: #{hierarchical_interview_scorer.30} parent=0
    _
  %s7 = ssub.s32 1, %s5
  %s8 = scalar_select 0, %s7, %s5
  // Predicated region
  $region2: #{hierarchical_interview_scorer.30} parent=0 // pred_check
    _
  $region3: #{hierarchical_interview_scorer.30} parent=0 // pred_check_branch
    %10 = sbr.rel (0) target = $region5
  $region4: #{hierarchical_interview_scorer.30} parent=0 // pred_region
    _
  $region5: #{hierarchical_interview_scorer.30} parent=0 // pred_fallthru
    _
  // Predicated region
  $region6: #{hierarchical_interview_scorer.30} parent=0 // pred_check
    _
  $region7: #{hierarchical_interview_scorer.30} parent=0 // pred_check_branch
    %12 = sbr.rel (0) target = $region9
  $region8: #{hierarchical_interview_scorer.30} parent=0 // pred_region
    _
  $region9: #{hierarchical_interview_scorer.30} parent=0 // pred_fallthru
    _
  // Predicated region
  $region10: #{hierarchical_interview_scorer.30} parent=0 // pred_check
    _
  $region11: #{hierarchical_interview_scorer.30} parent=0 // pred_check_branch
    %14 = sbr.rel (0) target = $region13
  $region12: #{hierarchical_interview_scorer.30} parent=0 // pred_region
    _
  $region13: #{hierarchical_interview_scorer.30} parent=0 // pred_fallthru
    _
  // Predicated region
  $region14: #{hierarchical_interview_scorer.30} parent=0 // pred_check
    _
  $region15: #{hierarchical_interview_scorer.30} parent=0 // pred_check_branch
    %16 = sbr.rel (0) target = $region17
  $region16: #{hierarchical_interview_scorer.30} parent=0 // pred_region
    _
  $region17: #{hierarchical_interview_scorer.30} parent=0 // pred_fallthru
    _
  %v17 = vld [vmem:[%s0] sm:$0xf]
  %v18 = vld [vmem:[%s0 + $0x4] sm:$0xf]
  %v19 = vld [vmem:[%s0 + $0x8] sm:$0xf]
  %v20 = vld [vmem:[%s0 + $0xc] sm:$0xf]
  %v21 = vld [vmem:[%s0 + $0x10] sm:$0xf]
  %v22 = vld [vmem:[%s0 + $0x14] sm:$0xf]
  %v23 = vld [vmem:[%s0 + $0x18] sm:$0xf]
  %v24 = vld [vmem:[%s0 + $0x1c] sm:$0xf]
  %v25 = vunpack.c.l.bf16 %v17
  %v26 = vunpack.c.l.bf16 %v18
  %v27 = vunpack.c.l.bf16 %v19
  %v28 = vunpack.c.l.bf16 %v20
  %v29 = vunpack.c.l.bf16 %v21
  %v30 = vunpack.c.l.bf16 %v22
  %v31 = vunpack.c.l.bf16 %v23
  %v32 = vunpack.c.l.bf16 %v24
  %v33 = vld [vmem:[%s1] sm:$0xf]
  %v34 = vld [vmem:[%s1 + $0x4] sm:$0xf]
  %v35 = vld [vmem:[%s1 + $0x8] sm:$0xf]
  %v36 = vld [vmem:[%s1 + $0xc] sm:$0xf]
  %v37 = vld [vmem:[%s1 + $0x10] sm:$0xf]
  %v38 = vld [vmem:[%s1 + $0x14] sm:$0xf]
  %v39 = vld [vmem:[%s1 + $0x18] sm:$0xf]
  %v40 = vld [vmem:[%s1 + $0x1c] sm:$0xf]
  %v41 = vunpack.c.l.bf16 %v33
  %v42 = vunpack.c.l.bf16 %v34
  %v43 = vunpack.c.l.bf16 %v35
  %v44 = vunpack.c.l.bf16 %v36
  %v45 = vunpack.c.l.bf16 %v37
  %v46 = vunpack.c.l.bf16 %v38
  %v47 = vunpack.c.l.bf16 %v39
  %v48 = vunpack.c.l.bf16 %v40
  %v49 = vadd.f32 %v25, %v41
  %v50 = vadd.f32 %v26, %v42
  %v51 = vadd.f32 %v27, %v43
  %v52 = vadd.f32 %v28, %v44
  %v53 = vadd.f32 %v29, %v45
  %v54 = vadd.f32 %v30, %v46
  %v55 = vadd.f32 %v31, %v47
  %v56 = vadd.f32 %v32, %v48
  %vm57 = vcmask 523264
  %v58 = vsel %vm57, %v49, 0.0
  %59 = vadd.xlane.f32.xlu0 %v58
  %v60 = vpop.xlane.xlu0 %59
  %v61 = vsel %vm57, %v50, 0.0
  %62 = vadd.xlane.f32.xlu0 %v61
  %v63 = vpop.xlane.xlu0 %62
  %v64 = vsel %vm57, %v51, 0.0
  %65 = vadd.xlane.f32.xlu0 %v64
  %v66 = vpop.xlane.xlu0 %65
  %v67 = vsel %vm57, %v52, 0.0
  %68 = vadd.xlane.f32.xlu0 %v67
  %v69 = vpop.xlane.xlu0 %68
  %v70 = vsel %vm57, %v53, 0.0
  %71 = vadd.xlane.f32.xlu0 %v70
  %v72 = vpop.xlane.xlu0 %71
  %v73 = vsel %vm57, %v54, 0.0
  %74 = vadd.xlane.f32.xlu0 %v73
  %v75 = vpop.xlane.xlu0 %74
  %v76 = vsel %vm57, %v55, 0.0
  %77 = vadd.xlane.f32.xlu0 %v76
  %v78 = vpop.xlane.xlu0 %77
  %v79 = vsel %vm57, %v56, 0.0
  %80 = vadd.xlane.f32.xlu0 %v79
  %v81 = vpop.xlane.xlu0 %80
  %v82 = vrcp.pop 64.0
  %v83 = vmul.f32 64.0, %v82
  %v84 = vsub.f32 1.0, %v83
  %v85 = vmul.f32 %v82, %v84
  %v86 = vadd.f32 %v82, %v85
  %vm87 = vweird.f32 %v82
  %v88 = vsel %vm87, %v82, %v86
  %v89 = vmul.f32 %v60, %v88
  %v90 = vmul.f32 %v63, %v88
  %v91 = vmul.f32 %v66, %v88
  %v92 = vmul.f32 %v69, %v88
  %v93 = vmul.f32 %v72, %v88
  %v94 = vmul.f32 %v75, %v88
  %v95 = vmul.f32 %v78, %v88
  %v96 = vmul.f32 %v81, %v88
  %v97 = vsub.f32 %v49, %v89
  %v98 = vsub.f32 %v50, %v90
  %v99 = vsub.f32 %v51, %v91
  %v100 = vsub.f32 %v52, %v92
  %v101 = vsub.f32 %v53, %v93
  %v102 = vsub.f32 %v54, %v94
  %v103 = vsub.f32 %v55, %v95
  %v104 = vsub.f32 %v56, %v96
  %v105 = vmul.f32 %v97, %v97
  %v106 = vmul.f32 %v98, %v98
  %v107 = vmul.f32 %v99, %v99
  %v108 = vmul.f32 %v100, %v100
  %v109 = vmul.f32 %v101, %v101
  %v110 = vmul.f32 %v102, %v102
  %v111 = vmul.f32 %v103, %v103
  %v112 = vmul.f32 %v104, %v104
  %v113 = vsel %vm57, %v105, 0.0
  %114 = vadd.xlane.f32.xlu0 %v113
  %v115 = vpop.xlane.xlu0 %114
  %v116 = vsel %vm57, %v106, 0.0
  %117 = vadd.xlane.f32.xlu0 %v116
  %v118 = vpop.xlane.xlu0 %117
  %v119 = vsel %vm57, %v107, 0.0
  %120 = vadd.xlane.f32.xlu0 %v119
  %v121 = vpop.xlane.xlu0 %120
  %v122 = vsel %vm57, %v108, 0.0
  %123 = vadd.xlane.f32.xlu0 %v122
  %v124 = vpop.xlane.xlu0 %123
  %v125 = vsel %vm57, %v109, 0.0
  %126 = vadd.xlane.f32.xlu0 %v125
  %v127 = vpop.xlane.xlu0 %126
  %v128 = vsel %vm57, %v110, 0.0
  %129 = vadd.xlane.f32.xlu0 %v128
  %v130 = vpop.xlane.xlu0 %129
  %v131 = vsel %vm57, %v111, 0.0
  %132 = vadd.xlane.f32.xlu0 %v131
  %v133 = vpop.xlane.xlu0 %132
  %v134 = vsel %vm57, %v112, 0.0
  %135 = vadd.xlane.f32.xlu0 %v134
  %v136 = vpop.xlane.xlu0 %135
  %v137 = vmul.f32 %v115, %v88
  %v138 = vmul.f32 %v118, %v88
  %v139 = vmul.f32 %v121, %v88
  %v140 = vmul.f32 %v124, %v88
  %v141 = vmul.f32 %v127, %v88
  %v142 = vmul.f32 %v130, %v88
  %v143 = vmul.f32 %v133, %v88
  %v144 = vmul.f32 %v136, %v88
  %v145 = vadd.f32 %v137, 1e-12
  %v146 = vadd.f32 %v138, 1e-12
  %v147 = vadd.f32 %v139, 1e-12
  %v148 = vadd.f32 %v140, 1e-12
  %v149 = vadd.f32 %v141, 1e-12
  %v150 = vadd.f32 %v142, 1e-12
  %v151 = vadd.f32 %v143, 1e-12
  %v152 = vadd.f32 %v144, 1e-12
  %v153 = vrsqrt.pop %v145
  %v154 = vmul.f32 %v153, %v145
  %v155 = vmul.f32 %v154, %v153
  %v156 = vmul.f32 0.5, %v155
  %v157 = vsub.f32 1.5, %v156
  %v158 = vmul.f32 %v153, %v157
  %vm159 = vweird.f32 %v145
  %vm160 = vweird.f32 %v153
  %vm161 = vmor %vm159, %vm160
  %v162 = vsel %vm161, %v153, %v158
  %v163 = vrsqrt.pop %v146
  %v164 = vmul.f32 %v163, %v146
  %v165 = vmul.f32 %v164, %v163
  %v166 = vmul.f32 0.5, %v165
  %v167 = vsub.f32 1.5, %v166
  %v168 = vmul.f32 %v163, %v167
  %vm169 = vweird.f32 %v146
  %vm170 = vweird.f32 %v163
  %vm171 = vmor %vm169, %vm170
  %v172 = vsel %vm171, %v163, %v168
  %v173 = vrsqrt.pop %v147
  %v174 = vmul.f32 %v173, %v147
  %v175 = vmul.f32 %v174, %v173
  %v176 = vmul.f32 0.5, %v175
  %v177 = vsub.f32 1.5, %v176
  %v178 = vmul.f32 %v173, %v177
  %vm179 = vweird.f32 %v147
  %vm180 = vweird.f32 %v173
  %vm181 = vmor %vm179, %vm180
  %v182 = vsel %vm181, %v173, %v178
  %v183 = vrsqrt.pop %v148
  %v184 = vmul.f32 %v183, %v148
  %v185 = vmul.f32 %v184, %v183
  %v186 = vmul.f32 0.5, %v185
  %v187 = vsub.f32 1.5, %v186
  %v188 = vmul.f32 %v183, %v187
  %vm189 = vweird.f32 %v148
  %vm190 = vweird.f32 %v183
  %vm191 = vmor %vm189, %vm190
  %v192 = vsel %vm191, %v183, %v188
  %v193 = vrsqrt.pop %v149
  %v194 = vmul.f32 %v193, %v149
  %v195 = vmul.f32 %v194, %v193
  %v196 = vmul.f32 0.5, %v195
  %v197 = vsub.f32 1.5, %v196
  %v198 = vmul.f32 %v193, %v197
  %vm199 = vweird.f32 %v149
  %vm200 = vweird.f32 %v193
  %vm201 = vmor %vm199, %vm200
  %v202 = vsel %vm201, %v193, %v198
  %v203 = vrsqrt.pop %v150
  %v204 = vmul.f32 %v203, %v150
  %v205 = vmul.f32 %v204, %v203
  %v206 = vmul.f32 0.5, %v205
  %v207 = vsub.f32 1.5, %v206
  %v208 = vmul.f32 %v203, %v207
  %vm209 = vweird.f32 %v150
  %vm210 = vweird.f32 %v203
  %vm211 = vmor %vm209, %vm210
  %v212 = vsel %vm211, %v203, %v208
  %v213 = vrsqrt.pop %v151
  %v214 = vmul.f32 %v213, %v151
  %v215 = vmul.f32 %v214, %v213
  %v216 = vmul.f32 0.5, %v215
  %v217 = vsub.f32 1.5, %v216
  %v218 = vmul.f32 %v213, %v217
  %vm219 = vweird.f32 %v151
  %vm220 = vweird.f32 %v213
  %vm221 = vmor %vm219, %vm220
  %v222 = vsel %vm221, %v213, %v218
  %v223 = vrsqrt.pop %v152
  %v224 = vmul.f32 %v223, %v152
  %v225 = vmul.f32 %v224, %v223
  %v226 = vmul.f32 0.5, %v225
  %v227 = vsub.f32 1.5, %v226
  %v228 = vmul.f32 %v223, %v227
  %vm229 = vweird.f32 %v152
  %vm230 = vweird.f32 %v223
  %vm231 = vmor %vm229, %vm230
  %v232 = vsel %vm231, %v223, %v228
  %v233 = vmul.f32 %v97, %v162
  %v234 = vmul.f32 %v98, %v172
  %v235 = vmul.f32 %v99, %v182
  %v236 = vmul.f32 %v100, %v192
  %v237 = vmul.f32 %v101, %v202
  %v238 = vmul.f32 %v102, %v212
  %v239 = vmul.f32 %v103, %v222
  %v240 = vmul.f32 %v104, %v232
  %v241 = vld [vmem:[%s2] sm:$0x1]
  %v243 = vperm.slane %v241, 0
  %v245 = vmul.f32 %v233, %v243
  %v246 = vmul.f32 %v234, %v243
  %v247 = vmul.f32 %v235, %v243
  %v248 = vmul.f32 %v236, %v243
  %v249 = vmul.f32 %v237, %v243
  %v250 = vmul.f32 %v238, %v243
  %v251 = vmul.f32 %v239, %v243
  %v252 = vmul.f32 %v240, %v243
  %v253 = vld [vmem:[%s3] sm:$0x1]
  %v255 = vperm.slane %v253, 0
  %v257 = vadd.f32 %v245, %v255
  %v258 = vadd.f32 %v246, %v255
  %v259 = vadd.f32 %v247, %v255
  %v260 = vadd.f32 %v248, %v255
  %v261 = vadd.f32 %v249, %v255
  %v262 = vadd.f32 %v250, %v255
  %v263 = vadd.f32 %v251, %v255
  %v264 = vadd.f32 %v252, %v255
  %v265 = vpack.c.bf16 %v257, %v257
  %v266 = vpack.c.bf16 %v258, %v258
  %v267 = vpack.c.bf16 %v259, %v259
  %v268 = vpack.c.bf16 %v260, %v260
  %v269 = vpack.c.bf16 %v261, %v261
  %v270 = vpack.c.bf16 %v262, %v262
  %v271 = vpack.c.bf16 %v263, %v263
  %v272 = vpack.c.bf16 %v264, %v264
  %vm273 = vcmask 519168
  %274 = vst.msk [vmem:[%s4] sm:$0xf] %vm273, %v265
  %275 = vst.msk [vmem:[%s4 + $0x4] sm:$0xf] %vm273, %v266
  %276 = vst.msk [vmem:[%s4 + $0x8] sm:$0xf] %vm273, %v267
  %277 = vst.msk [vmem:[%s4 + $0xc] sm:$0xf] %vm273, %v268
  %278 = vst.msk [vmem:[%s4 + $0x10] sm:$0xf] %vm273, %v269
  %279 = vst.msk [vmem:[%s4 + $0x14] sm:$0xf] %vm273, %v270
  %280 = vst.msk [vmem:[%s4 + $0x18] sm:$0xf] %vm273, %v271
  %281 = vst.msk [vmem:[%s4 + $0x1c] sm:$0xf] %vm273, %v272
  // Predicated region
  $region18: #{hierarchical_interview_scorer.30} parent=0 // pred_check
    _
  $region19: #{hierarchical_interview_scorer.30} parent=0 // pred_check_branch
    %283 = sbr.rel (0) target = $region21
  $region20: #{hierarchical_interview_scorer.30} parent=0 // pred_region
    _
  $region21: #{hierarchical_interview_scorer.30} parent=0 // pred_fallthru
    _
  // Predicated region
  $region22: #{hierarchical_interview_scorer.30} parent=0 // pred_check
    _
  $region23: #{hierarchical_interview_scorer.30} parent=0 // pred_check_branch
    %285 = sbr.rel (0) target = $region25
  $region24: #{hierarchical_interview_scorer.30} parent=0 // pred_region
    _
  $region25: #{hierarchical_interview_scorer.30} parent=0 // pred_fallthru
    _

// kernel: hierarchical_interview_scorer.35
$region0: #{hierarchical_interview_scorer.35}
  #allocation0 [shape = 'u32[]', space=smem, size = 0x4, offset = 0x4, fixed_abs, tag = 'smem constant byte address 0x4 - core index']
  #allocation1 [shape = 'u32[72,128]{1,0:T(1,128)}', space=vmem, size = 0x9000, scoped, tag = 'internal scratch']
  #allocation2 [shape = 'f32[8,64]{1,0:T(8,128)}', space=vmem, size = 0x1000, scoped, tag = 'scratch operand']
  %s0 = inlined_call_operand.vmem [shape: bf16[8,64], index: 0, kind: input, shape index: {}]
  %s1 = inlined_call_operand.vmem [shape: bf16[64,64], index: 1, kind: input, shape index: {}]
  %s2 = inlined_call_operand.vmem [shape: f32[1,64], index: 2, kind: input, shape index: {}]
  %s3 = inlined_call_operand.vmem [shape: bf16[8,64], index: 3, kind: output, shape index: {}]
  %s4 = sld [smem:[#allocation0]]
  $region30: #{hierarchical_interview_scorer.35} parent=0
    _
  %s6 = ssub.s32 1, %s4
  %s7 = scalar_select 0, %s6, %s4
  // Predicated region
  $region2: #{hierarchical_interview_scorer.35} parent=0 // pred_check
    _
  $region3: #{hierarchical_interview_scorer.35} parent=0 // pred_check_branch
    %9 = sbr.rel (0) target = $region5
  $region4: #{hierarchical_interview_scorer.35} parent=0 // pred_region
    _
  $region5: #{hierarchical_interview_scorer.35} parent=0 // pred_fallthru
    _
  // Predicated region
  $region6: #{hierarchical_interview_scorer.35} parent=0 // pred_check
    _
  $region7: #{hierarchical_interview_scorer.35} parent=0 // pred_check_branch
    %11 = sbr.rel (0) target = $region9
  $region8: #{hierarchical_interview_scorer.35} parent=0 // pred_region
    _
  $region9: #{hierarchical_interview_scorer.35} parent=0 // pred_fallthru
    _
  // Predicated region
  $region10: #{hierarchical_interview_scorer.35} parent=0 // pred_check
    _
  $region11: #{hierarchical_interview_scorer.35} parent=0 // pred_check_branch
    %13 = sbr.rel (0) target = $region13
  $region12: #{hierarchical_interview_scorer.35} parent=0 // pred_region
    _
  $region13: #{hierarchical_interview_scorer.35} parent=0 // pred_fallthru
    _
  %p15 = scmp.eq.s32.totalorder 0, 0
  // Predicated region
  $region14: #{hierarchical_interview_scorer.35} parent=0 // pred_check
    %p16 = pneg %p15
  $region15: #{hierarchical_interview_scorer.35} parent=0 // pred_check_branch
    %18 = sbr.rel (%p16) target = $region17
  $region16: #{hierarchical_interview_scorer.35} parent=0 // pred_region
    %vm19 = vcmask 523264
    %20 = vst.msk [vmem:[#allocation2] sm:$0xff] %vm19, 0.0
  $region17: #{hierarchical_interview_scorer.35} parent=0 // pred_fallthru
    _
  %v21 = vld [vmem:[#allocation2] sm:$0xff]
  %v22 = vld [vmem:[%s0] sm:$0xf]
  %v23 = vld [vmem:[%s1] sm:$0xf]
  %v24 = vld [vmem:[%s1 + $0x4] sm:$0xf]
  %v25 = vld [vmem:[%s1 + $0x8] sm:$0xf]
  %v26 = vld [vmem:[%s1 + $0xc] sm:$0xf]
  %v27 = vld [vmem:[%s1 + $0x10] sm:$0xf]
  %v28 = vld [vmem:[%s1 + $0x14] sm:$0xf]
  %v29 = vld [vmem:[%s1 + $0x18] sm:$0xf]
  %v30 = vld [vmem:[%s1 + $0x1c] sm:$0xf]
  %v39 = vunpack.c.l.b16 %v23
  %v40 = vunpack.c.l.b16 %v24
  %v41 = vunpack.c.l.b16 %v25
  %v42 = vunpack.c.l.b16 %v26
  %v43 = vunpack.c.l.b16 %v27
  %v44 = vunpack.c.l.b16 %v28
  %v45 = vunpack.c.l.b16 %v29
  %v46 = vunpack.c.l.b16 %v30
  %v47 = vpack.c.b16 %v40, %v39
  %v48 = vpack.c.b16 %v42, %v41
  %v49 = vpack.c.b16 %v44, %v43
  %v50 = vpack.c.b16 %v46, %v45
  %vm55 = vcmask 523264
  %v57 = vsel %vm55, %v22, 0
  %59 = vmatpush.bf16.msra.mxu0 0
  %60 = vmatpush.bf16.msra.mxu0 0
  %61 = vmatpush.bf16.msra.mxu0 0
  %62 = vmatpush.bf16.msra.mxu0 0
  %63 = vmatpush.bf16.msra.mxu0 %v50
  %64 = vmatpush.bf16.msra.mxu0 %v49
  %65 = vmatpush.bf16.msra.mxu0 %v48
  %66 = vmatpush.bf16.msra.mxu0 %v47
  %67 = vmatmul.bf16.gmra.mxu0 %v57
  %v68 = vpop.f32.mrf.mxu0
  %v69 = vadd.f32 0.0, %v68
  %v70 = vpop.f32.mrf.mxu0
  %71 = vdwg.mxu0
  %v72 = vadd.f32 %v21, %v69
  %73 = vst.msk [vmem:[#allocation2] sm:$0xff] %vm55, %v72
  // Predicated region
  $region18: #{hierarchical_interview_scorer.35} parent=0 // pred_check
    %p74 = pneg %p15
  $region19: #{hierarchical_interview_scorer.35} parent=0 // pred_check_branch
    %76 = sbr.rel (%p74) target = $region21
  $region20: #{hierarchical_interview_scorer.35} parent=0 // pred_region
    %v77 = vld [vmem:[#allocation2] sm:$0xff]
    %v78 = vld [vmem:[%s2] sm:$0x1]
    %v80 = vperm.slane %v78, 0
    %v82 = vadd.f32 %v77, %v80
    %v83 = vpack.c.bf16 %v82, %v82
    %vm84 = vcmask 519168
    %85 = vst.msk [vmem:[%s3] sm:$0xf] %vm84, %v83
  $region21: #{hierarchical_interview_scorer.35} parent=0 // pred_fallthru
    _
  // Predicated region
  $region22: #{hierarchical_interview_scorer.35} parent=0 // pred_check
    _
  $region23: #{hierarchical_interview_scorer.35} parent=0 // pred_check_branch
    %87 = sbr.rel (0) target = $region25
  $region24: #{hierarchical_interview_scorer.35} parent=0 // pred_region
    _
  $region25: #{hierarchical_interview_scorer.35} parent=0 // pred_fallthru
    _
  // Predicated region
  $region26: #{hierarchical_interview_scorer.35} parent=0 // pred_check
    _
  $region27: #{hierarchical_interview_scorer.35} parent=0 // pred_check_branch
    %89 = sbr.rel (0) target = $region29
  $region28: #{hierarchical_interview_scorer.35} parent=0 // pred_region
    _
  $region29: #{hierarchical_interview_scorer.35} parent=0 // pred_fallthru
    _

// kernel: hierarchical_interview_scorer.34
$region0: #{hierarchical_interview_scorer.34}
  #allocation0 [shape = 'u32[]', space=smem, size = 0x4, offset = 0x4, fixed_abs, tag = 'smem constant byte address 0x4 - core index']
  #allocation1 [shape = 'u32[72,128]{1,0:T(1,128)}', space=vmem, size = 0x9000, scoped, tag = 'internal scratch']
  %s0 = inlined_call_operand.vmem [shape: bf16[8,8,192], index: 0, kind: input, shape index: {}]
  %s1 = inlined_call_operand.vmem [shape: f32[8,1,8], index: 1, kind: input, shape index: {}]
  %s2 = inlined_call_operand.vmem [shape: bf16[8,1,64], index: 2, kind: output, shape index: {}]
  %s3 = sld [smem:[#allocation0]]
  $region41: #{hierarchical_interview_scorer.34} parent=0
    _
  %s5 = ssub.s32 1, %s3
  %s6 = scalar_select 0, %s5, %s3
  loop: start=0, step=1, limit=10
  $region2: #{hierarchical_interview_scorer.34} parent=0 // loop_pre_header
    _
  $region3: #{hierarchical_interview_scorer.34} parent=0 // loop_header
    %s8 = sphi 0, %s12
    %p9 = scmp.ge.s32.totalorder %s8, 10
    %s18 = sphi 0, %s20
    %s21 = sphi 0, %s18
    %s22 = sphi 0, %s21
    %s38 = sphi 0, %s22
    %s44 = sphi 0, %s46
    %s47 = sphi 0, %s44
    %s48 = sphi 0, %s47
    %s64 = sphi 0, %s48
    %s70 = sphi 0, %s72
    %s73 = sphi 0, %s70
    %s74 = sphi 0, %s73
    %s90 = sphi 0, %s74
  $region4: #{hierarchical_interview_scorer.34} parent=0 // loop_header_branch
    %11 = sbr.rel (%p9) target = $region8
  $region5: #{hierarchical_interview_scorer.34} parent=0 // loop_body
    %s13 = ssub.s32 %s8, 1
    %s14 = ssub.s32 %s8, 2
    %s15 = sadd.s32 %s8, 1
    %s16 = ssub.s32 %s8, %s15
    %p17 = scmp.eq.s32.totalorder %s16, 0
    %s19 = sadd.s32 %s18, 1
    %s20 = scalar_select %p17, %s18, %s19
    %p23 = pneg %p17
    %p24 = scmp.eq.s32.totalorder %s8, 7
    %p25 = por %p23, %p24
    %p26 = scmp.ne.s32.totalorder %s18, %s21
    %p27 = scmp.eq.s32.totalorder %s8, 0
    %p28 = por %p26, %p27
    %p29 = scmp.ne.s32.totalorder %s18, %s21
    %p30 = scmp.eq.s32.totalorder %s13, 7
    %p31 = por %p29, %p30
    %p32 = scmp.ne.s32.totalorder %s21, %s22
    %p33 = scmp.eq.s32.totalorder %s13, 0
    %p34 = por %p32, %p33
    %p35 = scmp.ne.s32.totalorder %s21, %s22
    %p36 = scmp.eq.s32.totalorder %s14, 7
    %p37 = por %p35, %p36
    %p39 = scmp.ne.s32.totalorder %s22, %s38
    %p40 = scmp.eq.s32.totalorder %s14, 0
    %p41 = por %p39, %p40
    %s42 = ssub.s32 %s8, %s15
    %p43 = scmp.eq.s32.totalorder %s42, 0
    %s45 = sadd.s32 %s44, 1
    %s46 = scalar_select %p43, %s44, %s45
    %p49 = pneg %p43
    %p50 = scmp.eq.s32.totalorder %s8, 7
    %p51 = por %p49, %p50
    %p52 = scmp.ne.s32.totalorder %s44, %s47
    %p53 = scmp.eq.s32.totalorder %s8, 0
    %p54 = por %p52, %p53
    %p55 = scmp.ne.s32.totalorder %s44, %s47
    %p56 = scmp.eq.s32.totalorder %s13, 7
    %p57 = por %p55, %p56
    %p58 = scmp.ne.s32.totalorder %s47, %s48
    %p59 = scmp.eq.s32.totalorder %s13, 0
    %p60 = por %p58, %p59
    %p61 = scmp.ne.s32.totalorder %s47, %s48
    %p62 = scmp.eq.s32.totalorder %s14, 7
    %p63 = por %p61, %p62
    %p65 = scmp.ne.s32.totalorder %s48, %s64
    %p66 = scmp.eq.s32.totalorder %s14, 0
    %p67 = por %p65, %p66
    %s68 = ssub.s32 %s8, %s15
    %p69 = scmp.eq.s32.totalorder %s68, 0
    %s71 = sadd.s32 %s70, 1
    %s72 = scalar_select %p69, %s70, %s71
    %p75 = pneg %p69
    %p76 = scmp.eq.s32.totalorder %s8, 7
    %p77 = por %p75, %p76
    %p78 = scmp.ne.s32.totalorder %s70, %s73
    %p79 = scmp.eq.s32.totalorder %s8, 0
    %p80 = por %p78, %p79
    %p81 = scmp.ne.s32.totalorder %s70, %s73
    %p82 = scmp.eq.s32.totalorder %s13, 7
    %p83 = por %p81, %p82
    %p84 = scmp.ne.s32.totalorder %s73, %s74
    %p85 = scmp.eq.s32.totalorder %s13, 0
    %p86 = por %p84, %p85
    %p87 = scmp.ne.s32.totalorder %s73, %s74
    %p88 = scmp.eq.s32.totalorder %s14, 7
    %p89 = por %p87, %p88
    %p91 = scmp.ne.s32.totalorder %s74, %s90
    %p92 = scmp.eq.s32.totalorder %s14, 0
    %p93 = por %p91, %p92
    %p94 = scmp.le.s32.totalorder 1, %s8
    %p95 = scmp.lt.s32.totalorder %s8, 9
    %p96 = pnand %p94, %p95
    %p97 = pneg %p96
    // Predicated region
    $region9: #{hierarchical_interview_scorer.34} parent=5 // pred_check
      _
    $region10: #{hierarchical_interview_scorer.34} parent=5 // pred_check_branch
      %99 = sbr.rel (%p96) target = $region12
    $region11: #{hierarchical_interview_scorer.34} parent=5 // pred_region
      %s100 = ssub.s32 %s8, 1
    $region12: #{hierarchical_interview_scorer.34} parent=5 // pred_fallthru
      _
    %p101 = scmp.lt.s32.totalorder %s8, 8
    // Predicated region
    $region13: #{hierarchical_interview_scorer.34} parent=5 // pred_check
      %p102 = pneg %p101
    $region14: #{hierarchical_interview_scorer.34} parent=5 // pred_check_branch
      %104 = sbr.rel (%p102) target = $region16
    $region15: #{hierarchical_interview_scorer.34} parent=5 // pred_region
      // Predicated region
      $region17: #{hierarchical_interview_scorer.34} parent=15 // pred_check
        %p105 = pneg %p28
      $region18: #{hierarchical_interview_scorer.34} parent=15 // pred_check_branch
        %107 = sbr.rel (%p105) target = $region20
      $region19: #{hierarchical_interview_scorer.34} parent=15 // pred_region
        %p108 = scmp.lt.s32.totalorder %s8, 7
        %s109 = scalar_select %p108, %s8, 7
        %s110 = smul.addr %s109, 2
        %s111 = smul.addr %s110, 4
        %s112 = scalar_lea.vmem %s0, %s111
      $region20: #{hierarchical_interview_scorer.34} parent=15 // pred_fallthru
        _
      // Predicated region
      $region21: #{hierarchical_interview_scorer.34} parent=15 // pred_check
        %p113 = pneg %p54
      $region22: #{hierarchical_interview_scorer.34} parent=15 // pred_check_branch
        %115 = sbr.rel (%p113) target = $region24
      $region23: #{hierarchical_interview_scorer.34} parent=15 // pred_region
        %p116 = scmp.lt.s32.totalorder %s8, 7
        %s117 = scalar_select %p116, %s8, 7
        %s118 = scalar_lea.vmem %s1, %s117
      $region24: #{hierarchical_interview_scorer.34} parent=15 // pred_fallthru
        _
    $region16: #{hierarchical_interview_scorer.34} parent=5 // pred_fallthru
      _
    %p119 = scmp.le.s32.totalorder 1, %s8
    %p120 = scmp.lt.s32.totalorder %s8, 9
    %p121 = pnand %p119, %p120
    %p122 = pneg %p121
    // Predicated region
    $region25: #{hierarchical_interview_scorer.34} parent=5 // pred_check
      _
    $region26: #{hierarchical_interview_scorer.34} parent=5 // pred_check_branch
      %124 = sbr.rel (%p121) target = $region28
    $region27: #{hierarchical_interview_scorer.34} parent=5 // pred_region
      %s125 = ssub.s32 %s8, 1
      %p126 = scmp.lt.s32.totalorder %s13, 7
      %s127 = scalar_select %p126, %s13, 7
      %s128 = smul.addr %s127, 2
      %s129 = smul.addr %s128, 4
      %s130 = scalar_lea.vmem %s0, %s129
      %p131 = pneg %p34
      %p132 = pneg %p31
      %p133 = scmp.lt.s32.totalorder %s13, 7
      %s134 = scalar_select %p133, %s13, 7
      %s135 = scalar_lea.vmem %s1, %s134
      %p136 = pneg %p60
      %p137 = pneg %p57
      %p138 = pneg %p86
      %p139 = pneg %p83
      %p140 = scmp.lt.s32.totalorder %s13, 7
      %s141 = scalar_select %p140, %s13, 7
      %s142 = scalar_lea.vmem %s2, %s141
      %p143 = scmp.lt.s32.totalorder %s13, 7
      %s144 = scalar_select %p143, %s13, 7
      %s145 = smul.addr %s144, 2
      %s146 = smul.addr %s145, 4
      %s147 = scalar_lea.vmem %s0, %s146
      %p148 = scmp.lt.s32.totalorder %s13, 7
      %s149 = scalar_select %p148, %s13, 7
      %s150 = scalar_lea.vmem %s1, %s149
      %p151 = scmp.lt.s32.totalorder %s13, 7
      %s152 = scalar_select %p151, %s13, 7
      %s153 = scalar_lea.vmem %s2, %s152
      %v155 = vld [vmem:[%s147] sm:$0xff]
      %v156 = vld [vmem:[%s150] sm:$0x1]
      %v158 = vunpack.c.l.b16 %v155
      %v159 = vpack.c.b16 %v158, %v158
      %160 = vrot.lane.b32.xlu0 %v159, 64
      %v161 = vpop.permute.xlu0 %160
      %vm162 = vcmask 130048
      %v164 = vsel %vm162, %v155, 0
      %v167 = vsel %vm162, %v161, 0
      %169 = vmatpush.bf16.xpose.msra.mxu0 0
      %170 = vmatpush.bf16.xpose.msra.mxu0 0
      %171 = vmatpush.bf16.xpose.msra.mxu0 0
      %172 = vmatpush.bf16.xpose.msra.mxu0 0
      %173 = vmatpush.bf16.xpose.msra.mxu0 0
      %174 = vmatpush.bf16.xpose.msra.mxu0 0
      %175 = vmatpush.bf16.xpose.msra.mxu0 0
      %176 = vmatpush.bf16.xpose.msra.mxu0 %v167
      %177 = vmatmul.bf16.gmra.mxu0 %v164
      %v178 = vpop.f32.mrf.mxu0
      %v179 = vadd.f32 %v156, %v178
      %v180 = vpop.f32.mrf.mxu0
      %181 = vdwg.mxu0
      %vm182 = vcmask 57344
      %v183 = vsel %vm182, %v179, -inf
      %184 = vmax.xlane.f32.xlu0 %v183
      %v185 = vpop.xlane.xlu0 %184
      %v186 = vsub.f32 %v179, %v185
      %v187 = vmul.f32 %v186, 1.442695
      %v188 = vpow.pop %v187
      %v189 = vsel %vm182, %v188, 0.0
      %190 = vadd.xlane.f32.xlu0 %v189
      %v191 = vpop.xlane.xlu0 %190
      %v192 = vrcp.pop %v191
      %v193 = vmul.f32 %v188, %v192
      %v194 = vpack.c.bf16 %v193, %v193
      %v195 = vunpack.c.h.b16 %v155
      %v196 = vpack.c.b16 %v195, %v195
      %vm197 = vcmask 64512
      %v199 = vsel %vm197, %v194, 0
      %vm201 = vcmask 1043456
      %v203 = vsel %vm201, %v196, 0
      %205 = vmatpush.bf16.msra.mxu0 0
      %206 = vmatpush.bf16.msra.mxu0 0
      %207 = vmatpush.bf16.msra.mxu0 0
      %208 = vmatpush.bf16.msra.mxu0 0
      %209 = vmatpush.bf16.msra.mxu0 0
      %210 = vmatpush.bf16.msra.mxu0 0
      %211 = vmatpush.bf16.msra.mxu0 0
      %212 = vmatpush.bf16.msra.mxu0 %v203
      %213 = vmatmul.bf16.gmra.mxu0 %v199
      %v214 = vpop.f32.mrf.mxu0
      %v215 = vadd.f32 0.0, %v214
      %v216 = vpop.f32.mrf.mxu0
      %217 = vdwg.mxu0
      %v218 = vpack.c.bf16 %v215, %v215
      %vm219 = vcmask 122880
      %vm220 = vsmask.f32 256
      %vm221 = vmand %vm219, %vm220
      %v222 = vld [vmem:[%s153] sm:$0x1]
      %v223 = vsel %vm221, %v218, %v222
      %224 = vst [vmem:[%s153] sm:$0x1] %v223
      %225 = vrot.lane.b32.xlu0 %v159, 112
      %v226 = vpop.permute.xlu0 %225
      %227 = vrot.lane.b32.xlu0 %v159, 48
      %v228 = vpop.permute.xlu0 %227
      %v230 = vsel %vm162, %v226, 0
      %v233 = vsel %vm162, %v228, 0
      %235 = vmatpush.bf16.xpose.msra.mxu0 0
      %236 = vmatpush.bf16.xpose.msra.mxu0 0
      %237 = vmatpush.bf16.xpose.msra.mxu0 0
      %238 = vmatpush.bf16.xpose.msra.mxu0 0
      %239 = vmatpush.bf16.xpose.msra.mxu0 0
      %240 = vmatpush.bf16.xpose.msra.mxu0 0
      %241 = vmatpush.bf16.xpose.msra.mxu0 0
      %242 = vmatpush.bf16.xpose.msra.mxu0 %v233
      %243 = vmatmul.bf16.gmra.mxu0 %v230
      %v244 = vpop.f32.mrf.mxu0
      %v245 = vadd.f32 %v156, %v244
      %v246 = vpop.f32.mrf.mxu0
      %247 = vdwg.mxu0
      %v248 = vsel %vm182, %v245, -inf
      %249 = vmax.xlane.f32.xlu0 %v248
      %v250 = vpop.xlane.xlu0 %249
      %v251 = vsub.f32 %v245, %v250
      %v252 = vmul.f32 %v251, 1.442695
      %v253 = vpow.pop %v252
      %v254 = vsel %vm182, %v253, 0.0
      %255 = vadd.xlane.f32.xlu0 %v254
      %v256 = vpop.xlane.xlu0 %255
      %v257 = vrcp.pop %v256
      %v258 = vmul.f32 %v253, %v257
      %v259 = vpack.c.bf16 %v258, %v258
      %260 = vrot.lane.b32.xlu0 %v196, 112
      %v261 = vpop.permute.xlu0 %260
      %v263 = vsel %vm197, %v259, 0
      %v266 = vsel %vm201, %v261, 0
      %268 = vmatpush.bf16.msra.mxu0 0
      %269 = vmatpush.bf16.msra.mxu0 0
      %270 = vmatpush.bf16.msra.mxu0 0
      %271 = vmatpush.bf16.msra.mxu0 0
      %272 = vmatpush.bf16.msra.mxu0 0
      %273 = vmatpush.bf16.msra.mxu0 0
      %274 = vmatpush.bf16.msra.mxu0 0
      %275 = vmatpush.bf16.msra.mxu0 %v266
      %276 = vmatmul.bf16.gmra.mxu0 %v263
      %v277 = vpop.f32.mrf.mxu0
      %v278 = vadd.f32 0.0, %v277
      %v279 = vpop.f32.mrf.mxu0
      %280 = vdwg.mxu0
      %v281 = vpack.c.bf16 %v278, %v278
      %v283 = vrot.slane %v281, 3
      %vm284 = vcmask 1040384
      %v287 = vsel %vm284, %v281, %v283
      %289 = vrot.lane.b32.xlu0 %v287, 16
      %v290 = vpop.permute.xlu0 %289
      %vm292 = vcmask 254080
      %vm293 = vmand %vm292, %vm220
      %v294 = vld [vmem:[%s153] sm:$0x1]
      %v295 = vsel %vm293, %v290, %v294
      %296 = vst [vmem:[%s153] sm:$0x1] %v295
      %297 = vrot.lane.b32.xlu0 %v159, 96
      %v298 = vpop.permute.xlu0 %297
      %299 = vrot.lane.b32.xlu0 %v159, 32
      %v300 = vpop.permute.xlu0 %299
      %v302 = vsel %vm162, %v298, 0
      %v305 = vsel %vm162, %v300, 0
      %307 = vmatpush.bf16.xpose.msra.mxu0 0
      %308 = vmatpush.bf16.xpose.msra.mxu0 0
      %309 = vmatpush.bf16.xpose.msra.mxu0 0
      %310 = vmatpush.bf16.xpose.msra.mxu0 0
      %311 = vmatpush.bf16.xpose.msra.mxu0 0
      %312 = vmatpush.bf16.xpose.msra.mxu0 0
      %313 = vmatpush.bf16.xpose.msra.mxu0 0
      %314 = vmatpush.bf16.xpose.msra.mxu0 %v305
      %315 = vmatmul.bf16.gmra.mxu0 %v302
      %v316 = vpop.f32.mrf.mxu0
      %v317 = vadd.f32 %v156, %v316
      %v318 = vpop.f32.mrf.mxu0
      %319 = vdwg.mxu0
      %v320 = vsel %vm182, %v317, -inf
      %321 = vmax.xlane.f32.xlu0 %v320
      %v322 = vpop.xlane.xlu0 %321
      %v323 = vsub.f32 %v317, %v322
      %v324 = vmul.f32 %v323, 1.442695
      %v325 = vpow.pop %v324
      %v326 = vsel %vm182, %v325, 0.0
      %327 = vadd.xlane.f32.xlu0 %v326
      %v328 = vpop.xlane.xlu0 %327
      %v329 = vrcp.pop %v328
      %v330 = vmul.f32 %v325, %v329
      %v331 = vpack.c.bf16 %v330, %v330
      %332 = vrot.lane.b32.xlu0 %v196, 96
      %v333 = vpop.permute.xlu0 %332
      %v335 = vsel %vm197, %v331, 0
      %v338 = vsel %vm201, %v333, 0
      %340 = vmatpush.bf16.msra.mxu0 0
      %341 = vmatpush.bf16.msra.mxu0 0
      %342 = vmatpush.bf16.msra.mxu0 0
      %343 = vmatpush.bf16.msra.mxu0 0
      %344 = vmatpush.bf16.msra.mxu0 0
      %345 = vmatpush.bf16.msra.mxu0 0
      %346 = vmatpush.bf16.msra.mxu0 0
      %347 = vmatpush.bf16.msra.mxu0 %v338
      %348 = vmatmul.bf16.gmra.mxu0 %v335
      %v349 = vpop.f32.mrf.mxu0
      %v350 = vadd.f32 0.0, %v349
      %v351 = vpop.f32.mrf.mxu0
      %352 = vdwg.mxu0
      %v353 = vpack.c.bf16 %v350, %v350
      %v355 = vrot.slane %v353, 3
      %v358 = vsel %vm284, %v353, %v355
      %360 = vrot.lane.b32.xlu0 %v358, 32
      %v361 = vpop.permute.xlu0 %360
      %vm363 = vcmask 385280
      %vm364 = vmand %vm363, %vm220
      %v365 = vld [vmem:[%s153] sm:$0x1]
      %v366 = vsel %vm364, %v361, %v365
      %367 = vst [vmem:[%s153] sm:$0x1] %v366
      %368 = vrot.lane.b32.xlu0 %v159, 80
      %v369 = vpop.permute.xlu0 %368
      %370 = vrot.lane.b32.xlu0 %v159, 16
      %v371 = vpop.permute.xlu0 %370
      %v373 = vsel %vm162, %v369, 0
      %v376 = vsel %vm162, %v371, 0
      %378 = vmatpush.bf16.xpose.msra.mxu0 0
      %379 = vmatpush.bf16.xpose.msra.mxu0 0
      %380 = vmatpush.bf16.xpose.msra.mxu0 0
      %381 = vmatpush.bf16.xpose.msra.mxu0 0
      %382 = vmatpush.bf16.xpose.msra.mxu0 0
      %383 = vmatpush.bf16.xpose.msra.mxu0 0
      %384 = vmatpush.bf16.xpose.msra.mxu0 0
      %385 = vmatpush.bf16.xpose.msra.mxu0 %v376
      %386 = vmatmul.bf16.gmra.mxu0 %v373
      %v387 = vpop.f32.mrf.mxu0
      %v388 = vadd.f32 %v156, %v387
      %v389 = vpop.f32.mrf.mxu0
      %390 = vdwg.mxu0
      %v391 = vsel %vm182, %v388, -inf
      %392 = vmax.xlane.f32.xlu0 %v391
      %v393 = vpop.xlane.xlu0 %392
      %v394 = vsub.f32 %v388, %v393
      %v395 = vmul.f32 %v394, 1.442695
      %v396 = vpow.pop %v395
      %v397 = vsel %vm182, %v396, 0.0
      %398 = vadd.xlane.f32.xlu0 %v397
      %v399 = vpop.xlane.xlu0 %398
      %v400 = vrcp.pop %v399
      %v401 = vmul.f32 %v396, %v400
      %v402 = vpack.c.bf16 %v401, %v401
      %403 = vrot.lane.b32.xlu0 %v196, 80
      %v404 = vpop.permute.xlu0 %403
      %v406 = vsel %vm197, %v402, 0
      %v409 = vsel %vm201, %v404, 0
      %411 = vmatpush.bf16.msra.mxu0 0
      %412 = vmatpush.bf16.msra.mxu0 0
      %413 = vmatpush.bf16.msra.mxu0 0
      %414 = vmatpush.bf16.msra.mxu0 0
      %415 = vmatpush.bf16.msra.mxu0 0
      %416 = vmatpush.bf16.msra.mxu0 0
      %417 = vmatpush.bf16.msra.mxu0 0
      %418 = vmatpush.bf16.msra.mxu0 %v409
      %419 = vmatmul.bf16.gmra.mxu0 %v406
      %v420 = vpop.f32.mrf.mxu0
      %v421 = vadd.f32 0.0, %v420
      %v422 = vpop.f32.mrf.mxu0
      %423 = vdwg.mxu0
      %v424 = vpack.c.bf16 %v421, %v421
      %v426 = vrot.slane %v424, 3
      %v429 = vsel %vm284, %v424, %v426
      %431 = vrot.lane.b32.xlu0 %v429, 48
      %v432 = vpop.permute.xlu0 %431
      %vm434 = vcmask 516480
      %vm435 = vmand %vm434, %vm220
      %v436 = vld [vmem:[%s153] sm:$0x1]
      %v437 = vsel %vm435, %v432, %v436
      %438 = vst [vmem:[%s153] sm:$0x1] %v437
      %p439 = scmp.lt.s32.totalorder %s13, 7
      %s440 = scalar_select %p439, %s13, 7
      %s441 = scalar_lea.vmem %s2, %s440
      // Predicated region
      $region29: #{hierarchical_interview_scorer.34} parent=27 // pred_check
        %p442 = pneg %p83
      $region30: #{hierarchical_interview_scorer.34} parent=27 // pred_check_branch
        %444 = sbr.rel (%p442) target = $region32
      $region31: #{hierarchical_interview_scorer.34} parent=27 // pred_region
        _
      $region32: #{hierarchical_interview_scorer.34} parent=27 // pred_fallthru
        _
    $region28: #{hierarchical_interview_scorer.34} parent=5 // pred_fallthru
      _
    %p445 = scmp.le.s32.totalorder 2, %s8
    // Predicated region
    $region33: #{hierarchical_interview_scorer.34} parent=5 // pred_check
      %p446 = pneg %p445
    $region34: #{hierarchical_interview_scorer.34} parent=5 // pred_check_branch
      %448 = sbr.rel (%p446) target = $region36
    $region35: #{hierarchical_interview_scorer.34} parent=5 // pred_region
      %s449 = ssub.s32 %s8, 2
      // Predicated region
      $region37: #{hierarchical_interview_scorer.34} parent=35 // pred_check
        %p450 = pneg %p89
      $region38: #{hierarchical_interview_scorer.34} parent=35 // pred_check_branch
        %452 = sbr.rel (%p450) target = $region40
      $region39: #{hierarchical_interview_scorer.34} parent=35 // pred_region
        %p453 = scmp.lt.s32.totalorder %s14, 7
        %s454 = scalar_select %p453, %s14, 7
        %s455 = scalar_lea.vmem %s2, %s454
      $region40: #{hierarchical_interview_scorer.34} parent=35 // pred_fallthru
        _
    $region36: #{hierarchical_interview_scorer.34} parent=5 // pred_fallthru
      _
  $region6: #{hierarchical_interview_scorer.34} parent=0 // loop_footer
    %s12 = sadd.s32 1, %s8
  $region7: #{hierarchical_interview_scorer.34} parent=0 // loop_footer_branch
    %7 = sbr.rel target = $region3
  $region8: #{hierarchical_interview_scorer.34} parent=0 // loop_exit
    _

// kernel: hierarchical_interview_scorer.31
$region0: #{hierarchical_interview_scorer.31}
  #allocation0 [shape = 'u32[]', space=smem, size = 0x4, offset = 0x4, fixed_abs, tag = 'smem constant byte address 0x4 - core index']
  #allocation1 [shape = 'u32[72,128]{1,0:T(1,128)}', space=vmem, size = 0x9000, scoped, tag = 'internal scratch']
  #allocation2 [shape = 'f32[64,64]{1,0:T(8,128)}', space=vmem, size = 0x8000, scoped, tag = 'scratch operand']
  %s0 = inlined_call_operand.vmem [shape: bf16[64,64], index: 0, kind: input, shape index: {}]
  %s1 = inlined_call_operand.vmem [shape: bf16[64,128], index: 1, kind: input, shape index: {}]
  %s2 = inlined_call_operand.vmem [shape: f32[1,128], index: 2, kind: input, shape index: {}]
  %s3 = inlined_call_operand.vmem [shape: bf16[128,64], index: 3, kind: input, shape index: {}]
  %s4 = inlined_call_operand.vmem [shape: f32[1,64], index: 4, kind: input, shape index: {}]
  %s5 = inlined_call_operand.vmem [shape: bf16[64,64], index: 5, kind: output, shape index: {}]
  %s6 = sld [smem:[#allocation0]]
  $region38: #{hierarchical_interview_scorer.31} parent=0
    _
  %s8 = ssub.s32 1, %s6
  %s9 = scalar_select 0, %s8, %s6
  // Predicated region
  $region2: #{hierarchical_interview_scorer.31} parent=0 // pred_check
    _
  $region3: #{hierarchical_interview_scorer.31} parent=0 // pred_check_branch
    %11 = sbr.rel (0) target = $region5
  $region4: #{hierarchical_interview_scorer.31} parent=0 // pred_region
    _
  $region5: #{hierarchical_interview_scorer.31} parent=0 // pred_fallthru
    _
  // Predicated region
  $region6: #{hierarchical_interview_scorer.31} parent=0 // pred_check
    _
  $region7: #{hierarchical_interview_scorer.31} parent=0 // pred_check_branch
    %13 = sbr.rel (0) target = $region9
  $region8: #{hierarchical_interview_scorer.31} parent=0 // pred_region
    _
  $region9: #{hierarchical_interview_scorer.31} parent=0 // pred_fallthru
    _
  // Predicated region
  $region10: #{hierarchical_interview_scorer.31} parent=0 // pred_check
    _
  $region11: #{hierarchical_interview_scorer.31} parent=0 // pred_check_branch
    %15 = sbr.rel (0) target = $region13
  $region12: #{hierarchical_interview_scorer.31} parent=0 // pred_region
    _
  $region13: #{hierarchical_interview_scorer.31} parent=0 // pred_fallthru
    _
  // Predicated region
  $region14: #{hierarchical_interview_scorer.31} parent=0 // pred_check
    _
  $region15: #{hierarchical_interview_scorer.31} parent=0 // pred_check_branch
    %17 = sbr.rel (0) target = $region17
  $region16: #{hierarchical_interview_scorer.31} parent=0 // pred_region
    _
  $region17: #{hierarchical_interview_scorer.31} parent=0 // pred_fallthru
    _
  // Predicated region
  $region18: #{hierarchical_interview_scorer.31} parent=0 // pred_check
    _
  $region19: #{hierarchical_interview_scorer.31} parent=0 // pred_check_branch
    %19 = sbr.rel (0) target = $region21
  $region20: #{hierarchical_interview_scorer.31} parent=0 // pred_region
    _
  $region21: #{hierarchical_interview_scorer.31} parent=0 // pred_fallthru
    _
  %p21 = scmp.eq.s32.totalorder 0, 0
  // Predicated region
  $region22: #{hierarchical_interview_scorer.31} parent=0 // pred_check
    %p22 = pneg %p21
  $region23: #{hierarchical_interview_scorer.31} parent=0 // pred_check_branch
    %24 = sbr.rel (%p22) target = $region25
  $region24: #{hierarchical_interview_scorer.31} parent=0 // pred_region
    %vm25 = vcmask 523264
    %26 = vst.msk [vmem:[#allocation2] sm:$0xff] %vm25, 0.0
    %27 = vst.msk [vmem:[#allocation2 + $0x8] sm:$0xff] %vm25, 0.0
    %28 = vst.msk [vmem:[#allocation2 + $0x10] sm:$0xff] %vm25, 0.0
    %29 = vst.msk [vmem:[#allocation2 + $0x18] sm:$0xff] %vm25, 0.0
    %30 = vst.msk [vmem:[#allocation2 + $0x20] sm:$0xff] %vm25, 0.0
    %31 = vst.msk [vmem:[#allocation2 + $0x28] sm:$0xff] %vm25, 0.0
    %32 = vst.msk [vmem:[#allocation2 + $0x30] sm:$0xff] %vm25, 0.0
    %33 = vst.msk [vmem:[#allocation2 + $0x38] sm:$0xff] %vm25, 0.0
  $region25: #{hierarchical_interview_scorer.31} parent=0 // pred_fallthru
    _
  %v34 = vld [vmem:[%s0] sm:$0xf]
  %v35 = vld [vmem:[%s0 + $0x4] sm:$0xf]
  %v36 = vld [vmem:[%s0 + $0x8] sm:$0xf]
  %v37 = vld [vmem:[%s0 + $0xc] sm:$0xf]
  %v38 = vld [vmem:[%s0 + $0x10] sm:$0xf]
  %v39 = vld [vmem:[%s0 + $0x14] sm:$0xf]
  %v40 = vld [vmem:[%s0 + $0x18] sm:$0xf]
  %v41 = vld [vmem:[%s0 + $0x1c] sm:$0xf]
  %v42 = vld [vmem:[%s1] sm:$0xf]
  %v43 = vld [vmem:[%s1 + $0x4] sm:$0xf]
  %v44 = vld [vmem:[%s1 + $0x8] sm:$0xf]
  %v45 = vld [vmem:[%s1 + $0xc] sm:$0xf]
  %v46 = vld [vmem:[%s1 + $0x10] sm:$0xf]
  %v47 = vld [vmem:[%s1 + $0x14] sm:$0xf]
  %v48 = vld [vmem:[%s1 + $0x18] sm:$0xf]
  %v49 = vld [vmem:[%s1 + $0x1c] sm:$0xf]
  %v50 = vld [vmem:[%s2] sm:$0x1]
  %v52 = vperm.slane %v50, 0
  %v62 = vunpack.c.l.b16 %v34
  %v63 = vunpack.c.l.b16 %v35
  %v64 = vunpack.c.l.b16 %v36
  %v65 = vunpack.c.l.b16 %v37
  %v66 = vunpack.c.l.b16 %v38
  %v67 = vunpack.c.l.b16 %v39
  %v68 = vunpack.c.l.b16 %v40
  %v69 = vunpack.c.l.b16 %v41
  %v70 = vpack.c.b16 %v63, %v62
  %v71 = vpack.c.b16 %v65, %v64
  %v72 = vpack.c.b16 %v67, %v66
  %v73 = vpack.c.b16 %v69, %v68
  %v82 = vunpack.c.l.b16 %v42
  %v83 = vunpack.c.l.b16 %v43
  %v84 = vunpack.c.l.b16 %v44
  %v85 = vunpack.c.l.b16 %v45
  %v86 = vunpack.c.l.b16 %v46
  %v87 = vunpack.c.l.b16 %v47
  %v88 = vunpack.c.l.b16 %v48
  %v89 = vunpack.c.l.b16 %v49
  %v90 = vpack.c.b16 %v83, %v82
  %v91 = vpack.c.b16 %v85, %v84
  %v92 = vpack.c.b16 %v87, %v86
  %v93 = vpack.c.b16 %v89, %v88
  %vm98 = vcmask 523264
  %v100 = vsel %vm98, %v70, 0
  %v103 = vsel %vm98, %v71, 0
  %v106 = vsel %vm98, %v72, 0
  %v109 = vsel %vm98, %v73, 0
  %111 = vmatpush.bf16.msra.mxu0 0
  %112 = vmatpush.bf16.msra.mxu0 0
  %113 = vmatpush.bf16.msra.mxu0 0
  %114 = vmatpush.bf16.msra.mxu0 0
  %115 = vmatpush.bf16.msra.mxu0 %v93
  %116 = vmatpush.bf16.msra.mxu0 %v92
  %117 = vmatpush.bf16.msra.mxu0 %v91
  %118 = vmatpush.bf16.msra.mxu0 %v90
  %119 = vmatmul.bf16.gmra.mxu0 %v100
  %v120 = vpop.f32.mrf.mxu0
  %v121 = vadd.f32 %v52, %v120
  %v122 = vpop.f32.mrf.mxu0
  %v123 = vadd.f32 %v52, %v122
  %124 = vmatmul.bf16.gmra.mxu0 %v103
  %v125 = vpop.f32.mrf.mxu0
  %v126 = vadd.f32 %v52, %v125
  %v127 = vpop.f32.mrf.mxu0
  %v128 = vadd.f32 %v52, %v127
  %129 = vmatmul.bf16.gmra.mxu0 %v106
  %v130 = vpop.f32.mrf.mxu0
  %v131 = vadd.f32 %v52, %v130
  %v132 = vpop.f32.mrf.mxu0
  %v133 = vadd.f32 %v52, %v132
  %134 = vmatmul.bf16.gmra.mxu0 %v109
  %v135 = vpop.f32.mrf.mxu0
  %v136 = vadd.f32 %v52, %v135
  %v137 = vpop.f32.mrf.mxu0
  %v138 = vadd.f32 %v52, %v137
  %139 = vdwg.mxu0
  %v140 = vmul.f32 %v121, 0.5
  %v141 = vmul.f32 %v123, 0.5
  %v142 = vmul.f32 %v126, 0.5
  %v143 = vmul.f32 %v128, 0.5
  %v144 = vmul.f32 %v131, 0.5
  %v145 = vmul.f32 %v133, 0.5
  %v146 = vmul.f32 %v136, 0.5
  %v147 = vmul.f32 %v138, 0.5
  %v148 = vmul.f32 %v121, 0.044715
  %v149 = vmul.f32 %v123, 0.044715
  %v150 = vmul.f32 %v126, 0.044715
  %v151 = vmul.f32 %v128, 0.044715
  %v152 = vmul.f32 %v131, 0.044715
  %v153 = vmul.f32 %v133, 0.044715
  %v154 = vmul.f32 %v136, 0.044715
  %v155 = vmul.f32 %v138, 0.044715
  %v156 = vmul.f32 %v148, %v121
  %v157 = vmul.f32 %v149, %v123
  %v158 = vmul.f32 %v150, %v126
  %v159 = vmul.f32 %v151, %v128
  %v160 = vmul.f32 %v152, %v131
  %v161 = vmul.f32 %v153, %v133
  %v162 = vmul.f32 %v154, %v136
  %v163 = vmul.f32 %v155, %v138
  %v164 = vmul.f32 %v156, %v121
  %v165 = vmul.f32 %v157, %v123
  %v166 = vmul.f32 %v158, %v126
  %v167 = vmul.f32 %v159, %v128
  %v168 = vmul.f32 %v160, %v131
  %v169 = vmul.f32 %v161, %v133
  %v170 = vmul.f32 %v162, %v136
  %v171 = vmul.f32 %v163, %v138
  %v172 = vadd.f32 %v121, %v164
  %v173 = vadd.f32 %v123, %v165
  %v174 = vadd.f32 %v126, %v166
  %v175 = vadd.f32 %v128, %v167
  %v176 = vadd.f32 %v131, %v168
  %v177 = vadd.f32 %v133, %v169
  %v178 = vadd.f32 %v136, %v170
  %v179 = vadd.f32 %v138, %v171
  %v180 = vmul.f32 %v172, 0.7978846
  %v181 = vmul.f32 %v173, 0.7978846
  %v182 = vmul.f32 %v174, 0.7978846
  %v183 = vmul.f32 %v175, 0.7978846
  %v184 = vmul.f32 %v176, 0.7978846
  %v185 = vmul.f32 %v177, 0.7978846
  %v186 = vmul.f32 %v178, 0.7978846
  %v187 = vmul.f32 %v179, 0.7978846
  %v188 = vtanh.pop %v180
  %v189 = vtanh.pop %v181
  %v190 = vtanh.pop %v182
  %v191 = vtanh.pop %v183
  %v192 = vtanh.pop %v184
  %v193 = vtanh.pop %v185
  %v194 = vtanh.pop %v186
  %v195 = vtanh.pop %v187
  %v196 = vadd.f32 %v188, 1.0
  %v197 = vadd.f32 %v189, 1.0
  %v198 = vadd.f32 %v190, 1.0
  %v199 = vadd.f32 %v191, 1.0
  %v200 = vadd.f32 %v192, 1.0
  %v201 = vadd.f32 %v193, 1.0
  %v202 = vadd.f32 %v194, 1.0
  %v203 = vadd.f32 %v195, 1.0
  %v204 = vmul.f32 %v140, %v196
  %v205 = vmul.f32 %v141, %v197
  %v206 = vmul.f32 %v142, %v198
  %v207 = vmul.f32 %v143, %v199
  %v208 = vmul.f32 %v144, %v200
  %v209 = vmul.f32 %v145, %v201
  %v210 = vmul.f32 %v146, %v202
  %v211 = vmul.f32 %v147, %v203
  %v212 = vld [vmem:[#allocation2] sm:$0xff]
  %v213 = vld [vmem:[#allocation2 + $0x8] sm:$0xff]
  %v214 = vld [vmem:[#allocation2 + $0x10] sm:$0xff]
  %v215 = vld [vmem:[#allocation2 + $0x18] sm:$0xff]
  %v216 = vld [vmem:[#allocation2 + $0x20] sm:$0xff]
  %v217 = vld [vmem:[#allocation2 + $0x28] sm:$0xff]
  %v218 = vld [vmem:[#allocation2 + $0x30] sm:$0xff]
  %v219 = vld [vmem:[#allocation2 + $0x38] sm:$0xff]
  %v220 = vpack.c.bf16 %v205, %v204
  %v221 = vpack.c.bf16 %v207, %v206
  %v222 = vpack.c.bf16 %v209, %v208
  %v223 = vpack.c.bf16 %v211, %v210
  %v224 = vld [vmem:[%s3] sm:$0xf]
  %v225 = vld [vmem:[%s3 + $0x4] sm:$0xf]
  %v226 = vld [vmem:[%s3 + $0x8] sm:$0xf]
  %v227 = vld [vmem:[%s3 + $0xc] sm:$0xf]
  %v228 = vld [vmem:[%s3 + $0x10] sm:$0xf]
  %v229 = vld [vmem:[%s3 + $0x14] sm:$0xf]
  %v230 = vld [vmem:[%s3 + $0x18] sm:$0xf]
  %v231 = vld [vmem:[%s3 + $0x1c] sm:$0xf]
  %v232 = vld [vmem:[%s3 + $0x20] sm:$0xf]
  %v233 = vld [vmem:[%s3 + $0x24] sm:$0xf]
  %v234 = vld [vmem:[%s3 + $0x28] sm:$0xf]
  %v235 = vld [vmem:[%s3 + $0x2c] sm:$0xf]
  %v236 = vld [vmem:[%s3 + $0x30] sm:$0xf]
  %v237 = vld [vmem:[%s3 + $0x34] sm:$0xf]
  %v238 = vld [vmem:[%s3 + $0x38] sm:$0xf]
  %v239 = vld [vmem:[%s3 + $0x3c] sm:$0xf]
  %v256 = vunpack.c.l.b16 %v224
  %v257 = vunpack.c.l.b16 %v225
  %v258 = vunpack.c.l.b16 %v226
  %v259 = vunpack.c.l.b16 %v227
  %v260 = vunpack.c.l.b16 %v228
  %v261 = vunpack.c.l.b16 %v229
  %v262 = vunpack.c.l.b16 %v230
  %v263 = vunpack.c.l.b16 %v231
  %v264 = vunpack.c.l.b16 %v232
  %v265 = vunpack.c.l.b16 %v233
  %v266 = vunpack.c.l.b16 %v234
  %v267 = vunpack.c.l.b16 %v235
  %v268 = vunpack.c.l.b16 %v236
  %v269 = vunpack.c.l.b16 %v237
  %v270 = vunpack.c.l.b16 %v238
  %v271 = vunpack.c.l.b16 %v239
  %v272 = vpack.c.b16 %v257, %v256
  %v273 = vpack.c.b16 %v259, %v258
  %v274 = vpack.c.b16 %v261, %v260
  %v275 = vpack.c.b16 %v263, %v262
  %v276 = vpack.c.b16 %v265, %v264
  %v277 = vpack.c.b16 %v267, %v266
  %v278 = vpack.c.b16 %v269, %v268
  %v279 = vpack.c.b16 %v271, %v270
  %288 = vmatpush.bf16.msra.mxu0 %v279
  %289 = vmatpush.bf16.msra.mxu0 %v278
  %290 = vmatpush.bf16.msra.mxu0 %v277
  %291 = vmatpush.bf16.msra.mxu0 %v276
  %292 = vmatpush.bf16.msra.mxu0 %v275
  %293 = vmatpush.bf16.msra.mxu0 %v274
  %294 = vmatpush.bf16.msra.mxu0 %v273
  %295 = vmatpush.bf16.msra.mxu0 %v272
  %296 = vmatmul.bf16.gmra.mxu0 %v220
  %v297 = vpop.f32.mrf.mxu0
  %v298 = vadd.f32 0.0, %v297
  %v299 = vpop.f32.mrf.mxu0
  %v300 = vadd.f32 0.0, %v299
  %301 = vmatmul.bf16.gmra.mxu0 %v221
  %v302 = vpop.f32.mrf.mxu0
  %v303 = vadd.f32 0.0, %v302
  %v304 = vpop.f32.mrf.mxu0
  %v305 = vadd.f32 0.0, %v304
  %306 = vmatmul.bf16.gmra.mxu0 %v222
  %v307 = vpop.f32.mrf.mxu0
  %v308 = vadd.f32 0.0, %v307
  %v309 = vpop.f32.mrf.mxu0
  %v310 = vadd.f32 0.0, %v309
  %311 = vmatmul.bf16.gmra.mxu0 %v223
  %v312 = vpop.f32.mrf.mxu0
  %v313 = vadd.f32 0.0, %v312
  %v314 = vpop.f32.mrf.mxu0
  %v315 = vadd.f32 0.0, %v314
  %316 = vdwg.mxu0
  %v317 = vadd.f32 %v212, %v298
  %v318 = vadd.f32 %v213, %v300
  %v319 = vadd.f32 %v214, %v303
  %v320 = vadd.f32 %v215, %v305
  %v321 = vadd.f32 %v216, %v308
  %v322 = vadd.f32 %v217, %v310
  %v323 = vadd.f32 %v218, %v313
  %v324 = vadd.f32 %v219, %v315
  %325 = vst.msk [vmem:[#allocation2] sm:$0xff] %vm98, %v317
  %326 = vst.msk [vmem:[#allocation2 + $0x8] sm:$0xff] %vm98, %v318
  %327 = vst.msk [vmem:[#allocation2 + $0x10] sm:$0xff] %vm98, %v319
  %328 = vst.msk [vmem:[#allocation2 + $0x18] sm:$0xff] %vm98, %v320
  %329 = vst.msk [vmem:[#allocation2 + $0x20] sm:$0xff] %vm98, %v321
  %330 = vst.msk [vmem:[#allocation2 + $0x28] sm:$0xff] %vm98, %v322
  %331 = vst.msk [vmem:[#allocation2 + $0x30] sm:$0xff] %vm98, %v323
  %332 = vst.msk [vmem:[#allocation2 + $0x38] sm:$0xff] %vm98, %v324
  // Predicated region
  $region26: #{hierarchical_interview_scorer.31} parent=0 // pred_check
    %p333 = pneg %p21
  $region27: #{hierarchical_interview_scorer.31} parent=0 // pred_check_branch
    %335 = sbr.rel (%p333) target = $region29
  $region28: #{hierarchical_interview_scorer.31} parent=0 // pred_region
    %v336 = vld [vmem:[#allocation2] sm:$0xff]
    %v337 = vld [vmem:[#allocation2 + $0x8] sm:$0xff]
    %v338 = vld [vmem:[#allocation2 + $0x10] sm:$0xff]
    %v339 = vld [vmem:[#allocation2 + $0x18] sm:$0xff]
    %v340 = vld [vmem:[#allocation2 + $0x20] sm:$0xff]
    %v341 = vld [vmem:[#allocation2 + $0x28] sm:$0xff]
    %v342 = vld [vmem:[#allocation2 + $0x30] sm:$0xff]
    %v343 = vld [vmem:[#allocation2 + $0x38] sm:$0xff]
    %v344 = vld [vmem:[%s4] sm:$0x1]
    %v346 = vperm.slane %v344, 0
    %v348 = vadd.f32 %v336, %v346
    %v349 = vadd.f32 %v337, %v346
    %v350 = vadd.f32 %v338, %v346
    %v351 = vadd.f32 %v339, %v346
    %v352 = vadd.f32 %v340, %v346
    %v353 = vadd.f32 %v341, %v346
    %v354 = vadd.f32 %v342, %v346
    %v355 = vadd.f32 %v343, %v346
    %v356 = vpack.c.bf16 %v348, %v348
    %v357 = vpack.c.bf16 %v349, %v349
    %v358 = vpack.c.bf16 %v350, %v350
    %v359 = vpack.c.bf16 %v351, %v351
    %v360 = vpack.c.bf16 %v352, %v352
    %v361 = vpack.c.bf16 %v353, %v353
    %v362 = vpack.c.bf16 %v354, %v354
    %v363 = vpack.c.bf16 %v355, %v355
    %vm364 = vcmask 519168
    %365 = vst.msk [vmem:[%s5] sm:$0xf] %vm364, %v356
    %366 = vst.msk [vmem:[%s5 + $0x4] sm:$0xf] %vm364, %v357
    %367 = vst.msk [vmem:[%s5 + $0x8] sm:$0xf] %vm364, %v358
    %368 = vst.msk [vmem:[%s5 + $0xc] sm:$0xf] %vm364, %v359
    %369 = vst.msk [vmem:[%s5 + $0x10] sm:$0xf] %vm364, %v360
    %370 = vst.msk [vmem:[%s5 + $0x14] sm:$0xf] %vm364, %v361
    %371 = vst.msk [vmem:[%s5 + $0x18] sm:$0xf] %vm364, %v362
    %372 = vst.msk [vmem:[%s5 + $0x1c] sm:$0xf] %vm364, %v363
  $region29: #{hierarchical_interview_scorer.31} parent=0 // pred_fallthru
    _
  // Predicated region
  $region30: #{hierarchical_interview_scorer.31} parent=0 // pred_check
    _
  $region31: #{hierarchical_interview_scorer.31} parent=0 // pred_check_branch
    %374 = sbr.rel (0) target = $region33
  $region32: #{hierarchical_interview_scorer.31} parent=0 // pred_region
    _
  $region33: #{hierarchical_interview_scorer.31} parent=0 // pred_fallthru
    _
  // Predicated region
  $region34: #{hierarchical_interview_scorer.31} parent=0 // pred_check
    _
  $region35: #{hierarchical_interview_scorer.31} parent=0 // pred_check_branch
    %376 = sbr.rel (0) target = $region37
  $region36: #{hierarchical_interview_scorer.31} parent=0 // pred_region
    _
  $region37: #{hierarchical_interview_scorer.31} parent=0 // pred_fallthru
    _

// kernel: hierarchical_interview_scorer.36
$region0: #{hierarchical_interview_scorer.36}
  #allocation0 [shape = 'u32[]', space=smem, size = 0x4, offset = 0x4, fixed_abs, tag = 'smem constant byte address 0x4 - core index']
  #allocation1 [shape = 'u32[72,128]{1,0:T(1,128)}', space=vmem, size = 0x9000, scoped, tag = 'internal scratch']
  %s0 = inlined_call_operand.vmem [shape: bf16[8,64], index: 0, kind: input, shape index: {}]
  %s1 = inlined_call_operand.vmem [shape: bf16[8,64], index: 1, kind: input, shape index: {}]
  %s2 = inlined_call_operand.vmem [shape: f32[1,64], index: 2, kind: input, shape index: {}]
  %s3 = inlined_call_operand.vmem [shape: f32[1,64], index: 3, kind: input, shape index: {}]
  %s4 = inlined_call_operand.vmem [shape: bf16[8,64], index: 4, kind: output, shape index: {}]
  %s5 = sld [smem:[#allocation0]]
  $region26: #{hierarchical_interview_scorer.36} parent=0
    _
  %s7 = ssub.s32 1, %s5
  %s8 = scalar_select 0, %s7, %s5
  // Predicated region
  $region2: #{hierarchical_interview_scorer.36} parent=0 // pred_check
    _
  $region3: #{hierarchical_interview_scorer.36} parent=0 // pred_check_branch
    %10 = sbr.rel (0) target = $region5
  $region4: #{hierarchical_interview_scorer.36} parent=0 // pred_region
    _
  $region5: #{hierarchical_interview_scorer.36} parent=0 // pred_fallthru
    _
  // Predicated region
  $region6: #{hierarchical_interview_scorer.36} parent=0 // pred_check
    _
  $region7: #{hierarchical_interview_scorer.36} parent=0 // pred_check_branch
    %12 = sbr.rel (0) target = $region9
  $region8: #{hierarchical_interview_scorer.36} parent=0 // pred_region
    _
  $region9: #{hierarchical_interview_scorer.36} parent=0 // pred_fallthru
    _
  // Predicated region
  $region10: #{hierarchical_interview_scorer.36} parent=0 // pred_check
    _
  $region11: #{hierarchical_interview_scorer.36} parent=0 // pred_check_branch
    %14 = sbr.rel (0) target = $region13
  $region12: #{hierarchical_interview_scorer.36} parent=0 // pred_region
    _
  $region13: #{hierarchical_interview_scorer.36} parent=0 // pred_fallthru
    _
  // Predicated region
  $region14: #{hierarchical_interview_scorer.36} parent=0 // pred_check
    _
  $region15: #{hierarchical_interview_scorer.36} parent=0 // pred_check_branch
    %16 = sbr.rel (0) target = $region17
  $region16: #{hierarchical_interview_scorer.36} parent=0 // pred_region
    _
  $region17: #{hierarchical_interview_scorer.36} parent=0 // pred_fallthru
    _
  %v17 = vld [vmem:[%s0] sm:$0xf]
  %v18 = vunpack.c.l.bf16 %v17
  %v19 = vld [vmem:[%s1] sm:$0xf]
  %v20 = vunpack.c.l.bf16 %v19
  %v21 = vadd.f32 %v18, %v20
  %vm22 = vcmask 523264
  %v23 = vsel %vm22, %v21, 0.0
  %24 = vadd.xlane.f32.xlu0 %v23
  %v25 = vpop.xlane.xlu0 %24
  %v26 = vrcp.pop 64.0
  %v27 = vmul.f32 64.0, %v26
  %v28 = vsub.f32 1.0, %v27
  %v29 = vmul.f32 %v26, %v28
  %v30 = vadd.f32 %v26, %v29
  %vm31 = vweird.f32 %v26
  %v32 = vsel %vm31, %v26, %v30
  %v33 = vmul.f32 %v25, %v32
  %v34 = vsub.f32 %v21, %v33
  %v35 = vmul.f32 %v34, %v34
  %v36 = vsel %vm22, %v35, 0.0
  %37 = vadd.xlane.f32.xlu0 %v36
  %v38 = vpop.xlane.xlu0 %37
  %v39 = vmul.f32 %v38, %v32
  %v40 = vadd.f32 %v39, 1e-12
  %v41 = vrsqrt.pop %v40
  %v42 = vmul.f32 %v41, %v40
  %v43 = vmul.f32 %v42, %v41
  %v44 = vmul.f32 0.5, %v43
  %v45 = vsub.f32 1.5, %v44
  %v46 = vmul.f32 %v41, %v45
  %vm47 = vweird.f32 %v40
  %vm48 = vweird.f32 %v41
  %vm49 = vmor %vm47, %vm48
  %v50 = vsel %vm49, %v41, %v46
  %v51 = vmul.f32 %v34, %v50
  %v52 = vld [vmem:[%s2] sm:$0x1]
  %v54 = vperm.slane %v52, 0
  %v56 = vmul.f32 %v51, %v54
  %v57 = vld [vmem:[%s3] sm:$0x1]
  %v59 = vperm.slane %v57, 0
  %v61 = vadd.f32 %v56, %v59
  %v62 = vpack.c.bf16 %v61, %v61
  %vm63 = vcmask 519168
  %64 = vst.msk [vmem:[%s4] sm:$0xf] %vm63, %v62
  // Predicated region
  $region18: #{hierarchical_interview_scorer.36} parent=0 // pred_check
    _
  $region19: #{hierarchical_interview_scorer.36} parent=0 // pred_check_branch
    %66 = sbr.rel (0) target = $region21
  $region20: #{hierarchical_interview_scorer.36} parent=0 // pred_region
    _
  $region21: #{hierarchical_interview_scorer.36} parent=0 // pred_fallthru
    _
  // Predicated region
  $region22: #{hierarchical_interview_scorer.36} parent=0 // pred_check
    _
  $region23: #{hierarchical_interview_scorer.36} parent=0 // pred_check_branch
    %68 = sbr.rel (0) target = $region25
  $region24: #{hierarchical_interview_scorer.36} parent=0 // pred_region
    _
  $region25: #{hierarchical_interview_scorer.36} parent=0 // pred_fallthru
    _

// kernel: hierarchical_interview_scorer.39
$region0: #{hierarchical_interview_scorer.39}
  #allocation0 [shape = 'u32[]', space=smem, size = 0x4, offset = 0x4, fixed_abs, tag = 'smem constant byte address 0x4 - core index']
  #allocation1 [shape = 'u32[72,128]{1,0:T(1,128)}', space=vmem, size = 0x9000, scoped, tag = 'internal scratch']
  #allocation2 [shape = 'f32[8,192]{1,0:T(8,128)}', space=vmem, size = 0x2000, scoped, tag = 'scratch operand']
  %s0 = inlined_call_operand.vmem [shape: bf16[8,64], index: 0, kind: input, shape index: {}]
  %s1 = inlined_call_operand.vmem [shape: bf16[64,192], index: 1, kind: input, shape index: {}]
  %s2 = inlined_call_operand.vmem [shape: f32[1,192], index: 2, kind: input, shape index: {}]
  %s3 = inlined_call_operand.vmem [shape: bf16[8,192], index: 3, kind: output, shape index: {}]
  %s4 = sld [smem:[#allocation0]]
  $region30: #{hierarchical_interview_scorer.39} parent=0
    _
  %s6 = ssub.s32 1, %s4
  %s7 = scalar_select 0, %s6, %s4
  // Predicated region
  $region2: #{hierarchical_interview_scorer.39} parent=0 // pred_check
    _
  $region3: #{hierarchical_interview_scorer.39} parent=0 // pred_check_branch
    %9 = sbr.rel (0) target = $region5
  $region4: #{hierarchical_interview_scorer.39} parent=0 // pred_region
    _
  $region5: #{hierarchical_interview_scorer.39} parent=0 // pred_fallthru
    _
  // Predicated region
  $region6: #{hierarchical_interview_scorer.39} parent=0 // pred_check
    _
  $region7: #{hierarchical_interview_scorer.39} parent=0 // pred_check_branch
    %11 = sbr.rel (0) target = $region9
  $region8: #{hierarchical_interview_scorer.39} parent=0 // pred_region
    _
  $region9: #{hierarchical_interview_scorer.39} parent=0 // pred_fallthru
    _
  // Predicated region
  $region10: #{hierarchical_interview_scorer.39} parent=0 // pred_check
    _
  $region11: #{hierarchical_interview_scorer.39} parent=0 // pred_check_branch
    %13 = sbr.rel (0) target = $region13
  $region12: #{hierarchical_interview_scorer.39} parent=0 // pred_region
    _
  $region13: #{hierarchical_interview_scorer.39} parent=0 // pred_fallthru
    _
  %p15 = scmp.eq.s32.totalorder 0, 0
  // Predicated region
  $region14: #{hierarchical_interview_scorer.39} parent=0 // pred_check
    %p16 = pneg %p15
  $region15: #{hierarchical_interview_scorer.39} parent=0 // pred_check_branch
    %18 = sbr.rel (%p16) target = $region17
  $region16: #{hierarchical_interview_scorer.39} parent=0 // pred_region
    %19 = vst [vmem:[#allocation2] sm:$0xff] 0.0
    %vm20 = vcmask 523264
    %21 = vst.msk [vmem:[#allocation2 + $0x8] sm:$0xff] %vm20, 0.0
  $region17: #{hierarchical_interview_scorer.39} parent=0 // pred_fallthru
    _
  %v22 = vld [vmem:[#allocation2] sm:$0xff]
  %v23 = vld [vmem:[#allocation2 + $0x8] sm:$0xff]
  %v24 = vld [vmem:[%s0] sm:$0xf]
  %v25 = vld [vmem:[%s1] sm:$0xff]
  %v26 = vld [vmem:[%s1 + $0x8] sm:$0xff]
  %v27 = vld [vmem:[%s1 + $0x10] sm:$0xff]
  %v28 = vld [vmem:[%s1 + $0x18] sm:$0xff]
  %v29 = vld [vmem:[%s1 + $0x20] sm:$0xff]
  %v30 = vld [vmem:[%s1 + $0x28] sm:$0xff]
  %v31 = vld [vmem:[%s1 + $0x30] sm:$0xff]
  %v32 = vld [vmem:[%s1 + $0x38] sm:$0xff]
  %v41 = vunpack.c.l.b16 %v25
  %v42 = vunpack.c.h.b16 %v25
  %v43 = vunpack.c.l.b16 %v26
  %v44 = vunpack.c.h.b16 %v26
  %v45 = vunpack.c.l.b16 %v27
  %v46 = vunpack.c.h.b16 %v27
  %v47 = vunpack.c.l.b16 %v28
  %v48 = vunpack.c.h.b16 %v28
  %v49 = vunpack.c.l.b16 %v29
  %v50 = vunpack.c.h.b16 %v29
  %v51 = vunpack.c.l.b16 %v30
  %v52 = vunpack.c.h.b16 %v30
  %v53 = vunpack.c.l.b16 %v31
  %v54 = vunpack.c.h.b16 %v31
  %v55 = vunpack.c.l.b16 %v32
  %v56 = vunpack.c.h.b16 %v32
  %v57 = vpack.c.b16 %v43, %v41
  %v58 = vpack.c.b16 %v44, %v42
  %v59 = vpack.c.b16 %v47, %v45
  %v60 = vpack.c.b16 %v48, %v46
  %v61 = vpack.c.b16 %v51, %v49
  %v62 = vpack.c.b16 %v52, %v50
  %v63 = vpack.c.b16 %v55, %v53
  %v64 = vpack.c.b16 %v56, %v54
  %vm73 = vcmask 523264
  %v75 = vsel %vm73, %v24, 0
  %77 = vmatpush.bf16.msra.mxu0 0
  %78 = vmatpush.bf16.msra.mxu0 0
  %79 = vmatpush.bf16.msra.mxu0 0
  %80 = vmatpush.bf16.msra.mxu0 0
  %81 = vmatpush.bf16.msra.mxu0 %v63
  %82 = vmatpush.bf16.msra.mxu0 %v61
  %83 = vmatpush.bf16.msra.mxu0 %v59
  %84 = vmatpush.bf16.msra.mxu0 %v57
  %85 = vmatmul.bf16.gmra.mxu0 %v75
  %v86 = vpop.f32.mrf.mxu0
  %v87 = vadd.f32 0.0, %v86
  %v88 = vpop.f32.mrf.mxu0
  %89 = vdwg.mxu0
  %90 = vmatpush.bf16.msra.mxu0 0
  %91 = vmatpush.bf16.msra.mxu0 0
  %92 = vmatpush.bf16.msra.mxu0 0
  %93 = vmatpush.bf16.msra.mxu0 0
  %94 = vmatpush.bf16.msra.mxu0 %v64
  %95 = vmatpush.bf16.msra.mxu0 %v62
  %96 = vmatpush.bf16.msra.mxu0 %v60
  %97 = vmatpush.bf16.msra.mxu0 %v58
  %98 = vmatmul.bf16.gmra.mxu0 %v75
  %v99 = vpop.f32.mrf.mxu0
  %v100 = vadd.f32 0.0, %v99
  %v101 = vpop.f32.mrf.mxu0
  %102 = vdwg.mxu0
  %v103 = vadd.f32 %v22, %v87
  %v104 = vadd.f32 %v23, %v100
  %105 = vst [vmem:[#allocation2] sm:$0xff] %v103
  %106 = vst.msk [vmem:[#allocation2 + $0x8] sm:$0xff] %vm73, %v104
  // Predicated region
  $region18: #{hierarchical_interview_scorer.39} parent=0 // pred_check
    %p107 = pneg %p15
  $region19: #{hierarchical_interview_scorer.39} parent=0 // pred_check_branch
    %109 = sbr.rel (%p107) target = $region21
  $region20: #{hierarchical_interview_scorer.39} parent=0 // pred_region
    %v110 = vld [vmem:[#allocation2] sm:$0xff]
    %v111 = vld [vmem:[#allocation2 + $0x8] sm:$0xff]
    %v112 = vld [vmem:[%s2] sm:$0x3]
    %v114 = vperm.slane %v112, 0
    %v115 = vperm.slane %v112, 1
    %v118 = vadd.f32 %v110, %v114
    %v119 = vadd.f32 %v111, %v115
    %v120 = vpack.c.bf16 %v119, %v118
    %vm121 = vcmask 1043456
    %vm122 = vcmask 523268
    %vm123 = vmor %vm122, %vm121
    %124 = vst.msk [vmem:[%s3] sm:$0xff] %vm123, %v120
  $region21: #{hierarchical_interview_scorer.39} parent=0 // pred_fallthru
    _
  // Predicated region
  $region22: #{hierarchical_interview_scorer.39} parent=0 // pred_check
    _
  $region23: #{hierarchical_interview_scorer.39} parent=0 // pred_check_branch
    %126 = sbr.rel (0) target = $region25
  $region24: #{hierarchical_interview_scorer.39} parent=0 // pred_region
    _
  $region25: #{hierarchical_interview_scorer.39} parent=0 // pred_fallthru
    _
  // Predicated region
  $region26: #{hierarchical_interview_scorer.39} parent=0 // pred_check
    _
  $region27: #{hierarchical_interview_scorer.39} parent=0 // pred_check_branch
    %128 = sbr.rel (0) target = $region29
  $region28: #{hierarchical_interview_scorer.39} parent=0 // pred_region
    _
  $region29: #{hierarchical_interview_scorer.39} parent=0 // pred_fallthru
    _

// kernel: hierarchical_interview_scorer.37
$region0: #{hierarchical_interview_scorer.37}
  #allocation0 [shape = 'u32[]', space=smem, size = 0x4, offset = 0x4, fixed_abs, tag = 'smem constant byte address 0x4 - core index']
  #allocation1 [shape = 'u32[72,128]{1,0:T(1,128)}', space=vmem, size = 0x9000, scoped, tag = 'internal scratch']
  #allocation2 [shape = 'f32[8,64]{1,0:T(8,128)}', space=vmem, size = 0x1000, scoped, tag = 'scratch operand']
  %s0 = inlined_call_operand.vmem [shape: bf16[8,64], index: 0, kind: input, shape index: {}]
  %s1 = inlined_call_operand.vmem [shape: bf16[64,128], index: 1, kind: input, shape index: {}]
  %s2 = inlined_call_operand.vmem [shape: f32[1,128], index: 2, kind: input, shape index: {}]
  %s3 = inlined_call_operand.vmem [shape: bf16[128,64], index: 3, kind: input, shape index: {}]
  %s4 = inlined_call_operand.vmem [shape: f32[1,64], index: 4, kind: input, shape index: {}]
  %s5 = inlined_call_operand.vmem [shape: bf16[8,64], index: 5, kind: output, shape index: {}]
  %s6 = sld [smem:[#allocation0]]
  $region38: #{hierarchical_interview_scorer.37} parent=0
    _
  %s8 = ssub.s32 1, %s6
  %s9 = scalar_select 0, %s8, %s6
  // Predicated region
  $region2: #{hierarchical_interview_scorer.37} parent=0 // pred_check
    _
  $region3: #{hierarchical_interview_scorer.37} parent=0 // pred_check_branch
    %11 = sbr.rel (0) target = $region5
  $region4: #{hierarchical_interview_scorer.37} parent=0 // pred_region
    _
  $region5: #{hierarchical_interview_scorer.37} parent=0 // pred_fallthru
    _
  // Predicated region
  $region6: #{hierarchical_interview_scorer.37} parent=0 // pred_check
    _
  $region7: #{hierarchical_interview_scorer.37} parent=0 // pred_check_branch
    %13 = sbr.rel (0) target = $region9
  $region8: #{hierarchical_interview_scorer.37} parent=0 // pred_region
    _
  $region9: #{hierarchical_interview_scorer.37} parent=0 // pred_fallthru
    _
  // Predicated region
  $region10: #{hierarchical_interview_scorer.37} parent=0 // pred_check
    _
  $region11: #{hierarchical_interview_scorer.37} parent=0 // pred_check_branch
    %15 = sbr.rel (0) target = $region13
  $region12: #{hierarchical_interview_scorer.37} parent=0 // pred_region
    _
  $region13: #{hierarchical_interview_scorer.37} parent=0 // pred_fallthru
    _
  // Predicated region
  $region14: #{hierarchical_interview_scorer.37} parent=0 // pred_check
    _
  $region15: #{hierarchical_interview_scorer.37} parent=0 // pred_check_branch
    %17 = sbr.rel (0) target = $region17
  $region16: #{hierarchical_interview_scorer.37} parent=0 // pred_region
    _
  $region17: #{hierarchical_interview_scorer.37} parent=0 // pred_fallthru
    _
  // Predicated region
  $region18: #{hierarchical_interview_scorer.37} parent=0 // pred_check
    _
  $region19: #{hierarchical_interview_scorer.37} parent=0 // pred_check_branch
    %19 = sbr.rel (0) target = $region21
  $region20: #{hierarchical_interview_scorer.37} parent=0 // pred_region
    _
  $region21: #{hierarchical_interview_scorer.37} parent=0 // pred_fallthru
    _
  %p21 = scmp.eq.s32.totalorder 0, 0
  // Predicated region
  $region22: #{hierarchical_interview_scorer.37} parent=0 // pred_check
    %p22 = pneg %p21
  $region23: #{hierarchical_interview_scorer.37} parent=0 // pred_check_branch
    %24 = sbr.rel (%p22) target = $region25
  $region24: #{hierarchical_interview_scorer.37} parent=0 // pred_region
    %vm25 = vcmask 523264
    %26 = vst.msk [vmem:[#allocation2] sm:$0xff] %vm25, 0.0
  $region25: #{hierarchical_interview_scorer.37} parent=0 // pred_fallthru
    _
  %v27 = vld [vmem:[%s0] sm:$0xf]
  %v28 = vld [vmem:[%s1] sm:$0xf]
  %v29 = vld [vmem:[%s1 + $0x4] sm:$0xf]
  %v30 = vld [vmem:[%s1 + $0x8] sm:$0xf]
  %v31 = vld [vmem:[%s1 + $0xc] sm:$0xf]
  %v32 = vld [vmem:[%s1 + $0x10] sm:$0xf]
  %v33 = vld [vmem:[%s1 + $0x14] sm:$0xf]
  %v34 = vld [vmem:[%s1 + $0x18] sm:$0xf]
  %v35 = vld [vmem:[%s1 + $0x1c] sm:$0xf]
  %v36 = vld [vmem:[%s2] sm:$0x1]
  %v38 = vperm.slane %v36, 0
  %v48 = vunpack.c.l.b16 %v28
  %v49 = vunpack.c.l.b16 %v29
  %v50 = vunpack.c.l.b16 %v30
  %v51 = vunpack.c.l.b16 %v31
  %v52 = vunpack.c.l.b16 %v32
  %v53 = vunpack.c.l.b16 %v33
  %v54 = vunpack.c.l.b16 %v34
  %v55 = vunpack.c.l.b16 %v35
  %v56 = vpack.c.b16 %v49, %v48
  %v57 = vpack.c.b16 %v51, %v50
  %v58 = vpack.c.b16 %v53, %v52
  %v59 = vpack.c.b16 %v55, %v54
  %vm64 = vcmask 523264
  %v66 = vsel %vm64, %v27, 0
  %68 = vmatpush.bf16.msra.mxu0 0
  %69 = vmatpush.bf16.msra.mxu0 0
  %70 = vmatpush.bf16.msra.mxu0 0
  %71 = vmatpush.bf16.msra.mxu0 0
  %72 = vmatpush.bf16.msra.mxu0 %v59
  %73 = vmatpush.bf16.msra.mxu0 %v58
  %74 = vmatpush.bf16.msra.mxu0 %v57
  %75 = vmatpush.bf16.msra.mxu0 %v56
  %76 = vmatmul.bf16.gmra.mxu0 %v66
  %v77 = vpop.f32.mrf.mxu0
  %v78 = vadd.f32 %v38, %v77
  %v79 = vpop.f32.mrf.mxu0
  %80 = vdwg.mxu0
  %v81 = vmul.f32 %v78, 0.5
  %v82 = vmul.f32 %v78, 0.044715
  %v83 = vmul.f32 %v82, %v78
  %v84 = vmul.f32 %v83, %v78
  %v85 = vadd.f32 %v78, %v84
  %v86 = vmul.f32 %v85, 0.7978846
  %v87 = vtanh.pop %v86
  %v88 = vadd.f32 %v87, 1.0
  %v89 = vmul.f32 %v81, %v88
  %v90 = vld [vmem:[#allocation2] sm:$0xff]
  %v91 = vpack.c.bf16 %v89, %v89
  %v92 = vld [vmem:[%s3] sm:$0xf]
  %v93 = vld [vmem:[%s3 + $0x4] sm:$0xf]
  %v94 = vld [vmem:[%s3 + $0x8] sm:$0xf]
  %v95 = vld [vmem:[%s3 + $0xc] sm:$0xf]
  %v96 = vld [vmem:[%s3 + $0x10] sm:$0xf]
  %v97 = vld [vmem:[%s3 + $0x14] sm:$0xf]
  %v98 = vld [vmem:[%s3 + $0x18] sm:$0xf]
  %v99 = vld [vmem:[%s3 + $0x1c] sm:$0xf]
  %v100 = vld [vmem:[%s3 + $0x20] sm:$0xf]
  %v101 = vld [vmem:[%s3 + $0x24] sm:$0xf]
  %v102 = vld [vmem:[%s3 + $0x28] sm:$0xf]
  %v103 = vld [vmem:[%s3 + $0x2c] sm:$0xf]
  %v104 = vld [vmem:[%s3 + $0x30] sm:$0xf]
  %v105 = vld [vmem:[%s3 + $0x34] sm:$0xf]
  %v106 = vld [vmem:[%s3 + $0x38] sm:$0xf]
  %v107 = vld [vmem:[%s3 + $0x3c] sm:$0xf]
  %v124 = vunpack.c.l.b16 %v92
  %v125 = vunpack.c.l.b16 %v93
  %v126 = vunpack.c.l.b16 %v94
  %v127 = vunpack.c.l.b16 %v95
  %v128 = vunpack.c.l.b16 %v96
  %v129 = vunpack.c.l.b16 %v97
  %v130 = vunpack.c.l.b16 %v98
  %v131 = vunpack.c.l.b16 %v99
  %v132 = vunpack.c.l.b16 %v100
  %v133 = vunpack.c.l.b16 %v101
  %v134 = vunpack.c.l.b16 %v102
  %v135 = vunpack.c.l.b16 %v103
  %v136 = vunpack.c.l.b16 %v104
  %v137 = vunpack.c.l.b16 %v105
  %v138 = vunpack.c.l.b16 %v106
  %v139 = vunpack.c.l.b16 %v107
  %v140 = vpack.c.b16 %v125, %v124
  %v141 = vpack.c.b16 %v127, %v126
  %v142 = vpack.c.b16 %v129, %v128
  %v143 = vpack.c.b16 %v131, %v130
  %v144 = vpack.c.b16 %v133, %v132
  %v145 = vpack.c.b16 %v135, %v134
  %v146 = vpack.c.b16 %v137, %v136
  %v147 = vpack.c.b16 %v139, %v138
  %156 = vmatpush.bf16.msra.mxu0 %v147
  %157 = vmatpush.bf16.msra.mxu0 %v146
  %158 = vmatpush.bf16.msra.mxu0 %v145
  %159 = vmatpush.bf16.msra.mxu0 %v144
  %160 = vmatpush.bf16.msra.mxu0 %v143
  %161 = vmatpush.bf16.msra.mxu0 %v142
  %162 = vmatpush.bf16.msra.mxu0 %v141
  %163 = vmatpush.bf16.msra.mxu0 %v140
  %164 = vmatmul.bf16.gmra.mxu0 %v91
  %v165 = vpop.f32.mrf.mxu0
  %v166 = vadd.f32 0.0, %v165
  %v167 = vpop.f32.mrf.mxu0
  %168 = vdwg.mxu0
  %v169 = vadd.f32 %v90, %v166
  %170 = vst.msk [vmem:[#allocation2] sm:$0xff] %vm64, %v169
  // Predicated region
  $region26: #{hierarchical_interview_scorer.37} parent=0 // pred_check
    %p171 = pneg %p21
  $region27: #{hierarchical_interview_scorer.37} parent=0 // pred_check_branch
    %173 = sbr.rel (%p171) target = $region29
  $region28: #{hierarchical_interview_scorer.37} parent=0 // pred_region
    %v174 = vld [vmem:[#allocation2] sm:$0xff]
    %v175 = vld [vmem:[%s4] sm:$0x1]
    %v177 = vperm.slane %v175, 0
    %v179 = vadd.f32 %v174, %v177
    %v180 = vpack.c.bf16 %v179, %v179
    %vm181 = vcmask 519168
    %182 = vst.msk [vmem:[%s5] sm:$0xf] %vm181, %v180
  $region29: #{hierarchical_interview_scorer.37} parent=0 // pred_fallthru
    _
  // Predicated region
  $region30: #{hierarchical_interview_scorer.37} parent=0 // pred_check
    _
  $region31: #{hierarchical_interview_scorer.37} parent=0 // pred_check_branch
    %184 = sbr.rel (0) target = $region33
  $region32: #{hierarchical_interview_scorer.37} parent=0 // pred_region
    _
  $region33: #{hierarchical_interview_scorer.37} parent=0 // pred_fallthru
    _
  // Predicated region
  $region34: #{hierarchical_interview_scorer.37} parent=0 // pred_check
    _
  $region35: #{hierarchical_interview_scorer.37} parent=0 // pred_check_branch
    %186 = sbr.rel (0) target = $region37
  $region36: #{hierarchical_interview_scorer.37} parent=0 // pred_region
    _
  $region37: #{hierarchical_interview_scorer.37} parent=0 // pred_fallthru
    _

// kernel: hierarchical_interview_scorer.42
$region0: #{hierarchical_interview_scorer.42}
  #allocation0 [shape = 'u32[]', space=smem, size = 0x4, offset = 0x4, fixed_abs, tag = 'smem constant byte address 0x4 - core index']
  #allocation1 [shape = 'u32[72,128]{1,0:T(1,128)}', space=vmem, size = 0x9000, scoped, tag = 'internal scratch']
  %s0 = inlined_call_operand.vmem [shape: bf16[8,64], index: 0, kind: input, shape index: {}]
  %s1 = inlined_call_operand.vmem [shape: bf16[8,64], index: 1, kind: input, shape index: {}]
  %s2 = inlined_call_operand.vmem [shape: f32[1,64], index: 2, kind: input, shape index: {}]
  %s3 = inlined_call_operand.vmem [shape: f32[1,64], index: 3, kind: input, shape index: {}]
  %s4 = inlined_call_operand.vmem [shape: bf16[8,64], index: 4, kind: output, shape index: {}]
  %s5 = sld [smem:[#allocation0]]
  $region26: #{hierarchical_interview_scorer.42} parent=0
    _
  %s7 = ssub.s32 1, %s5
  %s8 = scalar_select 0, %s7, %s5
  // Predicated region
  $region2: #{hierarchical_interview_scorer.42} parent=0 // pred_check
    _
  $region3: #{hierarchical_interview_scorer.42} parent=0 // pred_check_branch
    %10 = sbr.rel (0) target = $region5
  $region4: #{hierarchical_interview_scorer.42} parent=0 // pred_region
    _
  $region5: #{hierarchical_interview_scorer.42} parent=0 // pred_fallthru
    _
  // Predicated region
  $region6: #{hierarchical_interview_scorer.42} parent=0 // pred_check
    _
  $region7: #{hierarchical_interview_scorer.42} parent=0 // pred_check_branch
    %12 = sbr.rel (0) target = $region9
  $region8: #{hierarchical_interview_scorer.42} parent=0 // pred_region
    _
  $region9: #{hierarchical_interview_scorer.42} parent=0 // pred_fallthru
    _
  // Predicated region
  $region10: #{hierarchical_interview_scorer.42} parent=0 // pred_check
    _
  $region11: #{hierarchical_interview_scorer.42} parent=0 // pred_check_branch
    %14 = sbr.rel (0) target = $region13
  $region12: #{hierarchical_interview_scorer.42} parent=0 // pred_region
    _
  $region13: #{hierarchical_interview_scorer.42} parent=0 // pred_fallthru
    _
  // Predicated region
  $region14: #{hierarchical_interview_scorer.42} parent=0 // pred_check
    _
  $region15: #{hierarchical_interview_scorer.42} parent=0 // pred_check_branch
    %16 = sbr.rel (0) target = $region17
  $region16: #{hierarchical_interview_scorer.42} parent=0 // pred_region
    _
  $region17: #{hierarchical_interview_scorer.42} parent=0 // pred_fallthru
    _
  %v17 = vld [vmem:[%s0] sm:$0xf]
  %v18 = vunpack.c.l.bf16 %v17
  %v19 = vld [vmem:[%s1] sm:$0xf]
  %v20 = vunpack.c.l.bf16 %v19
  %v21 = vadd.f32 %v18, %v20
  %vm22 = vcmask 523264
  %v23 = vsel %vm22, %v21, 0.0
  %24 = vadd.xlane.f32.xlu0 %v23
  %v25 = vpop.xlane.xlu0 %24
  %v26 = vrcp.pop 64.0
  %v27 = vmul.f32 64.0, %v26
  %v28 = vsub.f32 1.0, %v27
  %v29 = vmul.f32 %v26, %v28
  %v30 = vadd.f32 %v26, %v29
  %vm31 = vweird.f32 %v26
  %v32 = vsel %vm31, %v26, %v30
  %v33 = vmul.f32 %v25, %v32
  %v34 = vsub.f32 %v21, %v33
  %v35 = vmul.f32 %v34, %v34
  %v36 = vsel %vm22, %v35, 0.0
  %37 = vadd.xlane.f32.xlu0 %v36
  %v38 = vpop.xlane.xlu0 %37
  %v39 = vmul.f32 %v38, %v32
  %v40 = vadd.f32 %v39, 1e-05
  %v41 = vrsqrt.pop %v40
  %v42 = vmul.f32 %v41, %v40
  %v43 = vmul.f32 %v42, %v41
  %v44 = vmul.f32 0.5, %v43
  %v45 = vsub.f32 1.5, %v44
  %v46 = vmul.f32 %v41, %v45
  %vm47 = vweird.f32 %v40
  %vm48 = vweird.f32 %v41
  %vm49 = vmor %vm47, %vm48
  %v50 = vsel %vm49, %v41, %v46
  %v51 = vmul.f32 %v34, %v50
  %v52 = vld [vmem:[%s2] sm:$0x1]
  %v54 = vperm.slane %v52, 0
  %v56 = vmul.f32 %v51, %v54
  %v57 = vld [vmem:[%s3] sm:$0x1]
  %v59 = vperm.slane %v57, 0
  %v61 = vadd.f32 %v56, %v59
  %v62 = vpack.c.bf16 %v61, %v61
  %vm63 = vcmask 519168
  %64 = vst.msk [vmem:[%s4] sm:$0xf] %vm63, %v62
  // Predicated region
  $region18: #{hierarchical_interview_scorer.42} parent=0 // pred_check
    _
  $region19: #{hierarchical_interview_scorer.42} parent=0 // pred_check_branch
    %66 = sbr.rel (0) target = $region21
  $region20: #{hierarchical_interview_scorer.42} parent=0 // pred_region
    _
  $region21: #{hierarchical_interview_scorer.42} parent=0 // pred_fallthru
    _
  // Predicated region
  $region22: #{hierarchical_interview_scorer.42} parent=0 // pred_check
    _
  $region23: #{hierarchical_interview_scorer.42} parent=0 // pred_check_branch
    %68 = sbr.rel (0) target = $region25
  $region24: #{hierarchical_interview_scorer.42} parent=0 // pred_region
    _
  $region25: #{hierarchical_interview_scorer.42} parent=0 // pred_fallthru
    _

// kernel: hierarchical_interview_scorer.40
$region0: #{hierarchical_interview_scorer.40}
  #allocation0 [shape = 'u32[]', space=smem, size = 0x4, offset = 0x4, fixed_abs, tag = 'smem constant byte address 0x4 - core index']
  #allocation1 [shape = 'u32[72,128]{1,0:T(1,128)}', space=vmem, size = 0x9000, scoped, tag = 'internal scratch']
  %s0 = inlined_call_operand.vmem [shape: bf16[2,4,192], index: 0, kind: input, shape index: {}]
  %s1 = inlined_call_operand.vmem [shape: f32[2,1,4], index: 1, kind: input, shape index: {}]
  %s2 = inlined_call_operand.vmem [shape: bf16[2,4,64], index: 2, kind: output, shape index: {}]
  %s3 = sld [smem:[#allocation0]]
  $region41: #{hierarchical_interview_scorer.40} parent=0
    _
  %s5 = ssub.s32 1, %s3
  %s6 = scalar_select 0, %s5, %s3
  loop: start=0, step=1, limit=4
  $region2: #{hierarchical_interview_scorer.40} parent=0 // loop_pre_header
    _
  $region3: #{hierarchical_interview_scorer.40} parent=0 // loop_header
    %s8 = sphi 0, %s12
    %p9 = scmp.ge.s32.totalorder %s8, 4
    %s18 = sphi 0, %s20
    %s21 = sphi 0, %s18
    %s22 = sphi 0, %s21
    %s38 = sphi 0, %s22
    %s44 = sphi 0, %s46
    %s47 = sphi 0, %s44
    %s48 = sphi 0, %s47
    %s64 = sphi 0, %s48
    %s70 = sphi 0, %s72
    %s73 = sphi 0, %s70
    %s74 = sphi 0, %s73
    %s90 = sphi 0, %s74
  $region4: #{hierarchical_interview_scorer.40} parent=0 // loop_header_branch
    %11 = sbr.rel (%p9) target = $region8
  $region5: #{hierarchical_interview_scorer.40} parent=0 // loop_body
    %s13 = ssub.s32 %s8, 1
    %s14 = ssub.s32 %s8, 2
    %s15 = sadd.s32 %s8, 1
    %s16 = ssub.s32 %s8, %s15
    %p17 = scmp.eq.s32.totalorder %s16, 0
    %s19 = sadd.s32 %s18, 1
    %s20 = scalar_select %p17, %s18, %s19
    %p23 = pneg %p17
    %p24 = scmp.eq.s32.totalorder %s8, 1
    %p25 = por %p23, %p24
    %p26 = scmp.ne.s32.totalorder %s18, %s21
    %p27 = scmp.eq.s32.totalorder %s8, 0
    %p28 = por %p26, %p27
    %p29 = scmp.ne.s32.totalorder %s18, %s21
    %p30 = scmp.eq.s32.totalorder %s13, 1
    %p31 = por %p29, %p30
    %p32 = scmp.ne.s32.totalorder %s21, %s22
    %p33 = scmp.eq.s32.totalorder %s13, 0
    %p34 = por %p32, %p33
    %p35 = scmp.ne.s32.totalorder %s21, %s22
    %p36 = scmp.eq.s32.totalorder %s14, 1
    %p37 = por %p35, %p36
    %p39 = scmp.ne.s32.totalorder %s22, %s38
    %p40 = scmp.eq.s32.totalorder %s14, 0
    %p41 = por %p39, %p40
    %s42 = ssub.s32 %s8, %s15
    %p43 = scmp.eq.s32.totalorder %s42, 0
    %s45 = sadd.s32 %s44, 1
    %s46 = scalar_select %p43, %s44, %s45
    %p49 = pneg %p43
    %p50 = scmp.eq.s32.totalorder %s8, 1
    %p51 = por %p49, %p50
    %p52 = scmp.ne.s32.totalorder %s44, %s47
    %p53 = scmp.eq.s32.totalorder %s8, 0
    %p54 = por %p52, %p53
    %p55 = scmp.ne.s32.totalorder %s44, %s47
    %p56 = scmp.eq.s32.totalorder %s13, 1
    %p57 = por %p55, %p56
    %p58 = scmp.ne.s32.totalorder %s47, %s48
    %p59 = scmp.eq.s32.totalorder %s13, 0
    %p60 = por %p58, %p59
    %p61 = scmp.ne.s32.totalorder %s47, %s48
    %p62 = scmp.eq.s32.totalorder %s14, 1
    %p63 = por %p61, %p62
    %p65 = scmp.ne.s32.totalorder %s48, %s64
    %p66 = scmp.eq.s32.totalorder %s14, 0
    %p67 = por %p65, %p66
    %s68 = ssub.s32 %s8, %s15
    %p69 = scmp.eq.s32.totalorder %s68, 0
    %s71 = sadd.s32 %s70, 1
    %s72 = scalar_select %p69, %s70, %s71
    %p75 = pneg %p69
    %p76 = scmp.eq.s32.totalorder %s8, 1
    %p77 = por %p75, %p76
    %p78 = scmp.ne.s32.totalorder %s70, %s73
    %p79 = scmp.eq.s32.totalorder %s8, 0
    %p80 = por %p78, %p79
    %p81 = scmp.ne.s32.totalorder %s70, %s73
    %p82 = scmp.eq.s32.totalorder %s13, 1
    %p83 = por %p81, %p82
    %p84 = scmp.ne.s32.totalorder %s73, %s74
    %p85 = scmp.eq.s32.totalorder %s13, 0
    %p86 = por %p84, %p85
    %p87 = scmp.ne.s32.totalorder %s73, %s74
    %p88 = scmp.eq.s32.totalorder %s14, 1
    %p89 = por %p87, %p88
    %p91 = scmp.ne.s32.totalorder %s74, %s90
    %p92 = scmp.eq.s32.totalorder %s14, 0
    %p93 = por %p91, %p92
    %p94 = scmp.le.s32.totalorder 1, %s8
    %p95 = scmp.lt.s32.totalorder %s8, 3
    %p96 = pnand %p94, %p95
    %p97 = pneg %p96
    // Predicated region
    $region9: #{hierarchical_interview_scorer.40} parent=5 // pred_check
      _
    $region10: #{hierarchical_interview_scorer.40} parent=5 // pred_check_branch
      %99 = sbr.rel (%p96) target = $region12
    $region11: #{hierarchical_interview_scorer.40} parent=5 // pred_region
      %s100 = ssub.s32 %s8, 1
    $region12: #{hierarchical_interview_scorer.40} parent=5 // pred_fallthru
      _
    %p101 = scmp.lt.s32.totalorder %s8, 2
    // Predicated region
    $region13: #{hierarchical_interview_scorer.40} parent=5 // pred_check
      %p102 = pneg %p101
    $region14: #{hierarchical_interview_scorer.40} parent=5 // pred_check_branch
      %104 = sbr.rel (%p102) target = $region16
    $region15: #{hierarchical_interview_scorer.40} parent=5 // pred_region
      // Predicated region
      $region17: #{hierarchical_interview_scorer.40} parent=15 // pred_check
        %p105 = pneg %p28
      $region18: #{hierarchical_interview_scorer.40} parent=15 // pred_check_branch
        %107 = sbr.rel (%p105) target = $region20
      $region19: #{hierarchical_interview_scorer.40} parent=15 // pred_region
        %p108 = scmp.lt.s32.totalorder %s8, 1
        %s109 = scalar_select %p108, %s8, 1
        %s110 = smul.addr %s109, 2
        %s111 = smul.addr %s110, 2
        %s112 = scalar_lea.vmem %s0, %s111
      $region20: #{hierarchical_interview_scorer.40} parent=15 // pred_fallthru
        _
      // Predicated region
      $region21: #{hierarchical_interview_scorer.40} parent=15 // pred_check
        %p113 = pneg %p54
      $region22: #{hierarchical_interview_scorer.40} parent=15 // pred_check_branch
        %115 = sbr.rel (%p113) target = $region24
      $region23: #{hierarchical_interview_scorer.40} parent=15 // pred_region
        %p116 = scmp.lt.s32.totalorder %s8, 1
        %s117 = scalar_select %p116, %s8, 1
        %s118 = scalar_lea.vmem %s1, %s117
      $region24: #{hierarchical_interview_scorer.40} parent=15 // pred_fallthru
        _
    $region16: #{hierarchical_interview_scorer.40} parent=5 // pred_fallthru
      _
    %p119 = scmp.le.s32.totalorder 1, %s8
    %p120 = scmp.lt.s32.totalorder %s8, 3
    %p121 = pnand %p119, %p120
    %p122 = pneg %p121
    // Predicated region
    $region25: #{hierarchical_interview_scorer.40} parent=5 // pred_check
      _
    $region26: #{hierarchical_interview_scorer.40} parent=5 // pred_check_branch
      %124 = sbr.rel (%p121) target = $region28
    $region27: #{hierarchical_interview_scorer.40} parent=5 // pred_region
      %s125 = ssub.s32 %s8, 1
      %p126 = scmp.lt.s32.totalorder %s13, 1
      %s127 = scalar_select %p126, %s13, 1
      %s128 = smul.addr %s127, 2
      %s129 = smul.addr %s128, 2
      %s130 = scalar_lea.vmem %s0, %s129
      %p131 = pneg %p34
      %p132 = pneg %p31
      %p133 = scmp.lt.s32.totalorder %s13, 1
      %s134 = scalar_select %p133, %s13, 1
      %s135 = scalar_lea.vmem %s1, %s134
      %p136 = pneg %p60
      %p137 = pneg %p57
      %p138 = pneg %p86
      %p139 = pneg %p83
      %p140 = scmp.lt.s32.totalorder %s13, 1
      %s141 = scalar_select %p140, %s13, 1
      %s142 = smul.addr %s141, 2
      %s143 = scalar_lea.vmem %s2, %s142
      %p144 = scmp.lt.s32.totalorder %s13, 1
      %s145 = scalar_select %p144, %s13, 1
      %s146 = smul.addr %s145, 2
      %s147 = smul.addr %s146, 2
      %s148 = scalar_lea.vmem %s0, %s147
      %p149 = scmp.lt.s32.totalorder %s13, 1
      %s150 = scalar_select %p149, %s13, 1
      %s151 = scalar_lea.vmem %s1, %s150
      %p152 = scmp.lt.s32.totalorder %s13, 1
      %s153 = scalar_select %p152, %s13, 1
      %s154 = smul.addr %s153, 2
      %s155 = scalar_lea.vmem %s2, %s154
      %v157 = vld [vmem:[%s148] sm:$0xf]
      %v158 = vld [vmem:[%s151] sm:$0x1]
      %v160 = vperm.slane %v158, 0
      %163 = vst [vmem:[#allocation1] ss:$4 sm:$0xff] %v157
      %v164 = vld.sshfl [vmem:[#allocation1] sm:$0xff pattern:$0x73625140]
      %166 = vrot.lane.b32.xlu0 %v164, 64
      %v167 = vpop.permute.xlu0 %166
      %vm168 = vcmask 64512
      %v169 = vsel %vm168, %v157, 0
      %v172 = vsel %vm168, %v167, 0
      %174 = vmatpush.bf16.xpose.msra.mxu0 0
      %175 = vmatpush.bf16.xpose.msra.mxu0 0
      %176 = vmatpush.bf16.xpose.msra.mxu0 0
      %177 = vmatpush.bf16.xpose.msra.mxu0 0
      %178 = vmatpush.bf16.xpose.msra.mxu0 0
      %179 = vmatpush.bf16.xpose.msra.mxu0 0
      %180 = vmatpush.bf16.xpose.msra.mxu0 0
      %181 = vmatpush.bf16.xpose.msra.mxu0 %v172
      %182 = vmatmul.bf16.gmra.mxu0 %v169
      %v183 = vpop.f32.mrf.mxu0
      %v184 = vadd.f32 %v160, %v183
      %v185 = vpop.f32.mrf.mxu0
      %186 = vdwg.mxu0
      %vm187 = vcmask 27648
      %v188 = vsel %vm187, %v184, -inf
      %189 = vmax.xlane.f32.xlu0 %v188
      %v190 = vpop.xlane.xlu0 %189
      %v191 = vsub.f32 %v184, %v190
      %v192 = vmul.f32 %v191, 1.442695
      %v193 = vpow.pop %v192
      %v194 = vsel %vm187, %v193, 0.0
      %195 = vadd.xlane.f32.xlu0 %v194
      %v196 = vpop.xlane.xlu0 %195
      %v197 = vrcp.pop %v196
      %v198 = vmul.f32 %v193, %v197
      %v199 = vpack.c.bf16 %v198, %v198
      %200 = vst [vmem:[#allocation1] ss:$4 sm:$0xff] %v157
      %v201 = vld.sshfl [vmem:[#allocation1 + $0x8] sm:$0xff pattern:$0x73625140]
      %vm202 = vcmask 31744
      %v204 = vsel %vm202, %v199, 0
      %vm206 = vcmask 1041408
      %v207 = vsel %vm206, %v201, 0
      %209 = vmatpush.bf16.msra.mxu0 0
      %210 = vmatpush.bf16.msra.mxu0 0
      %211 = vmatpush.bf16.msra.mxu0 0
      %212 = vmatpush.bf16.msra.mxu0 0
      %213 = vmatpush.bf16.msra.mxu0 0
      %214 = vmatpush.bf16.msra.mxu0 0
      %215 = vmatpush.bf16.msra.mxu0 0
      %216 = vmatpush.bf16.msra.mxu0 %v207
      %217 = vmatmul.bf16.gmra.mxu0 %v204
      %v218 = vpop.f32.mrf.mxu0
      %v219 = vadd.f32 0.0, %v218
      %v220 = vpop.f32.mrf.mxu0
      %221 = vdwg.mxu0
      %v222 = vpack.c.bf16 %v219, %v219
      %vm223 = vcmask 58368
      %224 = vst.msk [vmem:[%s155] sm:$0x3] %vm223, %v222
      %225 = vst [vmem:[#allocation1] ss:$4 sm:$0xff] %v157
      %v226 = vld.sshfl [vmem:[#allocation1] sm:$0xff pattern:$0x73625140]
      %228 = vrot.lane.b32.xlu0 %v226, 120
      %v229 = vpop.permute.xlu0 %228
      %230 = vst [vmem:[#allocation1] ss:$4 sm:$0xff] %v157
      %v231 = vld.sshfl [vmem:[#allocation1] sm:$0xff pattern:$0x73625140]
      %233 = vrot.lane.b32.xlu0 %v231, 56
      %v234 = vpop.permute.xlu0 %233
      %v236 = vsel %vm168, %v229, 0
      %v239 = vsel %vm168, %v234, 0
      %241 = vmatpush.bf16.xpose.msra.mxu0 0
      %242 = vmatpush.bf16.xpose.msra.mxu0 0
      %243 = vmatpush.bf16.xpose.msra.mxu0 0
      %244 = vmatpush.bf16.xpose.msra.mxu0 0
      %245 = vmatpush.bf16.xpose.msra.mxu0 0
      %246 = vmatpush.bf16.xpose.msra.mxu0 0
      %247 = vmatpush.bf16.xpose.msra.mxu0 0
      %248 = vmatpush.bf16.xpose.msra.mxu0 %v239
      %249 = vmatmul.bf16.gmra.mxu0 %v236
      %v250 = vpop.f32.mrf.mxu0
      %v251 = vadd.f32 %v160, %v250
      %v252 = vpop.f32.mrf.mxu0
      %253 = vdwg.mxu0
      %v254 = vsel %vm187, %v251, -inf
      %255 = vmax.xlane.f32.xlu0 %v254
      %v256 = vpop.xlane.xlu0 %255
      %v257 = vsub.f32 %v251, %v256
      %v258 = vmul.f32 %v257, 1.442695
      %v259 = vpow.pop %v258
      %v260 = vsel %vm187, %v259, 0.0
      %261 = vadd.xlane.f32.xlu0 %v260
      %v262 = vpop.xlane.xlu0 %261
      %v263 = vrcp.pop %v262
      %v264 = vmul.f32 %v259, %v263
      %v265 = vpack.c.bf16 %v264, %v264
      %266 = vst [vmem:[#allocation1] ss:$4 sm:$0xff] %v157
      %v267 = vld.sshfl [vmem:[#allocation1 + $0x8] sm:$0xff pattern:$0x73625140]
      %269 = vrot.lane.b32.xlu0 %v267, 120
      %v270 = vpop.permute.xlu0 %269
      %v272 = vsel %vm202, %v265, 0
      %v275 = vsel %vm206, %v270, 0
      %277 = vmatpush.bf16.msra.mxu0 0
      %278 = vmatpush.bf16.msra.mxu0 0
      %279 = vmatpush.bf16.msra.mxu0 0
      %280 = vmatpush.bf16.msra.mxu0 0
      %281 = vmatpush.bf16.msra.mxu0 0
      %282 = vmatpush.bf16.msra.mxu0 0
      %283 = vmatpush.bf16.msra.mxu0 0
      %284 = vmatpush.bf16.msra.mxu0 %v275
      %285 = vmatmul.bf16.gmra.mxu0 %v272
      %v286 = vpop.f32.mrf.mxu0
      %v287 = vadd.f32 0.0, %v286
      %v288 = vpop.f32.mrf.mxu0
      %289 = vdwg.mxu0
      %v290 = vpack.c.bf16 %v287, %v287
      %v292 = vrot.slane %v290, 2
      %v295 = vsel %vm206, %v290, %v292
      %297 = vrot.lane.b32.xlu0 %v295, 8
      %v298 = vpop.permute.xlu0 %297
      %vm300 = vcmask 123968
      %301 = vst.msk [vmem:[%s155] sm:$0x3] %vm300, %v298
      %302 = vst [vmem:[#allocation1] ss:$4 sm:$0xff] %v157
      %v303 = vld.sshfl [vmem:[#allocation1] sm:$0xff pattern:$0x73625140]
      %305 = vrot.lane.b32.xlu0 %v303, 112
      %v306 = vpop.permute.xlu0 %305
      %307 = vst [vmem:[#allocation1] ss:$4 sm:$0xff] %v157
      %v308 = vld.sshfl [vmem:[#allocation1] sm:$0xff pattern:$0x73625140]
      %310 = vrot.lane.b32.xlu0 %v308, 48
      %v311 = vpop.permute.xlu0 %310
      %v313 = vsel %vm168, %v306, 0
      %v316 = vsel %vm168, %v311, 0
      %318 = vmatpush.bf16.xpose.msra.mxu0 0
      %319 = vmatpush.bf16.xpose.msra.mxu0 0
      %320 = vmatpush.bf16.xpose.msra.mxu0 0
      %321 = vmatpush.bf16.xpose.msra.mxu0 0
      %322 = vmatpush.bf16.xpose.msra.mxu0 0
      %323 = vmatpush.bf16.xpose.msra.mxu0 0
      %324 = vmatpush.bf16.xpose.msra.mxu0 0
      %325 = vmatpush.bf16.xpose.msra.mxu0 %v316
      %326 = vmatmul.bf16.gmra.mxu0 %v313
      %v327 = vpop.f32.mrf.mxu0
      %v328 = vadd.f32 %v160, %v327
      %v329 = vpop.f32.mrf.mxu0
      %330 = vdwg.mxu0
      %v331 = vsel %vm187, %v328, -inf
      %332 = vmax.xlane.f32.xlu0 %v331
      %v333 = vpop.xlane.xlu0 %332
      %v334 = vsub.f32 %v328, %v333
      %v335 = vmul.f32 %v334, 1.442695
      %v336 = vpow.pop %v335
      %v337 = vsel %vm187, %v336, 0.0
      %338 = vadd.xlane.f32.xlu0 %v337
      %v339 = vpop.xlane.xlu0 %338
      %v340 = vrcp.pop %v339
      %v341 = vmul.f32 %v336, %v340
      %v342 = vpack.c.bf16 %v341, %v341
      %343 = vst [vmem:[#allocation1] ss:$4 sm:$0xff] %v157
      %v344 = vld.sshfl [vmem:[#allocation1 + $0x8] sm:$0xff pattern:$0x73625140]
      %346 = vrot.lane.b32.xlu0 %v344, 112
      %v347 = vpop.permute.xlu0 %346
      %v349 = vsel %vm202, %v342, 0
      %v352 = vsel %vm206, %v347, 0
      %354 = vmatpush.bf16.msra.mxu0 0
      %355 = vmatpush.bf16.msra.mxu0 0
      %356 = vmatpush.bf16.msra.mxu0 0
      %357 = vmatpush.bf16.msra.mxu0 0
      %358 = vmatpush.bf16.msra.mxu0 0
      %359 = vmatpush.bf16.msra.mxu0 0
      %360 = vmatpush.bf16.msra.mxu0 0
      %361 = vmatpush.bf16.msra.mxu0 %v352
      %362 = vmatmul.bf16.gmra.mxu0 %v349
      %v363 = vpop.f32.mrf.mxu0
      %v364 = vadd.f32 0.0, %v363
      %v365 = vpop.f32.mrf.mxu0
      %366 = vdwg.mxu0
      %v367 = vpack.c.bf16 %v364, %v364
      %v369 = vrot.slane %v367, 2
      %v372 = vsel %vm206, %v367, %v369
      %374 = vrot.lane.b32.xlu0 %v372, 16
      %v375 = vpop.permute.xlu0 %374
      %vm377 = vcmask 189568
      %378 = vst.msk [vmem:[%s155] sm:$0x3] %vm377, %v375
      %379 = vst [vmem:[#allocation1] ss:$4 sm:$0xff] %v157
      %v380 = vld.sshfl [vmem:[#allocation1] sm:$0xff pattern:$0x73625140]
      %382 = vrot.lane.b32.xlu0 %v380, 104
      %v383 = vpop.permute.xlu0 %382
      %384 = vst [vmem:[#allocation1] ss:$4 sm:$0xff] %v157
      %v385 = vld.sshfl [vmem:[#allocation1] sm:$0xff pattern:$0x73625140]
      %387 = vrot.lane.b32.xlu0 %v385, 40
      %v388 = vpop.permute.xlu0 %387
      %v390 = vsel %vm168, %v383, 0
      %v393 = vsel %vm168, %v388, 0
      %395 = vmatpush.bf16.xpose.msra.mxu0 0
      %396 = vmatpush.bf16.xpose.msra.mxu0 0
      %397 = vmatpush.bf16.xpose.msra.mxu0 0
      %398 = vmatpush.bf16.xpose.msra.mxu0 0
      %399 = vmatpush.bf16.xpose.msra.mxu0 0
      %400 = vmatpush.bf16.xpose.msra.mxu0 0
      %401 = vmatpush.bf16.xpose.msra.mxu0 0
      %402 = vmatpush.bf16.xpose.msra.mxu0 %v393
      %403 = vmatmul.bf16.gmra.mxu0 %v390
      %v404 = vpop.f32.mrf.mxu0
      %v405 = vadd.f32 %v160, %v404
      %v406 = vpop.f32.mrf.mxu0
      %407 = vdwg.mxu0
      %v408 = vsel %vm187, %v405, -inf
      %409 = vmax.xlane.f32.xlu0 %v408
      %v410 = vpop.xlane.xlu0 %409
      %v411 = vsub.f32 %v405, %v410
      %v412 = vmul.f32 %v411, 1.442695
      %v413 = vpow.pop %v412
      %v414 = vsel %vm187, %v413, 0.0
      %415 = vadd.xlane.f32.xlu0 %v414
      %v416 = vpop.xlane.xlu0 %415
      %v417 = vrcp.pop %v416
      %v418 = vmul.f32 %v413, %v417
      %v419 = vpack.c.bf16 %v418, %v418
      %420 = vst [vmem:[#allocation1] ss:$4 sm:$0xff] %v157
      %v421 = vld.sshfl [vmem:[#allocation1 + $0x8] sm:$0xff pattern:$0x73625140]
      %423 = vrot.lane.b32.xlu0 %v421, 104
      %v424 = vpop.permute.xlu0 %423
      %v426 = vsel %vm202, %v419, 0
      %v429 = vsel %vm206, %v424, 0
      %431 = vmatpush.bf16.msra.mxu0 0
      %432 = vmatpush.bf16.msra.mxu0 0
      %433 = vmatpush.bf16.msra.mxu0 0
      %434 = vmatpush.bf16.msra.mxu0 0
      %435 = vmatpush.bf16.msra.mxu0 0
      %436 = vmatpush.bf16.msra.mxu0 0
      %437 = vmatpush.bf16.msra.mxu0 0
      %438 = vmatpush.bf16.msra.mxu0 %v429
      %439 = vmatmul.bf16.gmra.mxu0 %v426
      %v440 = vpop.f32.mrf.mxu0
      %v441 = vadd.f32 0.0, %v440
      %v442 = vpop.f32.mrf.mxu0
      %443 = vdwg.mxu0
      %v444 = vpack.c.bf16 %v441, %v441
      %v446 = vrot.slane %v444, 2
      %v449 = vsel %vm206, %v444, %v446
      %451 = vrot.lane.b32.xlu0 %v449, 24
      %v452 = vpop.permute.xlu0 %451
      %vm454 = vcmask 255168
      %455 = vst.msk [vmem:[%s155] sm:$0x3] %vm454, %v452
      %456 = vst [vmem:[#allocation1] ss:$4 sm:$0xff] %v157
      %v457 = vld.sshfl [vmem:[#allocation1] sm:$0xff pattern:$0x73625140]
      %459 = vrot.lane.b32.xlu0 %v457, 96
      %v460 = vpop.permute.xlu0 %459
      %461 = vst [vmem:[#allocation1] ss:$4 sm:$0xff] %v157
      %v462 = vld.sshfl [vmem:[#allocation1] sm:$0xff pattern:$0x73625140]
      %464 = vrot.lane.b32.xlu0 %v462, 32
      %v465 = vpop.permute.xlu0 %464
      %v467 = vsel %vm168, %v460, 0
      %v470 = vsel %vm168, %v465, 0
      %472 = vmatpush.bf16.xpose.msra.mxu0 0
      %473 = vmatpush.bf16.xpose.msra.mxu0 0
      %474 = vmatpush.bf16.xpose.msra.mxu0 0
      %475 = vmatpush.bf16.xpose.msra.mxu0 0
      %476 = vmatpush.bf16.xpose.msra.mxu0 0
      %477 = vmatpush.bf16.xpose.msra.mxu0 0
      %478 = vmatpush.bf16.xpose.msra.mxu0 0
      %479 = vmatpush.bf16.xpose.msra.mxu0 %v470
      %480 = vmatmul.bf16.gmra.mxu0 %v467
      %v481 = vpop.f32.mrf.mxu0
      %v482 = vadd.f32 %v160, %v481
      %v483 = vpop.f32.mrf.mxu0
      %484 = vdwg.mxu0
      %v485 = vsel %vm187, %v482, -inf
      %486 = vmax.xlane.f32.xlu0 %v485
      %v487 = vpop.xlane.xlu0 %486
      %v488 = vsub.f32 %v482, %v487
      %v489 = vmul.f32 %v488, 1.442695
      %v490 = vpow.pop %v489
      %v491 = vsel %vm187, %v490, 0.0
      %492 = vadd.xlane.f32.xlu0 %v491
      %v493 = vpop.xlane.xlu0 %492
      %v494 = vrcp.pop %v493
      %v495 = vmul.f32 %v490, %v494
      %v496 = vpack.c.bf16 %v495, %v495
      %497 = vst [vmem:[#allocation1] ss:$4 sm:$0xff] %v157
      %v498 = vld.sshfl [vmem:[#allocation1 + $0x8] sm:$0xff pattern:$0x73625140]
      %500 = vrot.lane.b32.xlu0 %v498, 96
      %v501 = vpop.permute.xlu0 %500
      %v503 = vsel %vm202, %v496, 0
      %v506 = vsel %vm206, %v501, 0
      %508 = vmatpush.bf16.msra.mxu0 0
      %509 = vmatpush.bf16.msra.mxu0 0
      %510 = vmatpush.bf16.msra.mxu0 0
      %511 = vmatpush.bf16.msra.mxu0 0
      %512 = vmatpush.bf16.msra.mxu0 0
      %513 = vmatpush.bf16.msra.mxu0 0
      %514 = vmatpush.bf16.msra.mxu0 0
      %515 = vmatpush.bf16.msra.mxu0 %v506
      %516 = vmatmul.bf16.gmra.mxu0 %v503
      %v517 = vpop.f32.mrf.mxu0
      %v518 = vadd.f32 0.0, %v517
      %v519 = vpop.f32.mrf.mxu0
      %520 = vdwg.mxu0
      %v521 = vpack.c.bf16 %v518, %v518
      %v523 = vrot.slane %v521, 2
      %v526 = vsel %vm206, %v521, %v523
      %528 = vrot.lane.b32.xlu0 %v526, 32
      %v529 = vpop.permute.xlu0 %528
      %vm531 = vcmask 320768
      %532 = vst.msk [vmem:[%s155] sm:$0x3] %vm531, %v529
      %533 = vst [vmem:[#allocation1] ss:$4 sm:$0xff] %v157
      %v534 = vld.sshfl [vmem:[#allocation1] sm:$0xff pattern:$0x73625140]
      %536 = vrot.lane.b32.xlu0 %v534, 88
      %v537 = vpop.permute.xlu0 %536
      %538 = vst [vmem:[#allocation1] ss:$4 sm:$0xff] %v157
      %v539 = vld.sshfl [vmem:[#allocation1] sm:$0xff pattern:$0x73625140]
      %541 = vrot.lane.b32.xlu0 %v539, 24
      %v542 = vpop.permute.xlu0 %541
      %v544 = vsel %vm168, %v537, 0
      %v547 = vsel %vm168, %v542, 0
      %549 = vmatpush.bf16.xpose.msra.mxu0 0
      %550 = vmatpush.bf16.xpose.msra.mxu0 0
      %551 = vmatpush.bf16.xpose.msra.mxu0 0
      %552 = vmatpush.bf16.xpose.msra.mxu0 0
      %553 = vmatpush.bf16.xpose.msra.mxu0 0
      %554 = vmatpush.bf16.xpose.msra.mxu0 0
      %555 = vmatpush.bf16.xpose.msra.mxu0 0
      %556 = vmatpush.bf16.xpose.msra.mxu0 %v547
      %557 = vmatmul.bf16.gmra.mxu0 %v544
      %v558 = vpop.f32.mrf.mxu0
      %v559 = vadd.f32 %v160, %v558
      %v560 = vpop.f32.mrf.mxu0
      %561 = vdwg.mxu0
      %v562 = vsel %vm187, %v559, -inf
      %563 = vmax.xlane.f32.xlu0 %v562
      %v564 = vpop.xlane.xlu0 %563
      %v565 = vsub.f32 %v559, %v564
      %v566 = vmul.f32 %v565, 1.442695
      %v567 = vpow.pop %v566
      %v568 = vsel %vm187, %v567, 0.0
      %569 = vadd.xlane.f32.xlu0 %v568
      %v570 = vpop.xlane.xlu0 %569
      %v571 = vrcp.pop %v570
      %v572 = vmul.f32 %v567, %v571
      %v573 = vpack.c.bf16 %v572, %v572
      %574 = vst [vmem:[#allocation1] ss:$4 sm:$0xff] %v157
      %v575 = vld.sshfl [vmem:[#allocation1 + $0x8] sm:$0xff pattern:$0x73625140]
      %577 = vrot.lane.b32.xlu0 %v575, 88
      %v578 = vpop.permute.xlu0 %577
      %v580 = vsel %vm202, %v573, 0
      %v583 = vsel %vm206, %v578, 0
      %585 = vmatpush.bf16.msra.mxu0 0
      %586 = vmatpush.bf16.msra.mxu0 0
      %587 = vmatpush.bf16.msra.mxu0 0
      %588 = vmatpush.bf16.msra.mxu0 0
      %589 = vmatpush.bf16.msra.mxu0 0
      %590 = vmatpush.bf16.msra.mxu0 0
      %591 = vmatpush.bf16.msra.mxu0 0
      %592 = vmatpush.bf16.msra.mxu0 %v583
      %593 = vmatmul.bf16.gmra.mxu0 %v580
      %v594 = vpop.f32.mrf.mxu0
      %v595 = vadd.f32 0.0, %v594
      %v596 = vpop.f32.mrf.mxu0
      %597 = vdwg.mxu0
      %v598 = vpack.c.bf16 %v595, %v595
      %v600 = vrot.slane %v598, 2
      %v603 = vsel %vm206, %v598, %v600
      %605 = vrot.lane.b32.xlu0 %v603, 40
      %v606 = vpop.permute.xlu0 %605
      %vm608 = vcmask 386368
      %609 = vst.msk [vmem:[%s155] sm:$0x3] %vm608, %v606
      %610 = vst [vmem:[#allocation1] ss:$4 sm:$0xff] %v157
      %v611 = vld.sshfl [vmem:[#allocation1] sm:$0xff pattern:$0x73625140]
      %613 = vrot.lane.b32.xlu0 %v611, 80
      %v614 = vpop.permute.xlu0 %613
      %615 = vst [vmem:[#allocation1] ss:$4 sm:$0xff] %v157
      %v616 = vld.sshfl [vmem:[#allocation1] sm:$0xff pattern:$0x73625140]
      %618 = vrot.lane.b32.xlu0 %v616, 16
      %v619 = vpop.permute.xlu0 %618
      %v621 = vsel %vm168, %v614, 0
      %v624 = vsel %vm168, %v619, 0
      %626 = vmatpush.bf16.xpose.msra.mxu0 0
      %627 = vmatpush.bf16.xpose.msra.mxu0 0
      %628 = vmatpush.bf16.xpose.msra.mxu0 0
      %629 = vmatpush.bf16.xpose.msra.mxu0 0
      %630 = vmatpush.bf16.xpose.msra.mxu0 0
      %631 = vmatpush.bf16.xpose.msra.mxu0 0
      %632 = vmatpush.bf16.xpose.msra.mxu0 0
      %633 = vmatpush.bf16.xpose.msra.mxu0 %v624
      %634 = vmatmul.bf16.gmra.mxu0 %v621
      %v635 = vpop.f32.mrf.mxu0
      %v636 = vadd.f32 %v160, %v635
      %v637 = vpop.f32.mrf.mxu0
      %638 = vdwg.mxu0
      %v639 = vsel %vm187, %v636, -inf
      %640 = vmax.xlane.f32.xlu0 %v639
      %v641 = vpop.xlane.xlu0 %640
      %v642 = vsub.f32 %v636, %v641
      %v643 = vmul.f32 %v642, 1.442695
      %v644 = vpow.pop %v643
      %v645 = vsel %vm187, %v644, 0.0
      %646 = vadd.xlane.f32.xlu0 %v645
      %v647 = vpop.xlane.xlu0 %646
      %v648 = vrcp.pop %v647
      %v649 = vmul.f32 %v644, %v648
      %v650 = vpack.c.bf16 %v649, %v649
      %651 = vst [vmem:[#allocation1] ss:$4 sm:$0xff] %v157
      %v652 = vld.sshfl [vmem:[#allocation1 + $0x8] sm:$0xff pattern:$0x73625140]
      %654 = vrot.lane.b32.xlu0 %v652, 80
      %v655 = vpop.permute.xlu0 %654
      %v657 = vsel %vm202, %v650, 0
      %v660 = vsel %vm206, %v655, 0
      %662 = vmatpush.bf16.msra.mxu0 0
      %663 = vmatpush.bf16.msra.mxu0 0
      %664 = vmatpush.bf16.msra.mxu0 0
      %665 = vmatpush.bf16.msra.mxu0 0
      %666 = vmatpush.bf16.msra.mxu0 0
      %667 = vmatpush.bf16.msra.mxu0 0
      %668 = vmatpush.bf16.msra.mxu0 0
      %669 = vmatpush.bf16.msra.mxu0 %v660
      %670 = vmatmul.bf16.gmra.mxu0 %v657
      %v671 = vpop.f32.mrf.mxu0
      %v672 = vadd.f32 0.0, %v671
      %v673 = vpop.f32.mrf.mxu0
      %674 = vdwg.mxu0
      %v675 = vpack.c.bf16 %v672, %v672
      %v677 = vrot.slane %v675, 2
      %v680 = vsel %vm206, %v675, %v677
      %682 = vrot.lane.b32.xlu0 %v680, 48
      %v683 = vpop.permute.xlu0 %682
      %vm685 = vcmask 451968
      %686 = vst.msk [vmem:[%s155] sm:$0x3] %vm685, %v683
      %687 = vst [vmem:[#allocation1] ss:$4 sm:$0xff] %v157
      %v688 = vld.sshfl [vmem:[#allocation1] sm:$0xff pattern:$0x73625140]
      %690 = vrot.lane.b32.xlu0 %v688, 72
      %v691 = vpop.permute.xlu0 %690
      %692 = vst [vmem:[#allocation1] ss:$4 sm:$0xff] %v157
      %v693 = vld.sshfl [vmem:[#allocation1] sm:$0xff pattern:$0x73625140]
      %695 = vrot.lane.b32.xlu0 %v693, 8
      %v696 = vpop.permute.xlu0 %695
      %v698 = vsel %vm168, %v691, 0
      %v701 = vsel %vm168, %v696, 0
      %703 = vmatpush.bf16.xpose.msra.mxu0 0
      %704 = vmatpush.bf16.xpose.msra.mxu0 0
      %705 = vmatpush.bf16.xpose.msra.mxu0 0
      %706 = vmatpush.bf16.xpose.msra.mxu0 0
      %707 = vmatpush.bf16.xpose.msra.mxu0 0
      %708 = vmatpush.bf16.xpose.msra.mxu0 0
      %709 = vmatpush.bf16.xpose.msra.mxu0 0
      %710 = vmatpush.bf16.xpose.msra.mxu0 %v701
      %711 = vmatmul.bf16.gmra.mxu0 %v698
      %v712 = vpop.f32.mrf.mxu0
      %v713 = vadd.f32 %v160, %v712
      %v714 = vpop.f32.mrf.mxu0
      %715 = vdwg.mxu0
      %v716 = vsel %vm187, %v713, -inf
      %717 = vmax.xlane.f32.xlu0 %v716
      %v718 = vpop.xlane.xlu0 %717
      %v719 = vsub.f32 %v713, %v718
      %v720 = vmul.f32 %v719, 1.442695
      %v721 = vpow.pop %v720
      %v722 = vsel %vm187, %v721, 0.0
      %723 = vadd.xlane.f32.xlu0 %v722
      %v724 = vpop.xlane.xlu0 %723
      %v725 = vrcp.pop %v724
      %v726 = vmul.f32 %v721, %v725
      %v727 = vpack.c.bf16 %v726, %v726
      %728 = vst [vmem:[#allocation1] ss:$4 sm:$0xff] %v157
      %v729 = vld.sshfl [vmem:[#allocation1 + $0x8] sm:$0xff pattern:$0x73625140]
      %731 = vrot.lane.b32.xlu0 %v729, 72
      %v732 = vpop.permute.xlu0 %731
      %v734 = vsel %vm202, %v727, 0
      %v737 = vsel %vm206, %v732, 0
      %739 = vmatpush.bf16.msra.mxu0 0
      %740 = vmatpush.bf16.msra.mxu0 0
      %741 = vmatpush.bf16.msra.mxu0 0
      %742 = vmatpush.bf16.msra.mxu0 0
      %743 = vmatpush.bf16.msra.mxu0 0
      %744 = vmatpush.bf16.msra.mxu0 0
      %745 = vmatpush.bf16.msra.mxu0 0
      %746 = vmatpush.bf16.msra.mxu0 %v737
      %747 = vmatmul.bf16.gmra.mxu0 %v734
      %v748 = vpop.f32.mrf.mxu0
      %v749 = vadd.f32 0.0, %v748
      %v750 = vpop.f32.mrf.mxu0
      %751 = vdwg.mxu0
      %v752 = vpack.c.bf16 %v749, %v749
      %v754 = vrot.slane %v752, 2
      %v757 = vsel %vm206, %v752, %v754
      %759 = vrot.lane.b32.xlu0 %v757, 56
      %v760 = vpop.permute.xlu0 %759
      %vm762 = vcmask 517568
      %763 = vst.msk [vmem:[%s155] sm:$0x3] %vm762, %v760
      %p764 = scmp.lt.s32.totalorder %s13, 1
      %s765 = scalar_select %p764, %s13, 1
      %s766 = smul.addr %s765, 2
      %s767 = scalar_lea.vmem %s2, %s766
      // Predicated region
      $region29: #{hierarchical_interview_scorer.40} parent=27 // pred_check
        %p768 = pneg %p83
      $region30: #{hierarchical_interview_scorer.40} parent=27 // pred_check_branch
        %770 = sbr.rel (%p768) target = $region32
      $region31: #{hierarchical_interview_scorer.40} parent=27 // pred_region
        _
      $region32: #{hierarchical_interview_scorer.40} parent=27 // pred_fallthru
        _
    $region28: #{hierarchical_interview_scorer.40} parent=5 // pred_fallthru
      _
    %p771 = scmp.le.s32.totalorder 2, %s8
    // Predicated region
    $region33: #{hierarchical_interview_scorer.40} parent=5 // pred_check
      %p772 = pneg %p771
    $region34: #{hierarchical_interview_scorer.40} parent=5 // pred_check_branch
      %774 = sbr.rel (%p772) target = $region36
    $region35: #{hierarchical_interview_scorer.40} parent=5 // pred_region
      %s775 = ssub.s32 %s8, 2
      // Predicated region
      $region37: #{hierarchical_interview_scorer.40} parent=35 // pred_check
        %p776 = pneg %p89
      $region38: #{hierarchical_interview_scorer.40} parent=35 // pred_check_branch
        %778 = sbr.rel (%p776) target = $region40
      $region39: #{hierarchical_interview_scorer.40} parent=35 // pred_region
        %p779 = scmp.lt.s32.totalorder %s14, 1
        %s780 = scalar_select %p779, %s14, 1
        %s781 = smul.addr %s780, 2
        %s782 = scalar_lea.vmem %s2, %s781
      $region40: #{hierarchical_interview_scorer.40} parent=35 // pred_fallthru
        _
    $region36: #{hierarchical_interview_scorer.40} parent=5 // pred_fallthru
      _
  $region6: #{hierarchical_interview_scorer.40} parent=0 // loop_footer
    %s12 = sadd.s32 1, %s8
  $region7: #{hierarchical_interview_scorer.40} parent=0 // loop_footer_branch
    %7 = sbr.rel target = $region3
  $region8: #{hierarchical_interview_scorer.40} parent=0 // loop_exit
    _

// kernel: hierarchical_interview_scorer.44
$region0: #{hierarchical_interview_scorer.44}
  #allocation0 [shape = 'u32[]', space=smem, size = 0x4, offset = 0x4, fixed_abs, tag = 'smem constant byte address 0x4 - core index']
  #allocation1 [shape = 'u32[72,128]{1,0:T(1,128)}', space=vmem, size = 0x9000, scoped, tag = 'internal scratch']
  %s0 = inlined_call_operand.vmem [shape: bf16[8,64], index: 0, kind: input, shape index: {}]
  %s1 = inlined_call_operand.vmem [shape: bf16[8,64], index: 1, kind: input, shape index: {}]
  %s2 = inlined_call_operand.hbm [shape: f32[1,64], index: 2, kind: input, shape index: {}]
  %s3 = inlined_call_operand.hbm [shape: f32[1,64], index: 3, kind: input, shape index: {}]
  %s4 = inlined_call_operand.vmem [shape: bf16[8,64], index: 4, kind: output, shape index: {}]
  %s5 = sld [smem:[#allocation0]]
  $region34: #{hierarchical_interview_scorer.44} parent=0
    _
  %s7 = ssub.s32 1, %s5
  %s8 = scalar_select 0, %s7, %s5
  $region1: #{hierarchical_interview_scorer.44} parent=0
    #allocation2 [shape = 'u8[512]{0}', space=vmem, size = 0x400, scoped, tag = 'input window, operand 2, single buffered']
    #allocation3 [shape = 's32[1]{0}', space=sflag, size = 0x4, scoped, tag = 'scoped memory for hierarchical_interview_scorer.44']
    #allocation4 [shape = 'u8[512]{0}', space=vmem, size = 0x400, scoped, tag = 'input window, operand 3, single buffered']
    #allocation5 [shape = 's32[1]{0}', space=sflag, size = 0x4, scoped, tag = 'scoped memory for hierarchical_interview_scorer.44']
    %9 = vsyncpa [#allocation3], 0
    %10 = vsyncpa [#allocation5], 0
    // Predicated region
    $region2: #{hierarchical_interview_scorer.44} parent=1 // pred_check
      _
    $region3: #{hierarchical_interview_scorer.44} parent=1 // pred_check_branch
      %12 = sbr.rel (0) target = $region5
    $region4: #{hierarchical_interview_scorer.44} parent=1 // pred_region
      _
    $region5: #{hierarchical_interview_scorer.44} parent=1 // pred_fallthru
      _
    // Predicated region
    $region6: #{hierarchical_interview_scorer.44} parent=1 // pred_check
      _
    $region7: #{hierarchical_interview_scorer.44} parent=1 // pred_check_branch
      %14 = sbr.rel (0) target = $region9
    $region8: #{hierarchical_interview_scorer.44} parent=1 // pred_region
      _
    $region9: #{hierarchical_interview_scorer.44} parent=1 // pred_fallthru
      _
    // Predicated region
    $region10: #{hierarchical_interview_scorer.44} parent=1 // pred_check
      _
    $region11: #{hierarchical_interview_scorer.44} parent=1 // pred_check_branch
      %16 = sbr.rel (0) target = $region13
    $region12: #{hierarchical_interview_scorer.44} parent=1 // pred_region
      %18 = vsyncadd [#allocation3], 0
      %s20 = sshll.u32 %s2, 4
      %s21 = int_to_ptr.hbm [resolvable:$true] %s20
      %s22 = sshll.u32 [#allocation2], 4
      %s23 = int_to_ptr.vmem [resolvable:$true] %s22
      %25 = dma.hbm_to_vmem [thread:$0]  %s21, 16, %s23, [#allocation3]
    $region13: #{hierarchical_interview_scorer.44} parent=1 // pred_fallthru
      _
    // Predicated region
    $region14: #{hierarchical_interview_scorer.44} parent=1 // pred_check
      _
    $region15: #{hierarchical_interview_scorer.44} parent=1 // pred_check_branch
      %27 = sbr.rel (0) target = $region17
    $region16: #{hierarchical_interview_scorer.44} parent=1 // pred_region
      %29 = vsyncadd [#allocation5], 0
      %s31 = sshll.u32 %s3, 4
      %s32 = int_to_ptr.hbm [resolvable:$true] %s31
      %s33 = sshll.u32 [#allocation4], 4
      %s34 = int_to_ptr.vmem [resolvable:$true] %s33
      %36 = dma.hbm_to_vmem [thread:$0]  %s32, 16, %s34, [#allocation5]
    $region17: #{hierarchical_interview_scorer.44} parent=1 // pred_fallthru
      _
    // Predicated region
    $region18: #{hierarchical_interview_scorer.44} parent=1 // pred_check
      _
    $region19: #{hierarchical_interview_scorer.44} parent=1 // pred_check_branch
      %38 = sbr.rel (0) target = $region21
    $region20: #{hierarchical_interview_scorer.44} parent=1 // pred_region
      %40 = dma.done [#allocation3], 16
    $region21: #{hierarchical_interview_scorer.44} parent=1 // pred_fallthru
      _
    // Predicated region
    $region22: #{hierarchical_interview_scorer.44} parent=1 // pred_check
      _
    $region23: #{hierarchical_interview_scorer.44} parent=1 // pred_check_branch
      %42 = sbr.rel (0) target = $region25
    $region24: #{hierarchical_interview_scorer.44} parent=1 // pred_region
      %44 = dma.done [#allocation5], 16
    $region25: #{hierarchical_interview_scorer.44} parent=1 // pred_fallthru
      _
    %v45 = vld [vmem:[%s0] sm:$0xf]
    %v46 = vunpack.c.l.bf16 %v45
    %v47 = vld [vmem:[%s1] sm:$0xf]
    %v48 = vunpack.c.l.bf16 %v47
    %v49 = vadd.f32 %v46, %v48
    %vm50 = vcmask 523264
    %v51 = vsel %vm50, %v49, 0.0
    %52 = vadd.xlane.f32.xlu0 %v51
    %v53 = vpop.xlane.xlu0 %52
    %v54 = vrcp.pop 64.0
    %v55 = vmul.f32 64.0, %v54
    %v56 = vsub.f32 1.0, %v55
    %v57 = vmul.f32 %v54, %v56
    %v58 = vadd.f32 %v54, %v57
    %vm59 = vweird.f32 %v54
    %v60 = vsel %vm59, %v54, %v58
    %v61 = vmul.f32 %v53, %v60
    %v62 = vsub.f32 %v49, %v61
    %v63 = vmul.f32 %v62, %v62
    %v64 = vsel %vm50, %v63, 0.0
    %65 = vadd.xlane.f32.xlu0 %v64
    %v66 = vpop.xlane.xlu0 %65
    %v67 = vmul.f32 %v66, %v60
    %v68 = vadd.f32 %v67, 1e-05
    %v69 = vrsqrt.pop %v68
    %v70 = vmul.f32 %v69, %v68
    %v71 = vmul.f32 %v70, %v69
    %v72 = vmul.f32 0.5, %v71
    %v73 = vsub.f32 1.5, %v72
    %v74 = vmul.f32 %v69, %v73
    %vm75 = vweird.f32 %v68
    %vm76 = vweird.f32 %v69
    %vm77 = vmor %vm75, %vm76
    %v78 = vsel %vm77, %v69, %v74
    %v79 = vmul.f32 %v62, %v78
    %v80 = vld [vmem:[#allocation2] sm:$0x1]
    %v82 = vperm.slane %v80, 0
    %v84 = vmul.f32 %v79, %v82
    %v85 = vld [vmem:[#allocation4] sm:$0x1]
    %v87 = vperm.slane %v85, 0
    %v89 = vadd.f32 %v84, %v87
    %v90 = vpack.c.bf16 %v89, %v89
    %vm91 = vcmask 519168
    %92 = vst.msk [vmem:[%s4] sm:$0xf] %vm91, %v90
    // Predicated region
    $region26: #{hierarchical_interview_scorer.44} parent=1 // pred_check
      _
    $region27: #{hierarchical_interview_scorer.44} parent=1 // pred_check_branch
      %94 = sbr.rel (0) target = $region29
    $region28: #{hierarchical_interview_scorer.44} parent=1 // pred_region
      _
    $region29: #{hierarchical_interview_scorer.44} parent=1 // pred_fallthru
      _
    // Predicated region
    $region30: #{hierarchical_interview_scorer.44} parent=1 // pred_check
      _
    $region31: #{hierarchical_interview_scorer.44} parent=1 // pred_check_branch
      %96 = sbr.rel (0) target = $region33
    $region32: #{hierarchical_interview_scorer.44} parent=1 // pred_region
      _
    $region33: #{hierarchical_interview_scorer.44} parent=1 // pred_fallthru
      _
    %97 = vsyncpa [#allocation3], 1
    %98 = vsyncpa [#allocation5], 1

// kernel: hierarchical_interview_scorer.43
$region0: #{hierarchical_interview_scorer.43}
  #allocation0 [shape = 'u32[]', space=smem, size = 0x4, offset = 0x4, fixed_abs, tag = 'smem constant byte address 0x4 - core index']
  #allocation1 [shape = 'u32[72,128]{1,0:T(1,128)}', space=vmem, size = 0x9000, scoped, tag = 'internal scratch']
  #allocation2 [shape = 'f32[8,64]{1,0:T(8,128)}', space=vmem, size = 0x1000, scoped, tag = 'scratch operand']
  %s0 = inlined_call_operand.vmem [shape: bf16[8,64], index: 0, kind: input, shape index: {}]
  %s1 = inlined_call_operand.vmem [shape: bf16[64,128], index: 1, kind: input, shape index: {}]
  %s2 = inlined_call_operand.vmem [shape: f32[1,128], index: 2, kind: input, shape index: {}]
  %s3 = inlined_call_operand.vmem [shape: bf16[128,64], index: 3, kind: input, shape index: {}]
  %s4 = inlined_call_operand.vmem [shape: f32[1,64], index: 4, kind: input, shape index: {}]
  %s5 = inlined_call_operand.vmem [shape: bf16[8,64], index: 5, kind: output, shape index: {}]
  %s6 = sld [smem:[#allocation0]]
  $region38: #{hierarchical_interview_scorer.43} parent=0
    _
  %s8 = ssub.s32 1, %s6
  %s9 = scalar_select 0, %s8, %s6
  // Predicated region
  $region2: #{hierarchical_interview_scorer.43} parent=0 // pred_check
    _
  $region3: #{hierarchical_interview_scorer.43} parent=0 // pred_check_branch
    %11 = sbr.rel (0) target = $region5
  $region4: #{hierarchical_interview_scorer.43} parent=0 // pred_region
    _
  $region5: #{hierarchical_interview_scorer.43} parent=0 // pred_fallthru
    _
  // Predicated region
  $region6: #{hierarchical_interview_scorer.43} parent=0 // pred_check
    _
  $region7: #{hierarchical_interview_scorer.43} parent=0 // pred_check_branch
    %13 = sbr.rel (0) target = $region9
  $region8: #{hierarchical_interview_scorer.43} parent=0 // pred_region
    _
  $region9: #{hierarchical_interview_scorer.43} parent=0 // pred_fallthru
    _
  // Predicated region
  $region10: #{hierarchical_interview_scorer.43} parent=0 // pred_check
    _
  $region11: #{hierarchical_interview_scorer.43} parent=0 // pred_check_branch
    %15 = sbr.rel (0) target = $region13
  $region12: #{hierarchical_interview_scorer.43} parent=0 // pred_region
    _
  $region13: #{hierarchical_interview_scorer.43} parent=0 // pred_fallthru
    _
  // Predicated region
  $region14: #{hierarchical_interview_scorer.43} parent=0 // pred_check
    _
  $region15: #{hierarchical_interview_scorer.43} parent=0 // pred_check_branch
    %17 = sbr.rel (0) target = $region17
  $region16: #{hierarchical_interview_scorer.43} parent=0 // pred_region
    _
  $region17: #{hierarchical_interview_scorer.43} parent=0 // pred_fallthru
    _
  // Predicated region
  $region18: #{hierarchical_interview_scorer.43} parent=0 // pred_check
    _
  $region19: #{hierarchical_interview_scorer.43} parent=0 // pred_check_branch
    %19 = sbr.rel (0) target = $region21
  $region20: #{hierarchical_interview_scorer.43} parent=0 // pred_region
    _
  $region21: #{hierarchical_interview_scorer.43} parent=0 // pred_fallthru
    _
  %p21 = scmp.eq.s32.totalorder 0, 0
  // Predicated region
  $region22: #{hierarchical_interview_scorer.43} parent=0 // pred_check
    %p22 = pneg %p21
  $region23: #{hierarchical_interview_scorer.43} parent=0 // pred_check_branch
    %24 = sbr.rel (%p22) target = $region25
  $region24: #{hierarchical_interview_scorer.43} parent=0 // pred_region
    %vm25 = vcmask 523264
    %26 = vst.msk [vmem:[#allocation2] sm:$0xff] %vm25, 0.0
  $region25: #{hierarchical_interview_scorer.43} parent=0 // pred_fallthru
    _
  %v27 = vld [vmem:[%s0] sm:$0xf]
  %v28 = vld [vmem:[%s1] sm:$0xf]
  %v29 = vld [vmem:[%s1 + $0x4] sm:$0xf]
  %v30 = vld [vmem:[%s1 + $0x8] sm:$0xf]
  %v31 = vld [vmem:[%s1 + $0xc] sm:$0xf]
  %v32 = vld [vmem:[%s1 + $0x10] sm:$0xf]
  %v33 = vld [vmem:[%s1 + $0x14] sm:$0xf]
  %v34 = vld [vmem:[%s1 + $0x18] sm:$0xf]
  %v35 = vld [vmem:[%s1 + $0x1c] sm:$0xf]
  %v36 = vld [vmem:[%s2] sm:$0x1]
  %v38 = vperm.slane %v36, 0
  %v48 = vunpack.c.l.b16 %v28
  %v49 = vunpack.c.l.b16 %v29
  %v50 = vunpack.c.l.b16 %v30
  %v51 = vunpack.c.l.b16 %v31
  %v52 = vunpack.c.l.b16 %v32
  %v53 = vunpack.c.l.b16 %v33
  %v54 = vunpack.c.l.b16 %v34
  %v55 = vunpack.c.l.b16 %v35
  %v56 = vpack.c.b16 %v49, %v48
  %v57 = vpack.c.b16 %v51, %v50
  %v58 = vpack.c.b16 %v53, %v52
  %v59 = vpack.c.b16 %v55, %v54
  %vm64 = vcmask 523264
  %v66 = vsel %vm64, %v27, 0
  %68 = vmatpush.bf16.msra.mxu0 0
  %69 = vmatpush.bf16.msra.mxu0 0
  %70 = vmatpush.bf16.msra.mxu0 0
  %71 = vmatpush.bf16.msra.mxu0 0
  %72 = vmatpush.bf16.msra.mxu0 %v59
  %73 = vmatpush.bf16.msra.mxu0 %v58
  %74 = vmatpush.bf16.msra.mxu0 %v57
  %75 = vmatpush.bf16.msra.mxu0 %v56
  %76 = vmatmul.bf16.gmra.mxu0 %v66
  %v77 = vpop.f32.mrf.mxu0
  %v78 = vadd.f32 %v38, %v77
  %v79 = vpop.f32.mrf.mxu0
  %80 = vdwg.mxu0
  %v81 = vmax.f32 %v78, 0.0
  %v82 = vld [vmem:[#allocation2] sm:$0xff]
  %v83 = vpack.c.bf16 %v81, %v81
  %v84 = vld [vmem:[%s3] sm:$0xf]
  %v85 = vld [vmem:[%s3 + $0x4] sm:$0xf]
  %v86 = vld [vmem:[%s3 + $0x8] sm:$0xf]
  %v87 = vld [vmem:[%s3 + $0xc] sm:$0xf]
  %v88 = vld [vmem:[%s3 + $0x10] sm:$0xf]
  %v89 = vld [vmem:[%s3 + $0x14] sm:$0xf]
  %v90 = vld [vmem:[%s3 + $0x18] sm:$0xf]
  %v91 = vld [vmem:[%s3 + $0x1c] sm:$0xf]
  %v92 = vld [vmem:[%s3 + $0x20] sm:$0xf]
  %v93 = vld [vmem:[%s3 + $0x24] sm:$0xf]
  %v94 = vld [vmem:[%s3 + $0x28] sm:$0xf]
  %v95 = vld [vmem:[%s3 + $0x2c] sm:$0xf]
  %v96 = vld [vmem:[%s3 + $0x30] sm:$0xf]
  %v97 = vld [vmem:[%s3 + $0x34] sm:$0xf]
  %v98 = vld [vmem:[%s3 + $0x38] sm:$0xf]
  %v99 = vld [vmem:[%s3 + $0x3c] sm:$0xf]
  %v116 = vunpack.c.l.b16 %v84
  %v117 = vunpack.c.l.b16 %v85
  %v118 = vunpack.c.l.b16 %v86
  %v119 = vunpack.c.l.b16 %v87
  %v120 = vunpack.c.l.b16 %v88
  %v121 = vunpack.c.l.b16 %v89
  %v122 = vunpack.c.l.b16 %v90
  %v123 = vunpack.c.l.b16 %v91
  %v124 = vunpack.c.l.b16 %v92
  %v125 = vunpack.c.l.b16 %v93
  %v126 = vunpack.c.l.b16 %v94
  %v127 = vunpack.c.l.b16 %v95
  %v128 = vunpack.c.l.b16 %v96
  %v129 = vunpack.c.l.b16 %v97
  %v130 = vunpack.c.l.b16 %v98
  %v131 = vunpack.c.l.b16 %v99
  %v132 = vpack.c.b16 %v117, %v116
  %v133 = vpack.c.b16 %v119, %v118
  %v134 = vpack.c.b16 %v121, %v120
  %v135 = vpack.c.b16 %v123, %v122
  %v136 = vpack.c.b16 %v125, %v124
  %v137 = vpack.c.b16 %v127, %v126
  %v138 = vpack.c.b16 %v129, %v128
  %v139 = vpack.c.b16 %v131, %v130
  %148 = vmatpush.bf16.msra.mxu0 %v139
  %149 = vmatpush.bf16.msra.mxu0 %v138
  %150 = vmatpush.bf16.msra.mxu0 %v137
  %151 = vmatpush.bf16.msra.mxu0 %v136
  %152 = vmatpush.bf16.msra.mxu0 %v135
  %153 = vmatpush.bf16.msra.mxu0 %v134
  %154 = vmatpush.bf16.msra.mxu0 %v133
  %155 = vmatpush.bf16.msra.mxu0 %v132
  %156 = vmatmul.bf16.gmra.mxu0 %v83
  %v157 = vpop.f32.mrf.mxu0
  %v158 = vadd.f32 0.0, %v157
  %v159 = vpop.f32.mrf.mxu0
  %160 = vdwg.mxu0
  %v161 = vadd.f32 %v82, %v158
  %162 = vst.msk [vmem:[#allocation2] sm:$0xff] %vm64, %v161
  // Predicated region
  $region26: #{hierarchical_interview_scorer.43} parent=0 // pred_check
    %p163 = pneg %p21
  $region27: #{hierarchical_interview_scorer.43} parent=0 // pred_check_branch
    %165 = sbr.rel (%p163) target = $region29
  $region28: #{hierarchical_interview_scorer.43} parent=0 // pred_region
    %v166 = vld [vmem:[#allocation2] sm:$0xff]
    %v167 = vld [vmem:[%s4] sm:$0x1]
    %v169 = vperm.slane %v167, 0
    %v171 = vadd.f32 %v166, %v169
    %v172 = vpack.c.bf16 %v171, %v171
    %vm173 = vcmask 519168
    %174 = vst.msk [vmem:[%s5] sm:$0xf] %vm173, %v172
  $region29: #{hierarchical_interview_scorer.43} parent=0 // pred_fallthru
    _
  // Predicated region
  $region30: #{hierarchical_interview_scorer.43} parent=0 // pred_check
    _
  $region31: #{hierarchical_interview_scorer.43} parent=0 // pred_check_branch
    %176 = sbr.rel (0) target = $region33
  $region32: #{hierarchical_interview_scorer.43} parent=0 // pred_region
    _
  $region33: #{hierarchical_interview_scorer.43} parent=0 // pred_fallthru
    _
  // Predicated region
  $region34: #{hierarchical_interview_scorer.43} parent=0 // pred_check
    _
  $region35: #{hierarchical_interview_scorer.43} parent=0 // pred_check_branch
    %178 = sbr.rel (0) target = $region37
  $region36: #{hierarchical_interview_scorer.43} parent=0 // pred_region
    _
  $region37: #{hierarchical_interview_scorer.43} parent=0 // pred_fallthru
    _

// kernel: hierarchical_interview_scorer.51
$region0: #{hierarchical_interview_scorer.51}
  #allocation0 [shape = 'u32[]', space=smem, size = 0x4, offset = 0x4, fixed_abs, tag = 'smem constant byte address 0x4 - core index']
  #allocation1 [shape = 'u32[72,128]{1,0:T(1,128)}', space=vmem, size = 0x9000, scoped, tag = 'internal scratch']
  #allocation2 [shape = 'f32[2,32]{1,0:T(2,128)}', space=vmem, size = 0x400, scoped, tag = 'scratch operand']
  %s0 = inlined_call_operand.vmem [shape: f32[2,64], index: 0, kind: input, shape index: {}]
  %s1 = inlined_call_operand.vmem [shape: bf16[64,32], index: 1, kind: input, shape index: {}]
  %s2 = inlined_call_operand.vmem [shape: f32[1,32], index: 2, kind: input, shape index: {}]
  %s3 = inlined_call_operand.vmem [shape: bf16[2,32], index: 3, kind: output, shape index: {}]
  %s4 = sld [smem:[#allocation0]]
  $region30: #{hierarchical_interview_scorer.51} parent=0
    _
  %s6 = ssub.s32 1, %s4
  %s7 = scalar_select 0, %s6, %s4
  // Predicated region
  $region2: #{hierarchical_interview_scorer.51} parent=0 // pred_check
    _
  $region3: #{hierarchical_interview_scorer.51} parent=0 // pred_check_branch
    %9 = sbr.rel (0) target = $region5
  $region4: #{hierarchical_interview_scorer.51} parent=0 // pred_region
    _
  $region5: #{hierarchical_interview_scorer.51} parent=0 // pred_fallthru
    _
  // Predicated region
  $region6: #{hierarchical_interview_scorer.51} parent=0 // pred_check
    _
  $region7: #{hierarchical_interview_scorer.51} parent=0 // pred_check_branch
    %11 = sbr.rel (0) target = $region9
  $region8: #{hierarchical_interview_scorer.51} parent=0 // pred_region
    _
  $region9: #{hierarchical_interview_scorer.51} parent=0 // pred_fallthru
    _
  // Predicated region
  $region10: #{hierarchical_interview_scorer.51} parent=0 // pred_check
    _
  $region11: #{hierarchical_interview_scorer.51} parent=0 // pred_check_branch
    %13 = sbr.rel (0) target = $region13
  $region12: #{hierarchical_interview_scorer.51} parent=0 // pred_region
    _
  $region13: #{hierarchical_interview_scorer.51} parent=0 // pred_fallthru
    _
  %p15 = scmp.eq.s32.totalorder 0, 0
  // Predicated region
  $region14: #{hierarchical_interview_scorer.51} parent=0 // pred_check
    %p16 = pneg %p15
  $region15: #{hierarchical_interview_scorer.51} parent=0 // pred_check_branch
    %18 = sbr.rel (%p16) target = $region17
  $region16: #{hierarchical_interview_scorer.51} parent=0 // pred_region
    %vm19 = vcmask 254976
    %20 = vst.msk [vmem:[#allocation2] sm:$0x3] %vm19, 0.0
  $region17: #{hierarchical_interview_scorer.51} parent=0 // pred_fallthru
    _
  %v21 = vld [vmem:[#allocation2] sm:$0x3]
  %v22 = vld [vmem:[%s0] sm:$0x3]
  %v23 = vpack.c.bf16 %v22, %v22
  %v24 = vld [vmem:[%s1] sm:$0xf]
  %v25 = vld [vmem:[%s1 + $0x4] sm:$0xf]
  %v26 = vld [vmem:[%s1 + $0x8] sm:$0xf]
  %v27 = vld [vmem:[%s1 + $0xc] sm:$0xf]
  %v28 = vld [vmem:[%s1 + $0x10] sm:$0xf]
  %v29 = vld [vmem:[%s1 + $0x14] sm:$0xf]
  %v30 = vld [vmem:[%s1 + $0x18] sm:$0xf]
  %v31 = vld [vmem:[%s1 + $0x1c] sm:$0xf]
  %v40 = vunpack.c.l.b16 %v24
  %v41 = vunpack.c.l.b16 %v25
  %v42 = vunpack.c.l.b16 %v26
  %v43 = vunpack.c.l.b16 %v27
  %v44 = vunpack.c.l.b16 %v28
  %v45 = vunpack.c.l.b16 %v29
  %v46 = vunpack.c.l.b16 %v30
  %v47 = vunpack.c.l.b16 %v31
  %v48 = vpack.c.b16 %v41, %v40
  %v49 = vpack.c.b16 %v43, %v42
  %v50 = vpack.c.b16 %v45, %v44
  %v51 = vpack.c.b16 %v47, %v46
  %vm56 = vcmask 523264
  %v58 = vsel %vm56, %v23, 0
  %60 = vmatpush.bf16.msra.mxu0 0
  %61 = vmatpush.bf16.msra.mxu0 0
  %62 = vmatpush.bf16.msra.mxu0 0
  %63 = vmatpush.bf16.msra.mxu0 0
  %64 = vmatpush.bf16.msra.mxu0 %v51
  %65 = vmatpush.bf16.msra.mxu0 %v50
  %66 = vmatpush.bf16.msra.mxu0 %v49
  %67 = vmatpush.bf16.msra.mxu0 %v48
  %68 = vmatmul.bf16.gmra.mxu0 %v58
  %v69 = vpop.f32.mrf.mxu0
  %v70 = vadd.f32 0.0, %v69
  %v71 = vpop.f32.mrf.mxu0
  %72 = vdwg.mxu0
  %v73 = vadd.f32 %v21, %v70
  %vm74 = vcmask 254976
  %75 = vst.msk [vmem:[#allocation2] sm:$0x3] %vm74, %v73
  // Predicated region
  $region18: #{hierarchical_interview_scorer.51} parent=0 // pred_check
    %p76 = pneg %p15
  $region19: #{hierarchical_interview_scorer.51} parent=0 // pred_check_branch
    %78 = sbr.rel (%p76) target = $region21
  $region20: #{hierarchical_interview_scorer.51} parent=0 // pred_region
    %v79 = vld [vmem:[#allocation2] sm:$0x3]
    %v80 = vld [vmem:[%s2] sm:$0x1]
    %v82 = vperm.slane %v80, 0
    %v84 = vadd.f32 %v79, %v82
    %v85 = vmax.f32 %v84, 0.0
    %v86 = vpack.c.bf16 %v85, %v85
    %vm87 = vcmask 253952
    %88 = vst.msk [vmem:[%s3] sm:$0x1] %vm87, %v86
  $region21: #{hierarchical_interview_scorer.51} parent=0 // pred_fallthru
    _
  // Predicated region
  $region22: #{hierarchical_interview_scorer.51} parent=0 // pred_check
    _
  $region23: #{hierarchical_interview_scorer.51} parent=0 // pred_check_branch
    %90 = sbr.rel (0) target = $region25
  $region24: #{hierarchical_interview_scorer.51} parent=0 // pred_region
    _
  $region25: #{hierarchical_interview_scorer.51} parent=0 // pred_fallthru
    _
  // Predicated region
  $region26: #{hierarchical_interview_scorer.51} parent=0 // pred_check
    _
  $region27: #{hierarchical_interview_scorer.51} parent=0 // pred_check_branch
    %92 = sbr.rel (0) target = $region29
  $region28: #{hierarchical_interview_scorer.51} parent=0 // pred_region
    _
  $region29: #{hierarchical_interview_scorer.51} parent=0 // pred_fallthru
    _

</llo_original>
